<compile_context>
chip_gen: v6e
topology: v6e:2x2x1
jax: 0.10.0
libtpu: 0.0.40
codegen_flags: <defaults>
</compile_context>

<pallas_src>
import functools
import math

import jax
import jax.numpy as jnp
import numpy as np
from jax.experimental import pallas as pl
from jax.experimental.pallas import tpu as pltpu  # noqa: F401  (TPU backend)

MXU_DTYPE = jnp.bfloat16   # matmul operand dtype; accumulation is always f32
NEG_BIG = -1e9             # finite additive mask (never -inf -> no inf-inf NaN)


# ----------------------------------------------------------------------------
# The single fused Pallas kernel
# ----------------------------------------------------------------------------
def _fused_forward_kernel(
    # data / graph structure
    x_ref, res_ref,
    asp1_ref, asp2_ref, asp3_ref,          # block-diag spatial adjacency / stage
    mask1_ref, mask2_ref, mask3_ref,       # block-diag attention masks / stage
    atime_ref,                             # dense temporal adjacency (stage 1)
    # encoder
    enc_w_ref, enc_b_ref,
    # stage 1..3 stacked weights: GCN (4,H,H)/(4,1,H), attn (4,4,H,H)/(4,4,1,H)
    g1w_ref, g1b_ref, a1w_ref, a1b_ref,
    g2w_ref, g2b_ref, a2w_ref, a2b_ref,
    g3w_ref, g3b_ref, a3w_ref, a3b_ref,
    # diff-pool params
    p1wa_ref, p1ba_ref, p1we_ref, p1be_ref,
    p2wa_ref, p2ba_ref, p2we_ref, p2be_ref,
    # readout
    rw_ref, rb_ref,
    # output
    out_ref,
    *, attn_scale):
    """Entire GCNTemporalAttentionPooled forward as one Pallas program."""

    def mm(a, b):
        # MXU matmul: bf16 operands, f32 accumulation.
        return jnp.dot(a.astype(MXU_DTYPE), b.astype(MXU_DTYPE),
                       preferred_element_type=jnp.float32)

    def leaky_relu(v):
        return jnp.where(v > 0, v, 0.01 * v)

    def softmax_rows(s):
        s = s - jnp.max(s, axis=-1, keepdims=True)
        s = jnp.minimum(s, 0.0)            # exp args <= 0 (also in lane padding)
        e = jnp.exp(s)
        return e / jnp.sum(e, axis=-1, keepdims=True)

    def gcn_stack(h, a, w_ref, b_ref):
        # DenseBlock: 4 x (leaky_relu(A_blockdiag @ H @ W + b) + H)
        for i in range(w_ref.shape[0]):
            ah = mm(a, h)
            h = h + leaky_relu(mm(ah, w_ref[i]) + b_ref[i])
        return h

    def attention_stack(h, bias, w_ref, b_ref):
        # AttentionStack: 4 x single-head self-attention over time per spatial
        # node, batched over all nodes via a block-diagonal additive mask.
        for i in range(w_ref.shape[0]):
            q = mm(h, w_ref[i, 0]) + b_ref[i, 0]
            k = mm(h, w_ref[i, 1]) + b_ref[i, 1]
            v = mm(h, w_ref[i, 2]) + b_ref[i, 2]
            p = softmax_rows(mm(q, k.T) * attn_scale + bias)
            h = h + mm(mm(p, v), w_ref[i, 3]) + b_ref[i, 3]
        return h

    def diff_pool(x, a, wa, ba, we, be):
        # Standard dense DiffPool:
        #   S = softmax((A X) Wa + ba), Z = leaky_relu((A X) We + be)
        #   X' = S^T Z,  A' = S^T A S      (all fused, nothing leaves VMEM)
        ax = mm(a, x)
        s = softmax_rows(mm(ax, wa) + ba)
        z = leaky_relu(mm(ax, we) + be)
        st = s.T
        return mm(st, z), mm(st, mm(a, s))

    # encoder
    h = mm(x_ref[...], enc_w_ref[...]) + enc_b_ref[...]

    # stage 1: space -> time -> temporal diff-pool (arrow-of-time adjacency)
    h = gcn_stack(h, asp1_ref[...], g1w_ref, g1b_ref)
    h = attention_stack(h, mask1_ref[...], a1w_ref, a1b_ref)
    h, a_pool = diff_pool(h, atime_ref[...],
                          p1wa_ref[...], p1ba_ref[...],
                          p1we_ref[...], p1be_ref[...])

    # stage 2: space -> time -> diff-pool over the pooled adjacency
    h = gcn_stack(h, asp2_ref[...], g2w_ref, g2b_ref)
    h = attention_stack(h, mask2_ref[...], a2w_ref, a2b_ref)
    h, a_pool = diff_pool(h, a_pool,
                          p2wa_ref[...], p2ba_ref[...],
                          p2we_ref[...], p2be_ref[...])

    # stage 3: space -> time -> readout (+ last-input-timestep residual)
    h = gcn_stack(h, asp3_ref[...], g3w_ref, g3b_ref)
    h = attention_stack(h, mask3_ref[...], a3w_ref, a3b_ref)
    out = mm(h, rw_ref[...]) + rb_ref[...] + res_ref[...]
    out_ref[...] = out.astype(out_ref.dtype)


# ----------------------------------------------------------------------------
# Host-side graph / mask construction (plain JAX / numpy glue)
# ----------------------------------------------------------------------------
def build_spatial_adjacency(edge_index, edge_weight, n_nodes):
    a = jnp.zeros((n_nodes, n_nodes), jnp.float32)
    a = a.at[edge_index[0], edge_index[1]].add(edge_weight)
    a = a + jnp.eye(n_nodes, dtype=jnp.float32)
    d = jnp.sum(a, axis=1)
    d_inv = 1.0 / jnp.sqrt(jnp.maximum(d, 1e-6))
    return a * d_inv[:, None] * d_inv[None, :]


def build_temporal_adjacency(n_nodes, window):
    # "arrow of time": self loop on the first timestep plus node_t -> node_{t+1}
    # edges, with temporal-node index = t * n_nodes + spatial_node (matches the
    # reference build_temporal_adjacency).
    a = np.zeros((window * n_nodes, window * n_nodes), np.float32)
    for i in range(n_nodes):
        a[i, i] = 1.0
        for t in range(window - 1):
            a[t * n_nodes + i, (t + 1) * n_nodes + i] = 1.0
    return jnp.asarray(a)


def build_attention_bias(n_nodes, n_steps):
    # additive mask so temporal-node (t, n) attends only to (s, n), same n.
    tn = n_nodes * n_steps
    ids = np.arange(tn) % n_nodes
    same = ids[:, None] == ids[None, :]
    return jnp.asarray(np.where(same, 0.0, NEG_BIG).astype(np.float32))


# ----------------------------------------------------------------------------
# Parameter init (PyTorch-nn.Linear-style uniform init)
# ----------------------------------------------------------------------------
def init_params(key, input_size, hidden, out_features, n_nodes, window):
    t1 = math.ceil(window * 0.5)
    t2 = math.ceil(t1 * 0.4)
    (k_enc, k_t1, k_t2, k_t3, k_s1, k_s2, k_s3,
     k_p1, k_p2, k_r) = jax.random.split(key, 10)

    def linear_init(k, fan_in, fan_out):
        kw, kb = jax.random.split(k)
        bound = 1.0 / math.sqrt(fan_in)
        w = jax.random.uniform(kw, (fan_in, fan_out), jnp.float32, -bound, bound)
        b = jax.random.uniform(kb, (1, fan_out), jnp.float32, -bound, bound)
        return w, b

    def attn_stack_init(k, n_blocks=4):
        ks = jax.random.split(k, n_blocks * 4)
        ws, bs = [], []
        for i in range(n_blocks):
            w_row, b_row = [], []
            for j in range(4):                      # q, k, v, o projections
                w, b = linear_init(ks[i * 4 + j], hidden, hidden)
                w_row.append(w)
                b_row.append(b)
            ws.append(jnp.stack(w_row))
            bs.append(jnp.stack(b_row))
        return {"w": jnp.stack(ws), "b": jnp.stack(bs)}   # (4,4,H,H), (4,4,1,H)

    def gcn_stack_init(k, n_blocks=4):
        ks = jax.random.split(k, n_blocks)
        ws, bs = zip(*(linear_init(kk, hidden, hidden) for kk in ks))
        return {"w": jnp.stack(ws), "b": jnp.stack(bs)}   # (4,H,H), (4,1,H)

    def pool_init(k, n_clusters):
        ka, ke = jax.random.split(k)
        wa, ba = linear_init(ka, hidden, n_clusters)
        we, be = linear_init(ke, hidden, hidden)
        return {"wa": wa, "ba": ba, "we": we, "be": be}

    enc_w, enc_b = linear_init(k_enc, input_size, hidden)
    read_w, read_b = linear_init(k_r, hidden, out_features)
    return {
        "enc_w": enc_w, "enc_b": enc_b,
        "time_1": attn_stack_init(k_t1),
        "time_2": attn_stack_init(k_t2),
        "time_3": attn_stack_init(k_t3),
        "space_1": gcn_stack_init(k_s1),
        "space_2": gcn_stack_init(k_s2),
        "space_3": gcn_stack_init(k_s3),
        "pool_1": pool_init(k_p1, t1 * n_nodes),
        "pool_2": pool_init(k_p2, t2 * n_nodes),
        "read_w": read_w, "read_b": read_b,
    }


# ----------------------------------------------------------------------------
# Forward
# ----------------------------------------------------------------------------
@functools.partial(jax.jit, static_argnames=("n_nodes", "window"))
def forward(x, edge_index, edge_weight, params, *, n_nodes, window):
    """x: (1, window, n_nodes, input_size) -> (1, t2, n_nodes, out_features)"""
    B, T, N, Fin = x.shape
    assert B == 1 and T == window and N == n_nodes
    H = params["enc_w"].shape[1]
    Fout = params["read_w"].shape[1]
    # the reference's final `x + x_orig[:, -1]` broadcast requires this:
    assert Fout == Fin, "final residual requires out_features == input_size"

    t1 = math.ceil(window * 0.5)
    t2 = math.ceil(t1 * 0.4)

    adj_sp = build_spatial_adjacency(edge_index, edge_weight, N)
    # block-diagonal spatial propagation matrices (one spatial GCN / timestep)
    a_sp1 = jnp.kron(jnp.eye(T, dtype=jnp.float32), adj_sp)
    a_sp2 = jnp.kron(jnp.eye(t1, dtype=jnp.float32), adj_sp)
    a_sp3 = jnp.kron(jnp.eye(t2, dtype=jnp.float32), adj_sp)
    # block-diagonal temporal-attention masks (per-node attention over time)
    m1 = build_attention_bias(N, T)
    m2 = build_attention_bias(N, t1)
    m3 = build_attention_bias(N, t2)
    a_time = build_temporal_adjacency(N, T)

    x_flat = x.reshape(T * N, Fin)                    # 'b t n f -> (t n) f'
    res = jnp.tile(x[0, -1], (t2, 1))                 # last input step, per row

    out_flat = pl.pallas_call(
        functools.partial(_fused_forward_kernel,
                          attn_scale=1.0 / math.sqrt(H)),
        out_shape=jax.ShapeDtypeStruct((t2 * N, Fout), jnp.float32),
        # no grid / no BlockSpecs: every operand is mapped whole into VMEM
        # (total footprint < 1 MB, fits all of v5e/v6e/v7x comfortably).
    )(
        x_flat, res,
        a_sp1, a_sp2, a_sp3,
        m1, m2, m3,
        a_time,
        params["enc_w"], params["enc_b"],
        params["space_1"]["w"], params["space_1"]["b"],
        params["time_1"]["w"], params["time_1"]["b"],
        params["space_2"]["w"], params["space_2"]["b"],
        params["time_2"]["w"], params["time_2"]["b"],
        params["space_3"]["w"], params["space_3"]["b"],
        params["time_3"]["w"], params["time_3"]["b"],
        params["pool_1"]["wa"], params["pool_1"]["ba"],
        params["pool_1"]["we"], params["pool_1"]["be"],
        params["pool_2"]["wa"], params["pool_2"]["ba"],
        params["pool_2"]["we"], params["pool_2"]["be"],
        params["read_w"], params["read_b"],
    )
    return out_flat.reshape(1, t2, N, Fout)


# ----------------------------------------------------------------------------
if __name__ == "__main__":
    # Small, self-consistent demo shapes (out_features == input_size so the
    # final residual broadcast matches the reference semantics).
    N_NODES = 8
    WINDOW = 5
    INPUT_SIZE = 8
    HIDDEN = 32
    OUT_FEATURES = 8

    key = jax.random.PRNGKey(0)
    k_x, k_w, k_p = jax.random.split(key, 3)

    x = jax.random.normal(k_x, (1, WINDOW, N_NODES, INPUT_SIZE), jnp.float32)

    # deterministic ring graph for the spatial edges
    src = np.arange(N_NODES)
    dst = (src + 1) % N_NODES
    edge_index = jnp.asarray(
        np.stack([np.concatenate([src, dst]), np.concatenate([dst, src])]),
        dtype=jnp.int32)
    edge_weight = jax.random.uniform(k_w, (edge_index.shape[1],), jnp.float32,
                                     minval=0.5, maxval=1.0)

    params = init_params(k_p, INPUT_SIZE, HIDDEN, OUT_FEATURES,
                         N_NODES, WINDOW)
    t1 = math.ceil(WINDOW * 0.5)
    t2 = math.ceil(t1 * 0.4)

    out = forward(x, edge_index, edge_weight, params,
                  n_nodes=N_NODES, window=WINDOW)
    out = jax.block_until_ready(out)

    assert out.shape == (1, t2, N_NODES, OUT_FEATURES), out.shape
    assert bool(jnp.all(jnp.isfinite(out)))
    print("KERNEL_OK")
</pallas_src>

<mosaic_0001>
module attributes {stable_mosaic.version = 11 : i64} {
  func.func private @main(%arg0: i32) attributes {dimension_semantics = [#tpu.dimension_semantics<core_parallel>], iteration_bounds = array<i64: 2>, tpu.core_type = #tpu.core_type<sc_scalar_subcore>, window_params = []} {
    return
  }
}

module attributes {stable_mosaic.version = 11 : i64} {
  func.func private @main(%arg0: i32) attributes {dimension_semantics = [#tpu.dimension_semantics<core_parallel>], iteration_bounds = array<i64: 2>, tpu.core_type = #tpu.core_type<sc_scalar_subcore>, window_params = []} {
    return
  }
}

module attributes {stable_mosaic.version = 11 : i64} {
  func.func @_fused_forward_kernel(%arg0: memref<40x8xf32, #tpu.memory_space<vmem>>, %arg1: memref<16x8xf32, #tpu.memory_space<vmem>>, %arg2: memref<40x40xf32, #tpu.memory_space<vmem>>, %arg3: memref<24x24xf32, #tpu.memory_space<vmem>>, %arg4: memref<16x16xf32, #tpu.memory_space<vmem>>, %arg5: memref<40x40xf32, #tpu.memory_space<vmem>>, %arg6: memref<24x24xf32, #tpu.memory_space<vmem>>, %arg7: memref<16x16xf32, #tpu.memory_space<vmem>>, %arg8: memref<40x40xf32, #tpu.memory_space<vmem>>, %arg9: memref<8x32xf32, #tpu.memory_space<vmem>>, %arg10: memref<1x32xf32, #tpu.memory_space<vmem>>, %arg11: memref<4x32x32xf32, #tpu.memory_space<vmem>>, %arg12: memref<4x1x32xf32, #tpu.memory_space<vmem>>, %arg13: memref<4x4x32x32xf32, #tpu.memory_space<vmem>>, %arg14: memref<4x4x1x32xf32, #tpu.memory_space<vmem>>, %arg15: memref<4x32x32xf32, #tpu.memory_space<vmem>>, %arg16: memref<4x1x32xf32, #tpu.memory_space<vmem>>, %arg17: memref<4x4x32x32xf32, #tpu.memory_space<vmem>>, %arg18: memref<4x4x1x32xf32, #tpu.memory_space<vmem>>, %arg19: memref<4x32x32xf32, #tpu.memory_space<vmem>>, %arg20: memref<4x1x32xf32, #tpu.memory_space<vmem>>, %arg21: memref<4x4x32x32xf32, #tpu.memory_space<vmem>>, %arg22: memref<4x4x1x32xf32, #tpu.memory_space<vmem>>, %arg23: memref<32x24xf32, #tpu.memory_space<vmem>>, %arg24: memref<1x24xf32, #tpu.memory_space<vmem>>, %arg25: memref<32x32xf32, #tpu.memory_space<vmem>>, %arg26: memref<1x32xf32, #tpu.memory_space<vmem>>, %arg27: memref<32x16xf32, #tpu.memory_space<vmem>>, %arg28: memref<1x16xf32, #tpu.memory_space<vmem>>, %arg29: memref<32x32xf32, #tpu.memory_space<vmem>>, %arg30: memref<1x32xf32, #tpu.memory_space<vmem>>, %arg31: memref<32x8xf32, #tpu.memory_space<vmem>>, %arg32: memref<1x8xf32, #tpu.memory_space<vmem>>, %arg33: memref<16x8xf32, #tpu.memory_space<vmem>>) attributes {dimension_semantics = [], scalar_prefetch = 0 : i64, scratch_operands = 0 : i64, tpu.core_type = #tpu.core_type<tc>} {
    %c0 = arith.constant 0 : index
    %c0_0 = arith.constant 0 : index
    %0 = vector.load %arg0[%c0, %c0_0] : memref<40x8xf32, #tpu.memory_space<vmem>>, vector<40x8xf32>
    %c0_1 = arith.constant 0 : index
    %c0_2 = arith.constant 0 : index
    %1 = vector.load %arg9[%c0_1, %c0_2] : memref<8x32xf32, #tpu.memory_space<vmem>>, vector<8x32xf32>
    %2 = arith.truncf %0 : vector<40x8xf32> to vector<40x8xbf16>
    %3 = arith.truncf %1 : vector<8x32xf32> to vector<8x32xbf16>
    %cst = arith.constant dense<0.000000e+00> : vector<40x32xf32>
    %4 = tpu.matmul %2, %3, %cst {dimension_numbers = #tpu.dot_dimension_numbers<[1], [0], [0], [1], [0, 0, 1, 1], [], []>} : vector<40x8xbf16>, vector<8x32xbf16>, vector<40x32xf32> -> vector<40x32xf32>
    %c0_3 = arith.constant 0 : index
    %c0_4 = arith.constant 0 : index
    %5 = vector.load %arg10[%c0_3, %c0_4] : memref<1x32xf32, #tpu.memory_space<vmem>>, vector<1x32xf32>
    %6 = vector.broadcast %5 : vector<1x32xf32> to vector<40x32xf32>
    %7 = arith.addf %4, %6 : vector<40x32xf32>
    %c0_5 = arith.constant 0 : index
    %c0_6 = arith.constant 0 : index
    %8 = vector.load %arg2[%c0_5, %c0_6] : memref<40x40xf32, #tpu.memory_space<vmem>>, vector<40x40xf32>
    %9 = arith.truncf %8 : vector<40x40xf32> to vector<40x40xbf16>
    %10 = arith.truncf %7 : vector<40x32xf32> to vector<40x32xbf16>
    %cst_7 = arith.constant dense<0.000000e+00> : vector<40x32xf32>
    %11 = tpu.matmul %9, %10, %cst_7 {dimension_numbers = #tpu.dot_dimension_numbers<[1], [0], [0], [1], [0, 0, 1, 1], [], []>} : vector<40x40xbf16>, vector<40x32xbf16>, vector<40x32xf32> -> vector<40x32xf32>
    %c0_8 = arith.constant 0 : index
    %c0_9 = arith.constant 0 : index
    %c0_10 = arith.constant 0 : index
    %12 = vector.load %arg11[%c0_8, %c0_9, %c0_10] : memref<4x32x32xf32, #tpu.memory_space<vmem>>, vector<1x32x32xf32>
    %13 = vector.shape_cast %12 : vector<1x32x32xf32> to vector<32x32xf32>
    %14 = arith.truncf %11 : vector<40x32xf32> to vector<40x32xbf16>
    %15 = arith.truncf %13 : vector<32x32xf32> to vector<32x32xbf16>
    %cst_11 = arith.constant dense<0.000000e+00> : vector<40x32xf32>
    %16 = tpu.matmul %14, %15, %cst_11 {dimension_numbers = #tpu.dot_dimension_numbers<[1], [0], [0], [1], [0, 0, 1, 1], [], []>} : vector<40x32xbf16>, vector<32x32xbf16>, vector<40x32xf32> -> vector<40x32xf32>
    %c0_12 = arith.constant 0 : index
    %c0_13 = arith.constant 0 : index
    %c0_14 = arith.constant 0 : index
    %17 = vector.load %arg12[%c0_12, %c0_13, %c0_14] : memref<4x1x32xf32, #tpu.memory_space<vmem>>, vector<1x1x32xf32>
    %18 = vector.shape_cast %17 : vector<1x1x32xf32> to vector<1x32xf32>
    %19 = vector.broadcast %18 : vector<1x32xf32> to vector<40x32xf32>
    %20 = arith.addf %16, %19 : vector<40x32xf32>
    %cst_15 = arith.constant 0.000000e+00 : f32
    %21 = vector.broadcast %cst_15 : f32 to vector<40x32xf32>
    %22 = arith.cmpf ogt, %20, %21 : vector<40x32xf32>
    %cst_16 = arith.constant 0.00999999977 : f32
    %23 = vector.broadcast %cst_16 : f32 to vector<40x32xf32>
    %24 = arith.mulf %23, %20 : vector<40x32xf32>
    %25 = arith.select %22, %20, %24 : vector<40x32xi1>, vector<40x32xf32>
    %26 = arith.addf %7, %25 : vector<40x32xf32>
    %27 = arith.truncf %8 : vector<40x40xf32> to vector<40x40xbf16>
    %28 = arith.truncf %26 : vector<40x32xf32> to vector<40x32xbf16>
    %cst_17 = arith.constant dense<0.000000e+00> : vector<40x32xf32>
    %29 = tpu.matmul %27, %28, %cst_17 {dimension_numbers = #tpu.dot_dimension_numbers<[1], [0], [0], [1], [0, 0, 1, 1], [], []>} : vector<40x40xbf16>, vector<40x32xbf16>, vector<40x32xf32> -> vector<40x32xf32>
    %c1 = arith.constant 1 : index
    %c0_18 = arith.constant 0 : index
    %c0_19 = arith.constant 0 : index
    %30 = vector.load %arg11[%c1, %c0_18, %c0_19] : memref<4x32x32xf32, #tpu.memory_space<vmem>>, vector<1x32x32xf32>
    %31 = vector.shape_cast %30 : vector<1x32x32xf32> to vector<32x32xf32>
    %32 = arith.truncf %29 : vector<40x32xf32> to vector<40x32xbf16>
    %33 = arith.truncf %31 : vector<32x32xf32> to vector<32x32xbf16>
    %cst_20 = arith.constant dense<0.000000e+00> : vector<40x32xf32>
    %34 = tpu.matmul %32, %33, %cst_20 {dimension_numbers = #tpu.dot_dimension_numbers<[1], [0], [0], [1], [0, 0, 1, 1], [], []>} : vector<40x32xbf16>, vector<32x32xbf16>, vector<40x32xf32> -> vector<40x32xf32>
    %c1_21 = arith.constant 1 : index
    %c0_22 = arith.constant 0 : index
    %c0_23 = arith.constant 0 : index
    %35 = vector.load %arg12[%c1_21, %c0_22, %c0_23] : memref<4x1x32xf32, #tpu.memory_space<vmem>>, vector<1x1x32xf32>
    %36 = vector.shape_cast %35 : vector<1x1x32xf32> to vector<1x32xf32>
    %37 = vector.broadcast %36 : vector<1x32xf32> to vector<40x32xf32>
    %38 = arith.addf %34, %37 : vector<40x32xf32>
    %cst_24 = arith.constant 0.000000e+00 : f32
    %39 = vector.broadcast %cst_24 : f32 to vector<40x32xf32>
    %40 = arith.cmpf ogt, %38, %39 : vector<40x32xf32>
    %cst_25 = arith.constant 0.00999999977 : f32
    %41 = vector.broadcast %cst_25 : f32 to vector<40x32xf32>
    %42 = arith.mulf %41, %38 : vector<40x32xf32>
    %43 = arith.select %40, %38, %42 : vector<40x32xi1>, vector<40x32xf32>
    %44 = arith.addf %26, %43 : vector<40x32xf32>
    %45 = arith.truncf %8 : vector<40x40xf32> to vector<40x40xbf16>
    %46 = arith.truncf %44 : vector<40x32xf32> to vector<40x32xbf16>
    %cst_26 = arith.constant dense<0.000000e+00> : vector<40x32xf32>
    %47 = tpu.matmul %45, %46, %cst_26 {dimension_numbers = #tpu.dot_dimension_numbers<[1], [0], [0], [1], [0, 0, 1, 1], [], []>} : vector<40x40xbf16>, vector<40x32xbf16>, vector<40x32xf32> -> vector<40x32xf32>
    %c2 = arith.constant 2 : index
    %c0_27 = arith.constant 0 : index
    %c0_28 = arith.constant 0 : index
    %48 = vector.load %arg11[%c2, %c0_27, %c0_28] : memref<4x32x32xf32, #tpu.memory_space<vmem>>, vector<1x32x32xf32>
    %49 = vector.shape_cast %48 : vector<1x32x32xf32> to vector<32x32xf32>
    %50 = arith.truncf %47 : vector<40x32xf32> to vector<40x32xbf16>
    %51 = arith.truncf %49 : vector<32x32xf32> to vector<32x32xbf16>
    %cst_29 = arith.constant dense<0.000000e+00> : vector<40x32xf32>
    %52 = tpu.matmul %50, %51, %cst_29 {dimension_numbers = #tpu.dot_dimension_numbers<[1], [0], [0], [1], [0, 0, 1, 1], [], []>} : vector<40x32xbf16>, vector<32x32xbf16>, vector<40x32xf32> -> vector<40x32xf32>
    %c2_30 = arith.constant 2 : index
    %c0_31 = arith.constant 0 : index
    %c0_32 = arith.constant 0 : index
    %53 = vector.load %arg12[%c2_30, %c0_31, %c0_32] : memref<4x1x32xf32, #tpu.memory_space<vmem>>, vector<1x1x32xf32>
    %54 = vector.shape_cast %53 : vector<1x1x32xf32> to vector<1x32xf32>
    %55 = vector.broadcast %54 : vector<1x32xf32> to vector<40x32xf32>
    %56 = arith.addf %52, %55 : vector<40x32xf32>
    %cst_33 = arith.constant 0.000000e+00 : f32
    %57 = vector.broadcast %cst_33 : f32 to vector<40x32xf32>
    %58 = arith.cmpf ogt, %56, %57 : vector<40x32xf32>
    %cst_34 = arith.constant 0.00999999977 : f32
    %59 = vector.broadcast %cst_34 : f32 to vector<40x32xf32>
    %60 = arith.mulf %59, %56 : vector<40x32xf32>
    %61 = arith.select %58, %56, %60 : vector<40x32xi1>, vector<40x32xf32>
    %62 = arith.addf %44, %61 : vector<40x32xf32>
    %63 = arith.truncf %8 : vector<40x40xf32> to vector<40x40xbf16>
    %64 = arith.truncf %62 : vector<40x32xf32> to vector<40x32xbf16>
    %cst_35 = arith.constant dense<0.000000e+00> : vector<40x32xf32>
    %65 = tpu.matmul %63, %64, %cst_35 {dimension_numbers = #tpu.dot_dimension_numbers<[1], [0], [0], [1], [0, 0, 1, 1], [], []>} : vector<40x40xbf16>, vector<40x32xbf16>, vector<40x32xf32> -> vector<40x32xf32>
    %c3 = arith.constant 3 : index
    %c0_36 = arith.constant 0 : index
    %c0_37 = arith.constant 0 : index
    %66 = vector.load %arg11[%c3, %c0_36, %c0_37] : memref<4x32x32xf32, #tpu.memory_space<vmem>>, vector<1x32x32xf32>
    %67 = vector.shape_cast %66 : vector<1x32x32xf32> to vector<32x32xf32>
    %68 = arith.truncf %65 : vector<40x32xf32> to vector<40x32xbf16>
    %69 = arith.truncf %67 : vector<32x32xf32> to vector<32x32xbf16>
    %cst_38 = arith.constant dense<0.000000e+00> : vector<40x32xf32>
    %70 = tpu.matmul %68, %69, %cst_38 {dimension_numbers = #tpu.dot_dimension_numbers<[1], [0], [0], [1], [0, 0, 1, 1], [], []>} : vector<40x32xbf16>, vector<32x32xbf16>, vector<40x32xf32> -> vector<40x32xf32>
    %c3_39 = arith.constant 3 : index
    %c0_40 = arith.constant 0 : index
    %c0_41 = arith.constant 0 : index
    %71 = vector.load %arg12[%c3_39, %c0_40, %c0_41] : memref<4x1x32xf32, #tpu.memory_space<vmem>>, vector<1x1x32xf32>
    %72 = vector.shape_cast %71 : vector<1x1x32xf32> to vector<1x32xf32>
    %73 = vector.broadcast %72 : vector<1x32xf32> to vector<40x32xf32>
    %74 = arith.addf %70, %73 : vector<40x32xf32>
    %cst_42 = arith.constant 0.000000e+00 : f32
    %75 = vector.broadcast %cst_42 : f32 to vector<40x32xf32>
    %76 = arith.cmpf ogt, %74, %75 : vector<40x32xf32>
    %cst_43 = arith.constant 0.00999999977 : f32
    %77 = vector.broadcast %cst_43 : f32 to vector<40x32xf32>
    %78 = arith.mulf %77, %74 : vector<40x32xf32>
    %79 = arith.select %76, %74, %78 : vector<40x32xi1>, vector<40x32xf32>
    %80 = arith.addf %62, %79 : vector<40x32xf32>
    %c0_44 = arith.constant 0 : index
    %c0_45 = arith.constant 0 : index
    %81 = vector.load %arg5[%c0_44, %c0_45] : memref<40x40xf32, #tpu.memory_space<vmem>>, vector<40x40xf32>
    %c0_46 = arith.constant 0 : index
    %c0_47 = arith.constant 0 : index
    %c0_48 = arith.constant 0 : index
    %c0_49 = arith.constant 0 : index
    %82 = vector.load %arg13[%c0_46, %c0_47, %c0_48, %c0_49] : memref<4x4x32x32xf32, #tpu.memory_space<vmem>>, vector<1x1x32x32xf32>
    %83 = vector.shape_cast %82 : vector<1x1x32x32xf32> to vector<32x32xf32>
    %84 = arith.truncf %80 : vector<40x32xf32> to vector<40x32xbf16>
    %85 = arith.truncf %83 : vector<32x32xf32> to vector<32x32xbf16>
    %cst_50 = arith.constant dense<0.000000e+00> : vector<40x32xf32>
    %86 = tpu.matmul %84, %85, %cst_50 {dimension_numbers = #tpu.dot_dimension_numbers<[1], [0], [0], [1], [0, 0, 1, 1], [], []>} : vector<40x32xbf16>, vector<32x32xbf16>, vector<40x32xf32> -> vector<40x32xf32>
    %c0_51 = arith.constant 0 : index
    %c0_52 = arith.constant 0 : index
    %c0_53 = arith.constant 0 : index
    %c0_54 = arith.constant 0 : index
    %87 = vector.load %arg14[%c0_51, %c0_52, %c0_53, %c0_54] : memref<4x4x1x32xf32, #tpu.memory_space<vmem>>, vector<1x1x1x32xf32>
    %88 = vector.shape_cast %87 : vector<1x1x1x32xf32> to vector<1x32xf32>
    %89 = vector.broadcast %88 : vector<1x32xf32> to vector<40x32xf32>
    %90 = arith.addf %86, %89 : vector<40x32xf32>
    %c0_55 = arith.constant 0 : index
    %c1_56 = arith.constant 1 : index
    %c0_57 = arith.constant 0 : index
    %c0_58 = arith.constant 0 : index
    %91 = vector.load %arg13[%c0_55, %c1_56, %c0_57, %c0_58] : memref<4x4x32x32xf32, #tpu.memory_space<vmem>>, vector<1x1x32x32xf32>
    %92 = vector.shape_cast %91 : vector<1x1x32x32xf32> to vector<32x32xf32>
    %93 = arith.truncf %80 : vector<40x32xf32> to vector<40x32xbf16>
    %94 = arith.truncf %92 : vector<32x32xf32> to vector<32x32xbf16>
    %cst_59 = arith.constant dense<0.000000e+00> : vector<40x32xf32>
    %95 = tpu.matmul %93, %94, %cst_59 {dimension_numbers = #tpu.dot_dimension_numbers<[1], [0], [0], [1], [0, 0, 1, 1], [], []>} : vector<40x32xbf16>, vector<32x32xbf16>, vector<40x32xf32> -> vector<40x32xf32>
    %c0_60 = arith.constant 0 : index
    %c1_61 = arith.constant 1 : index
    %c0_62 = arith.constant 0 : index
    %c0_63 = arith.constant 0 : index
    %96 = vector.load %arg14[%c0_60, %c1_61, %c0_62, %c0_63] : memref<4x4x1x32xf32, #tpu.memory_space<vmem>>, vector<1x1x1x32xf32>
    %97 = vector.shape_cast %96 : vector<1x1x1x32xf32> to vector<1x32xf32>
    %98 = vector.broadcast %97 : vector<1x32xf32> to vector<40x32xf32>
    %99 = arith.addf %95, %98 : vector<40x32xf32>
    %c0_64 = arith.constant 0 : index
    %c2_65 = arith.constant 2 : index
    %c0_66 = arith.constant 0 : index
    %c0_67 = arith.constant 0 : index
    %100 = vector.load %arg13[%c0_64, %c2_65, %c0_66, %c0_67] : memref<4x4x32x32xf32, #tpu.memory_space<vmem>>, vector<1x1x32x32xf32>
    %101 = vector.shape_cast %100 : vector<1x1x32x32xf32> to vector<32x32xf32>
    %102 = arith.truncf %80 : vector<40x32xf32> to vector<40x32xbf16>
    %103 = arith.truncf %101 : vector<32x32xf32> to vector<32x32xbf16>
    %cst_68 = arith.constant dense<0.000000e+00> : vector<40x32xf32>
    %104 = tpu.matmul %102, %103, %cst_68 {dimension_numbers = #tpu.dot_dimension_numbers<[1], [0], [0], [1], [0, 0, 1, 1], [], []>} : vector<40x32xbf16>, vector<32x32xbf16>, vector<40x32xf32> -> vector<40x32xf32>
    %c0_69 = arith.constant 0 : index
    %c2_70 = arith.constant 2 : index
    %c0_71 = arith.constant 0 : index
    %c0_72 = arith.constant 0 : index
    %105 = vector.load %arg14[%c0_69, %c2_70, %c0_71, %c0_72] : memref<4x4x1x32xf32, #tpu.memory_space<vmem>>, vector<1x1x1x32xf32>
    %106 = vector.shape_cast %105 : vector<1x1x1x32xf32> to vector<1x32xf32>
    %107 = vector.broadcast %106 : vector<1x32xf32> to vector<40x32xf32>
    %108 = arith.addf %104, %107 : vector<40x32xf32>
    %109 = tpu.transpose %99, [1, 0] : vector<40x32xf32> -> vector<32x40xf32>
    %110 = arith.truncf %90 : vector<40x32xf32> to vector<40x32xbf16>
    %111 = arith.truncf %109 : vector<32x40xf32> to vector<32x40xbf16>
    %cst_73 = arith.constant dense<0.000000e+00> : vector<40x40xf32>
    %112 = tpu.matmul %110, %111, %cst_73 {dimension_numbers = #tpu.dot_dimension_numbers<[1], [0], [0], [1], [0, 0, 1, 1], [], []>} : vector<40x32xbf16>, vector<32x40xbf16>, vector<40x40xf32> -> vector<40x40xf32>
    %cst_74 = arith.constant 0.176776692 : f32
    %113 = vector.broadcast %cst_74 : f32 to vector<40x40xf32>
    %114 = arith.mulf %112, %113 : vector<40x40xf32>
    %115 = arith.addf %114, %81 : vector<40x40xf32>
    %cst_75 = arith.constant dense<0xFF800000> : vector<40xf32>
    %116 = vector.multi_reduction <maximumf>, %115, %cst_75 [1] : vector<40x40xf32> to vector<40xf32>
    %117 = vector.shape_cast %116 : vector<40xf32> to vector<40x1xf32>
    %118 = vector.broadcast %117 : vector<40x1xf32> to vector<40x40xf32>
    %119 = arith.subf %115, %118 : vector<40x40xf32>
    %cst_76 = arith.constant 0.000000e+00 : f32
    %120 = vector.broadcast %cst_76 : f32 to vector<40x40xf32>
    %121 = arith.minimumf %119, %120 : vector<40x40xf32>
    %122 = math.exp %121 : vector<40x40xf32>
    %cst_77 = arith.constant dense<0.000000e+00> : vector<40xf32>
    %123 = vector.multi_reduction <add>, %122, %cst_77 [1] : vector<40x40xf32> to vector<40xf32>
    %124 = vector.shape_cast %123 : vector<40xf32> to vector<40x1xf32>
    %125 = vector.broadcast %124 : vector<40x1xf32> to vector<40x40xf32>
    %126 = arith.divf %122, %125 : vector<40x40xf32>
    %127 = arith.truncf %126 : vector<40x40xf32> to vector<40x40xbf16>
    %128 = arith.truncf %108 : vector<40x32xf32> to vector<40x32xbf16>
    %cst_78 = arith.constant dense<0.000000e+00> : vector<40x32xf32>
    %129 = tpu.matmul %127, %128, %cst_78 {dimension_numbers = #tpu.dot_dimension_numbers<[1], [0], [0], [1], [0, 0, 1, 1], [], []>} : vector<40x40xbf16>, vector<40x32xbf16>, vector<40x32xf32> -> vector<40x32xf32>
    %c0_79 = arith.constant 0 : index
    %c3_80 = arith.constant 3 : index
    %c0_81 = arith.constant 0 : index
    %c0_82 = arith.constant 0 : index
    %130 = vector.load %arg13[%c0_79, %c3_80, %c0_81, %c0_82] : memref<4x4x32x32xf32, #tpu.memory_space<vmem>>, vector<1x1x32x32xf32>
    %131 = vector.shape_cast %130 : vector<1x1x32x32xf32> to vector<32x32xf32>
    %132 = arith.truncf %129 : vector<40x32xf32> to vector<40x32xbf16>
    %133 = arith.truncf %131 : vector<32x32xf32> to vector<32x32xbf16>
    %cst_83 = arith.constant dense<0.000000e+00> : vector<40x32xf32>
    %134 = tpu.matmul %132, %133, %cst_83 {dimension_numbers = #tpu.dot_dimension_numbers<[1], [0], [0], [1], [0, 0, 1, 1], [], []>} : vector<40x32xbf16>, vector<32x32xbf16>, vector<40x32xf32> -> vector<40x32xf32>
    %135 = arith.addf %80, %134 : vector<40x32xf32>
    %c0_84 = arith.constant 0 : index
    %c3_85 = arith.constant 3 : index
    %c0_86 = arith.constant 0 : index
    %c0_87 = arith.constant 0 : index
    %136 = vector.load %arg14[%c0_84, %c3_85, %c0_86, %c0_87] : memref<4x4x1x32xf32, #tpu.memory_space<vmem>>, vector<1x1x1x32xf32>
    %137 = vector.shape_cast %136 : vector<1x1x1x32xf32> to vector<1x32xf32>
    %138 = vector.broadcast %137 : vector<1x32xf32> to vector<40x32xf32>
    %139 = arith.addf %135, %138 : vector<40x32xf32>
    %c1_88 = arith.constant 1 : index
    %c0_89 = arith.constant 0 : index
    %c0_90 = arith.constant 0 : index
    %c0_91 = arith.constant 0 : index
    %140 = vector.load %arg13[%c1_88, %c0_89, %c0_90, %c0_91] : memref<4x4x32x32xf32, #tpu.memory_space<vmem>>, vector<1x1x32x32xf32>
    %141 = vector.shape_cast %140 : vector<1x1x32x32xf32> to vector<32x32xf32>
    %142 = arith.truncf %139 : vector<40x32xf32> to vector<40x32xbf16>
    %143 = arith.truncf %141 : vector<32x32xf32> to vector<32x32xbf16>
    %cst_92 = arith.constant dense<0.000000e+00> : vector<40x32xf32>
    %144 = tpu.matmul %142, %143, %cst_92 {dimension_numbers = #tpu.dot_dimension_numbers<[1], [0], [0], [1], [0, 0, 1, 1], [], []>} : vector<40x32xbf16>, vector<32x32xbf16>, vector<40x32xf32> -> vector<40x32xf32>
    %c1_93 = arith.constant 1 : index
    %c0_94 = arith.constant 0 : index
    %c0_95 = arith.constant 0 : index
    %c0_96 = arith.constant 0 : index
    %145 = vector.load %arg14[%c1_93, %c0_94, %c0_95, %c0_96] : memref<4x4x1x32xf32, #tpu.memory_space<vmem>>, vector<1x1x1x32xf32>
    %146 = vector.shape_cast %145 : vector<1x1x1x32xf32> to vector<1x32xf32>
    %147 = vector.broadcast %146 : vector<1x32xf32> to vector<40x32xf32>
    %148 = arith.addf %144, %147 : vector<40x32xf32>
    %c1_97 = arith.constant 1 : index
    %c1_98 = arith.constant 1 : index
    %c0_99 = arith.constant 0 : index
    %c0_100 = arith.constant 0 : index
    %149 = vector.load %arg13[%c1_97, %c1_98, %c0_99, %c0_100] : memref<4x4x32x32xf32, #tpu.memory_space<vmem>>, vector<1x1x32x32xf32>
    %150 = vector.shape_cast %149 : vector<1x1x32x32xf32> to vector<32x32xf32>
    %151 = arith.truncf %139 : vector<40x32xf32> to vector<40x32xbf16>
    %152 = arith.truncf %150 : vector<32x32xf32> to vector<32x32xbf16>
    %cst_101 = arith.constant dense<0.000000e+00> : vector<40x32xf32>
    %153 = tpu.matmul %151, %152, %cst_101 {dimension_numbers = #tpu.dot_dimension_numbers<[1], [0], [0], [1], [0, 0, 1, 1], [], []>} : vector<40x32xbf16>, vector<32x32xbf16>, vector<40x32xf32> -> vector<40x32xf32>
    %c1_102 = arith.constant 1 : index
    %c1_103 = arith.constant 1 : index
    %c0_104 = arith.constant 0 : index
    %c0_105 = arith.constant 0 : index
    %154 = vector.load %arg14[%c1_102, %c1_103, %c0_104, %c0_105] : memref<4x4x1x32xf32, #tpu.memory_space<vmem>>, vector<1x1x1x32xf32>
    %155 = vector.shape_cast %154 : vector<1x1x1x32xf32> to vector<1x32xf32>
    %156 = vector.broadcast %155 : vector<1x32xf32> to vector<40x32xf32>
    %157 = arith.addf %153, %156 : vector<40x32xf32>
    %c1_106 = arith.constant 1 : index
    %c2_107 = arith.constant 2 : index
    %c0_108 = arith.constant 0 : index
    %c0_109 = arith.constant 0 : index
    %158 = vector.load %arg13[%c1_106, %c2_107, %c0_108, %c0_109] : memref<4x4x32x32xf32, #tpu.memory_space<vmem>>, vector<1x1x32x32xf32>
    %159 = vector.shape_cast %158 : vector<1x1x32x32xf32> to vector<32x32xf32>
    %160 = arith.truncf %139 : vector<40x32xf32> to vector<40x32xbf16>
    %161 = arith.truncf %159 : vector<32x32xf32> to vector<32x32xbf16>
    %cst_110 = arith.constant dense<0.000000e+00> : vector<40x32xf32>
    %162 = tpu.matmul %160, %161, %cst_110 {dimension_numbers = #tpu.dot_dimension_numbers<[1], [0], [0], [1], [0, 0, 1, 1], [], []>} : vector<40x32xbf16>, vector<32x32xbf16>, vector<40x32xf32> -> vector<40x32xf32>
    %c1_111 = arith.constant 1 : index
    %c2_112 = arith.constant 2 : index
    %c0_113 = arith.constant 0 : index
    %c0_114 = arith.constant 0 : index
    %163 = vector.load %arg14[%c1_111, %c2_112, %c0_113, %c0_114] : memref<4x4x1x32xf32, #tpu.memory_space<vmem>>, vector<1x1x1x32xf32>
    %164 = vector.shape_cast %163 : vector<1x1x1x32xf32> to vector<1x32xf32>
    %165 = vector.broadcast %164 : vector<1x32xf32> to vector<40x32xf32>
    %166 = arith.addf %162, %165 : vector<40x32xf32>
    %167 = tpu.transpose %157, [1, 0] : vector<40x32xf32> -> vector<32x40xf32>
    %168 = arith.truncf %148 : vector<40x32xf32> to vector<40x32xbf16>
    %169 = arith.truncf %167 : vector<32x40xf32> to vector<32x40xbf16>
    %cst_115 = arith.constant dense<0.000000e+00> : vector<40x40xf32>
    %170 = tpu.matmul %168, %169, %cst_115 {dimension_numbers = #tpu.dot_dimension_numbers<[1], [0], [0], [1], [0, 0, 1, 1], [], []>} : vector<40x32xbf16>, vector<32x40xbf16>, vector<40x40xf32> -> vector<40x40xf32>
    %cst_116 = arith.constant 0.176776692 : f32
    %171 = vector.broadcast %cst_116 : f32 to vector<40x40xf32>
    %172 = arith.mulf %170, %171 : vector<40x40xf32>
    %173 = arith.addf %172, %81 : vector<40x40xf32>
    %cst_117 = arith.constant dense<0xFF800000> : vector<40xf32>
    %174 = vector.multi_reduction <maximumf>, %173, %cst_117 [1] : vector<40x40xf32> to vector<40xf32>
    %175 = vector.shape_cast %174 : vector<40xf32> to vector<40x1xf32>
    %176 = vector.broadcast %175 : vector<40x1xf32> to vector<40x40xf32>
    %177 = arith.subf %173, %176 : vector<40x40xf32>
    %cst_118 = arith.constant 0.000000e+00 : f32
    %178 = vector.broadcast %cst_118 : f32 to vector<40x40xf32>
    %179 = arith.minimumf %177, %178 : vector<40x40xf32>
    %180 = math.exp %179 : vector<40x40xf32>
    %cst_119 = arith.constant dense<0.000000e+00> : vector<40xf32>
    %181 = vector.multi_reduction <add>, %180, %cst_119 [1] : vector<40x40xf32> to vector<40xf32>
    %182 = vector.shape_cast %181 : vector<40xf32> to vector<40x1xf32>
    %183 = vector.broadcast %182 : vector<40x1xf32> to vector<40x40xf32>
    %184 = arith.divf %180, %183 : vector<40x40xf32>
    %185 = arith.truncf %184 : vector<40x40xf32> to vector<40x40xbf16>
    %186 = arith.truncf %166 : vector<40x32xf32> to vector<40x32xbf16>
    %cst_120 = arith.constant dense<0.000000e+00> : vector<40x32xf32>
    %187 = tpu.matmul %185, %186, %cst_120 {dimension_numbers = #tpu.dot_dimension_numbers<[1], [0], [0], [1], [0, 0, 1, 1], [], []>} : vector<40x40xbf16>, vector<40x32xbf16>, vector<40x32xf32> -> vector<40x32xf32>
    %c1_121 = arith.constant 1 : index
    %c3_122 = arith.constant 3 : index
    %c0_123 = arith.constant 0 : index
    %c0_124 = arith.constant 0 : index
    %188 = vector.load %arg13[%c1_121, %c3_122, %c0_123, %c0_124] : memref<4x4x32x32xf32, #tpu.memory_space<vmem>>, vector<1x1x32x32xf32>
    %189 = vector.shape_cast %188 : vector<1x1x32x32xf32> to vector<32x32xf32>
    %190 = arith.truncf %187 : vector<40x32xf32> to vector<40x32xbf16>
    %191 = arith.truncf %189 : vector<32x32xf32> to vector<32x32xbf16>
    %cst_125 = arith.constant dense<0.000000e+00> : vector<40x32xf32>
    %192 = tpu.matmul %190, %191, %cst_125 {dimension_numbers = #tpu.dot_dimension_numbers<[1], [0], [0], [1], [0, 0, 1, 1], [], []>} : vector<40x32xbf16>, vector<32x32xbf16>, vector<40x32xf32> -> vector<40x32xf32>
    %193 = arith.addf %139, %192 : vector<40x32xf32>
    %c1_126 = arith.constant 1 : index
    %c3_127 = arith.constant 3 : index
    %c0_128 = arith.constant 0 : index
    %c0_129 = arith.constant 0 : index
    %194 = vector.load %arg14[%c1_126, %c3_127, %c0_128, %c0_129] : memref<4x4x1x32xf32, #tpu.memory_space<vmem>>, vector<1x1x1x32xf32>
    %195 = vector.shape_cast %194 : vector<1x1x1x32xf32> to vector<1x32xf32>
    %196 = vector.broadcast %195 : vector<1x32xf32> to vector<40x32xf32>
    %197 = arith.addf %193, %196 : vector<40x32xf32>
    %c2_130 = arith.constant 2 : index
    %c0_131 = arith.constant 0 : index
    %c0_132 = arith.constant 0 : index
    %c0_133 = arith.constant 0 : index
    %198 = vector.load %arg13[%c2_130, %c0_131, %c0_132, %c0_133] : memref<4x4x32x32xf32, #tpu.memory_space<vmem>>, vector<1x1x32x32xf32>
    %199 = vector.shape_cast %198 : vector<1x1x32x32xf32> to vector<32x32xf32>
    %200 = arith.truncf %197 : vector<40x32xf32> to vector<40x32xbf16>
    %201 = arith.truncf %199 : vector<32x32xf32> to vector<32x32xbf16>
    %cst_134 = arith.constant dense<0.000000e+00> : vector<40x32xf32>
    %202 = tpu.matmul %200, %201, %cst_134 {dimension_numbers = #tpu.dot_dimension_numbers<[1], [0], [0], [1], [0, 0, 1, 1], [], []>} : vector<40x32xbf16>, vector<32x32xbf16>, vector<40x32xf32> -> vector<40x32xf32>
    %c2_135 = arith.constant 2 : index
    %c0_136 = arith.constant 0 : index
    %c0_137 = arith.constant 0 : index
    %c0_138 = arith.constant 0 : index
    %203 = vector.load %arg14[%c2_135, %c0_136, %c0_137, %c0_138] : memref<4x4x1x32xf32, #tpu.memory_space<vmem>>, vector<1x1x1x32xf32>
    %204 = vector.shape_cast %203 : vector<1x1x1x32xf32> to vector<1x32xf32>
    %205 = vector.broadcast %204 : vector<1x32xf32> to vector<40x32xf32>
    %206 = arith.addf %202, %205 : vector<40x32xf32>
    %c2_139 = arith.constant 2 : index
    %c1_140 = arith.constant 1 : index
    %c0_141 = arith.constant 0 : index
    %c0_142 = arith.constant 0 : index
    %207 = vector.load %arg13[%c2_139, %c1_140, %c0_141, %c0_142] : memref<4x4x32x32xf32, #tpu.memory_space<vmem>>, vector<1x1x32x32xf32>
    %208 = vector.shape_cast %207 : vector<1x1x32x32xf32> to vector<32x32xf32>
    %209 = arith.truncf %197 : vector<40x32xf32> to vector<40x32xbf16>
    %210 = arith.truncf %208 : vector<32x32xf32> to vector<32x32xbf16>
    %cst_143 = arith.constant dense<0.000000e+00> : vector<40x32xf32>
    %211 = tpu.matmul %209, %210, %cst_143 {dimension_numbers = #tpu.dot_dimension_numbers<[1], [0], [0], [1], [0, 0, 1, 1], [], []>} : vector<40x32xbf16>, vector<32x32xbf16>, vector<40x32xf32> -> vector<40x32xf32>
    %c2_144 = arith.constant 2 : index
    %c1_145 = arith.constant 1 : index
    %c0_146 = arith.constant 0 : index
    %c0_147 = arith.constant 0 : index
    %212 = vector.load %arg14[%c2_144, %c1_145, %c0_146, %c0_147] : memref<4x4x1x32xf32, #tpu.memory_space<vmem>>, vector<1x1x1x32xf32>
    %213 = vector.shape_cast %212 : vector<1x1x1x32xf32> to vector<1x32xf32>
    %214 = vector.broadcast %213 : vector<1x32xf32> to vector<40x32xf32>
    %215 = arith.addf %211, %214 : vector<40x32xf32>
    %c2_148 = arith.constant 2 : index
    %c2_149 = arith.constant 2 : index
    %c0_150 = arith.constant 0 : index
    %c0_151 = arith.constant 0 : index
    %216 = vector.load %arg13[%c2_148, %c2_149, %c0_150, %c0_151] : memref<4x4x32x32xf32, #tpu.memory_space<vmem>>, vector<1x1x32x32xf32>
    %217 = vector.shape_cast %216 : vector<1x1x32x32xf32> to vector<32x32xf32>
    %218 = arith.truncf %197 : vector<40x32xf32> to vector<40x32xbf16>
    %219 = arith.truncf %217 : vector<32x32xf32> to vector<32x32xbf16>
    %cst_152 = arith.constant dense<0.000000e+00> : vector<40x32xf32>
    %220 = tpu.matmul %218, %219, %cst_152 {dimension_numbers = #tpu.dot_dimension_numbers<[1], [0], [0], [1], [0, 0, 1, 1], [], []>} : vector<40x32xbf16>, vector<32x32xbf16>, vector<40x32xf32> -> vector<40x32xf32>
    %c2_153 = arith.constant 2 : index
    %c2_154 = arith.constant 2 : index
    %c0_155 = arith.constant 0 : index
    %c0_156 = arith.constant 0 : index
    %221 = vector.load %arg14[%c2_153, %c2_154, %c0_155, %c0_156] : memref<4x4x1x32xf32, #tpu.memory_space<vmem>>, vector<1x1x1x32xf32>
    %222 = vector.shape_cast %221 : vector<1x1x1x32xf32> to vector<1x32xf32>
    %223 = vector.broadcast %222 : vector<1x32xf32> to vector<40x32xf32>
    %224 = arith.addf %220, %223 : vector<40x32xf32>
    %225 = tpu.transpose %215, [1, 0] : vector<40x32xf32> -> vector<32x40xf32>
    %226 = arith.truncf %206 : vector<40x32xf32> to vector<40x32xbf16>
    %227 = arith.truncf %225 : vector<32x40xf32> to vector<32x40xbf16>
    %cst_157 = arith.constant dense<0.000000e+00> : vector<40x40xf32>
    %228 = tpu.matmul %226, %227, %cst_157 {dimension_numbers = #tpu.dot_dimension_numbers<[1], [0], [0], [1], [0, 0, 1, 1], [], []>} : vector<40x32xbf16>, vector<32x40xbf16>, vector<40x40xf32> -> vector<40x40xf32>
    %cst_158 = arith.constant 0.176776692 : f32
    %229 = vector.broadcast %cst_158 : f32 to vector<40x40xf32>
    %230 = arith.mulf %228, %229 : vector<40x40xf32>
    %231 = arith.addf %230, %81 : vector<40x40xf32>
    %cst_159 = arith.constant dense<0xFF800000> : vector<40xf32>
    %232 = vector.multi_reduction <maximumf>, %231, %cst_159 [1] : vector<40x40xf32> to vector<40xf32>
    %233 = vector.shape_cast %232 : vector<40xf32> to vector<40x1xf32>
    %234 = vector.broadcast %233 : vector<40x1xf32> to vector<40x40xf32>
    %235 = arith.subf %231, %234 : vector<40x40xf32>
    %cst_160 = arith.constant 0.000000e+00 : f32
    %236 = vector.broadcast %cst_160 : f32 to vector<40x40xf32>
    %237 = arith.minimumf %235, %236 : vector<40x40xf32>
    %238 = math.exp %237 : vector<40x40xf32>
    %cst_161 = arith.constant dense<0.000000e+00> : vector<40xf32>
    %239 = vector.multi_reduction <add>, %238, %cst_161 [1] : vector<40x40xf32> to vector<40xf32>
    %240 = vector.shape_cast %239 : vector<40xf32> to vector<40x1xf32>
    %241 = vector.broadcast %240 : vector<40x1xf32> to vector<40x40xf32>
    %242 = arith.divf %238, %241 : vector<40x40xf32>
    %243 = arith.truncf %242 : vector<40x40xf32> to vector<40x40xbf16>
    %244 = arith.truncf %224 : vector<40x32xf32> to vector<40x32xbf16>
    %cst_162 = arith.constant dense<0.000000e+00> : vector<40x32xf32>
    %245 = tpu.matmul %243, %244, %cst_162 {dimension_numbers = #tpu.dot_dimension_numbers<[1], [0], [0], [1], [0, 0, 1, 1], [], []>} : vector<40x40xbf16>, vector<40x32xbf16>, vector<40x32xf32> -> vector<40x32xf32>
    %c2_163 = arith.constant 2 : index
    %c3_164 = arith.constant 3 : index
    %c0_165 = arith.constant 0 : index
    %c0_166 = arith.constant 0 : index
    %246 = vector.load %arg13[%c2_163, %c3_164, %c0_165, %c0_166] : memref<4x4x32x32xf32, #tpu.memory_space<vmem>>, vector<1x1x32x32xf32>
    %247 = vector.shape_cast %246 : vector<1x1x32x32xf32> to vector<32x32xf32>
    %248 = arith.truncf %245 : vector<40x32xf32> to vector<40x32xbf16>
    %249 = arith.truncf %247 : vector<32x32xf32> to vector<32x32xbf16>
    %cst_167 = arith.constant dense<0.000000e+00> : vector<40x32xf32>
    %250 = tpu.matmul %248, %249, %cst_167 {dimension_numbers = #tpu.dot_dimension_numbers<[1], [0], [0], [1], [0, 0, 1, 1], [], []>} : vector<40x32xbf16>, vector<32x32xbf16>, vector<40x32xf32> -> vector<40x32xf32>
    %251 = arith.addf %197, %250 : vector<40x32xf32>
    %c2_168 = arith.constant 2 : index
    %c3_169 = arith.constant 3 : index
    %c0_170 = arith.constant 0 : index
    %c0_171 = arith.constant 0 : index
    %252 = vector.load %arg14[%c2_168, %c3_169, %c0_170, %c0_171] : memref<4x4x1x32xf32, #tpu.memory_space<vmem>>, vector<1x1x1x32xf32>
    %253 = vector.shape_cast %252 : vector<1x1x1x32xf32> to vector<1x32xf32>
    %254 = vector.broadcast %253 : vector<1x32xf32> to vector<40x32xf32>
    %255 = arith.addf %251, %254 : vector<40x32xf32>
    %c3_172 = arith.constant 3 : index
    %c0_173 = arith.constant 0 : index
    %c0_174 = arith.constant 0 : index
    %c0_175 = arith.constant 0 : index
    %256 = vector.load %arg13[%c3_172, %c0_173, %c0_174, %c0_175] : memref<4x4x32x32xf32, #tpu.memory_space<vmem>>, vector<1x1x32x32xf32>
    %257 = vector.shape_cast %256 : vector<1x1x32x32xf32> to vector<32x32xf32>
    %258 = arith.truncf %255 : vector<40x32xf32> to vector<40x32xbf16>
    %259 = arith.truncf %257 : vector<32x32xf32> to vector<32x32xbf16>
    %cst_176 = arith.constant dense<0.000000e+00> : vector<40x32xf32>
    %260 = tpu.matmul %258, %259, %cst_176 {dimension_numbers = #tpu.dot_dimension_numbers<[1], [0], [0], [1], [0, 0, 1, 1], [], []>} : vector<40x32xbf16>, vector<32x32xbf16>, vector<40x32xf32> -> vector<40x32xf32>
    %c3_177 = arith.constant 3 : index
    %c0_178 = arith.constant 0 : index
    %c0_179 = arith.constant 0 : index
    %c0_180 = arith.constant 0 : index
    %261 = vector.load %arg14[%c3_177, %c0_178, %c0_179, %c0_180] : memref<4x4x1x32xf32, #tpu.memory_space<vmem>>, vector<1x1x1x32xf32>
    %262 = vector.shape_cast %261 : vector<1x1x1x32xf32> to vector<1x32xf32>
    %263 = vector.broadcast %262 : vector<1x32xf32> to vector<40x32xf32>
    %264 = arith.addf %260, %263 : vector<40x32xf32>
    %c3_181 = arith.constant 3 : index
    %c1_182 = arith.constant 1 : index
    %c0_183 = arith.constant 0 : index
    %c0_184 = arith.constant 0 : index
    %265 = vector.load %arg13[%c3_181, %c1_182, %c0_183, %c0_184] : memref<4x4x32x32xf32, #tpu.memory_space<vmem>>, vector<1x1x32x32xf32>
    %266 = vector.shape_cast %265 : vector<1x1x32x32xf32> to vector<32x32xf32>
    %267 = arith.truncf %255 : vector<40x32xf32> to vector<40x32xbf16>
    %268 = arith.truncf %266 : vector<32x32xf32> to vector<32x32xbf16>
    %cst_185 = arith.constant dense<0.000000e+00> : vector<40x32xf32>
    %269 = tpu.matmul %267, %268, %cst_185 {dimension_numbers = #tpu.dot_dimension_numbers<[1], [0], [0], [1], [0, 0, 1, 1], [], []>} : vector<40x32xbf16>, vector<32x32xbf16>, vector<40x32xf32> -> vector<40x32xf32>
    %c3_186 = arith.constant 3 : index
    %c1_187 = arith.constant 1 : index
    %c0_188 = arith.constant 0 : index
    %c0_189 = arith.constant 0 : index
    %270 = vector.load %arg14[%c3_186, %c1_187, %c0_188, %c0_189] : memref<4x4x1x32xf32, #tpu.memory_space<vmem>>, vector<1x1x1x32xf32>
    %271 = vector.shape_cast %270 : vector<1x1x1x32xf32> to vector<1x32xf32>
    %272 = vector.broadcast %271 : vector<1x32xf32> to vector<40x32xf32>
    %273 = arith.addf %269, %272 : vector<40x32xf32>
    %c3_190 = arith.constant 3 : index
    %c2_191 = arith.constant 2 : index
    %c0_192 = arith.constant 0 : index
    %c0_193 = arith.constant 0 : index
    %274 = vector.load %arg13[%c3_190, %c2_191, %c0_192, %c0_193] : memref<4x4x32x32xf32, #tpu.memory_space<vmem>>, vector<1x1x32x32xf32>
    %275 = vector.shape_cast %274 : vector<1x1x32x32xf32> to vector<32x32xf32>
    %276 = arith.truncf %255 : vector<40x32xf32> to vector<40x32xbf16>
    %277 = arith.truncf %275 : vector<32x32xf32> to vector<32x32xbf16>
    %cst_194 = arith.constant dense<0.000000e+00> : vector<40x32xf32>
    %278 = tpu.matmul %276, %277, %cst_194 {dimension_numbers = #tpu.dot_dimension_numbers<[1], [0], [0], [1], [0, 0, 1, 1], [], []>} : vector<40x32xbf16>, vector<32x32xbf16>, vector<40x32xf32> -> vector<40x32xf32>
    %c3_195 = arith.constant 3 : index
    %c2_196 = arith.constant 2 : index
    %c0_197 = arith.constant 0 : index
    %c0_198 = arith.constant 0 : index
    %279 = vector.load %arg14[%c3_195, %c2_196, %c0_197, %c0_198] : memref<4x4x1x32xf32, #tpu.memory_space<vmem>>, vector<1x1x1x32xf32>
    %280 = vector.shape_cast %279 : vector<1x1x1x32xf32> to vector<1x32xf32>
    %281 = vector.broadcast %280 : vector<1x32xf32> to vector<40x32xf32>
    %282 = arith.addf %278, %281 : vector<40x32xf32>
    %283 = tpu.transpose %273, [1, 0] : vector<40x32xf32> -> vector<32x40xf32>
    %284 = arith.truncf %264 : vector<40x32xf32> to vector<40x32xbf16>
    %285 = arith.truncf %283 : vector<32x40xf32> to vector<32x40xbf16>
    %cst_199 = arith.constant dense<0.000000e+00> : vector<40x40xf32>
    %286 = tpu.matmul %284, %285, %cst_199 {dimension_numbers = #tpu.dot_dimension_numbers<[1], [0], [0], [1], [0, 0, 1, 1], [], []>} : vector<40x32xbf16>, vector<32x40xbf16>, vector<40x40xf32> -> vector<40x40xf32>
    %cst_200 = arith.constant 0.176776692 : f32
    %287 = vector.broadcast %cst_200 : f32 to vector<40x40xf32>
    %288 = arith.mulf %286, %287 : vector<40x40xf32>
    %289 = arith.addf %288, %81 : vector<40x40xf32>
    %cst_201 = arith.constant dense<0xFF800000> : vector<40xf32>
    %290 = vector.multi_reduction <maximumf>, %289, %cst_201 [1] : vector<40x40xf32> to vector<40xf32>
    %291 = vector.shape_cast %290 : vector<40xf32> to vector<40x1xf32>
    %292 = vector.broadcast %291 : vector<40x1xf32> to vector<40x40xf32>
    %293 = arith.subf %289, %292 : vector<40x40xf32>
    %cst_202 = arith.constant 0.000000e+00 : f32
    %294 = vector.broadcast %cst_202 : f32 to vector<40x40xf32>
    %295 = arith.minimumf %293, %294 : vector<40x40xf32>
    %296 = math.exp %295 : vector<40x40xf32>
    %cst_203 = arith.constant dense<0.000000e+00> : vector<40xf32>
    %297 = vector.multi_reduction <add>, %296, %cst_203 [1] : vector<40x40xf32> to vector<40xf32>
    %298 = vector.shape_cast %297 : vector<40xf32> to vector<40x1xf32>
    %299 = vector.broadcast %298 : vector<40x1xf32> to vector<40x40xf32>
    %300 = arith.divf %296, %299 : vector<40x40xf32>
    %301 = arith.truncf %300 : vector<40x40xf32> to vector<40x40xbf16>
    %302 = arith.truncf %282 : vector<40x32xf32> to vector<40x32xbf16>
    %cst_204 = arith.constant dense<0.000000e+00> : vector<40x32xf32>
    %303 = tpu.matmul %301, %302, %cst_204 {dimension_numbers = #tpu.dot_dimension_numbers<[1], [0], [0], [1], [0, 0, 1, 1], [], []>} : vector<40x40xbf16>, vector<40x32xbf16>, vector<40x32xf32> -> vector<40x32xf32>
    %c3_205 = arith.constant 3 : index
    %c3_206 = arith.constant 3 : index
    %c0_207 = arith.constant 0 : index
    %c0_208 = arith.constant 0 : index
    %304 = vector.load %arg13[%c3_205, %c3_206, %c0_207, %c0_208] : memref<4x4x32x32xf32, #tpu.memory_space<vmem>>, vector<1x1x32x32xf32>
    %305 = vector.shape_cast %304 : vector<1x1x32x32xf32> to vector<32x32xf32>
    %306 = arith.truncf %303 : vector<40x32xf32> to vector<40x32xbf16>
    %307 = arith.truncf %305 : vector<32x32xf32> to vector<32x32xbf16>
    %cst_209 = arith.constant dense<0.000000e+00> : vector<40x32xf32>
    %308 = tpu.matmul %306, %307, %cst_209 {dimension_numbers = #tpu.dot_dimension_numbers<[1], [0], [0], [1], [0, 0, 1, 1], [], []>} : vector<40x32xbf16>, vector<32x32xbf16>, vector<40x32xf32> -> vector<40x32xf32>
    %309 = arith.addf %255, %308 : vector<40x32xf32>
    %c3_210 = arith.constant 3 : index
    %c3_211 = arith.constant 3 : index
    %c0_212 = arith.constant 0 : index
    %c0_213 = arith.constant 0 : index
    %310 = vector.load %arg14[%c3_210, %c3_211, %c0_212, %c0_213] : memref<4x4x1x32xf32, #tpu.memory_space<vmem>>, vector<1x1x1x32xf32>
    %311 = vector.shape_cast %310 : vector<1x1x1x32xf32> to vector<1x32xf32>
    %312 = vector.broadcast %311 : vector<1x32xf32> to vector<40x32xf32>
    %313 = arith.addf %309, %312 : vector<40x32xf32>
    %c0_214 = arith.constant 0 : index
    %c0_215 = arith.constant 0 : index
    %314 = vector.load %arg8[%c0_214, %c0_215] : memref<40x40xf32, #tpu.memory_space<vmem>>, vector<40x40xf32>
    %c0_216 = arith.constant 0 : index
    %c0_217 = arith.constant 0 : index
    %315 = vector.load %arg23[%c0_216, %c0_217] : memref<32x24xf32, #tpu.memory_space<vmem>>, vector<32x24xf32>
    %c0_218 = arith.constant 0 : index
    %c0_219 = arith.constant 0 : index
    %316 = vector.load %arg24[%c0_218, %c0_219] : memref<1x24xf32, #tpu.memory_space<vmem>>, vector<1x24xf32>
    %c0_220 = arith.constant 0 : index
    %c0_221 = arith.constant 0 : index
    %317 = vector.load %arg25[%c0_220, %c0_221] : memref<32x32xf32, #tpu.memory_space<vmem>>, vector<32x32xf32>
    %c0_222 = arith.constant 0 : index
    %c0_223 = arith.constant 0 : index
    %318 = vector.load %arg26[%c0_222, %c0_223] : memref<1x32xf32, #tpu.memory_space<vmem>>, vector<1x32xf32>
    %319 = arith.truncf %314 : vector<40x40xf32> to vector<40x40xbf16>
    %320 = arith.truncf %313 : vector<40x32xf32> to vector<40x32xbf16>
    %cst_224 = arith.constant dense<0.000000e+00> : vector<40x32xf32>
    %321 = tpu.matmul %319, %320, %cst_224 {dimension_numbers = #tpu.dot_dimension_numbers<[1], [0], [0], [1], [0, 0, 1, 1], [], []>} : vector<40x40xbf16>, vector<40x32xbf16>, vector<40x32xf32> -> vector<40x32xf32>
    %322 = arith.truncf %321 : vector<40x32xf32> to vector<40x32xbf16>
    %323 = arith.truncf %315 : vector<32x24xf32> to vector<32x24xbf16>
    %cst_225 = arith.constant dense<0.000000e+00> : vector<40x24xf32>
    %324 = tpu.matmul %322, %323, %cst_225 {dimension_numbers = #tpu.dot_dimension_numbers<[1], [0], [0], [1], [0, 0, 1, 1], [], []>} : vector<40x32xbf16>, vector<32x24xbf16>, vector<40x24xf32> -> vector<40x24xf32>
    %325 = vector.broadcast %316 : vector<1x24xf32> to vector<40x24xf32>
    %326 = arith.addf %324, %325 : vector<40x24xf32>
    %cst_226 = arith.constant dense<0xFF800000> : vector<40xf32>
    %327 = vector.multi_reduction <maximumf>, %326, %cst_226 [1] : vector<40x24xf32> to vector<40xf32>
    %328 = vector.shape_cast %327 : vector<40xf32> to vector<40x1xf32>
    %329 = vector.broadcast %328 : vector<40x1xf32> to vector<40x24xf32>
    %330 = arith.subf %326, %329 : vector<40x24xf32>
    %cst_227 = arith.constant 0.000000e+00 : f32
    %331 = vector.broadcast %cst_227 : f32 to vector<40x24xf32>
    %332 = arith.minimumf %330, %331 : vector<40x24xf32>
    %333 = math.exp %332 : vector<40x24xf32>
    %cst_228 = arith.constant dense<0.000000e+00> : vector<40xf32>
    %334 = vector.multi_reduction <add>, %333, %cst_228 [1] : vector<40x24xf32> to vector<40xf32>
    %335 = vector.shape_cast %334 : vector<40xf32> to vector<40x1xf32>
    %336 = vector.broadcast %335 : vector<40x1xf32> to vector<40x24xf32>
    %337 = arith.divf %333, %336 : vector<40x24xf32>
    %338 = arith.truncf %321 : vector<40x32xf32> to vector<40x32xbf16>
    %339 = arith.truncf %317 : vector<32x32xf32> to vector<32x32xbf16>
    %cst_229 = arith.constant dense<0.000000e+00> : vector<40x32xf32>
    %340 = tpu.matmul %338, %339, %cst_229 {dimension_numbers = #tpu.dot_dimension_numbers<[1], [0], [0], [1], [0, 0, 1, 1], [], []>} : vector<40x32xbf16>, vector<32x32xbf16>, vector<40x32xf32> -> vector<40x32xf32>
    %341 = vector.broadcast %318 : vector<1x32xf32> to vector<40x32xf32>
    %342 = arith.addf %340, %341 : vector<40x32xf32>
    %cst_230 = arith.constant 0.000000e+00 : f32
    %343 = vector.broadcast %cst_230 : f32 to vector<40x32xf32>
    %344 = arith.cmpf ogt, %342, %343 : vector<40x32xf32>
    %cst_231 = arith.constant 0.00999999977 : f32
    %345 = vector.broadcast %cst_231 : f32 to vector<40x32xf32>
    %346 = arith.mulf %345, %342 : vector<40x32xf32>
    %347 = arith.select %344, %342, %346 : vector<40x32xi1>, vector<40x32xf32>
    %348 = tpu.transpose %337, [1, 0] : vector<40x24xf32> -> vector<24x40xf32>
    %349 = arith.truncf %348 : vector<24x40xf32> to vector<24x40xbf16>
    %350 = arith.truncf %347 : vector<40x32xf32> to vector<40x32xbf16>
    %cst_232 = arith.constant dense<0.000000e+00> : vector<24x32xf32>
    %351 = tpu.matmul %349, %350, %cst_232 {dimension_numbers = #tpu.dot_dimension_numbers<[1], [0], [0], [1], [0, 0, 1, 1], [], []>} : vector<24x40xbf16>, vector<40x32xbf16>, vector<24x32xf32> -> vector<24x32xf32>
    %352 = arith.truncf %314 : vector<40x40xf32> to vector<40x40xbf16>
    %353 = arith.truncf %337 : vector<40x24xf32> to vector<40x24xbf16>
    %cst_233 = arith.constant dense<0.000000e+00> : vector<40x24xf32>
    %354 = tpu.matmul %352, %353, %cst_233 {dimension_numbers = #tpu.dot_dimension_numbers<[1], [0], [0], [1], [0, 0, 1, 1], [], []>} : vector<40x40xbf16>, vector<40x24xbf16>, vector<40x24xf32> -> vector<40x24xf32>
    %355 = arith.truncf %348 : vector<24x40xf32> to vector<24x40xbf16>
    %356 = arith.truncf %354 : vector<40x24xf32> to vector<40x24xbf16>
    %cst_234 = arith.constant dense<0.000000e+00> : vector<24x24xf32>
    %357 = tpu.matmul %355, %356, %cst_234 {dimension_numbers = #tpu.dot_dimension_numbers<[1], [0], [0], [1], [0, 0, 1, 1], [], []>} : vector<24x40xbf16>, vector<40x24xbf16>, vector<24x24xf32> -> vector<24x24xf32>
    %c0_235 = arith.constant 0 : index
    %c0_236 = arith.constant 0 : index
    %358 = vector.load %arg3[%c0_235, %c0_236] : memref<24x24xf32, #tpu.memory_space<vmem>>, vector<24x24xf32>
    %359 = arith.truncf %358 : vector<24x24xf32> to vector<24x24xbf16>
    %360 = arith.truncf %351 : vector<24x32xf32> to vector<24x32xbf16>
    %cst_237 = arith.constant dense<0.000000e+00> : vector<24x32xf32>
    %361 = tpu.matmul %359, %360, %cst_237 {dimension_numbers = #tpu.dot_dimension_numbers<[1], [0], [0], [1], [0, 0, 1, 1], [], []>} : vector<24x24xbf16>, vector<24x32xbf16>, vector<24x32xf32> -> vector<24x32xf32>
    %c0_238 = arith.constant 0 : index
    %c0_239 = arith.constant 0 : index
    %c0_240 = arith.constant 0 : index
    %362 = vector.load %arg15[%c0_238, %c0_239, %c0_240] : memref<4x32x32xf32, #tpu.memory_space<vmem>>, vector<1x32x32xf32>
    %363 = vector.shape_cast %362 : vector<1x32x32xf32> to vector<32x32xf32>
    %364 = arith.truncf %361 : vector<24x32xf32> to vector<24x32xbf16>
    %365 = arith.truncf %363 : vector<32x32xf32> to vector<32x32xbf16>
    %cst_241 = arith.constant dense<0.000000e+00> : vector<24x32xf32>
    %366 = tpu.matmul %364, %365, %cst_241 {dimension_numbers = #tpu.dot_dimension_numbers<[1], [0], [0], [1], [0, 0, 1, 1], [], []>} : vector<24x32xbf16>, vector<32x32xbf16>, vector<24x32xf32> -> vector<24x32xf32>
    %c0_242 = arith.constant 0 : index
    %c0_243 = arith.constant 0 : index
    %c0_244 = arith.constant 0 : index
    %367 = vector.load %arg16[%c0_242, %c0_243, %c0_244] : memref<4x1x32xf32, #tpu.memory_space<vmem>>, vector<1x1x32xf32>
    %368 = vector.shape_cast %367 : vector<1x1x32xf32> to vector<1x32xf32>
    %369 = vector.broadcast %368 : vector<1x32xf32> to vector<24x32xf32>
    %370 = arith.addf %366, %369 : vector<24x32xf32>
    %cst_245 = arith.constant 0.000000e+00 : f32
    %371 = vector.broadcast %cst_245 : f32 to vector<24x32xf32>
    %372 = arith.cmpf ogt, %370, %371 : vector<24x32xf32>
    %cst_246 = arith.constant 0.00999999977 : f32
    %373 = vector.broadcast %cst_246 : f32 to vector<24x32xf32>
    %374 = arith.mulf %373, %370 : vector<24x32xf32>
    %375 = arith.select %372, %370, %374 : vector<24x32xi1>, vector<24x32xf32>
    %376 = arith.addf %351, %375 : vector<24x32xf32>
    %377 = arith.truncf %358 : vector<24x24xf32> to vector<24x24xbf16>
    %378 = arith.truncf %376 : vector<24x32xf32> to vector<24x32xbf16>
    %cst_247 = arith.constant dense<0.000000e+00> : vector<24x32xf32>
    %379 = tpu.matmul %377, %378, %cst_247 {dimension_numbers = #tpu.dot_dimension_numbers<[1], [0], [0], [1], [0, 0, 1, 1], [], []>} : vector<24x24xbf16>, vector<24x32xbf16>, vector<24x32xf32> -> vector<24x32xf32>
    %c1_248 = arith.constant 1 : index
    %c0_249 = arith.constant 0 : index
    %c0_250 = arith.constant 0 : index
    %380 = vector.load %arg15[%c1_248, %c0_249, %c0_250] : memref<4x32x32xf32, #tpu.memory_space<vmem>>, vector<1x32x32xf32>
    %381 = vector.shape_cast %380 : vector<1x32x32xf32> to vector<32x32xf32>
    %382 = arith.truncf %379 : vector<24x32xf32> to vector<24x32xbf16>
    %383 = arith.truncf %381 : vector<32x32xf32> to vector<32x32xbf16>
    %cst_251 = arith.constant dense<0.000000e+00> : vector<24x32xf32>
    %384 = tpu.matmul %382, %383, %cst_251 {dimension_numbers = #tpu.dot_dimension_numbers<[1], [0], [0], [1], [0, 0, 1, 1], [], []>} : vector<24x32xbf16>, vector<32x32xbf16>, vector<24x32xf32> -> vector<24x32xf32>
    %c1_252 = arith.constant 1 : index
    %c0_253 = arith.constant 0 : index
    %c0_254 = arith.constant 0 : index
    %385 = vector.load %arg16[%c1_252, %c0_253, %c0_254] : memref<4x1x32xf32, #tpu.memory_space<vmem>>, vector<1x1x32xf32>
    %386 = vector.shape_cast %385 : vector<1x1x32xf32> to vector<1x32xf32>
    %387 = vector.broadcast %386 : vector<1x32xf32> to vector<24x32xf32>
    %388 = arith.addf %384, %387 : vector<24x32xf32>
    %cst_255 = arith.constant 0.000000e+00 : f32
    %389 = vector.broadcast %cst_255 : f32 to vector<24x32xf32>
    %390 = arith.cmpf ogt, %388, %389 : vector<24x32xf32>
    %cst_256 = arith.constant 0.00999999977 : f32
    %391 = vector.broadcast %cst_256 : f32 to vector<24x32xf32>
    %392 = arith.mulf %391, %388 : vector<24x32xf32>
    %393 = arith.select %390, %388, %392 : vector<24x32xi1>, vector<24x32xf32>
    %394 = arith.addf %376, %393 : vector<24x32xf32>
    %395 = arith.truncf %358 : vector<24x24xf32> to vector<24x24xbf16>
    %396 = arith.truncf %394 : vector<24x32xf32> to vector<24x32xbf16>
    %cst_257 = arith.constant dense<0.000000e+00> : vector<24x32xf32>
    %397 = tpu.matmul %395, %396, %cst_257 {dimension_numbers = #tpu.dot_dimension_numbers<[1], [0], [0], [1], [0, 0, 1, 1], [], []>} : vector<24x24xbf16>, vector<24x32xbf16>, vector<24x32xf32> -> vector<24x32xf32>
    %c2_258 = arith.constant 2 : index
    %c0_259 = arith.constant 0 : index
    %c0_260 = arith.constant 0 : index
    %398 = vector.load %arg15[%c2_258, %c0_259, %c0_260] : memref<4x32x32xf32, #tpu.memory_space<vmem>>, vector<1x32x32xf32>
    %399 = vector.shape_cast %398 : vector<1x32x32xf32> to vector<32x32xf32>
    %400 = arith.truncf %397 : vector<24x32xf32> to vector<24x32xbf16>
    %401 = arith.truncf %399 : vector<32x32xf32> to vector<32x32xbf16>
    %cst_261 = arith.constant dense<0.000000e+00> : vector<24x32xf32>
    %402 = tpu.matmul %400, %401, %cst_261 {dimension_numbers = #tpu.dot_dimension_numbers<[1], [0], [0], [1], [0, 0, 1, 1], [], []>} : vector<24x32xbf16>, vector<32x32xbf16>, vector<24x32xf32> -> vector<24x32xf32>
    %c2_262 = arith.constant 2 : index
    %c0_263 = arith.constant 0 : index
    %c0_264 = arith.constant 0 : index
    %403 = vector.load %arg16[%c2_262, %c0_263, %c0_264] : memref<4x1x32xf32, #tpu.memory_space<vmem>>, vector<1x1x32xf32>
    %404 = vector.shape_cast %403 : vector<1x1x32xf32> to vector<1x32xf32>
    %405 = vector.broadcast %404 : vector<1x32xf32> to vector<24x32xf32>
    %406 = arith.addf %402, %405 : vector<24x32xf32>
    %cst_265 = arith.constant 0.000000e+00 : f32
    %407 = vector.broadcast %cst_265 : f32 to vector<24x32xf32>
    %408 = arith.cmpf ogt, %406, %407 : vector<24x32xf32>
    %cst_266 = arith.constant 0.00999999977 : f32
    %409 = vector.broadcast %cst_266 : f32 to vector<24x32xf32>
    %410 = arith.mulf %409, %406 : vector<24x32xf32>
    %411 = arith.select %408, %406, %410 : vector<24x32xi1>, vector<24x32xf32>
    %412 = arith.addf %394, %411 : vector<24x32xf32>
    %413 = arith.truncf %358 : vector<24x24xf32> to vector<24x24xbf16>
    %414 = arith.truncf %412 : vector<24x32xf32> to vector<24x32xbf16>
    %cst_267 = arith.constant dense<0.000000e+00> : vector<24x32xf32>
    %415 = tpu.matmul %413, %414, %cst_267 {dimension_numbers = #tpu.dot_dimension_numbers<[1], [0], [0], [1], [0, 0, 1, 1], [], []>} : vector<24x24xbf16>, vector<24x32xbf16>, vector<24x32xf32> -> vector<24x32xf32>
    %c3_268 = arith.constant 3 : index
    %c0_269 = arith.constant 0 : index
    %c0_270 = arith.constant 0 : index
    %416 = vector.load %arg15[%c3_268, %c0_269, %c0_270] : memref<4x32x32xf32, #tpu.memory_space<vmem>>, vector<1x32x32xf32>
    %417 = vector.shape_cast %416 : vector<1x32x32xf32> to vector<32x32xf32>
    %418 = arith.truncf %415 : vector<24x32xf32> to vector<24x32xbf16>
    %419 = arith.truncf %417 : vector<32x32xf32> to vector<32x32xbf16>
    %cst_271 = arith.constant dense<0.000000e+00> : vector<24x32xf32>
    %420 = tpu.matmul %418, %419, %cst_271 {dimension_numbers = #tpu.dot_dimension_numbers<[1], [0], [0], [1], [0, 0, 1, 1], [], []>} : vector<24x32xbf16>, vector<32x32xbf16>, vector<24x32xf32> -> vector<24x32xf32>
    %c3_272 = arith.constant 3 : index
    %c0_273 = arith.constant 0 : index
    %c0_274 = arith.constant 0 : index
    %421 = vector.load %arg16[%c3_272, %c0_273, %c0_274] : memref<4x1x32xf32, #tpu.memory_space<vmem>>, vector<1x1x32xf32>
    %422 = vector.shape_cast %421 : vector<1x1x32xf32> to vector<1x32xf32>
    %423 = vector.broadcast %422 : vector<1x32xf32> to vector<24x32xf32>
    %424 = arith.addf %420, %423 : vector<24x32xf32>
    %cst_275 = arith.constant 0.000000e+00 : f32
    %425 = vector.broadcast %cst_275 : f32 to vector<24x32xf32>
    %426 = arith.cmpf ogt, %424, %425 : vector<24x32xf32>
    %cst_276 = arith.constant 0.00999999977 : f32
    %427 = vector.broadcast %cst_276 : f32 to vector<24x32xf32>
    %428 = arith.mulf %427, %424 : vector<24x32xf32>
    %429 = arith.select %426, %424, %428 : vector<24x32xi1>, vector<24x32xf32>
    %430 = arith.addf %412, %429 : vector<24x32xf32>
    %c0_277 = arith.constant 0 : index
    %c0_278 = arith.constant 0 : index
    %431 = vector.load %arg6[%c0_277, %c0_278] : memref<24x24xf32, #tpu.memory_space<vmem>>, vector<24x24xf32>
    %c0_279 = arith.constant 0 : index
    %c0_280 = arith.constant 0 : index
    %c0_281 = arith.constant 0 : index
    %c0_282 = arith.constant 0 : index
    %432 = vector.load %arg17[%c0_279, %c0_280, %c0_281, %c0_282] : memref<4x4x32x32xf32, #tpu.memory_space<vmem>>, vector<1x1x32x32xf32>
    %433 = vector.shape_cast %432 : vector<1x1x32x32xf32> to vector<32x32xf32>
    %434 = arith.truncf %430 : vector<24x32xf32> to vector<24x32xbf16>
    %435 = arith.truncf %433 : vector<32x32xf32> to vector<32x32xbf16>
    %cst_283 = arith.constant dense<0.000000e+00> : vector<24x32xf32>
    %436 = tpu.matmul %434, %435, %cst_283 {dimension_numbers = #tpu.dot_dimension_numbers<[1], [0], [0], [1], [0, 0, 1, 1], [], []>} : vector<24x32xbf16>, vector<32x32xbf16>, vector<24x32xf32> -> vector<24x32xf32>
    %c0_284 = arith.constant 0 : index
    %c0_285 = arith.constant 0 : index
    %c0_286 = arith.constant 0 : index
    %c0_287 = arith.constant 0 : index
    %437 = vector.load %arg18[%c0_284, %c0_285, %c0_286, %c0_287] : memref<4x4x1x32xf32, #tpu.memory_space<vmem>>, vector<1x1x1x32xf32>
    %438 = vector.shape_cast %437 : vector<1x1x1x32xf32> to vector<1x32xf32>
    %439 = vector.broadcast %438 : vector<1x32xf32> to vector<24x32xf32>
    %440 = arith.addf %436, %439 : vector<24x32xf32>
    %c0_288 = arith.constant 0 : index
    %c1_289 = arith.constant 1 : index
    %c0_290 = arith.constant 0 : index
    %c0_291 = arith.constant 0 : index
    %441 = vector.load %arg17[%c0_288, %c1_289, %c0_290, %c0_291] : memref<4x4x32x32xf32, #tpu.memory_space<vmem>>, vector<1x1x32x32xf32>
    %442 = vector.shape_cast %441 : vector<1x1x32x32xf32> to vector<32x32xf32>
    %443 = arith.truncf %430 : vector<24x32xf32> to vector<24x32xbf16>
    %444 = arith.truncf %442 : vector<32x32xf32> to vector<32x32xbf16>
    %cst_292 = arith.constant dense<0.000000e+00> : vector<24x32xf32>
    %445 = tpu.matmul %443, %444, %cst_292 {dimension_numbers = #tpu.dot_dimension_numbers<[1], [0], [0], [1], [0, 0, 1, 1], [], []>} : vector<24x32xbf16>, vector<32x32xbf16>, vector<24x32xf32> -> vector<24x32xf32>
    %c0_293 = arith.constant 0 : index
    %c1_294 = arith.constant 1 : index
    %c0_295 = arith.constant 0 : index
    %c0_296 = arith.constant 0 : index
    %446 = vector.load %arg18[%c0_293, %c1_294, %c0_295, %c0_296] : memref<4x4x1x32xf32, #tpu.memory_space<vmem>>, vector<1x1x1x32xf32>
    %447 = vector.shape_cast %446 : vector<1x1x1x32xf32> to vector<1x32xf32>
    %448 = vector.broadcast %447 : vector<1x32xf32> to vector<24x32xf32>
    %449 = arith.addf %445, %448 : vector<24x32xf32>
    %c0_297 = arith.constant 0 : index
    %c2_298 = arith.constant 2 : index
    %c0_299 = arith.constant 0 : index
    %c0_300 = arith.constant 0 : index
    %450 = vector.load %arg17[%c0_297, %c2_298, %c0_299, %c0_300] : memref<4x4x32x32xf32, #tpu.memory_space<vmem>>, vector<1x1x32x32xf32>
    %451 = vector.shape_cast %450 : vector<1x1x32x32xf32> to vector<32x32xf32>
    %452 = arith.truncf %430 : vector<24x32xf32> to vector<24x32xbf16>
    %453 = arith.truncf %451 : vector<32x32xf32> to vector<32x32xbf16>
    %cst_301 = arith.constant dense<0.000000e+00> : vector<24x32xf32>
    %454 = tpu.matmul %452, %453, %cst_301 {dimension_numbers = #tpu.dot_dimension_numbers<[1], [0], [0], [1], [0, 0, 1, 1], [], []>} : vector<24x32xbf16>, vector<32x32xbf16>, vector<24x32xf32> -> vector<24x32xf32>
    %c0_302 = arith.constant 0 : index
    %c2_303 = arith.constant 2 : index
    %c0_304 = arith.constant 0 : index
    %c0_305 = arith.constant 0 : index
    %455 = vector.load %arg18[%c0_302, %c2_303, %c0_304, %c0_305] : memref<4x4x1x32xf32, #tpu.memory_space<vmem>>, vector<1x1x1x32xf32>
    %456 = vector.shape_cast %455 : vector<1x1x1x32xf32> to vector<1x32xf32>
    %457 = vector.broadcast %456 : vector<1x32xf32> to vector<24x32xf32>
    %458 = arith.addf %454, %457 : vector<24x32xf32>
    %459 = tpu.transpose %449, [1, 0] : vector<24x32xf32> -> vector<32x24xf32>
    %460 = arith.truncf %440 : vector<24x32xf32> to vector<24x32xbf16>
    %461 = arith.truncf %459 : vector<32x24xf32> to vector<32x24xbf16>
    %cst_306 = arith.constant dense<0.000000e+00> : vector<24x24xf32>
    %462 = tpu.matmul %460, %461, %cst_306 {dimension_numbers = #tpu.dot_dimension_numbers<[1], [0], [0], [1], [0, 0, 1, 1], [], []>} : vector<24x32xbf16>, vector<32x24xbf16>, vector<24x24xf32> -> vector<24x24xf32>
    %cst_307 = arith.constant 0.176776692 : f32
    %463 = vector.broadcast %cst_307 : f32 to vector<24x24xf32>
    %464 = arith.mulf %462, %463 : vector<24x24xf32>
    %465 = arith.addf %464, %431 : vector<24x24xf32>
    %cst_308 = arith.constant dense<0xFF800000> : vector<24xf32>
    %466 = vector.multi_reduction <maximumf>, %465, %cst_308 [1] : vector<24x24xf32> to vector<24xf32>
    %467 = vector.shape_cast %466 : vector<24xf32> to vector<24x1xf32>
    %468 = vector.broadcast %467 : vector<24x1xf32> to vector<24x24xf32>
    %469 = arith.subf %465, %468 : vector<24x24xf32>
    %cst_309 = arith.constant 0.000000e+00 : f32
    %470 = vector.broadcast %cst_309 : f32 to vector<24x24xf32>
    %471 = arith.minimumf %469, %470 : vector<24x24xf32>
    %472 = math.exp %471 : vector<24x24xf32>
    %cst_310 = arith.constant dense<0.000000e+00> : vector<24xf32>
    %473 = vector.multi_reduction <add>, %472, %cst_310 [1] : vector<24x24xf32> to vector<24xf32>
    %474 = vector.shape_cast %473 : vector<24xf32> to vector<24x1xf32>
    %475 = vector.broadcast %474 : vector<24x1xf32> to vector<24x24xf32>
    %476 = arith.divf %472, %475 : vector<24x24xf32>
    %477 = arith.truncf %476 : vector<24x24xf32> to vector<24x24xbf16>
    %478 = arith.truncf %458 : vector<24x32xf32> to vector<24x32xbf16>
    %cst_311 = arith.constant dense<0.000000e+00> : vector<24x32xf32>
    %479 = tpu.matmul %477, %478, %cst_311 {dimension_numbers = #tpu.dot_dimension_numbers<[1], [0], [0], [1], [0, 0, 1, 1], [], []>} : vector<24x24xbf16>, vector<24x32xbf16>, vector<24x32xf32> -> vector<24x32xf32>
    %c0_312 = arith.constant 0 : index
    %c3_313 = arith.constant 3 : index
    %c0_314 = arith.constant 0 : index
    %c0_315 = arith.constant 0 : index
    %480 = vector.load %arg17[%c0_312, %c3_313, %c0_314, %c0_315] : memref<4x4x32x32xf32, #tpu.memory_space<vmem>>, vector<1x1x32x32xf32>
    %481 = vector.shape_cast %480 : vector<1x1x32x32xf32> to vector<32x32xf32>
    %482 = arith.truncf %479 : vector<24x32xf32> to vector<24x32xbf16>
    %483 = arith.truncf %481 : vector<32x32xf32> to vector<32x32xbf16>
    %cst_316 = arith.constant dense<0.000000e+00> : vector<24x32xf32>
    %484 = tpu.matmul %482, %483, %cst_316 {dimension_numbers = #tpu.dot_dimension_numbers<[1], [0], [0], [1], [0, 0, 1, 1], [], []>} : vector<24x32xbf16>, vector<32x32xbf16>, vector<24x32xf32> -> vector<24x32xf32>
    %485 = arith.addf %430, %484 : vector<24x32xf32>
    %c0_317 = arith.constant 0 : index
    %c3_318 = arith.constant 3 : index
    %c0_319 = arith.constant 0 : index
    %c0_320 = arith.constant 0 : index
    %486 = vector.load %arg18[%c0_317, %c3_318, %c0_319, %c0_320] : memref<4x4x1x32xf32, #tpu.memory_space<vmem>>, vector<1x1x1x32xf32>
    %487 = vector.shape_cast %486 : vector<1x1x1x32xf32> to vector<1x32xf32>
    %488 = vector.broadcast %487 : vector<1x32xf32> to vector<24x32xf32>
    %489 = arith.addf %485, %488 : vector<24x32xf32>
    %c1_321 = arith.constant 1 : index
    %c0_322 = arith.constant 0 : index
    %c0_323 = arith.constant 0 : index
    %c0_324 = arith.constant 0 : index
    %490 = vector.load %arg17[%c1_321, %c0_322, %c0_323, %c0_324] : memref<4x4x32x32xf32, #tpu.memory_space<vmem>>, vector<1x1x32x32xf32>
    %491 = vector.shape_cast %490 : vector<1x1x32x32xf32> to vector<32x32xf32>
    %492 = arith.truncf %489 : vector<24x32xf32> to vector<24x32xbf16>
    %493 = arith.truncf %491 : vector<32x32xf32> to vector<32x32xbf16>
    %cst_325 = arith.constant dense<0.000000e+00> : vector<24x32xf32>
    %494 = tpu.matmul %492, %493, %cst_325 {dimension_numbers = #tpu.dot_dimension_numbers<[1], [0], [0], [1], [0, 0, 1, 1], [], []>} : vector<24x32xbf16>, vector<32x32xbf16>, vector<24x32xf32> -> vector<24x32xf32>
    %c1_326 = arith.constant 1 : index
    %c0_327 = arith.constant 0 : index
    %c0_328 = arith.constant 0 : index
    %c0_329 = arith.constant 0 : index
    %495 = vector.load %arg18[%c1_326, %c0_327, %c0_328, %c0_329] : memref<4x4x1x32xf32, #tpu.memory_space<vmem>>, vector<1x1x1x32xf32>
    %496 = vector.shape_cast %495 : vector<1x1x1x32xf32> to vector<1x32xf32>
    %497 = vector.broadcast %496 : vector<1x32xf32> to vector<24x32xf32>
    %498 = arith.addf %494, %497 : vector<24x32xf32>
    %c1_330 = arith.constant 1 : index
    %c1_331 = arith.constant 1 : index
    %c0_332 = arith.constant 0 : index
    %c0_333 = arith.constant 0 : index
    %499 = vector.load %arg17[%c1_330, %c1_331, %c0_332, %c0_333] : memref<4x4x32x32xf32, #tpu.memory_space<vmem>>, vector<1x1x32x32xf32>
    %500 = vector.shape_cast %499 : vector<1x1x32x32xf32> to vector<32x32xf32>
    %501 = arith.truncf %489 : vector<24x32xf32> to vector<24x32xbf16>
    %502 = arith.truncf %500 : vector<32x32xf32> to vector<32x32xbf16>
    %cst_334 = arith.constant dense<0.000000e+00> : vector<24x32xf32>
    %503 = tpu.matmul %501, %502, %cst_334 {dimension_numbers = #tpu.dot_dimension_numbers<[1], [0], [0], [1], [0, 0, 1, 1], [], []>} : vector<24x32xbf16>, vector<32x32xbf16>, vector<24x32xf32> -> vector<24x32xf32>
    %c1_335 = arith.constant 1 : index
    %c1_336 = arith.constant 1 : index
    %c0_337 = arith.constant 0 : index
    %c0_338 = arith.constant 0 : index
    %504 = vector.load %arg18[%c1_335, %c1_336, %c0_337, %c0_338] : memref<4x4x1x32xf32, #tpu.memory_space<vmem>>, vector<1x1x1x32xf32>
    %505 = vector.shape_cast %504 : vector<1x1x1x32xf32> to vector<1x32xf32>
    %506 = vector.broadcast %505 : vector<1x32xf32> to vector<24x32xf32>
    %507 = arith.addf %503, %506 : vector<24x32xf32>
    %c1_339 = arith.constant 1 : index
    %c2_340 = arith.constant 2 : index
    %c0_341 = arith.constant 0 : index
    %c0_342 = arith.constant 0 : index
    %508 = vector.load %arg17[%c1_339, %c2_340, %c0_341, %c0_342] : memref<4x4x32x32xf32, #tpu.memory_space<vmem>>, vector<1x1x32x32xf32>
    %509 = vector.shape_cast %508 : vector<1x1x32x32xf32> to vector<32x32xf32>
    %510 = arith.truncf %489 : vector<24x32xf32> to vector<24x32xbf16>
    %511 = arith.truncf %509 : vector<32x32xf32> to vector<32x32xbf16>
    %cst_343 = arith.constant dense<0.000000e+00> : vector<24x32xf32>
    %512 = tpu.matmul %510, %511, %cst_343 {dimension_numbers = #tpu.dot_dimension_numbers<[1], [0], [0], [1], [0, 0, 1, 1], [], []>} : vector<24x32xbf16>, vector<32x32xbf16>, vector<24x32xf32> -> vector<24x32xf32>
    %c1_344 = arith.constant 1 : index
    %c2_345 = arith.constant 2 : index
    %c0_346 = arith.constant 0 : index
    %c0_347 = arith.constant 0 : index
    %513 = vector.load %arg18[%c1_344, %c2_345, %c0_346, %c0_347] : memref<4x4x1x32xf32, #tpu.memory_space<vmem>>, vector<1x1x1x32xf32>
    %514 = vector.shape_cast %513 : vector<1x1x1x32xf32> to vector<1x32xf32>
    %515 = vector.broadcast %514 : vector<1x32xf32> to vector<24x32xf32>
    %516 = arith.addf %512, %515 : vector<24x32xf32>
    %517 = tpu.transpose %507, [1, 0] : vector<24x32xf32> -> vector<32x24xf32>
    %518 = arith.truncf %498 : vector<24x32xf32> to vector<24x32xbf16>
    %519 = arith.truncf %517 : vector<32x24xf32> to vector<32x24xbf16>
    %cst_348 = arith.constant dense<0.000000e+00> : vector<24x24xf32>
    %520 = tpu.matmul %518, %519, %cst_348 {dimension_numbers = #tpu.dot_dimension_numbers<[1], [0], [0], [1], [0, 0, 1, 1], [], []>} : vector<24x32xbf16>, vector<32x24xbf16>, vector<24x24xf32> -> vector<24x24xf32>
    %cst_349 = arith.constant 0.176776692 : f32
    %521 = vector.broadcast %cst_349 : f32 to vector<24x24xf32>
    %522 = arith.mulf %520, %521 : vector<24x24xf32>
    %523 = arith.addf %522, %431 : vector<24x24xf32>
    %cst_350 = arith.constant dense<0xFF800000> : vector<24xf32>
    %524 = vector.multi_reduction <maximumf>, %523, %cst_350 [1] : vector<24x24xf32> to vector<24xf32>
    %525 = vector.shape_cast %524 : vector<24xf32> to vector<24x1xf32>
    %526 = vector.broadcast %525 : vector<24x1xf32> to vector<24x24xf32>
    %527 = arith.subf %523, %526 : vector<24x24xf32>
    %cst_351 = arith.constant 0.000000e+00 : f32
    %528 = vector.broadcast %cst_351 : f32 to vector<24x24xf32>
    %529 = arith.minimumf %527, %528 : vector<24x24xf32>
    %530 = math.exp %529 : vector<24x24xf32>
    %cst_352 = arith.constant dense<0.000000e+00> : vector<24xf32>
    %531 = vector.multi_reduction <add>, %530, %cst_352 [1] : vector<24x24xf32> to vector<24xf32>
    %532 = vector.shape_cast %531 : vector<24xf32> to vector<24x1xf32>
    %533 = vector.broadcast %532 : vector<24x1xf32> to vector<24x24xf32>
    %534 = arith.divf %530, %533 : vector<24x24xf32>
    %535 = arith.truncf %534 : vector<24x24xf32> to vector<24x24xbf16>
    %536 = arith.truncf %516 : vector<24x32xf32> to vector<24x32xbf16>
    %cst_353 = arith.constant dense<0.000000e+00> : vector<24x32xf32>
    %537 = tpu.matmul %535, %536, %cst_353 {dimension_numbers = #tpu.dot_dimension_numbers<[1], [0], [0], [1], [0, 0, 1, 1], [], []>} : vector<24x24xbf16>, vector<24x32xbf16>, vector<24x32xf32> -> vector<24x32xf32>
    %c1_354 = arith.constant 1 : index
    %c3_355 = arith.constant 3 : index
    %c0_356 = arith.constant 0 : index
    %c0_357 = arith.constant 0 : index
    %538 = vector.load %arg17[%c1_354, %c3_355, %c0_356, %c0_357] : memref<4x4x32x32xf32, #tpu.memory_space<vmem>>, vector<1x1x32x32xf32>
    %539 = vector.shape_cast %538 : vector<1x1x32x32xf32> to vector<32x32xf32>
    %540 = arith.truncf %537 : vector<24x32xf32> to vector<24x32xbf16>
    %541 = arith.truncf %539 : vector<32x32xf32> to vector<32x32xbf16>
    %cst_358 = arith.constant dense<0.000000e+00> : vector<24x32xf32>
    %542 = tpu.matmul %540, %541, %cst_358 {dimension_numbers = #tpu.dot_dimension_numbers<[1], [0], [0], [1], [0, 0, 1, 1], [], []>} : vector<24x32xbf16>, vector<32x32xbf16>, vector<24x32xf32> -> vector<24x32xf32>
    %543 = arith.addf %489, %542 : vector<24x32xf32>
    %c1_359 = arith.constant 1 : index
    %c3_360 = arith.constant 3 : index
    %c0_361 = arith.constant 0 : index
    %c0_362 = arith.constant 0 : index
    %544 = vector.load %arg18[%c1_359, %c3_360, %c0_361, %c0_362] : memref<4x4x1x32xf32, #tpu.memory_space<vmem>>, vector<1x1x1x32xf32>
    %545 = vector.shape_cast %544 : vector<1x1x1x32xf32> to vector<1x32xf32>
    %546 = vector.broadcast %545 : vector<1x32xf32> to vector<24x32xf32>
    %547 = arith.addf %543, %546 : vector<24x32xf32>
    %c2_363 = arith.constant 2 : index
    %c0_364 = arith.constant 0 : index
    %c0_365 = arith.constant 0 : index
    %c0_366 = arith.constant 0 : index
    %548 = vector.load %arg17[%c2_363, %c0_364, %c0_365, %c0_366] : memref<4x4x32x32xf32, #tpu.memory_space<vmem>>, vector<1x1x32x32xf32>
    %549 = vector.shape_cast %548 : vector<1x1x32x32xf32> to vector<32x32xf32>
    %550 = arith.truncf %547 : vector<24x32xf32> to vector<24x32xbf16>
    %551 = arith.truncf %549 : vector<32x32xf32> to vector<32x32xbf16>
    %cst_367 = arith.constant dense<0.000000e+00> : vector<24x32xf32>
    %552 = tpu.matmul %550, %551, %cst_367 {dimension_numbers = #tpu.dot_dimension_numbers<[1], [0], [0], [1], [0, 0, 1, 1], [], []>} : vector<24x32xbf16>, vector<32x32xbf16>, vector<24x32xf32> -> vector<24x32xf32>
    %c2_368 = arith.constant 2 : index
    %c0_369 = arith.constant 0 : index
    %c0_370 = arith.constant 0 : index
    %c0_371 = arith.constant 0 : index
    %553 = vector.load %arg18[%c2_368, %c0_369, %c0_370, %c0_371] : memref<4x4x1x32xf32, #tpu.memory_space<vmem>>, vector<1x1x1x32xf32>
    %554 = vector.shape_cast %553 : vector<1x1x1x32xf32> to vector<1x32xf32>
    %555 = vector.broadcast %554 : vector<1x32xf32> to vector<24x32xf32>
    %556 = arith.addf %552, %555 : vector<24x32xf32>
    %c2_372 = arith.constant 2 : index
    %c1_373 = arith.constant 1 : index
    %c0_374 = arith.constant 0 : index
    %c0_375 = arith.constant 0 : index
    %557 = vector.load %arg17[%c2_372, %c1_373, %c0_374, %c0_375] : memref<4x4x32x32xf32, #tpu.memory_space<vmem>>, vector<1x1x32x32xf32>
    %558 = vector.shape_cast %557 : vector<1x1x32x32xf32> to vector<32x32xf32>
    %559 = arith.truncf %547 : vector<24x32xf32> to vector<24x32xbf16>
    %560 = arith.truncf %558 : vector<32x32xf32> to vector<32x32xbf16>
    %cst_376 = arith.constant dense<0.000000e+00> : vector<24x32xf32>
    %561 = tpu.matmul %559, %560, %cst_376 {dimension_numbers = #tpu.dot_dimension_numbers<[1], [0], [0], [1], [0, 0, 1, 1], [], []>} : vector<24x32xbf16>, vector<32x32xbf16>, vector<24x32xf32> -> vector<24x32xf32>
    %c2_377 = arith.constant 2 : index
    %c1_378 = arith.constant 1 : index
    %c0_379 = arith.constant 0 : index
    %c0_380 = arith.constant 0 : index
    %562 = vector.load %arg18[%c2_377, %c1_378, %c0_379, %c0_380] : memref<4x4x1x32xf32, #tpu.memory_space<vmem>>, vector<1x1x1x32xf32>
    %563 = vector.shape_cast %562 : vector<1x1x1x32xf32> to vector<1x32xf32>
    %564 = vector.broadcast %563 : vector<1x32xf32> to vector<24x32xf32>
    %565 = arith.addf %561, %564 : vector<24x32xf32>
    %c2_381 = arith.constant 2 : index
    %c2_382 = arith.constant 2 : index
    %c0_383 = arith.constant 0 : index
    %c0_384 = arith.constant 0 : index
    %566 = vector.load %arg17[%c2_381, %c2_382, %c0_383, %c0_384] : memref<4x4x32x32xf32, #tpu.memory_space<vmem>>, vector<1x1x32x32xf32>
    %567 = vector.shape_cast %566 : vector<1x1x32x32xf32> to vector<32x32xf32>
    %568 = arith.truncf %547 : vector<24x32xf32> to vector<24x32xbf16>
    %569 = arith.truncf %567 : vector<32x32xf32> to vector<32x32xbf16>
    %cst_385 = arith.constant dense<0.000000e+00> : vector<24x32xf32>
    %570 = tpu.matmul %568, %569, %cst_385 {dimension_numbers = #tpu.dot_dimension_numbers<[1], [0], [0], [1], [0, 0, 1, 1], [], []>} : vector<24x32xbf16>, vector<32x32xbf16>, vector<24x32xf32> -> vector<24x32xf32>
    %c2_386 = arith.constant 2 : index
    %c2_387 = arith.constant 2 : index
    %c0_388 = arith.constant 0 : index
    %c0_389 = arith.constant 0 : index
    %571 = vector.load %arg18[%c2_386, %c2_387, %c0_388, %c0_389] : memref<4x4x1x32xf32, #tpu.memory_space<vmem>>, vector<1x1x1x32xf32>
    %572 = vector.shape_cast %571 : vector<1x1x1x32xf32> to vector<1x32xf32>
    %573 = vector.broadcast %572 : vector<1x32xf32> to vector<24x32xf32>
    %574 = arith.addf %570, %573 : vector<24x32xf32>
    %575 = tpu.transpose %565, [1, 0] : vector<24x32xf32> -> vector<32x24xf32>
    %576 = arith.truncf %556 : vector<24x32xf32> to vector<24x32xbf16>
    %577 = arith.truncf %575 : vector<32x24xf32> to vector<32x24xbf16>
    %cst_390 = arith.constant dense<0.000000e+00> : vector<24x24xf32>
    %578 = tpu.matmul %576, %577, %cst_390 {dimension_numbers = #tpu.dot_dimension_numbers<[1], [0], [0], [1], [0, 0, 1, 1], [], []>} : vector<24x32xbf16>, vector<32x24xbf16>, vector<24x24xf32> -> vector<24x24xf32>
    %cst_391 = arith.constant 0.176776692 : f32
    %579 = vector.broadcast %cst_391 : f32 to vector<24x24xf32>
    %580 = arith.mulf %578, %579 : vector<24x24xf32>
    %581 = arith.addf %580, %431 : vector<24x24xf32>
    %cst_392 = arith.constant dense<0xFF800000> : vector<24xf32>
    %582 = vector.multi_reduction <maximumf>, %581, %cst_392 [1] : vector<24x24xf32> to vector<24xf32>
    %583 = vector.shape_cast %582 : vector<24xf32> to vector<24x1xf32>
    %584 = vector.broadcast %583 : vector<24x1xf32> to vector<24x24xf32>
    %585 = arith.subf %581, %584 : vector<24x24xf32>
    %cst_393 = arith.constant 0.000000e+00 : f32
    %586 = vector.broadcast %cst_393 : f32 to vector<24x24xf32>
    %587 = arith.minimumf %585, %586 : vector<24x24xf32>
    %588 = math.exp %587 : vector<24x24xf32>
    %cst_394 = arith.constant dense<0.000000e+00> : vector<24xf32>
    %589 = vector.multi_reduction <add>, %588, %cst_394 [1] : vector<24x24xf32> to vector<24xf32>
    %590 = vector.shape_cast %589 : vector<24xf32> to vector<24x1xf32>
    %591 = vector.broadcast %590 : vector<24x1xf32> to vector<24x24xf32>
    %592 = arith.divf %588, %591 : vector<24x24xf32>
    %593 = arith.truncf %592 : vector<24x24xf32> to vector<24x24xbf16>
    %594 = arith.truncf %574 : vector<24x32xf32> to vector<24x32xbf16>
    %cst_395 = arith.constant dense<0.000000e+00> : vector<24x32xf32>
    %595 = tpu.matmul %593, %594, %cst_395 {dimension_numbers = #tpu.dot_dimension_numbers<[1], [0], [0], [1], [0, 0, 1, 1], [], []>} : vector<24x24xbf16>, vector<24x32xbf16>, vector<24x32xf32> -> vector<24x32xf32>
    %c2_396 = arith.constant 2 : index
    %c3_397 = arith.constant 3 : index
    %c0_398 = arith.constant 0 : index
    %c0_399 = arith.constant 0 : index
    %596 = vector.load %arg17[%c2_396, %c3_397, %c0_398, %c0_399] : memref<4x4x32x32xf32, #tpu.memory_space<vmem>>, vector<1x1x32x32xf32>
    %597 = vector.shape_cast %596 : vector<1x1x32x32xf32> to vector<32x32xf32>
    %598 = arith.truncf %595 : vector<24x32xf32> to vector<24x32xbf16>
    %599 = arith.truncf %597 : vector<32x32xf32> to vector<32x32xbf16>
    %cst_400 = arith.constant dense<0.000000e+00> : vector<24x32xf32>
    %600 = tpu.matmul %598, %599, %cst_400 {dimension_numbers = #tpu.dot_dimension_numbers<[1], [0], [0], [1], [0, 0, 1, 1], [], []>} : vector<24x32xbf16>, vector<32x32xbf16>, vector<24x32xf32> -> vector<24x32xf32>
    %601 = arith.addf %547, %600 : vector<24x32xf32>
    %c2_401 = arith.constant 2 : index
    %c3_402 = arith.constant 3 : index
    %c0_403 = arith.constant 0 : index
    %c0_404 = arith.constant 0 : index
    %602 = vector.load %arg18[%c2_401, %c3_402, %c0_403, %c0_404] : memref<4x4x1x32xf32, #tpu.memory_space<vmem>>, vector<1x1x1x32xf32>
    %603 = vector.shape_cast %602 : vector<1x1x1x32xf32> to vector<1x32xf32>
    %604 = vector.broadcast %603 : vector<1x32xf32> to vector<24x32xf32>
    %605 = arith.addf %601, %604 : vector<24x32xf32>
    %c3_405 = arith.constant 3 : index
    %c0_406 = arith.constant 0 : index
    %c0_407 = arith.constant 0 : index
    %c0_408 = arith.constant 0 : index
    %606 = vector.load %arg17[%c3_405, %c0_406, %c0_407, %c0_408] : memref<4x4x32x32xf32, #tpu.memory_space<vmem>>, vector<1x1x32x32xf32>
    %607 = vector.shape_cast %606 : vector<1x1x32x32xf32> to vector<32x32xf32>
    %608 = arith.truncf %605 : vector<24x32xf32> to vector<24x32xbf16>
    %609 = arith.truncf %607 : vector<32x32xf32> to vector<32x32xbf16>
    %cst_409 = arith.constant dense<0.000000e+00> : vector<24x32xf32>
    %610 = tpu.matmul %608, %609, %cst_409 {dimension_numbers = #tpu.dot_dimension_numbers<[1], [0], [0], [1], [0, 0, 1, 1], [], []>} : vector<24x32xbf16>, vector<32x32xbf16>, vector<24x32xf32> -> vector<24x32xf32>
    %c3_410 = arith.constant 3 : index
    %c0_411 = arith.constant 0 : index
    %c0_412 = arith.constant 0 : index
    %c0_413 = arith.constant 0 : index
    %611 = vector.load %arg18[%c3_410, %c0_411, %c0_412, %c0_413] : memref<4x4x1x32xf32, #tpu.memory_space<vmem>>, vector<1x1x1x32xf32>
    %612 = vector.shape_cast %611 : vector<1x1x1x32xf32> to vector<1x32xf32>
    %613 = vector.broadcast %612 : vector<1x32xf32> to vector<24x32xf32>
    %614 = arith.addf %610, %613 : vector<24x32xf32>
    %c3_414 = arith.constant 3 : index
    %c1_415 = arith.constant 1 : index
    %c0_416 = arith.constant 0 : index
    %c0_417 = arith.constant 0 : index
    %615 = vector.load %arg17[%c3_414, %c1_415, %c0_416, %c0_417] : memref<4x4x32x32xf32, #tpu.memory_space<vmem>>, vector<1x1x32x32xf32>
    %616 = vector.shape_cast %615 : vector<1x1x32x32xf32> to vector<32x32xf32>
    %617 = arith.truncf %605 : vector<24x32xf32> to vector<24x32xbf16>
    %618 = arith.truncf %616 : vector<32x32xf32> to vector<32x32xbf16>
    %cst_418 = arith.constant dense<0.000000e+00> : vector<24x32xf32>
    %619 = tpu.matmul %617, %618, %cst_418 {dimension_numbers = #tpu.dot_dimension_numbers<[1], [0], [0], [1], [0, 0, 1, 1], [], []>} : vector<24x32xbf16>, vector<32x32xbf16>, vector<24x32xf32> -> vector<24x32xf32>
    %c3_419 = arith.constant 3 : index
    %c1_420 = arith.constant 1 : index
    %c0_421 = arith.constant 0 : index
    %c0_422 = arith.constant 0 : index
    %620 = vector.load %arg18[%c3_419, %c1_420, %c0_421, %c0_422] : memref<4x4x1x32xf32, #tpu.memory_space<vmem>>, vector<1x1x1x32xf32>
    %621 = vector.shape_cast %620 : vector<1x1x1x32xf32> to vector<1x32xf32>
    %622 = vector.broadcast %621 : vector<1x32xf32> to vector<24x32xf32>
    %623 = arith.addf %619, %622 : vector<24x32xf32>
    %c3_423 = arith.constant 3 : index
    %c2_424 = arith.constant 2 : index
    %c0_425 = arith.constant 0 : index
    %c0_426 = arith.constant 0 : index
    %624 = vector.load %arg17[%c3_423, %c2_424, %c0_425, %c0_426] : memref<4x4x32x32xf32, #tpu.memory_space<vmem>>, vector<1x1x32x32xf32>
    %625 = vector.shape_cast %624 : vector<1x1x32x32xf32> to vector<32x32xf32>
    %626 = arith.truncf %605 : vector<24x32xf32> to vector<24x32xbf16>
    %627 = arith.truncf %625 : vector<32x32xf32> to vector<32x32xbf16>
    %cst_427 = arith.constant dense<0.000000e+00> : vector<24x32xf32>
    %628 = tpu.matmul %626, %627, %cst_427 {dimension_numbers = #tpu.dot_dimension_numbers<[1], [0], [0], [1], [0, 0, 1, 1], [], []>} : vector<24x32xbf16>, vector<32x32xbf16>, vector<24x32xf32> -> vector<24x32xf32>
    %c3_428 = arith.constant 3 : index
    %c2_429 = arith.constant 2 : index
    %c0_430 = arith.constant 0 : index
    %c0_431 = arith.constant 0 : index
    %629 = vector.load %arg18[%c3_428, %c2_429, %c0_430, %c0_431] : memref<4x4x1x32xf32, #tpu.memory_space<vmem>>, vector<1x1x1x32xf32>
    %630 = vector.shape_cast %629 : vector<1x1x1x32xf32> to vector<1x32xf32>
    %631 = vector.broadcast %630 : vector<1x32xf32> to vector<24x32xf32>
    %632 = arith.addf %628, %631 : vector<24x32xf32>
    %633 = tpu.transpose %623, [1, 0] : vector<24x32xf32> -> vector<32x24xf32>
    %634 = arith.truncf %614 : vector<24x32xf32> to vector<24x32xbf16>
    %635 = arith.truncf %633 : vector<32x24xf32> to vector<32x24xbf16>
    %cst_432 = arith.constant dense<0.000000e+00> : vector<24x24xf32>
    %636 = tpu.matmul %634, %635, %cst_432 {dimension_numbers = #tpu.dot_dimension_numbers<[1], [0], [0], [1], [0, 0, 1, 1], [], []>} : vector<24x32xbf16>, vector<32x24xbf16>, vector<24x24xf32> -> vector<24x24xf32>
    %cst_433 = arith.constant 0.176776692 : f32
    %637 = vector.broadcast %cst_433 : f32 to vector<24x24xf32>
    %638 = arith.mulf %636, %637 : vector<24x24xf32>
    %639 = arith.addf %638, %431 : vector<24x24xf32>
    %cst_434 = arith.constant dense<0xFF800000> : vector<24xf32>
    %640 = vector.multi_reduction <maximumf>, %639, %cst_434 [1] : vector<24x24xf32> to vector<24xf32>
    %641 = vector.shape_cast %640 : vector<24xf32> to vector<24x1xf32>
    %642 = vector.broadcast %641 : vector<24x1xf32> to vector<24x24xf32>
    %643 = arith.subf %639, %642 : vector<24x24xf32>
    %cst_435 = arith.constant 0.000000e+00 : f32
    %644 = vector.broadcast %cst_435 : f32 to vector<24x24xf32>
    %645 = arith.minimumf %643, %644 : vector<24x24xf32>
    %646 = math.exp %645 : vector<24x24xf32>
    %cst_436 = arith.constant dense<0.000000e+00> : vector<24xf32>
    %647 = vector.multi_reduction <add>, %646, %cst_436 [1] : vector<24x24xf32> to vector<24xf32>
    %648 = vector.shape_cast %647 : vector<24xf32> to vector<24x1xf32>
    %649 = vector.broadcast %648 : vector<24x1xf32> to vector<24x24xf32>
    %650 = arith.divf %646, %649 : vector<24x24xf32>
    %651 = arith.truncf %650 : vector<24x24xf32> to vector<24x24xbf16>
    %652 = arith.truncf %632 : vector<24x32xf32> to vector<24x32xbf16>
    %cst_437 = arith.constant dense<0.000000e+00> : vector<24x32xf32>
    %653 = tpu.matmul %651, %652, %cst_437 {dimension_numbers = #tpu.dot_dimension_numbers<[1], [0], [0], [1], [0, 0, 1, 1], [], []>} : vector<24x24xbf16>, vector<24x32xbf16>, vector<24x32xf32> -> vector<24x32xf32>
    %c3_438 = arith.constant 3 : index
    %c3_439 = arith.constant 3 : index
    %c0_440 = arith.constant 0 : index
    %c0_441 = arith.constant 0 : index
    %654 = vector.load %arg17[%c3_438, %c3_439, %c0_440, %c0_441] : memref<4x4x32x32xf32, #tpu.memory_space<vmem>>, vector<1x1x32x32xf32>
    %655 = vector.shape_cast %654 : vector<1x1x32x32xf32> to vector<32x32xf32>
    %656 = arith.truncf %653 : vector<24x32xf32> to vector<24x32xbf16>
    %657 = arith.truncf %655 : vector<32x32xf32> to vector<32x32xbf16>
    %cst_442 = arith.constant dense<0.000000e+00> : vector<24x32xf32>
    %658 = tpu.matmul %656, %657, %cst_442 {dimension_numbers = #tpu.dot_dimension_numbers<[1], [0], [0], [1], [0, 0, 1, 1], [], []>} : vector<24x32xbf16>, vector<32x32xbf16>, vector<24x32xf32> -> vector<24x32xf32>
    %659 = arith.addf %605, %658 : vector<24x32xf32>
    %c3_443 = arith.constant 3 : index
    %c3_444 = arith.constant 3 : index
    %c0_445 = arith.constant 0 : index
    %c0_446 = arith.constant 0 : index
    %660 = vector.load %arg18[%c3_443, %c3_444, %c0_445, %c0_446] : memref<4x4x1x32xf32, #tpu.memory_space<vmem>>, vector<1x1x1x32xf32>
    %661 = vector.shape_cast %660 : vector<1x1x1x32xf32> to vector<1x32xf32>
    %662 = vector.broadcast %661 : vector<1x32xf32> to vector<24x32xf32>
    %663 = arith.addf %659, %662 : vector<24x32xf32>
    %c0_447 = arith.constant 0 : index
    %c0_448 = arith.constant 0 : index
    %664 = vector.load %arg27[%c0_447, %c0_448] : memref<32x16xf32, #tpu.memory_space<vmem>>, vector<32x16xf32>
    %c0_449 = arith.constant 0 : index
    %c0_450 = arith.constant 0 : index
    %665 = vector.load %arg28[%c0_449, %c0_450] : memref<1x16xf32, #tpu.memory_space<vmem>>, vector<1x16xf32>
    %c0_451 = arith.constant 0 : index
    %c0_452 = arith.constant 0 : index
    %666 = vector.load %arg29[%c0_451, %c0_452] : memref<32x32xf32, #tpu.memory_space<vmem>>, vector<32x32xf32>
    %c0_453 = arith.constant 0 : index
    %c0_454 = arith.constant 0 : index
    %667 = vector.load %arg30[%c0_453, %c0_454] : memref<1x32xf32, #tpu.memory_space<vmem>>, vector<1x32xf32>
    %668 = arith.truncf %357 : vector<24x24xf32> to vector<24x24xbf16>
    %669 = arith.truncf %663 : vector<24x32xf32> to vector<24x32xbf16>
    %cst_455 = arith.constant dense<0.000000e+00> : vector<24x32xf32>
    %670 = tpu.matmul %668, %669, %cst_455 {dimension_numbers = #tpu.dot_dimension_numbers<[1], [0], [0], [1], [0, 0, 1, 1], [], []>} : vector<24x24xbf16>, vector<24x32xbf16>, vector<24x32xf32> -> vector<24x32xf32>
    %671 = arith.truncf %670 : vector<24x32xf32> to vector<24x32xbf16>
    %672 = arith.truncf %664 : vector<32x16xf32> to vector<32x16xbf16>
    %cst_456 = arith.constant dense<0.000000e+00> : vector<24x16xf32>
    %673 = tpu.matmul %671, %672, %cst_456 {dimension_numbers = #tpu.dot_dimension_numbers<[1], [0], [0], [1], [0, 0, 1, 1], [], []>} : vector<24x32xbf16>, vector<32x16xbf16>, vector<24x16xf32> -> vector<24x16xf32>
    %674 = vector.broadcast %665 : vector<1x16xf32> to vector<24x16xf32>
    %675 = arith.addf %673, %674 : vector<24x16xf32>
    %cst_457 = arith.constant dense<0xFF800000> : vector<24xf32>
    %676 = vector.multi_reduction <maximumf>, %675, %cst_457 [1] : vector<24x16xf32> to vector<24xf32>
    %677 = vector.shape_cast %676 : vector<24xf32> to vector<24x1xf32>
    %678 = vector.broadcast %677 : vector<24x1xf32> to vector<24x16xf32>
    %679 = arith.subf %675, %678 : vector<24x16xf32>
    %cst_458 = arith.constant 0.000000e+00 : f32
    %680 = vector.broadcast %cst_458 : f32 to vector<24x16xf32>
    %681 = arith.minimumf %679, %680 : vector<24x16xf32>
    %682 = math.exp %681 : vector<24x16xf32>
    %cst_459 = arith.constant dense<0.000000e+00> : vector<24xf32>
    %683 = vector.multi_reduction <add>, %682, %cst_459 [1] : vector<24x16xf32> to vector<24xf32>
    %684 = vector.shape_cast %683 : vector<24xf32> to vector<24x1xf32>
    %685 = vector.broadcast %684 : vector<24x1xf32> to vector<24x16xf32>
    %686 = arith.divf %682, %685 : vector<24x16xf32>
    %687 = arith.truncf %670 : vector<24x32xf32> to vector<24x32xbf16>
    %688 = arith.truncf %666 : vector<32x32xf32> to vector<32x32xbf16>
    %cst_460 = arith.constant dense<0.000000e+00> : vector<24x32xf32>
    %689 = tpu.matmul %687, %688, %cst_460 {dimension_numbers = #tpu.dot_dimension_numbers<[1], [0], [0], [1], [0, 0, 1, 1], [], []>} : vector<24x32xbf16>, vector<32x32xbf16>, vector<24x32xf32> -> vector<24x32xf32>
    %690 = vector.broadcast %667 : vector<1x32xf32> to vector<24x32xf32>
    %691 = arith.addf %689, %690 : vector<24x32xf32>
    %cst_461 = arith.constant 0.000000e+00 : f32
    %692 = vector.broadcast %cst_461 : f32 to vector<24x32xf32>
    %693 = arith.cmpf ogt, %691, %692 : vector<24x32xf32>
    %cst_462 = arith.constant 0.00999999977 : f32
    %694 = vector.broadcast %cst_462 : f32 to vector<24x32xf32>
    %695 = arith.mulf %694, %691 : vector<24x32xf32>
    %696 = arith.select %693, %691, %695 : vector<24x32xi1>, vector<24x32xf32>
    %697 = tpu.transpose %686, [1, 0] : vector<24x16xf32> -> vector<16x24xf32>
    %698 = arith.truncf %697 : vector<16x24xf32> to vector<16x24xbf16>
    %699 = arith.truncf %696 : vector<24x32xf32> to vector<24x32xbf16>
    %cst_463 = arith.constant dense<0.000000e+00> : vector<16x32xf32>
    %700 = tpu.matmul %698, %699, %cst_463 {dimension_numbers = #tpu.dot_dimension_numbers<[1], [0], [0], [1], [0, 0, 1, 1], [], []>} : vector<16x24xbf16>, vector<24x32xbf16>, vector<16x32xf32> -> vector<16x32xf32>
    %c0_464 = arith.constant 0 : index
    %c0_465 = arith.constant 0 : index
    %701 = vector.load %arg4[%c0_464, %c0_465] : memref<16x16xf32, #tpu.memory_space<vmem>>, vector<16x16xf32>
    %702 = arith.truncf %701 : vector<16x16xf32> to vector<16x16xbf16>
    %703 = arith.truncf %700 : vector<16x32xf32> to vector<16x32xbf16>
    %cst_466 = arith.constant dense<0.000000e+00> : vector<16x32xf32>
    %704 = tpu.matmul %702, %703, %cst_466 {dimension_numbers = #tpu.dot_dimension_numbers<[1], [0], [0], [1], [0, 0, 1, 1], [], []>} : vector<16x16xbf16>, vector<16x32xbf16>, vector<16x32xf32> -> vector<16x32xf32>
    %c0_467 = arith.constant 0 : index
    %c0_468 = arith.constant 0 : index
    %c0_469 = arith.constant 0 : index
    %705 = vector.load %arg19[%c0_467, %c0_468, %c0_469] : memref<4x32x32xf32, #tpu.memory_space<vmem>>, vector<1x32x32xf32>
    %706 = vector.shape_cast %705 : vector<1x32x32xf32> to vector<32x32xf32>
    %707 = arith.truncf %704 : vector<16x32xf32> to vector<16x32xbf16>
    %708 = arith.truncf %706 : vector<32x32xf32> to vector<32x32xbf16>
    %cst_470 = arith.constant dense<0.000000e+00> : vector<16x32xf32>
    %709 = tpu.matmul %707, %708, %cst_470 {dimension_numbers = #tpu.dot_dimension_numbers<[1], [0], [0], [1], [0, 0, 1, 1], [], []>} : vector<16x32xbf16>, vector<32x32xbf16>, vector<16x32xf32> -> vector<16x32xf32>
    %c0_471 = arith.constant 0 : index
    %c0_472 = arith.constant 0 : index
    %c0_473 = arith.constant 0 : index
    %710 = vector.load %arg20[%c0_471, %c0_472, %c0_473] : memref<4x1x32xf32, #tpu.memory_space<vmem>>, vector<1x1x32xf32>
    %711 = vector.shape_cast %710 : vector<1x1x32xf32> to vector<1x32xf32>
    %712 = vector.broadcast %711 : vector<1x32xf32> to vector<16x32xf32>
    %713 = arith.addf %709, %712 : vector<16x32xf32>
    %cst_474 = arith.constant 0.000000e+00 : f32
    %714 = vector.broadcast %cst_474 : f32 to vector<16x32xf32>
    %715 = arith.cmpf ogt, %713, %714 : vector<16x32xf32>
    %cst_475 = arith.constant 0.00999999977 : f32
    %716 = vector.broadcast %cst_475 : f32 to vector<16x32xf32>
    %717 = arith.mulf %716, %713 : vector<16x32xf32>
    %718 = arith.select %715, %713, %717 : vector<16x32xi1>, vector<16x32xf32>
    %719 = arith.addf %700, %718 : vector<16x32xf32>
    %720 = arith.truncf %701 : vector<16x16xf32> to vector<16x16xbf16>
    %721 = arith.truncf %719 : vector<16x32xf32> to vector<16x32xbf16>
    %cst_476 = arith.constant dense<0.000000e+00> : vector<16x32xf32>
    %722 = tpu.matmul %720, %721, %cst_476 {dimension_numbers = #tpu.dot_dimension_numbers<[1], [0], [0], [1], [0, 0, 1, 1], [], []>} : vector<16x16xbf16>, vector<16x32xbf16>, vector<16x32xf32> -> vector<16x32xf32>
    %c1_477 = arith.constant 1 : index
    %c0_478 = arith.constant 0 : index
    %c0_479 = arith.constant 0 : index
    %723 = vector.load %arg19[%c1_477, %c0_478, %c0_479] : memref<4x32x32xf32, #tpu.memory_space<vmem>>, vector<1x32x32xf32>
    %724 = vector.shape_cast %723 : vector<1x32x32xf32> to vector<32x32xf32>
    %725 = arith.truncf %722 : vector<16x32xf32> to vector<16x32xbf16>
    %726 = arith.truncf %724 : vector<32x32xf32> to vector<32x32xbf16>
    %cst_480 = arith.constant dense<0.000000e+00> : vector<16x32xf32>
    %727 = tpu.matmul %725, %726, %cst_480 {dimension_numbers = #tpu.dot_dimension_numbers<[1], [0], [0], [1], [0, 0, 1, 1], [], []>} : vector<16x32xbf16>, vector<32x32xbf16>, vector<16x32xf32> -> vector<16x32xf32>
    %c1_481 = arith.constant 1 : index
    %c0_482 = arith.constant 0 : index
    %c0_483 = arith.constant 0 : index
    %728 = vector.load %arg20[%c1_481, %c0_482, %c0_483] : memref<4x1x32xf32, #tpu.memory_space<vmem>>, vector<1x1x32xf32>
    %729 = vector.shape_cast %728 : vector<1x1x32xf32> to vector<1x32xf32>
    %730 = vector.broadcast %729 : vector<1x32xf32> to vector<16x32xf32>
    %731 = arith.addf %727, %730 : vector<16x32xf32>
    %cst_484 = arith.constant 0.000000e+00 : f32
    %732 = vector.broadcast %cst_484 : f32 to vector<16x32xf32>
    %733 = arith.cmpf ogt, %731, %732 : vector<16x32xf32>
    %cst_485 = arith.constant 0.00999999977 : f32
    %734 = vector.broadcast %cst_485 : f32 to vector<16x32xf32>
    %735 = arith.mulf %734, %731 : vector<16x32xf32>
    %736 = arith.select %733, %731, %735 : vector<16x32xi1>, vector<16x32xf32>
    %737 = arith.addf %719, %736 : vector<16x32xf32>
    %738 = arith.truncf %701 : vector<16x16xf32> to vector<16x16xbf16>
    %739 = arith.truncf %737 : vector<16x32xf32> to vector<16x32xbf16>
    %cst_486 = arith.constant dense<0.000000e+00> : vector<16x32xf32>
    %740 = tpu.matmul %738, %739, %cst_486 {dimension_numbers = #tpu.dot_dimension_numbers<[1], [0], [0], [1], [0, 0, 1, 1], [], []>} : vector<16x16xbf16>, vector<16x32xbf16>, vector<16x32xf32> -> vector<16x32xf32>
    %c2_487 = arith.constant 2 : index
    %c0_488 = arith.constant 0 : index
    %c0_489 = arith.constant 0 : index
    %741 = vector.load %arg19[%c2_487, %c0_488, %c0_489] : memref<4x32x32xf32, #tpu.memory_space<vmem>>, vector<1x32x32xf32>
    %742 = vector.shape_cast %741 : vector<1x32x32xf32> to vector<32x32xf32>
    %743 = arith.truncf %740 : vector<16x32xf32> to vector<16x32xbf16>
    %744 = arith.truncf %742 : vector<32x32xf32> to vector<32x32xbf16>
    %cst_490 = arith.constant dense<0.000000e+00> : vector<16x32xf32>
    %745 = tpu.matmul %743, %744, %cst_490 {dimension_numbers = #tpu.dot_dimension_numbers<[1], [0], [0], [1], [0, 0, 1, 1], [], []>} : vector<16x32xbf16>, vector<32x32xbf16>, vector<16x32xf32> -> vector<16x32xf32>
    %c2_491 = arith.constant 2 : index
    %c0_492 = arith.constant 0 : index
    %c0_493 = arith.constant 0 : index
    %746 = vector.load %arg20[%c2_491, %c0_492, %c0_493] : memref<4x1x32xf32, #tpu.memory_space<vmem>>, vector<1x1x32xf32>
    %747 = vector.shape_cast %746 : vector<1x1x32xf32> to vector<1x32xf32>
    %748 = vector.broadcast %747 : vector<1x32xf32> to vector<16x32xf32>
    %749 = arith.addf %745, %748 : vector<16x32xf32>
    %cst_494 = arith.constant 0.000000e+00 : f32
    %750 = vector.broadcast %cst_494 : f32 to vector<16x32xf32>
    %751 = arith.cmpf ogt, %749, %750 : vector<16x32xf32>
    %cst_495 = arith.constant 0.00999999977 : f32
    %752 = vector.broadcast %cst_495 : f32 to vector<16x32xf32>
    %753 = arith.mulf %752, %749 : vector<16x32xf32>
    %754 = arith.select %751, %749, %753 : vector<16x32xi1>, vector<16x32xf32>
    %755 = arith.addf %737, %754 : vector<16x32xf32>
    %756 = arith.truncf %701 : vector<16x16xf32> to vector<16x16xbf16>
    %757 = arith.truncf %755 : vector<16x32xf32> to vector<16x32xbf16>
    %cst_496 = arith.constant dense<0.000000e+00> : vector<16x32xf32>
    %758 = tpu.matmul %756, %757, %cst_496 {dimension_numbers = #tpu.dot_dimension_numbers<[1], [0], [0], [1], [0, 0, 1, 1], [], []>} : vector<16x16xbf16>, vector<16x32xbf16>, vector<16x32xf32> -> vector<16x32xf32>
    %c3_497 = arith.constant 3 : index
    %c0_498 = arith.constant 0 : index
    %c0_499 = arith.constant 0 : index
    %759 = vector.load %arg19[%c3_497, %c0_498, %c0_499] : memref<4x32x32xf32, #tpu.memory_space<vmem>>, vector<1x32x32xf32>
    %760 = vector.shape_cast %759 : vector<1x32x32xf32> to vector<32x32xf32>
    %761 = arith.truncf %758 : vector<16x32xf32> to vector<16x32xbf16>
    %762 = arith.truncf %760 : vector<32x32xf32> to vector<32x32xbf16>
    %cst_500 = arith.constant dense<0.000000e+00> : vector<16x32xf32>
    %763 = tpu.matmul %761, %762, %cst_500 {dimension_numbers = #tpu.dot_dimension_numbers<[1], [0], [0], [1], [0, 0, 1, 1], [], []>} : vector<16x32xbf16>, vector<32x32xbf16>, vector<16x32xf32> -> vector<16x32xf32>
    %c3_501 = arith.constant 3 : index
    %c0_502 = arith.constant 0 : index
    %c0_503 = arith.constant 0 : index
    %764 = vector.load %arg20[%c3_501, %c0_502, %c0_503] : memref<4x1x32xf32, #tpu.memory_space<vmem>>, vector<1x1x32xf32>
    %765 = vector.shape_cast %764 : vector<1x1x32xf32> to vector<1x32xf32>
    %766 = vector.broadcast %765 : vector<1x32xf32> to vector<16x32xf32>
    %767 = arith.addf %763, %766 : vector<16x32xf32>
    %cst_504 = arith.constant 0.000000e+00 : f32
    %768 = vector.broadcast %cst_504 : f32 to vector<16x32xf32>
    %769 = arith.cmpf ogt, %767, %768 : vector<16x32xf32>
    %cst_505 = arith.constant 0.00999999977 : f32
    %770 = vector.broadcast %cst_505 : f32 to vector<16x32xf32>
    %771 = arith.mulf %770, %767 : vector<16x32xf32>
    %772 = arith.select %769, %767, %771 : vector<16x32xi1>, vector<16x32xf32>
    %773 = arith.addf %755, %772 : vector<16x32xf32>
    %c0_506 = arith.constant 0 : index
    %c0_507 = arith.constant 0 : index
    %774 = vector.load %arg7[%c0_506, %c0_507] : memref<16x16xf32, #tpu.memory_space<vmem>>, vector<16x16xf32>
    %c0_508 = arith.constant 0 : index
    %c0_509 = arith.constant 0 : index
    %c0_510 = arith.constant 0 : index
    %c0_511 = arith.constant 0 : index
    %775 = vector.load %arg21[%c0_508, %c0_509, %c0_510, %c0_511] : memref<4x4x32x32xf32, #tpu.memory_space<vmem>>, vector<1x1x32x32xf32>
    %776 = vector.shape_cast %775 : vector<1x1x32x32xf32> to vector<32x32xf32>
    %777 = arith.truncf %773 : vector<16x32xf32> to vector<16x32xbf16>
    %778 = arith.truncf %776 : vector<32x32xf32> to vector<32x32xbf16>
    %cst_512 = arith.constant dense<0.000000e+00> : vector<16x32xf32>
    %779 = tpu.matmul %777, %778, %cst_512 {dimension_numbers = #tpu.dot_dimension_numbers<[1], [0], [0], [1], [0, 0, 1, 1], [], []>} : vector<16x32xbf16>, vector<32x32xbf16>, vector<16x32xf32> -> vector<16x32xf32>
    %c0_513 = arith.constant 0 : index
    %c0_514 = arith.constant 0 : index
    %c0_515 = arith.constant 0 : index
    %c0_516 = arith.constant 0 : index
    %780 = vector.load %arg22[%c0_513, %c0_514, %c0_515, %c0_516] : memref<4x4x1x32xf32, #tpu.memory_space<vmem>>, vector<1x1x1x32xf32>
    %781 = vector.shape_cast %780 : vector<1x1x1x32xf32> to vector<1x32xf32>
    %782 = vector.broadcast %781 : vector<1x32xf32> to vector<16x32xf32>
    %783 = arith.addf %779, %782 : vector<16x32xf32>
    %c0_517 = arith.constant 0 : index
    %c1_518 = arith.constant 1 : index
    %c0_519 = arith.constant 0 : index
    %c0_520 = arith.constant 0 : index
    %784 = vector.load %arg21[%c0_517, %c1_518, %c0_519, %c0_520] : memref<4x4x32x32xf32, #tpu.memory_space<vmem>>, vector<1x1x32x32xf32>
    %785 = vector.shape_cast %784 : vector<1x1x32x32xf32> to vector<32x32xf32>
    %786 = arith.truncf %773 : vector<16x32xf32> to vector<16x32xbf16>
    %787 = arith.truncf %785 : vector<32x32xf32> to vector<32x32xbf16>
    %cst_521 = arith.constant dense<0.000000e+00> : vector<16x32xf32>
    %788 = tpu.matmul %786, %787, %cst_521 {dimension_numbers = #tpu.dot_dimension_numbers<[1], [0], [0], [1], [0, 0, 1, 1], [], []>} : vector<16x32xbf16>, vector<32x32xbf16>, vector<16x32xf32> -> vector<16x32xf32>
    %c0_522 = arith.constant 0 : index
    %c1_523 = arith.constant 1 : index
    %c0_524 = arith.constant 0 : index
    %c0_525 = arith.constant 0 : index
    %789 = vector.load %arg22[%c0_522, %c1_523, %c0_524, %c0_525] : memref<4x4x1x32xf32, #tpu.memory_space<vmem>>, vector<1x1x1x32xf32>
    %790 = vector.shape_cast %789 : vector<1x1x1x32xf32> to vector<1x32xf32>
    %791 = vector.broadcast %790 : vector<1x32xf32> to vector<16x32xf32>
    %792 = arith.addf %788, %791 : vector<16x32xf32>
    %c0_526 = arith.constant 0 : index
    %c2_527 = arith.constant 2 : index
    %c0_528 = arith.constant 0 : index
    %c0_529 = arith.constant 0 : index
    %793 = vector.load %arg21[%c0_526, %c2_527, %c0_528, %c0_529] : memref<4x4x32x32xf32, #tpu.memory_space<vmem>>, vector<1x1x32x32xf32>
    %794 = vector.shape_cast %793 : vector<1x1x32x32xf32> to vector<32x32xf32>
    %795 = arith.truncf %773 : vector<16x32xf32> to vector<16x32xbf16>
    %796 = arith.truncf %794 : vector<32x32xf32> to vector<32x32xbf16>
    %cst_530 = arith.constant dense<0.000000e+00> : vector<16x32xf32>
    %797 = tpu.matmul %795, %796, %cst_530 {dimension_numbers = #tpu.dot_dimension_numbers<[1], [0], [0], [1], [0, 0, 1, 1], [], []>} : vector<16x32xbf16>, vector<32x32xbf16>, vector<16x32xf32> -> vector<16x32xf32>
    %c0_531 = arith.constant 0 : index
    %c2_532 = arith.constant 2 : index
    %c0_533 = arith.constant 0 : index
    %c0_534 = arith.constant 0 : index
    %798 = vector.load %arg22[%c0_531, %c2_532, %c0_533, %c0_534] : memref<4x4x1x32xf32, #tpu.memory_space<vmem>>, vector<1x1x1x32xf32>
    %799 = vector.shape_cast %798 : vector<1x1x1x32xf32> to vector<1x32xf32>
    %800 = vector.broadcast %799 : vector<1x32xf32> to vector<16x32xf32>
    %801 = arith.addf %797, %800 : vector<16x32xf32>
    %802 = tpu.transpose %792, [1, 0] : vector<16x32xf32> -> vector<32x16xf32>
    %803 = arith.truncf %783 : vector<16x32xf32> to vector<16x32xbf16>
    %804 = arith.truncf %802 : vector<32x16xf32> to vector<32x16xbf16>
    %cst_535 = arith.constant dense<0.000000e+00> : vector<16x16xf32>
    %805 = tpu.matmul %803, %804, %cst_535 {dimension_numbers = #tpu.dot_dimension_numbers<[1], [0], [0], [1], [0, 0, 1, 1], [], []>} : vector<16x32xbf16>, vector<32x16xbf16>, vector<16x16xf32> -> vector<16x16xf32>
    %cst_536 = arith.constant 0.176776692 : f32
    %806 = vector.broadcast %cst_536 : f32 to vector<16x16xf32>
    %807 = arith.mulf %805, %806 : vector<16x16xf32>
    %808 = arith.addf %807, %774 : vector<16x16xf32>
    %cst_537 = arith.constant dense<0xFF800000> : vector<16xf32>
    %809 = vector.multi_reduction <maximumf>, %808, %cst_537 [1] : vector<16x16xf32> to vector<16xf32>
    %810 = vector.shape_cast %809 : vector<16xf32> to vector<16x1xf32>
    %811 = vector.broadcast %810 : vector<16x1xf32> to vector<16x16xf32>
    %812 = arith.subf %808, %811 : vector<16x16xf32>
    %cst_538 = arith.constant 0.000000e+00 : f32
    %813 = vector.broadcast %cst_538 : f32 to vector<16x16xf32>
    %814 = arith.minimumf %812, %813 : vector<16x16xf32>
    %815 = math.exp %814 : vector<16x16xf32>
    %cst_539 = arith.constant dense<0.000000e+00> : vector<16xf32>
    %816 = vector.multi_reduction <add>, %815, %cst_539 [1] : vector<16x16xf32> to vector<16xf32>
    %817 = vector.shape_cast %816 : vector<16xf32> to vector<16x1xf32>
    %818 = vector.broadcast %817 : vector<16x1xf32> to vector<16x16xf32>
    %819 = arith.divf %815, %818 : vector<16x16xf32>
    %820 = arith.truncf %819 : vector<16x16xf32> to vector<16x16xbf16>
    %821 = arith.truncf %801 : vector<16x32xf32> to vector<16x32xbf16>
    %cst_540 = arith.constant dense<0.000000e+00> : vector<16x32xf32>
    %822 = tpu.matmul %820, %821, %cst_540 {dimension_numbers = #tpu.dot_dimension_numbers<[1], [0], [0], [1], [0, 0, 1, 1], [], []>} : vector<16x16xbf16>, vector<16x32xbf16>, vector<16x32xf32> -> vector<16x32xf32>
    %c0_541 = arith.constant 0 : index
    %c3_542 = arith.constant 3 : index
    %c0_543 = arith.constant 0 : index
    %c0_544 = arith.constant 0 : index
    %823 = vector.load %arg21[%c0_541, %c3_542, %c0_543, %c0_544] : memref<4x4x32x32xf32, #tpu.memory_space<vmem>>, vector<1x1x32x32xf32>
    %824 = vector.shape_cast %823 : vector<1x1x32x32xf32> to vector<32x32xf32>
    %825 = arith.truncf %822 : vector<16x32xf32> to vector<16x32xbf16>
    %826 = arith.truncf %824 : vector<32x32xf32> to vector<32x32xbf16>
    %cst_545 = arith.constant dense<0.000000e+00> : vector<16x32xf32>
    %827 = tpu.matmul %825, %826, %cst_545 {dimension_numbers = #tpu.dot_dimension_numbers<[1], [0], [0], [1], [0, 0, 1, 1], [], []>} : vector<16x32xbf16>, vector<32x32xbf16>, vector<16x32xf32> -> vector<16x32xf32>
    %828 = arith.addf %773, %827 : vector<16x32xf32>
    %c0_546 = arith.constant 0 : index
    %c3_547 = arith.constant 3 : index
    %c0_548 = arith.constant 0 : index
    %c0_549 = arith.constant 0 : index
    %829 = vector.load %arg22[%c0_546, %c3_547, %c0_548, %c0_549] : memref<4x4x1x32xf32, #tpu.memory_space<vmem>>, vector<1x1x1x32xf32>
    %830 = vector.shape_cast %829 : vector<1x1x1x32xf32> to vector<1x32xf32>
    %831 = vector.broadcast %830 : vector<1x32xf32> to vector<16x32xf32>
    %832 = arith.addf %828, %831 : vector<16x32xf32>
    %c1_550 = arith.constant 1 : index
    %c0_551 = arith.constant 0 : index
    %c0_552 = arith.constant 0 : index
    %c0_553 = arith.constant 0 : index
    %833 = vector.load %arg21[%c1_550, %c0_551, %c0_552, %c0_553] : memref<4x4x32x32xf32, #tpu.memory_space<vmem>>, vector<1x1x32x32xf32>
    %834 = vector.shape_cast %833 : vector<1x1x32x32xf32> to vector<32x32xf32>
    %835 = arith.truncf %832 : vector<16x32xf32> to vector<16x32xbf16>
    %836 = arith.truncf %834 : vector<32x32xf32> to vector<32x32xbf16>
    %cst_554 = arith.constant dense<0.000000e+00> : vector<16x32xf32>
    %837 = tpu.matmul %835, %836, %cst_554 {dimension_numbers = #tpu.dot_dimension_numbers<[1], [0], [0], [1], [0, 0, 1, 1], [], []>} : vector<16x32xbf16>, vector<32x32xbf16>, vector<16x32xf32> -> vector<16x32xf32>
    %c1_555 = arith.constant 1 : index
    %c0_556 = arith.constant 0 : index
    %c0_557 = arith.constant 0 : index
    %c0_558 = arith.constant 0 : index
    %838 = vector.load %arg22[%c1_555, %c0_556, %c0_557, %c0_558] : memref<4x4x1x32xf32, #tpu.memory_space<vmem>>, vector<1x1x1x32xf32>
    %839 = vector.shape_cast %838 : vector<1x1x1x32xf32> to vector<1x32xf32>
    %840 = vector.broadcast %839 : vector<1x32xf32> to vector<16x32xf32>
    %841 = arith.addf %837, %840 : vector<16x32xf32>
    %c1_559 = arith.constant 1 : index
    %c1_560 = arith.constant 1 : index
    %c0_561 = arith.constant 0 : index
    %c0_562 = arith.constant 0 : index
    %842 = vector.load %arg21[%c1_559, %c1_560, %c0_561, %c0_562] : memref<4x4x32x32xf32, #tpu.memory_space<vmem>>, vector<1x1x32x32xf32>
    %843 = vector.shape_cast %842 : vector<1x1x32x32xf32> to vector<32x32xf32>
    %844 = arith.truncf %832 : vector<16x32xf32> to vector<16x32xbf16>
    %845 = arith.truncf %843 : vector<32x32xf32> to vector<32x32xbf16>
    %cst_563 = arith.constant dense<0.000000e+00> : vector<16x32xf32>
    %846 = tpu.matmul %844, %845, %cst_563 {dimension_numbers = #tpu.dot_dimension_numbers<[1], [0], [0], [1], [0, 0, 1, 1], [], []>} : vector<16x32xbf16>, vector<32x32xbf16>, vector<16x32xf32> -> vector<16x32xf32>
    %c1_564 = arith.constant 1 : index
    %c1_565 = arith.constant 1 : index
    %c0_566 = arith.constant 0 : index
    %c0_567 = arith.constant 0 : index
    %847 = vector.load %arg22[%c1_564, %c1_565, %c0_566, %c0_567] : memref<4x4x1x32xf32, #tpu.memory_space<vmem>>, vector<1x1x1x32xf32>
    %848 = vector.shape_cast %847 : vector<1x1x1x32xf32> to vector<1x32xf32>
    %849 = vector.broadcast %848 : vector<1x32xf32> to vector<16x32xf32>
    %850 = arith.addf %846, %849 : vector<16x32xf32>
    %c1_568 = arith.constant 1 : index
    %c2_569 = arith.constant 2 : index
    %c0_570 = arith.constant 0 : index
    %c0_571 = arith.constant 0 : index
    %851 = vector.load %arg21[%c1_568, %c2_569, %c0_570, %c0_571] : memref<4x4x32x32xf32, #tpu.memory_space<vmem>>, vector<1x1x32x32xf32>
    %852 = vector.shape_cast %851 : vector<1x1x32x32xf32> to vector<32x32xf32>
    %853 = arith.truncf %832 : vector<16x32xf32> to vector<16x32xbf16>
    %854 = arith.truncf %852 : vector<32x32xf32> to vector<32x32xbf16>
    %cst_572 = arith.constant dense<0.000000e+00> : vector<16x32xf32>
    %855 = tpu.matmul %853, %854, %cst_572 {dimension_numbers = #tpu.dot_dimension_numbers<[1], [0], [0], [1], [0, 0, 1, 1], [], []>} : vector<16x32xbf16>, vector<32x32xbf16>, vector<16x32xf32> -> vector<16x32xf32>
    %c1_573 = arith.constant 1 : index
    %c2_574 = arith.constant 2 : index
    %c0_575 = arith.constant 0 : index
    %c0_576 = arith.constant 0 : index
    %856 = vector.load %arg22[%c1_573, %c2_574, %c0_575, %c0_576] : memref<4x4x1x32xf32, #tpu.memory_space<vmem>>, vector<1x1x1x32xf32>
    %857 = vector.shape_cast %856 : vector<1x1x1x32xf32> to vector<1x32xf32>
    %858 = vector.broadcast %857 : vector<1x32xf32> to vector<16x32xf32>
    %859 = arith.addf %855, %858 : vector<16x32xf32>
    %860 = tpu.transpose %850, [1, 0] : vector<16x32xf32> -> vector<32x16xf32>
    %861 = arith.truncf %841 : vector<16x32xf32> to vector<16x32xbf16>
    %862 = arith.truncf %860 : vector<32x16xf32> to vector<32x16xbf16>
    %cst_577 = arith.constant dense<0.000000e+00> : vector<16x16xf32>
    %863 = tpu.matmul %861, %862, %cst_577 {dimension_numbers = #tpu.dot_dimension_numbers<[1], [0], [0], [1], [0, 0, 1, 1], [], []>} : vector<16x32xbf16>, vector<32x16xbf16>, vector<16x16xf32> -> vector<16x16xf32>
    %cst_578 = arith.constant 0.176776692 : f32
    %864 = vector.broadcast %cst_578 : f32 to vector<16x16xf32>
    %865 = arith.mulf %863, %864 : vector<16x16xf32>
    %866 = arith.addf %865, %774 : vector<16x16xf32>
    %cst_579 = arith.constant dense<0xFF800000> : vector<16xf32>
    %867 = vector.multi_reduction <maximumf>, %866, %cst_579 [1] : vector<16x16xf32> to vector<16xf32>
    %868 = vector.shape_cast %867 : vector<16xf32> to vector<16x1xf32>
    %869 = vector.broadcast %868 : vector<16x1xf32> to vector<16x16xf32>
    %870 = arith.subf %866, %869 : vector<16x16xf32>
    %cst_580 = arith.constant 0.000000e+00 : f32
    %871 = vector.broadcast %cst_580 : f32 to vector<16x16xf32>
    %872 = arith.minimumf %870, %871 : vector<16x16xf32>
    %873 = math.exp %872 : vector<16x16xf32>
    %cst_581 = arith.constant dense<0.000000e+00> : vector<16xf32>
    %874 = vector.multi_reduction <add>, %873, %cst_581 [1] : vector<16x16xf32> to vector<16xf32>
    %875 = vector.shape_cast %874 : vector<16xf32> to vector<16x1xf32>
    %876 = vector.broadcast %875 : vector<16x1xf32> to vector<16x16xf32>
    %877 = arith.divf %873, %876 : vector<16x16xf32>
    %878 = arith.truncf %877 : vector<16x16xf32> to vector<16x16xbf16>
    %879 = arith.truncf %859 : vector<16x32xf32> to vector<16x32xbf16>
    %cst_582 = arith.constant dense<0.000000e+00> : vector<16x32xf32>
    %880 = tpu.matmul %878, %879, %cst_582 {dimension_numbers = #tpu.dot_dimension_numbers<[1], [0], [0], [1], [0, 0, 1, 1], [], []>} : vector<16x16xbf16>, vector<16x32xbf16>, vector<16x32xf32> -> vector<16x32xf32>
    %c1_583 = arith.constant 1 : index
    %c3_584 = arith.constant 3 : index
    %c0_585 = arith.constant 0 : index
    %c0_586 = arith.constant 0 : index
    %881 = vector.load %arg21[%c1_583, %c3_584, %c0_585, %c0_586] : memref<4x4x32x32xf32, #tpu.memory_space<vmem>>, vector<1x1x32x32xf32>
    %882 = vector.shape_cast %881 : vector<1x1x32x32xf32> to vector<32x32xf32>
    %883 = arith.truncf %880 : vector<16x32xf32> to vector<16x32xbf16>
    %884 = arith.truncf %882 : vector<32x32xf32> to vector<32x32xbf16>
    %cst_587 = arith.constant dense<0.000000e+00> : vector<16x32xf32>
    %885 = tpu.matmul %883, %884, %cst_587 {dimension_numbers = #tpu.dot_dimension_numbers<[1], [0], [0], [1], [0, 0, 1, 1], [], []>} : vector<16x32xbf16>, vector<32x32xbf16>, vector<16x32xf32> -> vector<16x32xf32>
    %886 = arith.addf %832, %885 : vector<16x32xf32>
    %c1_588 = arith.constant 1 : index
    %c3_589 = arith.constant 3 : index
    %c0_590 = arith.constant 0 : index
    %c0_591 = arith.constant 0 : index
    %887 = vector.load %arg22[%c1_588, %c3_589, %c0_590, %c0_591] : memref<4x4x1x32xf32, #tpu.memory_space<vmem>>, vector<1x1x1x32xf32>
    %888 = vector.shape_cast %887 : vector<1x1x1x32xf32> to vector<1x32xf32>
    %889 = vector.broadcast %888 : vector<1x32xf32> to vector<16x32xf32>
    %890 = arith.addf %886, %889 : vector<16x32xf32>
    %c2_592 = arith.constant 2 : index
    %c0_593 = arith.constant 0 : index
    %c0_594 = arith.constant 0 : index
    %c0_595 = arith.constant 0 : index
    %891 = vector.load %arg21[%c2_592, %c0_593, %c0_594, %c0_595] : memref<4x4x32x32xf32, #tpu.memory_space<vmem>>, vector<1x1x32x32xf32>
    %892 = vector.shape_cast %891 : vector<1x1x32x32xf32> to vector<32x32xf32>
    %893 = arith.truncf %890 : vector<16x32xf32> to vector<16x32xbf16>
    %894 = arith.truncf %892 : vector<32x32xf32> to vector<32x32xbf16>
    %cst_596 = arith.constant dense<0.000000e+00> : vector<16x32xf32>
    %895 = tpu.matmul %893, %894, %cst_596 {dimension_numbers = #tpu.dot_dimension_numbers<[1], [0], [0], [1], [0, 0, 1, 1], [], []>} : vector<16x32xbf16>, vector<32x32xbf16>, vector<16x32xf32> -> vector<16x32xf32>
    %c2_597 = arith.constant 2 : index
    %c0_598 = arith.constant 0 : index
    %c0_599 = arith.constant 0 : index
    %c0_600 = arith.constant 0 : index
    %896 = vector.load %arg22[%c2_597, %c0_598, %c0_599, %c0_600] : memref<4x4x1x32xf32, #tpu.memory_space<vmem>>, vector<1x1x1x32xf32>
    %897 = vector.shape_cast %896 : vector<1x1x1x32xf32> to vector<1x32xf32>
    %898 = vector.broadcast %897 : vector<1x32xf32> to vector<16x32xf32>
    %899 = arith.addf %895, %898 : vector<16x32xf32>
    %c2_601 = arith.constant 2 : index
    %c1_602 = arith.constant 1 : index
    %c0_603 = arith.constant 0 : index
    %c0_604 = arith.constant 0 : index
    %900 = vector.load %arg21[%c2_601, %c1_602, %c0_603, %c0_604] : memref<4x4x32x32xf32, #tpu.memory_space<vmem>>, vector<1x1x32x32xf32>
    %901 = vector.shape_cast %900 : vector<1x1x32x32xf32> to vector<32x32xf32>
    %902 = arith.truncf %890 : vector<16x32xf32> to vector<16x32xbf16>
    %903 = arith.truncf %901 : vector<32x32xf32> to vector<32x32xbf16>
    %cst_605 = arith.constant dense<0.000000e+00> : vector<16x32xf32>
    %904 = tpu.matmul %902, %903, %cst_605 {dimension_numbers = #tpu.dot_dimension_numbers<[1], [0], [0], [1], [0, 0, 1, 1], [], []>} : vector<16x32xbf16>, vector<32x32xbf16>, vector<16x32xf32> -> vector<16x32xf32>
    %c2_606 = arith.constant 2 : index
    %c1_607 = arith.constant 1 : index
    %c0_608 = arith.constant 0 : index
    %c0_609 = arith.constant 0 : index
    %905 = vector.load %arg22[%c2_606, %c1_607, %c0_608, %c0_609] : memref<4x4x1x32xf32, #tpu.memory_space<vmem>>, vector<1x1x1x32xf32>
    %906 = vector.shape_cast %905 : vector<1x1x1x32xf32> to vector<1x32xf32>
    %907 = vector.broadcast %906 : vector<1x32xf32> to vector<16x32xf32>
    %908 = arith.addf %904, %907 : vector<16x32xf32>
    %c2_610 = arith.constant 2 : index
    %c2_611 = arith.constant 2 : index
    %c0_612 = arith.constant 0 : index
    %c0_613 = arith.constant 0 : index
    %909 = vector.load %arg21[%c2_610, %c2_611, %c0_612, %c0_613] : memref<4x4x32x32xf32, #tpu.memory_space<vmem>>, vector<1x1x32x32xf32>
    %910 = vector.shape_cast %909 : vector<1x1x32x32xf32> to vector<32x32xf32>
    %911 = arith.truncf %890 : vector<16x32xf32> to vector<16x32xbf16>
    %912 = arith.truncf %910 : vector<32x32xf32> to vector<32x32xbf16>
    %cst_614 = arith.constant dense<0.000000e+00> : vector<16x32xf32>
    %913 = tpu.matmul %911, %912, %cst_614 {dimension_numbers = #tpu.dot_dimension_numbers<[1], [0], [0], [1], [0, 0, 1, 1], [], []>} : vector<16x32xbf16>, vector<32x32xbf16>, vector<16x32xf32> -> vector<16x32xf32>
    %c2_615 = arith.constant 2 : index
    %c2_616 = arith.constant 2 : index
    %c0_617 = arith.constant 0 : index
    %c0_618 = arith.constant 0 : index
    %914 = vector.load %arg22[%c2_615, %c2_616, %c0_617, %c0_618] : memref<4x4x1x32xf32, #tpu.memory_space<vmem>>, vector<1x1x1x32xf32>
    %915 = vector.shape_cast %914 : vector<1x1x1x32xf32> to vector<1x32xf32>
    %916 = vector.broadcast %915 : vector<1x32xf32> to vector<16x32xf32>
    %917 = arith.addf %913, %916 : vector<16x32xf32>
    %918 = tpu.transpose %908, [1, 0] : vector<16x32xf32> -> vector<32x16xf32>
    %919 = arith.truncf %899 : vector<16x32xf32> to vector<16x32xbf16>
    %920 = arith.truncf %918 : vector<32x16xf32> to vector<32x16xbf16>
    %cst_619 = arith.constant dense<0.000000e+00> : vector<16x16xf32>
    %921 = tpu.matmul %919, %920, %cst_619 {dimension_numbers = #tpu.dot_dimension_numbers<[1], [0], [0], [1], [0, 0, 1, 1], [], []>} : vector<16x32xbf16>, vector<32x16xbf16>, vector<16x16xf32> -> vector<16x16xf32>
    %cst_620 = arith.constant 0.176776692 : f32
    %922 = vector.broadcast %cst_620 : f32 to vector<16x16xf32>
    %923 = arith.mulf %921, %922 : vector<16x16xf32>
    %924 = arith.addf %923, %774 : vector<16x16xf32>
    %cst_621 = arith.constant dense<0xFF800000> : vector<16xf32>
    %925 = vector.multi_reduction <maximumf>, %924, %cst_621 [1] : vector<16x16xf32> to vector<16xf32>
    %926 = vector.shape_cast %925 : vector<16xf32> to vector<16x1xf32>
    %927 = vector.broadcast %926 : vector<16x1xf32> to vector<16x16xf32>
    %928 = arith.subf %924, %927 : vector<16x16xf32>
    %cst_622 = arith.constant 0.000000e+00 : f32
    %929 = vector.broadcast %cst_622 : f32 to vector<16x16xf32>
    %930 = arith.minimumf %928, %929 : vector<16x16xf32>
    %931 = math.exp %930 : vector<16x16xf32>
    %cst_623 = arith.constant dense<0.000000e+00> : vector<16xf32>
    %932 = vector.multi_reduction <add>, %931, %cst_623 [1] : vector<16x16xf32> to vector<16xf32>
    %933 = vector.shape_cast %932 : vector<16xf32> to vector<16x1xf32>
    %934 = vector.broadcast %933 : vector<16x1xf32> to vector<16x16xf32>
    %935 = arith.divf %931, %934 : vector<16x16xf32>
    %936 = arith.truncf %935 : vector<16x16xf32> to vector<16x16xbf16>
    %937 = arith.truncf %917 : vector<16x32xf32> to vector<16x32xbf16>
    %cst_624 = arith.constant dense<0.000000e+00> : vector<16x32xf32>
    %938 = tpu.matmul %936, %937, %cst_624 {dimension_numbers = #tpu.dot_dimension_numbers<[1], [0], [0], [1], [0, 0, 1, 1], [], []>} : vector<16x16xbf16>, vector<16x32xbf16>, vector<16x32xf32> -> vector<16x32xf32>
    %c2_625 = arith.constant 2 : index
    %c3_626 = arith.constant 3 : index
    %c0_627 = arith.constant 0 : index
    %c0_628 = arith.constant 0 : index
    %939 = vector.load %arg21[%c2_625, %c3_626, %c0_627, %c0_628] : memref<4x4x32x32xf32, #tpu.memory_space<vmem>>, vector<1x1x32x32xf32>
    %940 = vector.shape_cast %939 : vector<1x1x32x32xf32> to vector<32x32xf32>
    %941 = arith.truncf %938 : vector<16x32xf32> to vector<16x32xbf16>
    %942 = arith.truncf %940 : vector<32x32xf32> to vector<32x32xbf16>
    %cst_629 = arith.constant dense<0.000000e+00> : vector<16x32xf32>
    %943 = tpu.matmul %941, %942, %cst_629 {dimension_numbers = #tpu.dot_dimension_numbers<[1], [0], [0], [1], [0, 0, 1, 1], [], []>} : vector<16x32xbf16>, vector<32x32xbf16>, vector<16x32xf32> -> vector<16x32xf32>
    %944 = arith.addf %890, %943 : vector<16x32xf32>
    %c2_630 = arith.constant 2 : index
    %c3_631 = arith.constant 3 : index
    %c0_632 = arith.constant 0 : index
    %c0_633 = arith.constant 0 : index
    %945 = vector.load %arg22[%c2_630, %c3_631, %c0_632, %c0_633] : memref<4x4x1x32xf32, #tpu.memory_space<vmem>>, vector<1x1x1x32xf32>
    %946 = vector.shape_cast %945 : vector<1x1x1x32xf32> to vector<1x32xf32>
    %947 = vector.broadcast %946 : vector<1x32xf32> to vector<16x32xf32>
    %948 = arith.addf %944, %947 : vector<16x32xf32>
    %c3_634 = arith.constant 3 : index
    %c0_635 = arith.constant 0 : index
    %c0_636 = arith.constant 0 : index
    %c0_637 = arith.constant 0 : index
    %949 = vector.load %arg21[%c3_634, %c0_635, %c0_636, %c0_637] : memref<4x4x32x32xf32, #tpu.memory_space<vmem>>, vector<1x1x32x32xf32>
    %950 = vector.shape_cast %949 : vector<1x1x32x32xf32> to vector<32x32xf32>
    %951 = arith.truncf %948 : vector<16x32xf32> to vector<16x32xbf16>
    %952 = arith.truncf %950 : vector<32x32xf32> to vector<32x32xbf16>
    %cst_638 = arith.constant dense<0.000000e+00> : vector<16x32xf32>
    %953 = tpu.matmul %951, %952, %cst_638 {dimension_numbers = #tpu.dot_dimension_numbers<[1], [0], [0], [1], [0, 0, 1, 1], [], []>} : vector<16x32xbf16>, vector<32x32xbf16>, vector<16x32xf32> -> vector<16x32xf32>
    %c3_639 = arith.constant 3 : index
    %c0_640 = arith.constant 0 : index
    %c0_641 = arith.constant 0 : index
    %c0_642 = arith.constant 0 : index
    %954 = vector.load %arg22[%c3_639, %c0_640, %c0_641, %c0_642] : memref<4x4x1x32xf32, #tpu.memory_space<vmem>>, vector<1x1x1x32xf32>
    %955 = vector.shape_cast %954 : vector<1x1x1x32xf32> to vector<1x32xf32>
    %956 = vector.broadcast %955 : vector<1x32xf32> to vector<16x32xf32>
    %957 = arith.addf %953, %956 : vector<16x32xf32>
    %c3_643 = arith.constant 3 : index
    %c1_644 = arith.constant 1 : index
    %c0_645 = arith.constant 0 : index
    %c0_646 = arith.constant 0 : index
    %958 = vector.load %arg21[%c3_643, %c1_644, %c0_645, %c0_646] : memref<4x4x32x32xf32, #tpu.memory_space<vmem>>, vector<1x1x32x32xf32>
    %959 = vector.shape_cast %958 : vector<1x1x32x32xf32> to vector<32x32xf32>
    %960 = arith.truncf %948 : vector<16x32xf32> to vector<16x32xbf16>
    %961 = arith.truncf %959 : vector<32x32xf32> to vector<32x32xbf16>
    %cst_647 = arith.constant dense<0.000000e+00> : vector<16x32xf32>
    %962 = tpu.matmul %960, %961, %cst_647 {dimension_numbers = #tpu.dot_dimension_numbers<[1], [0], [0], [1], [0, 0, 1, 1], [], []>} : vector<16x32xbf16>, vector<32x32xbf16>, vector<16x32xf32> -> vector<16x32xf32>
    %c3_648 = arith.constant 3 : index
    %c1_649 = arith.constant 1 : index
    %c0_650 = arith.constant 0 : index
    %c0_651 = arith.constant 0 : index
    %963 = vector.load %arg22[%c3_648, %c1_649, %c0_650, %c0_651] : memref<4x4x1x32xf32, #tpu.memory_space<vmem>>, vector<1x1x1x32xf32>
    %964 = vector.shape_cast %963 : vector<1x1x1x32xf32> to vector<1x32xf32>
    %965 = vector.broadcast %964 : vector<1x32xf32> to vector<16x32xf32>
    %966 = arith.addf %962, %965 : vector<16x32xf32>
    %c3_652 = arith.constant 3 : index
    %c2_653 = arith.constant 2 : index
    %c0_654 = arith.constant 0 : index
    %c0_655 = arith.constant 0 : index
    %967 = vector.load %arg21[%c3_652, %c2_653, %c0_654, %c0_655] : memref<4x4x32x32xf32, #tpu.memory_space<vmem>>, vector<1x1x32x32xf32>
    %968 = vector.shape_cast %967 : vector<1x1x32x32xf32> to vector<32x32xf32>
    %969 = arith.truncf %948 : vector<16x32xf32> to vector<16x32xbf16>
    %970 = arith.truncf %968 : vector<32x32xf32> to vector<32x32xbf16>
    %cst_656 = arith.constant dense<0.000000e+00> : vector<16x32xf32>
    %971 = tpu.matmul %969, %970, %cst_656 {dimension_numbers = #tpu.dot_dimension_numbers<[1], [0], [0], [1], [0, 0, 1, 1], [], []>} : vector<16x32xbf16>, vector<32x32xbf16>, vector<16x32xf32> -> vector<16x32xf32>
    %c3_657 = arith.constant 3 : index
    %c2_658 = arith.constant 2 : index
    %c0_659 = arith.constant 0 : index
    %c0_660 = arith.constant 0 : index
    %972 = vector.load %arg22[%c3_657, %c2_658, %c0_659, %c0_660] : memref<4x4x1x32xf32, #tpu.memory_space<vmem>>, vector<1x1x1x32xf32>
    %973 = vector.shape_cast %972 : vector<1x1x1x32xf32> to vector<1x32xf32>
    %974 = vector.broadcast %973 : vector<1x32xf32> to vector<16x32xf32>
    %975 = arith.addf %971, %974 : vector<16x32xf32>
    %976 = tpu.transpose %966, [1, 0] : vector<16x32xf32> -> vector<32x16xf32>
    %977 = arith.truncf %957 : vector<16x32xf32> to vector<16x32xbf16>
    %978 = arith.truncf %976 : vector<32x16xf32> to vector<32x16xbf16>
    %cst_661 = arith.constant dense<0.000000e+00> : vector<16x16xf32>
    %979 = tpu.matmul %977, %978, %cst_661 {dimension_numbers = #tpu.dot_dimension_numbers<[1], [0], [0], [1], [0, 0, 1, 1], [], []>} : vector<16x32xbf16>, vector<32x16xbf16>, vector<16x16xf32> -> vector<16x16xf32>
    %cst_662 = arith.constant 0.176776692 : f32
    %980 = vector.broadcast %cst_662 : f32 to vector<16x16xf32>
    %981 = arith.mulf %979, %980 : vector<16x16xf32>
    %982 = arith.addf %981, %774 : vector<16x16xf32>
    %cst_663 = arith.constant dense<0xFF800000> : vector<16xf32>
    %983 = vector.multi_reduction <maximumf>, %982, %cst_663 [1] : vector<16x16xf32> to vector<16xf32>
    %984 = vector.shape_cast %983 : vector<16xf32> to vector<16x1xf32>
    %985 = vector.broadcast %984 : vector<16x1xf32> to vector<16x16xf32>
    %986 = arith.subf %982, %985 : vector<16x16xf32>
    %cst_664 = arith.constant 0.000000e+00 : f32
    %987 = vector.broadcast %cst_664 : f32 to vector<16x16xf32>
    %988 = arith.minimumf %986, %987 : vector<16x16xf32>
    %989 = math.exp %988 : vector<16x16xf32>
    %cst_665 = arith.constant dense<0.000000e+00> : vector<16xf32>
    %990 = vector.multi_reduction <add>, %989, %cst_665 [1] : vector<16x16xf32> to vector<16xf32>
    %991 = vector.shape_cast %990 : vector<16xf32> to vector<16x1xf32>
    %992 = vector.broadcast %991 : vector<16x1xf32> to vector<16x16xf32>
    %993 = arith.divf %989, %992 : vector<16x16xf32>
    %994 = arith.truncf %993 : vector<16x16xf32> to vector<16x16xbf16>
    %995 = arith.truncf %975 : vector<16x32xf32> to vector<16x32xbf16>
    %cst_666 = arith.constant dense<0.000000e+00> : vector<16x32xf32>
    %996 = tpu.matmul %994, %995, %cst_666 {dimension_numbers = #tpu.dot_dimension_numbers<[1], [0], [0], [1], [0, 0, 1, 1], [], []>} : vector<16x16xbf16>, vector<16x32xbf16>, vector<16x32xf32> -> vector<16x32xf32>
    %c3_667 = arith.constant 3 : index
    %c3_668 = arith.constant 3 : index
    %c0_669 = arith.constant 0 : index
    %c0_670 = arith.constant 0 : index
    %997 = vector.load %arg21[%c3_667, %c3_668, %c0_669, %c0_670] : memref<4x4x32x32xf32, #tpu.memory_space<vmem>>, vector<1x1x32x32xf32>
    %998 = vector.shape_cast %997 : vector<1x1x32x32xf32> to vector<32x32xf32>
    %999 = arith.truncf %996 : vector<16x32xf32> to vector<16x32xbf16>
    %1000 = arith.truncf %998 : vector<32x32xf32> to vector<32x32xbf16>
    %cst_671 = arith.constant dense<0.000000e+00> : vector<16x32xf32>
    %1001 = tpu.matmul %999, %1000, %cst_671 {dimension_numbers = #tpu.dot_dimension_numbers<[1], [0], [0], [1], [0, 0, 1, 1], [], []>} : vector<16x32xbf16>, vector<32x32xbf16>, vector<16x32xf32> -> vector<16x32xf32>
    %1002 = arith.addf %948, %1001 : vector<16x32xf32>
    %c3_672 = arith.constant 3 : index
    %c3_673 = arith.constant 3 : index
    %c0_674 = arith.constant 0 : index
    %c0_675 = arith.constant 0 : index
    %1003 = vector.load %arg22[%c3_672, %c3_673, %c0_674, %c0_675] : memref<4x4x1x32xf32, #tpu.memory_space<vmem>>, vector<1x1x1x32xf32>
    %1004 = vector.shape_cast %1003 : vector<1x1x1x32xf32> to vector<1x32xf32>
    %1005 = vector.broadcast %1004 : vector<1x32xf32> to vector<16x32xf32>
    %1006 = arith.addf %1002, %1005 : vector<16x32xf32>
    %c0_676 = arith.constant 0 : index
    %c0_677 = arith.constant 0 : index
    %1007 = vector.load %arg31[%c0_676, %c0_677] : memref<32x8xf32, #tpu.memory_space<vmem>>, vector<32x8xf32>
    %1008 = arith.truncf %1006 : vector<16x32xf32> to vector<16x32xbf16>
    %1009 = arith.truncf %1007 : vector<32x8xf32> to vector<32x8xbf16>
    %cst_678 = arith.constant dense<0.000000e+00> : vector<16x8xf32>
    %1010 = tpu.matmul %1008, %1009, %cst_678 {dimension_numbers = #tpu.dot_dimension_numbers<[1], [0], [0], [1], [0, 0, 1, 1], [], []>} : vector<16x32xbf16>, vector<32x8xbf16>, vector<16x8xf32> -> vector<16x8xf32>
    %c0_679 = arith.constant 0 : index
    %c0_680 = arith.constant 0 : index
    %1011 = vector.load %arg32[%c0_679, %c0_680] : memref<1x8xf32, #tpu.memory_space<vmem>>, vector<1x8xf32>
    %1012 = vector.broadcast %1011 : vector<1x8xf32> to vector<16x8xf32>
    %1013 = arith.addf %1010, %1012 : vector<16x8xf32>
    %c0_681 = arith.constant 0 : index
    %c0_682 = arith.constant 0 : index
    %1014 = vector.load %arg1[%c0_681, %c0_682] : memref<16x8xf32, #tpu.memory_space<vmem>>, vector<16x8xf32>
    %1015 = arith.addf %1013, %1014 : vector<16x8xf32>
    %c0_683 = arith.constant 0 : index
    %c0_684 = arith.constant 0 : index
    %1016 = vector.load %arg33[%c0_683, %c0_684] : memref<16x8xf32, #tpu.memory_space<vmem>>, vector<16x8xf32>
    tpu.vector_store %arg33[%c0_683, %c0_684], %1015 {strides = array<i32>} : memref<16x8xf32, #tpu.memory_space<vmem>>, vector<16x8xf32>,
    return
  }
}

</mosaic_0001>

<llo_original>
// kernel: forward.1
$region0: #{forward.1}
  #allocation0 [shape = 'u32[]', space=smem, size = 0x4, offset = 0x4, fixed_abs, tag = 'smem constant byte address 0x4 - core index']
  #allocation1 [shape = 'u32[144,128]{1,0:T(1,128)}', space=vmem, size = 0x12000, scoped, tag = 'internal scratch']
  %s0 = inlined_call_operand.smem [shape: u32[34], index: -1, kind: input, shape index: {}]
  %s1 = sld [smem:[%s0]]
  %s2 = scalar_lea.smem %s0, 1
  %s3 = sld [smem:[%s2]]
  %s4 = scalar_lea.smem %s0, 2
  %s5 = sld [smem:[%s4]]
  %s6 = scalar_lea.smem %s0, 3
  %s7 = sld [smem:[%s6]]
  %s8 = scalar_lea.smem %s0, 4
  %s9 = sld [smem:[%s8]]
  %s10 = scalar_lea.smem %s0, 5
  %s11 = sld [smem:[%s10]]
  %s12 = scalar_lea.smem %s0, 6
  %s13 = sld [smem:[%s12]]
  %s14 = scalar_lea.smem %s0, 7
  %s15 = sld [smem:[%s14]]
  %s16 = scalar_lea.smem %s0, 8
  %s17 = sld [smem:[%s16]]
  %s18 = scalar_lea.smem %s0, 9
  %s19 = sld [smem:[%s18]]
  %s20 = scalar_lea.smem %s0, 10
  %s21 = sld [smem:[%s20]]
  %s22 = scalar_lea.smem %s0, 11
  %s23 = sld [smem:[%s22]]
  %s24 = scalar_lea.smem %s0, 12
  %s25 = sld [smem:[%s24]]
  %s26 = scalar_lea.smem %s0, 13
  %s27 = sld [smem:[%s26]]
  %s28 = scalar_lea.smem %s0, 14
  %s29 = sld [smem:[%s28]]
  %s30 = scalar_lea.smem %s0, 15
  %s31 = sld [smem:[%s30]]
  %s32 = scalar_lea.smem %s0, 16
  %s33 = sld [smem:[%s32]]
  %s34 = scalar_lea.smem %s0, 17
  %s35 = sld [smem:[%s34]]
  %s36 = scalar_lea.smem %s0, 18
  %s37 = sld [smem:[%s36]]
  %s38 = scalar_lea.smem %s0, 19
  %s39 = sld [smem:[%s38]]
  %s40 = scalar_lea.smem %s0, 20
  %s41 = sld [smem:[%s40]]
  %s42 = scalar_lea.smem %s0, 21
  %s43 = sld [smem:[%s42]]
  %s44 = scalar_lea.smem %s0, 22
  %s45 = sld [smem:[%s44]]
  %s46 = scalar_lea.smem %s0, 23
  %s47 = sld [smem:[%s46]]
  %s48 = scalar_lea.smem %s0, 24
  %s49 = sld [smem:[%s48]]
  %s50 = scalar_lea.smem %s0, 25
  %s51 = sld [smem:[%s50]]
  %s52 = scalar_lea.smem %s0, 26
  %s53 = sld [smem:[%s52]]
  %s54 = scalar_lea.smem %s0, 27
  %s55 = sld [smem:[%s54]]
  %s56 = scalar_lea.smem %s0, 28
  %s57 = sld [smem:[%s56]]
  %s58 = scalar_lea.smem %s0, 29
  %s59 = sld [smem:[%s58]]
  %s60 = scalar_lea.smem %s0, 30
  %s61 = sld [smem:[%s60]]
  %s62 = scalar_lea.smem %s0, 31
  %s63 = sld [smem:[%s62]]
  %s64 = scalar_lea.smem %s0, 32
  %s65 = sld [smem:[%s64]]
  %s66 = scalar_lea.smem %s0, 33
  %s67 = sld [smem:[%s66]]
  %s68 = sld [smem:[#allocation0]]
  $region142: #{forward.1} parent=0
    _
  %s70 = ssub.s32 1, %s68
  %s71 = scalar_select 0, %s70, %s68
  $region1: #{forward.1} parent=0
    #allocation2 [shape = 'u8[8192]{0}', space=vmem, size = 0x2000, scoped, tag = 'output window, operand 0, single buffered']
    #allocation3 [shape = 's32[1]{0}', space=sflag, size = 0x4, scoped, tag = 'scoped memory for forward.1']
    %72 = vsyncpa [#allocation3], 0
    // Predicated region
    $region2: #{forward.1} parent=1 // pred_check
      _
    $region3: #{forward.1} parent=1 // pred_check_branch
      %74 = sbr.rel (0) target = $region5
    $region4: #{forward.1} parent=1 // pred_region
      _
    $region5: #{forward.1} parent=1 // pred_fallthru
      _
    // Predicated region
    $region6: #{forward.1} parent=1 // pred_check
      _
    $region7: #{forward.1} parent=1 // pred_check_branch
      %76 = sbr.rel (0) target = $region9
    $region8: #{forward.1} parent=1 // pred_region
      _
    $region9: #{forward.1} parent=1 // pred_fallthru
      _
    // Predicated region
    $region10: #{forward.1} parent=1 // pred_check
      _
    $region11: #{forward.1} parent=1 // pred_check_branch
      %78 = sbr.rel (0) target = $region13
    $region12: #{forward.1} parent=1 // pred_region
      _
    $region13: #{forward.1} parent=1 // pred_fallthru
      _
    // Predicated region
    $region14: #{forward.1} parent=1 // pred_check
      _
    $region15: #{forward.1} parent=1 // pred_check_branch
      %80 = sbr.rel (0) target = $region17
    $region16: #{forward.1} parent=1 // pred_region
      _
    $region17: #{forward.1} parent=1 // pred_fallthru
      _
    // Predicated region
    $region18: #{forward.1} parent=1 // pred_check
      _
    $region19: #{forward.1} parent=1 // pred_check_branch
      %82 = sbr.rel (0) target = $region21
    $region20: #{forward.1} parent=1 // pred_region
      _
    $region21: #{forward.1} parent=1 // pred_fallthru
      _
    // Predicated region
    $region22: #{forward.1} parent=1 // pred_check
      _
    $region23: #{forward.1} parent=1 // pred_check_branch
      %84 = sbr.rel (0) target = $region25
    $region24: #{forward.1} parent=1 // pred_region
      _
    $region25: #{forward.1} parent=1 // pred_fallthru
      _
    // Predicated region
    $region26: #{forward.1} parent=1 // pred_check
      _
    $region27: #{forward.1} parent=1 // pred_check_branch
      %86 = sbr.rel (0) target = $region29
    $region28: #{forward.1} parent=1 // pred_region
      _
    $region29: #{forward.1} parent=1 // pred_fallthru
      _
    // Predicated region
    $region30: #{forward.1} parent=1 // pred_check
      _
    $region31: #{forward.1} parent=1 // pred_check_branch
      %88 = sbr.rel (0) target = $region33
    $region32: #{forward.1} parent=1 // pred_region
      _
    $region33: #{forward.1} parent=1 // pred_fallthru
      _
    // Predicated region
    $region34: #{forward.1} parent=1 // pred_check
      _
    $region35: #{forward.1} parent=1 // pred_check_branch
      %90 = sbr.rel (0) target = $region37
    $region36: #{forward.1} parent=1 // pred_region
      _
    $region37: #{forward.1} parent=1 // pred_fallthru
      _
    // Predicated region
    $region38: #{forward.1} parent=1 // pred_check
      _
    $region39: #{forward.1} parent=1 // pred_check_branch
      %92 = sbr.rel (0) target = $region41
    $region40: #{forward.1} parent=1 // pred_region
      _
    $region41: #{forward.1} parent=1 // pred_fallthru
      _
    // Predicated region
    $region42: #{forward.1} parent=1 // pred_check
      _
    $region43: #{forward.1} parent=1 // pred_check_branch
      %94 = sbr.rel (0) target = $region45
    $region44: #{forward.1} parent=1 // pred_region
      _
    $region45: #{forward.1} parent=1 // pred_fallthru
      _
    // Predicated region
    $region46: #{forward.1} parent=1 // pred_check
      _
    $region47: #{forward.1} parent=1 // pred_check_branch
      %96 = sbr.rel (0) target = $region49
    $region48: #{forward.1} parent=1 // pred_region
      _
    $region49: #{forward.1} parent=1 // pred_fallthru
      _
    // Predicated region
    $region50: #{forward.1} parent=1 // pred_check
      _
    $region51: #{forward.1} parent=1 // pred_check_branch
      %98 = sbr.rel (0) target = $region53
    $region52: #{forward.1} parent=1 // pred_region
      _
    $region53: #{forward.1} parent=1 // pred_fallthru
      _
    // Predicated region
    $region54: #{forward.1} parent=1 // pred_check
      _
    $region55: #{forward.1} parent=1 // pred_check_branch
      %100 = sbr.rel (0) target = $region57
    $region56: #{forward.1} parent=1 // pred_region
      _
    $region57: #{forward.1} parent=1 // pred_fallthru
      _
    // Predicated region
    $region58: #{forward.1} parent=1 // pred_check
      _
    $region59: #{forward.1} parent=1 // pred_check_branch
      %102 = sbr.rel (0) target = $region61
    $region60: #{forward.1} parent=1 // pred_region
      _
    $region61: #{forward.1} parent=1 // pred_fallthru
      _
    // Predicated region
    $region62: #{forward.1} parent=1 // pred_check
      _
    $region63: #{forward.1} parent=1 // pred_check_branch
      %104 = sbr.rel (0) target = $region65
    $region64: #{forward.1} parent=1 // pred_region
      _
    $region65: #{forward.1} parent=1 // pred_fallthru
      _
    // Predicated region
    $region66: #{forward.1} parent=1 // pred_check
      _
    $region67: #{forward.1} parent=1 // pred_check_branch
      %106 = sbr.rel (0) target = $region69
    $region68: #{forward.1} parent=1 // pred_region
      _
    $region69: #{forward.1} parent=1 // pred_fallthru
      _
    // Predicated region
    $region70: #{forward.1} parent=1 // pred_check
      _
    $region71: #{forward.1} parent=1 // pred_check_branch
      %108 = sbr.rel (0) target = $region73
    $region72: #{forward.1} parent=1 // pred_region
      _
    $region73: #{forward.1} parent=1 // pred_fallthru
      _
    // Predicated region
    $region74: #{forward.1} parent=1 // pred_check
      _
    $region75: #{forward.1} parent=1 // pred_check_branch
      %110 = sbr.rel (0) target = $region77
    $region76: #{forward.1} parent=1 // pred_region
      _
    $region77: #{forward.1} parent=1 // pred_fallthru
      _
    // Predicated region
    $region78: #{forward.1} parent=1 // pred_check
      _
    $region79: #{forward.1} parent=1 // pred_check_branch
      %112 = sbr.rel (0) target = $region81
    $region80: #{forward.1} parent=1 // pred_region
      _
    $region81: #{forward.1} parent=1 // pred_fallthru
      _
    // Predicated region
    $region82: #{forward.1} parent=1 // pred_check
      _
    $region83: #{forward.1} parent=1 // pred_check_branch
      %114 = sbr.rel (0) target = $region85
    $region84: #{forward.1} parent=1 // pred_region
      _
    $region85: #{forward.1} parent=1 // pred_fallthru
      _
    // Predicated region
    $region86: #{forward.1} parent=1 // pred_check
      _
    $region87: #{forward.1} parent=1 // pred_check_branch
      %116 = sbr.rel (0) target = $region89
    $region88: #{forward.1} parent=1 // pred_region
      _
    $region89: #{forward.1} parent=1 // pred_fallthru
      _
    // Predicated region
    $region90: #{forward.1} parent=1 // pred_check
      _
    $region91: #{forward.1} parent=1 // pred_check_branch
      %118 = sbr.rel (0) target = $region93
    $region92: #{forward.1} parent=1 // pred_region
      _
    $region93: #{forward.1} parent=1 // pred_fallthru
      _
    // Predicated region
    $region94: #{forward.1} parent=1 // pred_check
      _
    $region95: #{forward.1} parent=1 // pred_check_branch
      %120 = sbr.rel (0) target = $region97
    $region96: #{forward.1} parent=1 // pred_region
      _
    $region97: #{forward.1} parent=1 // pred_fallthru
      _
    // Predicated region
    $region98: #{forward.1} parent=1 // pred_check
      _
    $region99: #{forward.1} parent=1 // pred_check_branch
      %122 = sbr.rel (0) target = $region101
    $region100: #{forward.1} parent=1 // pred_region
      _
    $region101: #{forward.1} parent=1 // pred_fallthru
      _
    // Predicated region
    $region102: #{forward.1} parent=1 // pred_check
      _
    $region103: #{forward.1} parent=1 // pred_check_branch
      %124 = sbr.rel (0) target = $region105
    $region104: #{forward.1} parent=1 // pred_region
      _
    $region105: #{forward.1} parent=1 // pred_fallthru
      _
    // Predicated region
    $region106: #{forward.1} parent=1 // pred_check
      _
    $region107: #{forward.1} parent=1 // pred_check_branch
      %126 = sbr.rel (0) target = $region109
    $region108: #{forward.1} parent=1 // pred_region
      _
    $region109: #{forward.1} parent=1 // pred_fallthru
      _
    // Predicated region
    $region110: #{forward.1} parent=1 // pred_check
      _
    $region111: #{forward.1} parent=1 // pred_check_branch
      %128 = sbr.rel (0) target = $region113
    $region112: #{forward.1} parent=1 // pred_region
      _
    $region113: #{forward.1} parent=1 // pred_fallthru
      _
    // Predicated region
    $region114: #{forward.1} parent=1 // pred_check
      _
    $region115: #{forward.1} parent=1 // pred_check_branch
      %130 = sbr.rel (0) target = $region117
    $region116: #{forward.1} parent=1 // pred_region
      _
    $region117: #{forward.1} parent=1 // pred_fallthru
      _
    // Predicated region
    $region118: #{forward.1} parent=1 // pred_check
      _
    $region119: #{forward.1} parent=1 // pred_check_branch
      %132 = sbr.rel (0) target = $region121
    $region120: #{forward.1} parent=1 // pred_region
      _
    $region121: #{forward.1} parent=1 // pred_fallthru
      _
    // Predicated region
    $region122: #{forward.1} parent=1 // pred_check
      _
    $region123: #{forward.1} parent=1 // pred_check_branch
      %134 = sbr.rel (0) target = $region125
    $region124: #{forward.1} parent=1 // pred_region
      _
    $region125: #{forward.1} parent=1 // pred_fallthru
      _
    // Predicated region
    $region126: #{forward.1} parent=1 // pred_check
      _
    $region127: #{forward.1} parent=1 // pred_check_branch
      %136 = sbr.rel (0) target = $region129
    $region128: #{forward.1} parent=1 // pred_region
      _
    $region129: #{forward.1} parent=1 // pred_fallthru
      _
    // Predicated region
    $region130: #{forward.1} parent=1 // pred_check
      _
    $region131: #{forward.1} parent=1 // pred_check_branch
      %138 = sbr.rel (0) target = $region133
    $region132: #{forward.1} parent=1 // pred_region
      _
    $region133: #{forward.1} parent=1 // pred_fallthru
      _
    %v140 = vld [vmem:[%s1] sm:$0xff]
    %v141 = vld [vmem:[%s1 + $0x8] sm:$0xff]
    %v142 = vld [vmem:[%s1 + $0x10] sm:$0xff]
    %v143 = vld [vmem:[%s1 + $0x18] sm:$0xff]
    %v144 = vld [vmem:[%s1 + $0x20] sm:$0xff]
    %v145 = vld [vmem:[%s19] sm:$0xff]
    %v146 = vpack.c.bf16 %v141, %v140
    %v147 = vpack.c.bf16 %v143, %v142
    %v148 = vpack.c.bf16 %v144, %v144
    %v149 = vpack.c.bf16 %v145, %v145
    %v150 = vld [vmem:[%s21] sm:$0x1]
    %v152 = vlaneseq
    %v153 = vshrl.u32 %v152, 7
    %v154 = vsub.s32 0, %v153
    %v155 = vrot.slane %v150, %v154
    %vm157 = vcmask 64512
    %v159 = vsel %vm157, %v146, 0
    %v162 = vsel %vm157, %v147, 0
    %v165 = vsel %vm157, %v148, 0
    %vm167 = vcmask 1043456
    %v169 = vsel %vm167, %v149, 0
    %171 = vmatprep.subr.bf16.mxu0 0
    %172 = vmatpush1.bf16.msra.mxu0 0
    %173 = vmatprep.subr.bf16.mxu0 0
    %174 = vmatpush1.bf16.msra.mxu0 0
    %175 = vmatprep.subr.bf16.mxu0 0
    %176 = vmatpush1.bf16.msra.mxu0 0
    %177 = vmatprep.subr.bf16.mxu0 0
    %178 = vmatpush1.bf16.msra.mxu0 0
    %179 = vmatprep.subr.bf16.mxu0 0
    %180 = vmatpush1.bf16.msra.mxu0 0
    %181 = vmatprep.subr.bf16.mxu0 0
    %182 = vmatpush1.bf16.msra.mxu0 0
    %183 = vmatprep.subr.bf16.mxu0 0
    %184 = vmatpush1.bf16.msra.mxu0 0
    %185 = vmatprep.subr.bf16.mxu0 0
    %186 = vmatpush1.bf16.msra.mxu0 %v169
    %187 = vmatprep.subr.bf16.mxu0 0
    %188 = vmatpush2.bf16.msra.mxu0 0
    %189 = vmatprep.subr.bf16.mxu0 0
    %190 = vmatpush2.bf16.msra.mxu0 0
    %191 = vmatprep.subr.bf16.mxu0 0
    %192 = vmatpush2.bf16.msra.mxu0 0
    %193 = vmatprep.subr.bf16.mxu0 0
    %194 = vmatpush2.bf16.msra.mxu0 0
    %195 = vmatprep.subr.bf16.mxu0 0
    %196 = vmatpush2.bf16.msra.mxu0 0
    %197 = vmatprep.subr.bf16.mxu0 0
    %198 = vmatpush2.bf16.msra.mxu0 0
    %199 = vmatprep.subr.bf16.mxu0 0
    %200 = vmatpush2.bf16.msra.mxu0 0
    %201 = vmatprep.subr.bf16.mxu0 0
    %202 = vmatpush2.bf16.msra.mxu0 0
    %203 = vmatprep.mubr.bf16.mxu0 0
    %204 = vmatmul.mubr.bf16.gmra.mxu0 %v159
    %v205 = vpop.f32.mrf.mxu0
    %v206 = vadd.f32 %v155, %v205
    %v207 = vpop.f32.mrf.mxu0
    %v208 = vpop.f32.mrf.mxu0
    %v209 = vadd.f32 %v155, %v208
    %v210 = vpop.f32.mrf.mxu0
    %211 = vmatprep.mubr.bf16.mxu0 0
    %212 = vmatmul.mubr.bf16.gmra.mxu0 %v162
    %v213 = vpop.f32.mrf.mxu0
    %v214 = vadd.f32 %v155, %v213
    %v215 = vpop.f32.mrf.mxu0
    %v216 = vpop.f32.mrf.mxu0
    %v217 = vadd.f32 %v155, %v216
    %v218 = vpop.f32.mrf.mxu0
    %219 = vmatprep.mubr.bf16.mxu0 0
    %220 = vmatmul.mubr.bf16.gmra.mxu0 %v165
    %v221 = vpop.f32.mrf.mxu0
    %v222 = vadd.f32 %v155, %v221
    %v223 = vpop.f32.mrf.mxu0
    %v224 = vpop.f32.mrf.mxu0
    %v225 = vpop.f32.mrf.mxu0
    %226 = vdwg.mxu0
    %v227 = vld [vmem:[%s5] sm:$0xff]
    %v228 = vld [vmem:[%s5 + $0x8] sm:$0xff]
    %v229 = vld [vmem:[%s5 + $0x10] sm:$0xff]
    %v230 = vld [vmem:[%s5 + $0x18] sm:$0xff]
    %v231 = vld [vmem:[%s5 + $0x20] sm:$0xff]
    %v232 = vpack.c.bf16 %v228, %v227
    %v233 = vpack.c.bf16 %v230, %v229
    %v234 = vpack.c.bf16 %v231, %v231
    %v235 = vpack.c.bf16 %v209, %v206
    %v236 = vpack.c.bf16 %v217, %v214
    %v237 = vpack.c.bf16 %v222, %v222
    %vm238 = vcmask 326656
    %v240 = vsel %vm238, %v232, 0
    %v243 = vsel %vm238, %v233, 0
    %v246 = vsel %vm238, %v234, 0
    %v249 = vsel %vm167, %v237, 0
    %251 = vmatprep.subr.bf16.mxu0 0
    %252 = vmatpush1.bf16.msra.mxu0 0
    %253 = vmatprep.subr.bf16.mxu0 0
    %254 = vmatpush1.bf16.msra.mxu0 0
    %255 = vmatprep.subr.bf16.mxu0 0
    %256 = vmatpush1.bf16.msra.mxu0 0
    %257 = vmatprep.subr.bf16.mxu0 0
    %258 = vmatpush1.bf16.msra.mxu0 0
    %259 = vmatprep.subr.bf16.mxu0 0
    %260 = vmatpush1.bf16.msra.mxu0 0
    %261 = vmatprep.subr.bf16.mxu0 0
    %262 = vmatpush1.bf16.msra.mxu0 %v249
    %263 = vmatprep.subr.bf16.mxu0 0
    %264 = vmatpush1.bf16.msra.mxu0 %v236
    %265 = vmatprep.subr.bf16.mxu0 0
    %266 = vmatpush1.bf16.msra.mxu0 %v235
    %267 = vmatprep.subr.bf16.mxu0 0
    %268 = vmatpush2.bf16.msra.mxu0 0
    %269 = vmatprep.subr.bf16.mxu0 0
    %270 = vmatpush2.bf16.msra.mxu0 0
    %271 = vmatprep.subr.bf16.mxu0 0
    %272 = vmatpush2.bf16.msra.mxu0 0
    %273 = vmatprep.subr.bf16.mxu0 0
    %274 = vmatpush2.bf16.msra.mxu0 0
    %275 = vmatprep.subr.bf16.mxu0 0
    %276 = vmatpush2.bf16.msra.mxu0 0
    %277 = vmatprep.subr.bf16.mxu0 0
    %278 = vmatpush2.bf16.msra.mxu0 0
    %279 = vmatprep.subr.bf16.mxu0 0
    %280 = vmatpush2.bf16.msra.mxu0 0
    %281 = vmatprep.subr.bf16.mxu0 0
    %282 = vmatpush2.bf16.msra.mxu0 0
    %283 = vmatprep.mubr.bf16.mxu0 0
    %284 = vmatmul.mubr.bf16.gmra.mxu0 %v240
    %v285 = vpop.f32.mrf.mxu0
    %v286 = vadd.f32 0.0, %v285
    %v287 = vpop.f32.mrf.mxu0
    %v288 = vpop.f32.mrf.mxu0
    %v289 = vadd.f32 0.0, %v288
    %v290 = vpop.f32.mrf.mxu0
    %291 = vmatprep.mubr.bf16.mxu0 0
    %292 = vmatmul.mubr.bf16.gmra.mxu0 %v243
    %v293 = vpop.f32.mrf.mxu0
    %v294 = vadd.f32 0.0, %v293
    %v295 = vpop.f32.mrf.mxu0
    %v296 = vpop.f32.mrf.mxu0
    %v297 = vadd.f32 0.0, %v296
    %v298 = vpop.f32.mrf.mxu0
    %299 = vmatprep.mubr.bf16.mxu0 0
    %300 = vmatmul.mubr.bf16.gmra.mxu0 %v246
    %v301 = vpop.f32.mrf.mxu0
    %v302 = vadd.f32 0.0, %v301
    %v303 = vpop.f32.mrf.mxu0
    %v304 = vpop.f32.mrf.mxu0
    %v305 = vpop.f32.mrf.mxu0
    %306 = vdwg.mxu0
    %v307 = vld [vmem:[%s23] sm:$0xff]
    %v308 = vld [vmem:[%s23 + $0x8] sm:$0xff]
    %v309 = vld [vmem:[%s23 + $0x10] sm:$0xff]
    %v310 = vld [vmem:[%s23 + $0x18] sm:$0xff]
    %v311 = vpack.c.bf16 %v289, %v286
    %v312 = vpack.c.bf16 %v297, %v294
    %v313 = vpack.c.bf16 %v302, %v302
    %v314 = vpack.c.bf16 %v308, %v307
    %v315 = vpack.c.bf16 %v310, %v309
    %v316 = vld [vmem:[%s25] sm:$0x1]
    %v318 = vlaneseq
    %v319 = vshrl.u32 %v318, 7
    %v320 = vsub.s32 0, %v319
    %v321 = vrot.slane %v316, %v320
    %vm323 = vcmask 261120
    %v325 = vsel %vm323, %v311, 0
    %v328 = vsel %vm323, %v312, 0
    %v331 = vsel %vm323, %v313, 0
    %333 = vmatprep.subr.bf16.mxu0 0
    %334 = vmatpush1.bf16.msra.mxu0 0
    %335 = vmatprep.subr.bf16.mxu0 0
    %336 = vmatpush1.bf16.msra.mxu0 0
    %337 = vmatprep.subr.bf16.mxu0 0
    %338 = vmatpush1.bf16.msra.mxu0 0
    %339 = vmatprep.subr.bf16.mxu0 0
    %340 = vmatpush1.bf16.msra.mxu0 0
    %341 = vmatprep.subr.bf16.mxu0 0
    %342 = vmatpush1.bf16.msra.mxu0 0
    %343 = vmatprep.subr.bf16.mxu0 0
    %344 = vmatpush1.bf16.msra.mxu0 0
    %345 = vmatprep.subr.bf16.mxu0 0
    %346 = vmatpush1.bf16.msra.mxu0 %v315
    %347 = vmatprep.subr.bf16.mxu0 0
    %348 = vmatpush1.bf16.msra.mxu0 %v314
    %349 = vmatprep.subr.bf16.mxu0 0
    %350 = vmatpush2.bf16.msra.mxu0 0
    %351 = vmatprep.subr.bf16.mxu0 0
    %352 = vmatpush2.bf16.msra.mxu0 0
    %353 = vmatprep.subr.bf16.mxu0 0
    %354 = vmatpush2.bf16.msra.mxu0 0
    %355 = vmatprep.subr.bf16.mxu0 0
    %356 = vmatpush2.bf16.msra.mxu0 0
    %357 = vmatprep.subr.bf16.mxu0 0
    %358 = vmatpush2.bf16.msra.mxu0 0
    %359 = vmatprep.subr.bf16.mxu0 0
    %360 = vmatpush2.bf16.msra.mxu0 0
    %361 = vmatprep.subr.bf16.mxu0 0
    %362 = vmatpush2.bf16.msra.mxu0 0
    %363 = vmatprep.subr.bf16.mxu0 0
    %364 = vmatpush2.bf16.msra.mxu0 0
    %365 = vmatprep.mubr.bf16.mxu0 0
    %366 = vmatmul.mubr.bf16.gmra.mxu0 %v325
    %v367 = vpop.f32.mrf.mxu0
    %v368 = vadd.f32 %v321, %v367
    %v369 = vpop.f32.mrf.mxu0
    %v370 = vpop.f32.mrf.mxu0
    %v371 = vadd.f32 %v321, %v370
    %v372 = vpop.f32.mrf.mxu0
    %373 = vmatprep.mubr.bf16.mxu0 0
    %374 = vmatmul.mubr.bf16.gmra.mxu0 %v328
    %v375 = vpop.f32.mrf.mxu0
    %v376 = vadd.f32 %v321, %v375
    %v377 = vpop.f32.mrf.mxu0
    %v378 = vpop.f32.mrf.mxu0
    %v379 = vadd.f32 %v321, %v378
    %v380 = vpop.f32.mrf.mxu0
    %381 = vmatprep.mubr.bf16.mxu0 0
    %382 = vmatmul.mubr.bf16.gmra.mxu0 %v331
    %v383 = vpop.f32.mrf.mxu0
    %v384 = vadd.f32 %v321, %v383
    %v385 = vpop.f32.mrf.mxu0
    %v386 = vpop.f32.mrf.mxu0
    %v387 = vpop.f32.mrf.mxu0
    %388 = vdwg.mxu0
    %vm389 = vcmp.gt.f32.partialorder %v368, 0.0
    %vm390 = vcmp.gt.f32.partialorder %v371, 0.0
    %vm391 = vcmp.gt.f32.partialorder %v376, 0.0
    %vm392 = vcmp.gt.f32.partialorder %v379, 0.0
    %vm393 = vcmp.gt.f32.partialorder %v384, 0.0
    %v394 = vmul.f32 %v368, 0.01
    %v395 = vmul.f32 %v371, 0.01
    %v396 = vmul.f32 %v376, 0.01
    %v397 = vmul.f32 %v379, 0.01
    %v398 = vmul.f32 %v384, 0.01
    %v399 = vsel %vm389, %v368, %v394
    %v400 = vsel %vm390, %v371, %v395
    %v401 = vsel %vm391, %v376, %v396
    %v402 = vsel %vm392, %v379, %v397
    %v403 = vsel %vm393, %v384, %v398
    %v404 = vadd.f32 %v206, %v399
    %v405 = vadd.f32 %v209, %v400
    %v406 = vadd.f32 %v214, %v401
    %v407 = vadd.f32 %v217, %v402
    %v408 = vadd.f32 %v222, %v403
    %v409 = vpack.c.bf16 %v405, %v404
    %v410 = vpack.c.bf16 %v407, %v406
    %v411 = vpack.c.bf16 %v408, %v408
    %v413 = vsel %vm167, %v411, 0
    %415 = vmatprep.subr.bf16.mxu0 0
    %416 = vmatpush1.bf16.msra.mxu0 0
    %417 = vmatprep.subr.bf16.mxu0 0
    %418 = vmatpush1.bf16.msra.mxu0 0
    %419 = vmatprep.subr.bf16.mxu0 0
    %420 = vmatpush1.bf16.msra.mxu0 0
    %421 = vmatprep.subr.bf16.mxu0 0
    %422 = vmatpush1.bf16.msra.mxu0 0
    %423 = vmatprep.subr.bf16.mxu0 0
    %424 = vmatpush1.bf16.msra.mxu0 0
    %425 = vmatprep.subr.bf16.mxu0 0
    %426 = vmatpush1.bf16.msra.mxu0 %v413
    %427 = vmatprep.subr.bf16.mxu0 0
    %428 = vmatpush1.bf16.msra.mxu0 %v410
    %429 = vmatprep.subr.bf16.mxu0 0
    %430 = vmatpush1.bf16.msra.mxu0 %v409
    %431 = vmatprep.subr.bf16.mxu0 0
    %432 = vmatpush2.bf16.msra.mxu0 0
    %433 = vmatprep.subr.bf16.mxu0 0
    %434 = vmatpush2.bf16.msra.mxu0 0
    %435 = vmatprep.subr.bf16.mxu0 0
    %436 = vmatpush2.bf16.msra.mxu0 0
    %437 = vmatprep.subr.bf16.mxu0 0
    %438 = vmatpush2.bf16.msra.mxu0 0
    %439 = vmatprep.subr.bf16.mxu0 0
    %440 = vmatpush2.bf16.msra.mxu0 0
    %441 = vmatprep.subr.bf16.mxu0 0
    %442 = vmatpush2.bf16.msra.mxu0 0
    %443 = vmatprep.subr.bf16.mxu0 0
    %444 = vmatpush2.bf16.msra.mxu0 0
    %445 = vmatprep.subr.bf16.mxu0 0
    %446 = vmatpush2.bf16.msra.mxu0 0
    %447 = vmatprep.mubr.bf16.mxu0 0
    %448 = vmatmul.mubr.bf16.gmra.mxu0 %v240
    %v449 = vpop.f32.mrf.mxu0
    %v450 = vadd.f32 0.0, %v449
    %v451 = vpop.f32.mrf.mxu0
    %v452 = vpop.f32.mrf.mxu0
    %v453 = vadd.f32 0.0, %v452
    %v454 = vpop.f32.mrf.mxu0
    %455 = vmatprep.mubr.bf16.mxu0 0
    %456 = vmatmul.mubr.bf16.gmra.mxu0 %v243
    %v457 = vpop.f32.mrf.mxu0
    %v458 = vadd.f32 0.0, %v457
    %v459 = vpop.f32.mrf.mxu0
    %v460 = vpop.f32.mrf.mxu0
    %v461 = vadd.f32 0.0, %v460
    %v462 = vpop.f32.mrf.mxu0
    %463 = vmatprep.mubr.bf16.mxu0 0
    %464 = vmatmul.mubr.bf16.gmra.mxu0 %v246
    %v465 = vpop.f32.mrf.mxu0
    %v466 = vadd.f32 0.0, %v465
    %v467 = vpop.f32.mrf.mxu0
    %v468 = vpop.f32.mrf.mxu0
    %v469 = vpop.f32.mrf.mxu0
    %470 = vdwg.mxu0
    %s471 = scalar_lea.vmem %s23, 32
    %v472 = vld [vmem:[%s471] sm:$0xff]
    %v473 = vld [vmem:[%s471 + $0x8] sm:$0xff]
    %v474 = vld [vmem:[%s471 + $0x10] sm:$0xff]
    %v475 = vld [vmem:[%s471 + $0x18] sm:$0xff]
    %v476 = vpack.c.bf16 %v453, %v450
    %v477 = vpack.c.bf16 %v461, %v458
    %v478 = vpack.c.bf16 %v466, %v466
    %v479 = vpack.c.bf16 %v473, %v472
    %v480 = vpack.c.bf16 %v475, %v474
    %s481 = scalar_lea.vmem %s25, 1
    %v482 = vld [vmem:[%s481] sm:$0x1]
    %v484 = vlaneseq
    %v485 = vshrl.u32 %v484, 7
    %v486 = vsub.s32 0, %v485
    %v487 = vrot.slane %v482, %v486
    %v490 = vsel %vm323, %v476, 0
    %v493 = vsel %vm323, %v477, 0
    %v496 = vsel %vm323, %v478, 0
    %498 = vmatprep.subr.bf16.mxu0 0
    %499 = vmatpush1.bf16.msra.mxu0 0
    %500 = vmatprep.subr.bf16.mxu0 0
    %501 = vmatpush1.bf16.msra.mxu0 0
    %502 = vmatprep.subr.bf16.mxu0 0
    %503 = vmatpush1.bf16.msra.mxu0 0
    %504 = vmatprep.subr.bf16.mxu0 0
    %505 = vmatpush1.bf16.msra.mxu0 0
    %506 = vmatprep.subr.bf16.mxu0 0
    %507 = vmatpush1.bf16.msra.mxu0 0
    %508 = vmatprep.subr.bf16.mxu0 0
    %509 = vmatpush1.bf16.msra.mxu0 0
    %510 = vmatprep.subr.bf16.mxu0 0
    %511 = vmatpush1.bf16.msra.mxu0 %v480
    %512 = vmatprep.subr.bf16.mxu0 0
    %513 = vmatpush1.bf16.msra.mxu0 %v479
    %514 = vmatprep.subr.bf16.mxu0 0
    %515 = vmatpush2.bf16.msra.mxu0 0
    %516 = vmatprep.subr.bf16.mxu0 0
    %517 = vmatpush2.bf16.msra.mxu0 0
    %518 = vmatprep.subr.bf16.mxu0 0
    %519 = vmatpush2.bf16.msra.mxu0 0
    %520 = vmatprep.subr.bf16.mxu0 0
    %521 = vmatpush2.bf16.msra.mxu0 0
    %522 = vmatprep.subr.bf16.mxu0 0
    %523 = vmatpush2.bf16.msra.mxu0 0
    %524 = vmatprep.subr.bf16.mxu0 0
    %525 = vmatpush2.bf16.msra.mxu0 0
    %526 = vmatprep.subr.bf16.mxu0 0
    %527 = vmatpush2.bf16.msra.mxu0 0
    %528 = vmatprep.subr.bf16.mxu0 0
    %529 = vmatpush2.bf16.msra.mxu0 0
    %530 = vmatprep.mubr.bf16.mxu0 0
    %531 = vmatmul.mubr.bf16.gmra.mxu0 %v490
    %v532 = vpop.f32.mrf.mxu0
    %v533 = vadd.f32 %v487, %v532
    %v534 = vpop.f32.mrf.mxu0
    %v535 = vpop.f32.mrf.mxu0
    %v536 = vadd.f32 %v487, %v535
    %v537 = vpop.f32.mrf.mxu0
    %538 = vmatprep.mubr.bf16.mxu0 0
    %539 = vmatmul.mubr.bf16.gmra.mxu0 %v493
    %v540 = vpop.f32.mrf.mxu0
    %v541 = vadd.f32 %v487, %v540
    %v542 = vpop.f32.mrf.mxu0
    %v543 = vpop.f32.mrf.mxu0
    %v544 = vadd.f32 %v487, %v543
    %v545 = vpop.f32.mrf.mxu0
    %546 = vmatprep.mubr.bf16.mxu0 0
    %547 = vmatmul.mubr.bf16.gmra.mxu0 %v496
    %v548 = vpop.f32.mrf.mxu0
    %v549 = vadd.f32 %v487, %v548
    %v550 = vpop.f32.mrf.mxu0
    %v551 = vpop.f32.mrf.mxu0
    %v552 = vpop.f32.mrf.mxu0
    %553 = vdwg.mxu0
    %vm554 = vcmp.gt.f32.partialorder %v533, 0.0
    %vm555 = vcmp.gt.f32.partialorder %v536, 0.0
    %vm556 = vcmp.gt.f32.partialorder %v541, 0.0
    %vm557 = vcmp.gt.f32.partialorder %v544, 0.0
    %vm558 = vcmp.gt.f32.partialorder %v549, 0.0
    %v559 = vmul.f32 %v533, 0.01
    %v560 = vmul.f32 %v536, 0.01
    %v561 = vmul.f32 %v541, 0.01
    %v562 = vmul.f32 %v544, 0.01
    %v563 = vmul.f32 %v549, 0.01
    %v564 = vsel %vm554, %v533, %v559
    %v565 = vsel %vm555, %v536, %v560
    %v566 = vsel %vm556, %v541, %v561
    %v567 = vsel %vm557, %v544, %v562
    %v568 = vsel %vm558, %v549, %v563
    %v569 = vadd.f32 %v404, %v564
    %v570 = vadd.f32 %v405, %v565
    %v571 = vadd.f32 %v406, %v566
    %v572 = vadd.f32 %v407, %v567
    %v573 = vadd.f32 %v408, %v568
    %v574 = vpack.c.bf16 %v570, %v569
    %v575 = vpack.c.bf16 %v572, %v571
    %v576 = vpack.c.bf16 %v573, %v573
    %v578 = vsel %vm167, %v576, 0
    %580 = vmatprep.subr.bf16.mxu0 0
    %581 = vmatpush1.bf16.msra.mxu0 0
    %582 = vmatprep.subr.bf16.mxu0 0
    %583 = vmatpush1.bf16.msra.mxu0 0
    %584 = vmatprep.subr.bf16.mxu0 0
    %585 = vmatpush1.bf16.msra.mxu0 0
    %586 = vmatprep.subr.bf16.mxu0 0
    %587 = vmatpush1.bf16.msra.mxu0 0
    %588 = vmatprep.subr.bf16.mxu0 0
    %589 = vmatpush1.bf16.msra.mxu0 0
    %590 = vmatprep.subr.bf16.mxu0 0
    %591 = vmatpush1.bf16.msra.mxu0 %v578
    %592 = vmatprep.subr.bf16.mxu0 0
    %593 = vmatpush1.bf16.msra.mxu0 %v575
    %594 = vmatprep.subr.bf16.mxu0 0
    %595 = vmatpush1.bf16.msra.mxu0 %v574
    %596 = vmatprep.subr.bf16.mxu0 0
    %597 = vmatpush2.bf16.msra.mxu0 0
    %598 = vmatprep.subr.bf16.mxu0 0
    %599 = vmatpush2.bf16.msra.mxu0 0
    %600 = vmatprep.subr.bf16.mxu0 0
    %601 = vmatpush2.bf16.msra.mxu0 0
    %602 = vmatprep.subr.bf16.mxu0 0
    %603 = vmatpush2.bf16.msra.mxu0 0
    %604 = vmatprep.subr.bf16.mxu0 0
    %605 = vmatpush2.bf16.msra.mxu0 0
    %606 = vmatprep.subr.bf16.mxu0 0
    %607 = vmatpush2.bf16.msra.mxu0 0
    %608 = vmatprep.subr.bf16.mxu0 0
    %609 = vmatpush2.bf16.msra.mxu0 0
    %610 = vmatprep.subr.bf16.mxu0 0
    %611 = vmatpush2.bf16.msra.mxu0 0
    %612 = vmatprep.mubr.bf16.mxu0 0
    %613 = vmatmul.mubr.bf16.gmra.mxu0 %v240
    %v614 = vpop.f32.mrf.mxu0
    %v615 = vadd.f32 0.0, %v614
    %v616 = vpop.f32.mrf.mxu0
    %v617 = vpop.f32.mrf.mxu0
    %v618 = vadd.f32 0.0, %v617
    %v619 = vpop.f32.mrf.mxu0
    %620 = vmatprep.mubr.bf16.mxu0 0
    %621 = vmatmul.mubr.bf16.gmra.mxu0 %v243
    %v622 = vpop.f32.mrf.mxu0
    %v623 = vadd.f32 0.0, %v622
    %v624 = vpop.f32.mrf.mxu0
    %v625 = vpop.f32.mrf.mxu0
    %v626 = vadd.f32 0.0, %v625
    %v627 = vpop.f32.mrf.mxu0
    %628 = vmatprep.mubr.bf16.mxu0 0
    %629 = vmatmul.mubr.bf16.gmra.mxu0 %v246
    %v630 = vpop.f32.mrf.mxu0
    %v631 = vadd.f32 0.0, %v630
    %v632 = vpop.f32.mrf.mxu0
    %v633 = vpop.f32.mrf.mxu0
    %v634 = vpop.f32.mrf.mxu0
    %635 = vdwg.mxu0
    %s636 = scalar_lea.vmem %s23, 64
    %v637 = vld [vmem:[%s636] sm:$0xff]
    %v638 = vld [vmem:[%s636 + $0x8] sm:$0xff]
    %v639 = vld [vmem:[%s636 + $0x10] sm:$0xff]
    %v640 = vld [vmem:[%s636 + $0x18] sm:$0xff]
    %v641 = vpack.c.bf16 %v618, %v615
    %v642 = vpack.c.bf16 %v626, %v623
    %v643 = vpack.c.bf16 %v631, %v631
    %v644 = vpack.c.bf16 %v638, %v637
    %v645 = vpack.c.bf16 %v640, %v639
    %s646 = scalar_lea.vmem %s25, 2
    %v647 = vld [vmem:[%s646] sm:$0x1]
    %v649 = vlaneseq
    %v650 = vshrl.u32 %v649, 7
    %v651 = vsub.s32 0, %v650
    %v652 = vrot.slane %v647, %v651
    %v655 = vsel %vm323, %v641, 0
    %v658 = vsel %vm323, %v642, 0
    %v661 = vsel %vm323, %v643, 0
    %663 = vmatprep.subr.bf16.mxu0 0
    %664 = vmatpush1.bf16.msra.mxu0 0
    %665 = vmatprep.subr.bf16.mxu0 0
    %666 = vmatpush1.bf16.msra.mxu0 0
    %667 = vmatprep.subr.bf16.mxu0 0
    %668 = vmatpush1.bf16.msra.mxu0 0
    %669 = vmatprep.subr.bf16.mxu0 0
    %670 = vmatpush1.bf16.msra.mxu0 0
    %671 = vmatprep.subr.bf16.mxu0 0
    %672 = vmatpush1.bf16.msra.mxu0 0
    %673 = vmatprep.subr.bf16.mxu0 0
    %674 = vmatpush1.bf16.msra.mxu0 0
    %675 = vmatprep.subr.bf16.mxu0 0
    %676 = vmatpush1.bf16.msra.mxu0 %v645
    %677 = vmatprep.subr.bf16.mxu0 0
    %678 = vmatpush1.bf16.msra.mxu0 %v644
    %679 = vmatprep.subr.bf16.mxu0 0
    %680 = vmatpush2.bf16.msra.mxu0 0
    %681 = vmatprep.subr.bf16.mxu0 0
    %682 = vmatpush2.bf16.msra.mxu0 0
    %683 = vmatprep.subr.bf16.mxu0 0
    %684 = vmatpush2.bf16.msra.mxu0 0
    %685 = vmatprep.subr.bf16.mxu0 0
    %686 = vmatpush2.bf16.msra.mxu0 0
    %687 = vmatprep.subr.bf16.mxu0 0
    %688 = vmatpush2.bf16.msra.mxu0 0
    %689 = vmatprep.subr.bf16.mxu0 0
    %690 = vmatpush2.bf16.msra.mxu0 0
    %691 = vmatprep.subr.bf16.mxu0 0
    %692 = vmatpush2.bf16.msra.mxu0 0
    %693 = vmatprep.subr.bf16.mxu0 0
    %694 = vmatpush2.bf16.msra.mxu0 0
    %695 = vmatprep.mubr.bf16.mxu0 0
    %696 = vmatmul.mubr.bf16.gmra.mxu0 %v655
    %v697 = vpop.f32.mrf.mxu0
    %v698 = vadd.f32 %v652, %v697
    %v699 = vpop.f32.mrf.mxu0
    %v700 = vpop.f32.mrf.mxu0
    %v701 = vadd.f32 %v652, %v700
    %v702 = vpop.f32.mrf.mxu0
    %703 = vmatprep.mubr.bf16.mxu0 0
    %704 = vmatmul.mubr.bf16.gmra.mxu0 %v658
    %v705 = vpop.f32.mrf.mxu0
    %v706 = vadd.f32 %v652, %v705
    %v707 = vpop.f32.mrf.mxu0
    %v708 = vpop.f32.mrf.mxu0
    %v709 = vadd.f32 %v652, %v708
    %v710 = vpop.f32.mrf.mxu0
    %711 = vmatprep.mubr.bf16.mxu0 0
    %712 = vmatmul.mubr.bf16.gmra.mxu0 %v661
    %v713 = vpop.f32.mrf.mxu0
    %v714 = vadd.f32 %v652, %v713
    %v715 = vpop.f32.mrf.mxu0
    %v716 = vpop.f32.mrf.mxu0
    %v717 = vpop.f32.mrf.mxu0
    %718 = vdwg.mxu0
    %vm719 = vcmp.gt.f32.partialorder %v698, 0.0
    %vm720 = vcmp.gt.f32.partialorder %v701, 0.0
    %vm721 = vcmp.gt.f32.partialorder %v706, 0.0
    %vm722 = vcmp.gt.f32.partialorder %v709, 0.0
    %vm723 = vcmp.gt.f32.partialorder %v714, 0.0
    %v724 = vmul.f32 %v698, 0.01
    %v725 = vmul.f32 %v701, 0.01
    %v726 = vmul.f32 %v706, 0.01
    %v727 = vmul.f32 %v709, 0.01
    %v728 = vmul.f32 %v714, 0.01
    %v729 = vsel %vm719, %v698, %v724
    %v730 = vsel %vm720, %v701, %v725
    %v731 = vsel %vm721, %v706, %v726
    %v732 = vsel %vm722, %v709, %v727
    %v733 = vsel %vm723, %v714, %v728
    %v734 = vadd.f32 %v569, %v729
    %v735 = vadd.f32 %v570, %v730
    %v736 = vadd.f32 %v571, %v731
    %v737 = vadd.f32 %v572, %v732
    %v738 = vadd.f32 %v573, %v733
    %v739 = vpack.c.bf16 %v735, %v734
    %v740 = vpack.c.bf16 %v737, %v736
    %v741 = vpack.c.bf16 %v738, %v738
    %v743 = vsel %vm167, %v741, 0
    %745 = vmatprep.subr.bf16.mxu0 0
    %746 = vmatpush1.bf16.msra.mxu0 0
    %747 = vmatprep.subr.bf16.mxu0 0
    %748 = vmatpush1.bf16.msra.mxu0 0
    %749 = vmatprep.subr.bf16.mxu0 0
    %750 = vmatpush1.bf16.msra.mxu0 0
    %751 = vmatprep.subr.bf16.mxu0 0
    %752 = vmatpush1.bf16.msra.mxu0 0
    %753 = vmatprep.subr.bf16.mxu0 0
    %754 = vmatpush1.bf16.msra.mxu0 0
    %755 = vmatprep.subr.bf16.mxu0 0
    %756 = vmatpush1.bf16.msra.mxu0 %v743
    %757 = vmatprep.subr.bf16.mxu0 0
    %758 = vmatpush1.bf16.msra.mxu0 %v740
    %759 = vmatprep.subr.bf16.mxu0 0
    %760 = vmatpush1.bf16.msra.mxu0 %v739
    %761 = vmatprep.subr.bf16.mxu0 0
    %762 = vmatpush2.bf16.msra.mxu0 0
    %763 = vmatprep.subr.bf16.mxu0 0
    %764 = vmatpush2.bf16.msra.mxu0 0
    %765 = vmatprep.subr.bf16.mxu0 0
    %766 = vmatpush2.bf16.msra.mxu0 0
    %767 = vmatprep.subr.bf16.mxu0 0
    %768 = vmatpush2.bf16.msra.mxu0 0
    %769 = vmatprep.subr.bf16.mxu0 0
    %770 = vmatpush2.bf16.msra.mxu0 0
    %771 = vmatprep.subr.bf16.mxu0 0
    %772 = vmatpush2.bf16.msra.mxu0 0
    %773 = vmatprep.subr.bf16.mxu0 0
    %774 = vmatpush2.bf16.msra.mxu0 0
    %775 = vmatprep.subr.bf16.mxu0 0
    %776 = vmatpush2.bf16.msra.mxu0 0
    %777 = vmatprep.mubr.bf16.mxu0 0
    %778 = vmatmul.mubr.bf16.gmra.mxu0 %v240
    %v779 = vpop.f32.mrf.mxu0
    %v780 = vadd.f32 0.0, %v779
    %v781 = vpop.f32.mrf.mxu0
    %v782 = vpop.f32.mrf.mxu0
    %v783 = vadd.f32 0.0, %v782
    %v784 = vpop.f32.mrf.mxu0
    %785 = vmatprep.mubr.bf16.mxu0 0
    %786 = vmatmul.mubr.bf16.gmra.mxu0 %v243
    %v787 = vpop.f32.mrf.mxu0
    %v788 = vadd.f32 0.0, %v787
    %v789 = vpop.f32.mrf.mxu0
    %v790 = vpop.f32.mrf.mxu0
    %v791 = vadd.f32 0.0, %v790
    %v792 = vpop.f32.mrf.mxu0
    %793 = vmatprep.mubr.bf16.mxu0 0
    %794 = vmatmul.mubr.bf16.gmra.mxu0 %v246
    %v795 = vpop.f32.mrf.mxu0
    %v796 = vadd.f32 0.0, %v795
    %v797 = vpop.f32.mrf.mxu0
    %v798 = vpop.f32.mrf.mxu0
    %v799 = vpop.f32.mrf.mxu0
    %800 = vdwg.mxu0
    %s801 = scalar_lea.vmem %s23, 96
    %v802 = vld [vmem:[%s801] sm:$0xff]
    %v803 = vld [vmem:[%s801 + $0x8] sm:$0xff]
    %v804 = vld [vmem:[%s801 + $0x10] sm:$0xff]
    %v805 = vld [vmem:[%s801 + $0x18] sm:$0xff]
    %v806 = vpack.c.bf16 %v783, %v780
    %v807 = vpack.c.bf16 %v791, %v788
    %v808 = vpack.c.bf16 %v796, %v796
    %v809 = vpack.c.bf16 %v803, %v802
    %v810 = vpack.c.bf16 %v805, %v804
    %s811 = scalar_lea.vmem %s25, 3
    %v812 = vld [vmem:[%s811] sm:$0x1]
    %v814 = vlaneseq
    %v815 = vshrl.u32 %v814, 7
    %v816 = vsub.s32 0, %v815
    %v817 = vrot.slane %v812, %v816
    %v820 = vsel %vm323, %v806, 0
    %v823 = vsel %vm323, %v807, 0
    %v826 = vsel %vm323, %v808, 0
    %828 = vmatprep.subr.bf16.mxu0 0
    %829 = vmatpush1.bf16.msra.mxu0 0
    %830 = vmatprep.subr.bf16.mxu0 0
    %831 = vmatpush1.bf16.msra.mxu0 0
    %832 = vmatprep.subr.bf16.mxu0 0
    %833 = vmatpush1.bf16.msra.mxu0 0
    %834 = vmatprep.subr.bf16.mxu0 0
    %835 = vmatpush1.bf16.msra.mxu0 0
    %836 = vmatprep.subr.bf16.mxu0 0
    %837 = vmatpush1.bf16.msra.mxu0 0
    %838 = vmatprep.subr.bf16.mxu0 0
    %839 = vmatpush1.bf16.msra.mxu0 0
    %840 = vmatprep.subr.bf16.mxu0 0
    %841 = vmatpush1.bf16.msra.mxu0 %v810
    %842 = vmatprep.subr.bf16.mxu0 0
    %843 = vmatpush1.bf16.msra.mxu0 %v809
    %844 = vmatprep.subr.bf16.mxu0 0
    %845 = vmatpush2.bf16.msra.mxu0 0
    %846 = vmatprep.subr.bf16.mxu0 0
    %847 = vmatpush2.bf16.msra.mxu0 0
    %848 = vmatprep.subr.bf16.mxu0 0
    %849 = vmatpush2.bf16.msra.mxu0 0
    %850 = vmatprep.subr.bf16.mxu0 0
    %851 = vmatpush2.bf16.msra.mxu0 0
    %852 = vmatprep.subr.bf16.mxu0 0
    %853 = vmatpush2.bf16.msra.mxu0 0
    %854 = vmatprep.subr.bf16.mxu0 0
    %855 = vmatpush2.bf16.msra.mxu0 0
    %856 = vmatprep.subr.bf16.mxu0 0
    %857 = vmatpush2.bf16.msra.mxu0 0
    %858 = vmatprep.subr.bf16.mxu0 0
    %859 = vmatpush2.bf16.msra.mxu0 0
    %860 = vmatprep.mubr.bf16.mxu0 0
    %861 = vmatmul.mubr.bf16.gmra.mxu0 %v820
    %v862 = vpop.f32.mrf.mxu0
    %v863 = vadd.f32 %v817, %v862
    %v864 = vpop.f32.mrf.mxu0
    %v865 = vpop.f32.mrf.mxu0
    %v866 = vadd.f32 %v817, %v865
    %v867 = vpop.f32.mrf.mxu0
    %868 = vmatprep.mubr.bf16.mxu0 0
    %869 = vmatmul.mubr.bf16.gmra.mxu0 %v823
    %v870 = vpop.f32.mrf.mxu0
    %v871 = vadd.f32 %v817, %v870
    %v872 = vpop.f32.mrf.mxu0
    %v873 = vpop.f32.mrf.mxu0
    %v874 = vadd.f32 %v817, %v873
    %v875 = vpop.f32.mrf.mxu0
    %876 = vmatprep.mubr.bf16.mxu0 0
    %877 = vmatmul.mubr.bf16.gmra.mxu0 %v826
    %v878 = vpop.f32.mrf.mxu0
    %v879 = vadd.f32 %v817, %v878
    %v880 = vpop.f32.mrf.mxu0
    %v881 = vpop.f32.mrf.mxu0
    %v882 = vpop.f32.mrf.mxu0
    %883 = vdwg.mxu0
    %vm884 = vcmp.gt.f32.partialorder %v863, 0.0
    %vm885 = vcmp.gt.f32.partialorder %v866, 0.0
    %vm886 = vcmp.gt.f32.partialorder %v871, 0.0
    %vm887 = vcmp.gt.f32.partialorder %v874, 0.0
    %vm888 = vcmp.gt.f32.partialorder %v879, 0.0
    %v889 = vmul.f32 %v863, 0.01
    %v890 = vmul.f32 %v866, 0.01
    %v891 = vmul.f32 %v871, 0.01
    %v892 = vmul.f32 %v874, 0.01
    %v893 = vmul.f32 %v879, 0.01
    %v894 = vsel %vm884, %v863, %v889
    %v895 = vsel %vm885, %v866, %v890
    %v896 = vsel %vm886, %v871, %v891
    %v897 = vsel %vm887, %v874, %v892
    %v898 = vsel %vm888, %v879, %v893
    %v899 = vadd.f32 %v734, %v894
    %v900 = vadd.f32 %v735, %v895
    %v901 = vadd.f32 %v736, %v896
    %v902 = vadd.f32 %v737, %v897
    %v903 = vadd.f32 %v738, %v898
    %v904 = vld [vmem:[%s11] sm:$0xff]
    %v905 = vld [vmem:[%s11 + $0x8] sm:$0xff]
    %v906 = vld [vmem:[%s11 + $0x10] sm:$0xff]
    %v907 = vld [vmem:[%s11 + $0x18] sm:$0xff]
    %v908 = vld [vmem:[%s11 + $0x20] sm:$0xff]
    %v909 = vld [vmem:[%s27] sm:$0xff]
    %v910 = vld [vmem:[%s27 + $0x8] sm:$0xff]
    %v911 = vld [vmem:[%s27 + $0x10] sm:$0xff]
    %v912 = vld [vmem:[%s27 + $0x18] sm:$0xff]
    %v913 = vpack.c.bf16 %v900, %v899
    %v914 = vpack.c.bf16 %v902, %v901
    %v915 = vpack.c.bf16 %v903, %v903
    %v916 = vpack.c.bf16 %v910, %v909
    %v917 = vpack.c.bf16 %v912, %v911
    %v918 = vld [vmem:[%s29] sm:$0x1]
    %v920 = vlaneseq
    %v921 = vshrl.u32 %v920, 7
    %v922 = vsub.s32 0, %v921
    %v923 = vrot.slane %v918, %v922
    %v926 = vsel %vm323, %v913, 0
    %v929 = vsel %vm323, %v914, 0
    %v932 = vsel %vm323, %v915, 0
    %934 = vmatprep.subr.bf16.mxu0 0
    %935 = vmatpush1.bf16.msra.mxu0 0
    %936 = vmatprep.subr.bf16.mxu0 0
    %937 = vmatpush1.bf16.msra.mxu0 0
    %938 = vmatprep.subr.bf16.mxu0 0
    %939 = vmatpush1.bf16.msra.mxu0 0
    %940 = vmatprep.subr.bf16.mxu0 0
    %941 = vmatpush1.bf16.msra.mxu0 0
    %942 = vmatprep.subr.bf16.mxu0 0
    %943 = vmatpush1.bf16.msra.mxu0 0
    %944 = vmatprep.subr.bf16.mxu0 0
    %945 = vmatpush1.bf16.msra.mxu0 0
    %946 = vmatprep.subr.bf16.mxu0 0
    %947 = vmatpush1.bf16.msra.mxu0 %v917
    %948 = vmatprep.subr.bf16.mxu0 0
    %949 = vmatpush1.bf16.msra.mxu0 %v916
    %950 = vmatprep.subr.bf16.mxu0 0
    %951 = vmatpush2.bf16.msra.mxu0 0
    %952 = vmatprep.subr.bf16.mxu0 0
    %953 = vmatpush2.bf16.msra.mxu0 0
    %954 = vmatprep.subr.bf16.mxu0 0
    %955 = vmatpush2.bf16.msra.mxu0 0
    %956 = vmatprep.subr.bf16.mxu0 0
    %957 = vmatpush2.bf16.msra.mxu0 0
    %958 = vmatprep.subr.bf16.mxu0 0
    %959 = vmatpush2.bf16.msra.mxu0 0
    %960 = vmatprep.subr.bf16.mxu0 0
    %961 = vmatpush2.bf16.msra.mxu0 0
    %962 = vmatprep.subr.bf16.mxu0 0
    %963 = vmatpush2.bf16.msra.mxu0 0
    %964 = vmatprep.subr.bf16.mxu0 0
    %965 = vmatpush2.bf16.msra.mxu0 0
    %966 = vmatprep.mubr.bf16.mxu0 0
    %967 = vmatmul.mubr.bf16.gmra.mxu0 %v926
    %v968 = vpop.f32.mrf.mxu0
    %v969 = vadd.f32 %v923, %v968
    %v970 = vpop.f32.mrf.mxu0
    %v971 = vpop.f32.mrf.mxu0
    %v972 = vadd.f32 %v923, %v971
    %v973 = vpop.f32.mrf.mxu0
    %974 = vmatprep.mubr.bf16.mxu0 0
    %975 = vmatmul.mubr.bf16.gmra.mxu0 %v929
    %v976 = vpop.f32.mrf.mxu0
    %v977 = vadd.f32 %v923, %v976
    %v978 = vpop.f32.mrf.mxu0
    %v979 = vpop.f32.mrf.mxu0
    %v980 = vadd.f32 %v923, %v979
    %v981 = vpop.f32.mrf.mxu0
    %982 = vmatprep.mubr.bf16.mxu0 0
    %983 = vmatmul.mubr.bf16.gmra.mxu0 %v932
    %v984 = vpop.f32.mrf.mxu0
    %v985 = vadd.f32 %v923, %v984
    %v986 = vpop.f32.mrf.mxu0
    %v987 = vpop.f32.mrf.mxu0
    %v988 = vpop.f32.mrf.mxu0
    %989 = vdwg.mxu0
    %s990 = scalar_lea.vmem %s27, 32
    %v991 = vld [vmem:[%s990] sm:$0xff]
    %v992 = vld [vmem:[%s990 + $0x8] sm:$0xff]
    %v993 = vld [vmem:[%s990 + $0x10] sm:$0xff]
    %v994 = vld [vmem:[%s990 + $0x18] sm:$0xff]
    %v995 = vpack.c.bf16 %v992, %v991
    %v996 = vpack.c.bf16 %v994, %v993
    %s997 = scalar_lea.vmem %s29, 1
    %v998 = vld [vmem:[%s997] sm:$0x1]
    %v1000 = vlaneseq
    %v1001 = vshrl.u32 %v1000, 7
    %v1002 = vsub.s32 0, %v1001
    %v1003 = vrot.slane %v998, %v1002
    %1005 = vmatprep.subr.bf16.mxu0 0
    %1006 = vmatpush1.bf16.msra.mxu0 0
    %1007 = vmatprep.subr.bf16.mxu0 0
    %1008 = vmatpush1.bf16.msra.mxu0 0
    %1009 = vmatprep.subr.bf16.mxu0 0
    %1010 = vmatpush1.bf16.msra.mxu0 0
    %1011 = vmatprep.subr.bf16.mxu0 0
    %1012 = vmatpush1.bf16.msra.mxu0 0
    %1013 = vmatprep.subr.bf16.mxu0 0
    %1014 = vmatpush1.bf16.msra.mxu0 0
    %1015 = vmatprep.subr.bf16.mxu0 0
    %1016 = vmatpush1.bf16.msra.mxu0 0
    %1017 = vmatprep.subr.bf16.mxu0 0
    %1018 = vmatpush1.bf16.msra.mxu0 %v996
    %1019 = vmatprep.subr.bf16.mxu0 0
    %1020 = vmatpush1.bf16.msra.mxu0 %v995
    %1021 = vmatprep.subr.bf16.mxu0 0
    %1022 = vmatpush2.bf16.msra.mxu0 0
    %1023 = vmatprep.subr.bf16.mxu0 0
    %1024 = vmatpush2.bf16.msra.mxu0 0
    %1025 = vmatprep.subr.bf16.mxu0 0
    %1026 = vmatpush2.bf16.msra.mxu0 0
    %1027 = vmatprep.subr.bf16.mxu0 0
    %1028 = vmatpush2.bf16.msra.mxu0 0
    %1029 = vmatprep.subr.bf16.mxu0 0
    %1030 = vmatpush2.bf16.msra.mxu0 0
    %1031 = vmatprep.subr.bf16.mxu0 0
    %1032 = vmatpush2.bf16.msra.mxu0 0
    %1033 = vmatprep.subr.bf16.mxu0 0
    %1034 = vmatpush2.bf16.msra.mxu0 0
    %1035 = vmatprep.subr.bf16.mxu0 0
    %1036 = vmatpush2.bf16.msra.mxu0 0
    %1037 = vmatprep.mubr.bf16.mxu0 0
    %1038 = vmatmul.mubr.bf16.gmra.mxu0 %v926
    %v1039 = vpop.f32.mrf.mxu0
    %v1040 = vadd.f32 %v1003, %v1039
    %v1041 = vpop.f32.mrf.mxu0
    %v1042 = vpop.f32.mrf.mxu0
    %v1043 = vadd.f32 %v1003, %v1042
    %v1044 = vpop.f32.mrf.mxu0
    %1045 = vmatprep.mubr.bf16.mxu0 0
    %1046 = vmatmul.mubr.bf16.gmra.mxu0 %v929
    %v1047 = vpop.f32.mrf.mxu0
    %v1048 = vadd.f32 %v1003, %v1047
    %v1049 = vpop.f32.mrf.mxu0
    %v1050 = vpop.f32.mrf.mxu0
    %v1051 = vadd.f32 %v1003, %v1050
    %v1052 = vpop.f32.mrf.mxu0
    %1053 = vmatprep.mubr.bf16.mxu0 0
    %1054 = vmatmul.mubr.bf16.gmra.mxu0 %v932
    %v1055 = vpop.f32.mrf.mxu0
    %v1056 = vadd.f32 %v1003, %v1055
    %v1057 = vpop.f32.mrf.mxu0
    %v1058 = vpop.f32.mrf.mxu0
    %v1059 = vpop.f32.mrf.mxu0
    %1060 = vdwg.mxu0
    %s1061 = scalar_lea.vmem %s27, 64
    %v1062 = vld [vmem:[%s1061] sm:$0xff]
    %v1063 = vld [vmem:[%s1061 + $0x8] sm:$0xff]
    %v1064 = vld [vmem:[%s1061 + $0x10] sm:$0xff]
    %v1065 = vld [vmem:[%s1061 + $0x18] sm:$0xff]
    %v1066 = vpack.c.bf16 %v1063, %v1062
    %v1067 = vpack.c.bf16 %v1065, %v1064
    %s1068 = scalar_lea.vmem %s29, 2
    %v1069 = vld [vmem:[%s1068] sm:$0x1]
    %v1071 = vlaneseq
    %v1072 = vshrl.u32 %v1071, 7
    %v1073 = vsub.s32 0, %v1072
    %v1074 = vrot.slane %v1069, %v1073
    %1076 = vmatprep.subr.bf16.mxu0 0
    %1077 = vmatpush1.bf16.msra.mxu0 0
    %1078 = vmatprep.subr.bf16.mxu0 0
    %1079 = vmatpush1.bf16.msra.mxu0 0
    %1080 = vmatprep.subr.bf16.mxu0 0
    %1081 = vmatpush1.bf16.msra.mxu0 0
    %1082 = vmatprep.subr.bf16.mxu0 0
    %1083 = vmatpush1.bf16.msra.mxu0 0
    %1084 = vmatprep.subr.bf16.mxu0 0
    %1085 = vmatpush1.bf16.msra.mxu0 0
    %1086 = vmatprep.subr.bf16.mxu0 0
    %1087 = vmatpush1.bf16.msra.mxu0 0
    %1088 = vmatprep.subr.bf16.mxu0 0
    %1089 = vmatpush1.bf16.msra.mxu0 %v1067
    %1090 = vmatprep.subr.bf16.mxu0 0
    %1091 = vmatpush1.bf16.msra.mxu0 %v1066
    %1092 = vmatprep.subr.bf16.mxu0 0
    %1093 = vmatpush2.bf16.msra.mxu0 0
    %1094 = vmatprep.subr.bf16.mxu0 0
    %1095 = vmatpush2.bf16.msra.mxu0 0
    %1096 = vmatprep.subr.bf16.mxu0 0
    %1097 = vmatpush2.bf16.msra.mxu0 0
    %1098 = vmatprep.subr.bf16.mxu0 0
    %1099 = vmatpush2.bf16.msra.mxu0 0
    %1100 = vmatprep.subr.bf16.mxu0 0
    %1101 = vmatpush2.bf16.msra.mxu0 0
    %1102 = vmatprep.subr.bf16.mxu0 0
    %1103 = vmatpush2.bf16.msra.mxu0 0
    %1104 = vmatprep.subr.bf16.mxu0 0
    %1105 = vmatpush2.bf16.msra.mxu0 0
    %1106 = vmatprep.subr.bf16.mxu0 0
    %1107 = vmatpush2.bf16.msra.mxu0 0
    %1108 = vmatprep.mubr.bf16.mxu0 0
    %1109 = vmatmul.mubr.bf16.gmra.mxu0 %v926
    %v1110 = vpop.f32.mrf.mxu0
    %v1111 = vadd.f32 %v1074, %v1110
    %v1112 = vpop.f32.mrf.mxu0
    %v1113 = vpop.f32.mrf.mxu0
    %v1114 = vadd.f32 %v1074, %v1113
    %v1115 = vpop.f32.mrf.mxu0
    %1116 = vmatprep.mubr.bf16.mxu0 0
    %1117 = vmatmul.mubr.bf16.gmra.mxu0 %v929
    %v1118 = vpop.f32.mrf.mxu0
    %v1119 = vadd.f32 %v1074, %v1118
    %v1120 = vpop.f32.mrf.mxu0
    %v1121 = vpop.f32.mrf.mxu0
    %v1122 = vadd.f32 %v1074, %v1121
    %v1123 = vpop.f32.mrf.mxu0
    %1124 = vmatprep.mubr.bf16.mxu0 0
    %1125 = vmatmul.mubr.bf16.gmra.mxu0 %v932
    %v1126 = vpop.f32.mrf.mxu0
    %v1127 = vadd.f32 %v1074, %v1126
    %v1128 = vpop.f32.mrf.mxu0
    %v1129 = vpop.f32.mrf.mxu0
    %v1130 = vpop.f32.mrf.mxu0
    %1131 = vdwg.mxu0
    %1132 = vxpose.xlu0.b32.start [1/16] %v1040, 128
    %1133 = vxpose.xlu0.b32.cont [2/16] %v1043, 128
    %1134 = vxpose.xlu0.b32.cont [3/16] %v1048, 128
    %1135 = vxpose.xlu0.b32.cont [4/16] %v1051, 128
    %1136 = vxpose.xlu0.b32.cont [5/16] %v1056, 128
    %1137 = vxpose.xlu0.b32.cont [6/16] 0.0, 128
    %1138 = vxpose.xlu0.b32.cont [7/16] 0.0, 128
    %1139 = vxpose.xlu0.b32.cont [8/16] 0.0, 128
    %1140 = vxpose.xlu0.b32.cont [9/16] 0.0, 128
    %1141 = vxpose.xlu0.b32.cont [10/16] 0.0, 128
    %1142 = vxpose.xlu0.b32.cont [11/16] 0.0, 128
    %1143 = vxpose.xlu0.b32.cont [12/16] 0.0, 128
    %1144 = vxpose.xlu0.b32.cont [13/16] 0.0, 128
    %1145 = vxpose.xlu0.b32.cont [14/16] 0.0, 128
    %1146 = vxpose.xlu0.b32.cont [15/16] 0.0, 128
    %1147 = vxpose.xlu0.b32.end [16/16] 0.0, 128
    %v1148 = vpop.trf.xlu0
    %v1149 = vpop.trf.xlu0
    %v1150 = vpop.trf.xlu0
    %v1151 = vpop.trf.xlu0
    %v1152 = vpop.trf.xlu0
    %v1153 = vpop.trf.xlu0
    %v1154 = vpop.trf.xlu0
    %v1155 = vpop.trf.xlu0
    %v1156 = vpop.trf.xlu0
    %v1157 = vpop.trf.xlu0
    %v1158 = vpop.trf.xlu0
    %v1159 = vpop.trf.xlu0
    %v1160 = vpop.trf.xlu0
    %v1161 = vpop.trf.xlu0
    %v1162 = vpop.trf.xlu0
    %v1163 = vpop.trf.xlu0
    %v1164 = vpack.c.bf16 %v972, %v969
    %v1165 = vpack.c.bf16 %v980, %v977
    %v1166 = vpack.c.bf16 %v985, %v985
    %v1167 = vpack.c.bf16 %v1149, %v1148
    %v1168 = vpack.c.bf16 %v1151, %v1150
    %v1170 = vsel %vm323, %v1164, 0
    %v1173 = vsel %vm323, %v1165, 0
    %v1176 = vsel %vm323, %v1166, 0
    %1178 = vmatprep.subr.bf16.mxu0 0
    %1179 = vmatpush1.bf16.msra.mxu0 0
    %1180 = vmatprep.subr.bf16.mxu0 0
    %1181 = vmatpush1.bf16.msra.mxu0 0
    %1182 = vmatprep.subr.bf16.mxu0 0
    %1183 = vmatpush1.bf16.msra.mxu0 0
    %1184 = vmatprep.subr.bf16.mxu0 0
    %1185 = vmatpush1.bf16.msra.mxu0 0
    %1186 = vmatprep.subr.bf16.mxu0 0
    %1187 = vmatpush1.bf16.msra.mxu0 0
    %1188 = vmatprep.subr.bf16.mxu0 0
    %1189 = vmatpush1.bf16.msra.mxu0 0
    %1190 = vmatprep.subr.bf16.mxu0 0
    %1191 = vmatpush1.bf16.msra.mxu0 %v1168
    %1192 = vmatprep.subr.bf16.mxu0 0
    %1193 = vmatpush1.bf16.msra.mxu0 %v1167
    %1194 = vmatprep.subr.bf16.mxu0 0
    %1195 = vmatpush2.bf16.msra.mxu0 0
    %1196 = vmatprep.subr.bf16.mxu0 0
    %1197 = vmatpush2.bf16.msra.mxu0 0
    %1198 = vmatprep.subr.bf16.mxu0 0
    %1199 = vmatpush2.bf16.msra.mxu0 0
    %1200 = vmatprep.subr.bf16.mxu0 0
    %1201 = vmatpush2.bf16.msra.mxu0 0
    %1202 = vmatprep.subr.bf16.mxu0 0
    %1203 = vmatpush2.bf16.msra.mxu0 0
    %1204 = vmatprep.subr.bf16.mxu0 0
    %1205 = vmatpush2.bf16.msra.mxu0 0
    %1206 = vmatprep.subr.bf16.mxu0 0
    %1207 = vmatpush2.bf16.msra.mxu0 0
    %1208 = vmatprep.subr.bf16.mxu0 0
    %1209 = vmatpush2.bf16.msra.mxu0 0
    %1210 = vmatprep.mubr.bf16.mxu0 0
    %1211 = vmatmul.mubr.bf16.gmra.mxu0 %v1170
    %v1212 = vpop.f32.mrf.mxu0
    %v1213 = vadd.f32 0.0, %v1212
    %v1214 = vpop.f32.mrf.mxu0
    %v1215 = vpop.f32.mrf.mxu0
    %v1216 = vadd.f32 0.0, %v1215
    %v1217 = vpop.f32.mrf.mxu0
    %1218 = vmatprep.mubr.bf16.mxu0 0
    %1219 = vmatmul.mubr.bf16.gmra.mxu0 %v1173
    %v1220 = vpop.f32.mrf.mxu0
    %v1221 = vadd.f32 0.0, %v1220
    %v1222 = vpop.f32.mrf.mxu0
    %v1223 = vpop.f32.mrf.mxu0
    %v1224 = vadd.f32 0.0, %v1223
    %v1225 = vpop.f32.mrf.mxu0
    %1226 = vmatprep.mubr.bf16.mxu0 0
    %1227 = vmatmul.mubr.bf16.gmra.mxu0 %v1176
    %v1228 = vpop.f32.mrf.mxu0
    %v1229 = vadd.f32 0.0, %v1228
    %v1230 = vpop.f32.mrf.mxu0
    %v1231 = vpop.f32.mrf.mxu0
    %v1232 = vpop.f32.mrf.mxu0
    %1233 = vdwg.mxu0
    %v1234 = vmul.f32 %v1213, 0.17677669
    %v1235 = vmul.f32 %v1216, 0.17677669
    %v1236 = vmul.f32 %v1221, 0.17677669
    %v1237 = vmul.f32 %v1224, 0.17677669
    %v1238 = vmul.f32 %v1229, 0.17677669
    %v1239 = vadd.f32 %v1234, %v904
    %v1240 = vadd.f32 %v1235, %v905
    %v1241 = vadd.f32 %v1236, %v906
    %v1242 = vadd.f32 %v1237, %v907
    %v1243 = vadd.f32 %v1238, %v908
    %v1244 = vsel %vm238, %v1239, -inf
    %1245 = vmax.xlane.f32.xlu0 %v1244
    %v1246 = vpop.xlane.xlu0 %1245
    %v1247 = vsel %vm238, %v1240, -inf
    %1248 = vmax.xlane.f32.xlu0 %v1247
    %v1249 = vpop.xlane.xlu0 %1248
    %v1250 = vsel %vm238, %v1241, -inf
    %1251 = vmax.xlane.f32.xlu0 %v1250
    %v1252 = vpop.xlane.xlu0 %1251
    %v1253 = vsel %vm238, %v1242, -inf
    %1254 = vmax.xlane.f32.xlu0 %v1253
    %v1255 = vpop.xlane.xlu0 %1254
    %v1256 = vsel %vm238, %v1243, -inf
    %1257 = vmax.xlane.f32.xlu0 %v1256
    %v1258 = vpop.xlane.xlu0 %1257
    %v1259 = vsub.f32 %v1239, %v1246
    %v1260 = vsub.f32 %v1240, %v1249
    %v1261 = vsub.f32 %v1241, %v1252
    %v1262 = vsub.f32 %v1242, %v1255
    %v1263 = vsub.f32 %v1243, %v1258
    %v1264 = vmin.f32 %v1259, 0.0
    %v1265 = vmin.f32 %v1260, 0.0
    %v1266 = vmin.f32 %v1261, 0.0
    %v1267 = vmin.f32 %v1262, 0.0
    %v1268 = vmin.f32 %v1263, 0.0
    %v1269 = vmul.f32 %v1264, 1.442695
    %v1270 = vpow.pop %v1269
    %v1271 = vmul.f32 %v1265, 1.442695
    %v1272 = vpow.pop %v1271
    %v1273 = vmul.f32 %v1266, 1.442695
    %v1274 = vpow.pop %v1273
    %v1275 = vmul.f32 %v1267, 1.442695
    %v1276 = vpow.pop %v1275
    %v1277 = vmul.f32 %v1268, 1.442695
    %v1278 = vpow.pop %v1277
    %v1279 = vsel %vm238, %v1270, 0.0
    %1280 = vadd.xlane.f32.xlu0 %v1279
    %v1281 = vpop.xlane.xlu0 %1280
    %v1282 = vsel %vm238, %v1272, 0.0
    %1283 = vadd.xlane.f32.xlu0 %v1282
    %v1284 = vpop.xlane.xlu0 %1283
    %v1285 = vsel %vm238, %v1274, 0.0
    %1286 = vadd.xlane.f32.xlu0 %v1285
    %v1287 = vpop.xlane.xlu0 %1286
    %v1288 = vsel %vm238, %v1276, 0.0
    %1289 = vadd.xlane.f32.xlu0 %v1288
    %v1290 = vpop.xlane.xlu0 %1289
    %v1291 = vsel %vm238, %v1278, 0.0
    %1292 = vadd.xlane.f32.xlu0 %v1291
    %v1293 = vpop.xlane.xlu0 %1292
    %v1294 = vrcp.pop %v1281
    %v1295 = vmul.f32 %v1270, %v1294
    %v1296 = vrcp.pop %v1284
    %v1297 = vmul.f32 %v1272, %v1296
    %v1298 = vrcp.pop %v1287
    %v1299 = vmul.f32 %v1274, %v1298
    %v1300 = vrcp.pop %v1290
    %v1301 = vmul.f32 %v1276, %v1300
    %v1302 = vrcp.pop %v1293
    %v1303 = vmul.f32 %v1278, %v1302
    %v1304 = vpack.c.bf16 %v1297, %v1295
    %v1305 = vpack.c.bf16 %v1301, %v1299
    %v1306 = vpack.c.bf16 %v1303, %v1303
    %v1307 = vpack.c.bf16 %v1114, %v1111
    %v1308 = vpack.c.bf16 %v1122, %v1119
    %v1309 = vpack.c.bf16 %v1127, %v1127
    %v1311 = vsel %vm238, %v1304, 0
    %v1314 = vsel %vm238, %v1305, 0
    %v1317 = vsel %vm238, %v1306, 0
    %v1320 = vsel %vm167, %v1309, 0
    %1322 = vmatprep.subr.bf16.mxu0 0
    %1323 = vmatpush1.bf16.msra.mxu0 0
    %1324 = vmatprep.subr.bf16.mxu0 0
    %1325 = vmatpush1.bf16.msra.mxu0 0
    %1326 = vmatprep.subr.bf16.mxu0 0
    %1327 = vmatpush1.bf16.msra.mxu0 0
    %1328 = vmatprep.subr.bf16.mxu0 0
    %1329 = vmatpush1.bf16.msra.mxu0 0
    %1330 = vmatprep.subr.bf16.mxu0 0
    %1331 = vmatpush1.bf16.msra.mxu0 0
    %1332 = vmatprep.subr.bf16.mxu0 0
    %1333 = vmatpush1.bf16.msra.mxu0 %v1320
    %1334 = vmatprep.subr.bf16.mxu0 0
    %1335 = vmatpush1.bf16.msra.mxu0 %v1308
    %1336 = vmatprep.subr.bf16.mxu0 0
    %1337 = vmatpush1.bf16.msra.mxu0 %v1307
    %1338 = vmatprep.subr.bf16.mxu0 0
    %1339 = vmatpush2.bf16.msra.mxu0 0
    %1340 = vmatprep.subr.bf16.mxu0 0
    %1341 = vmatpush2.bf16.msra.mxu0 0
    %1342 = vmatprep.subr.bf16.mxu0 0
    %1343 = vmatpush2.bf16.msra.mxu0 0
    %1344 = vmatprep.subr.bf16.mxu0 0
    %1345 = vmatpush2.bf16.msra.mxu0 0
    %1346 = vmatprep.subr.bf16.mxu0 0
    %1347 = vmatpush2.bf16.msra.mxu0 0
    %1348 = vmatprep.subr.bf16.mxu0 0
    %1349 = vmatpush2.bf16.msra.mxu0 0
    %1350 = vmatprep.subr.bf16.mxu0 0
    %1351 = vmatpush2.bf16.msra.mxu0 0
    %1352 = vmatprep.subr.bf16.mxu0 0
    %1353 = vmatpush2.bf16.msra.mxu0 0
    %1354 = vmatprep.mubr.bf16.mxu0 0
    %1355 = vmatmul.mubr.bf16.gmra.mxu0 %v1311
    %v1356 = vpop.f32.mrf.mxu0
    %v1357 = vadd.f32 0.0, %v1356
    %v1358 = vpop.f32.mrf.mxu0
    %v1359 = vpop.f32.mrf.mxu0
    %v1360 = vadd.f32 0.0, %v1359
    %v1361 = vpop.f32.mrf.mxu0
    %1362 = vmatprep.mubr.bf16.mxu0 0
    %1363 = vmatmul.mubr.bf16.gmra.mxu0 %v1314
    %v1364 = vpop.f32.mrf.mxu0
    %v1365 = vadd.f32 0.0, %v1364
    %v1366 = vpop.f32.mrf.mxu0
    %v1367 = vpop.f32.mrf.mxu0
    %v1368 = vadd.f32 0.0, %v1367
    %v1369 = vpop.f32.mrf.mxu0
    %1370 = vmatprep.mubr.bf16.mxu0 0
    %1371 = vmatmul.mubr.bf16.gmra.mxu0 %v1317
    %v1372 = vpop.f32.mrf.mxu0
    %v1373 = vadd.f32 0.0, %v1372
    %v1374 = vpop.f32.mrf.mxu0
    %v1375 = vpop.f32.mrf.mxu0
    %v1376 = vpop.f32.mrf.mxu0
    %1377 = vdwg.mxu0
    %s1378 = scalar_lea.vmem %s27, 96
    %v1379 = vld [vmem:[%s1378] sm:$0xff]
    %v1380 = vld [vmem:[%s1378 + $0x8] sm:$0xff]
    %v1381 = vld [vmem:[%s1378 + $0x10] sm:$0xff]
    %v1382 = vld [vmem:[%s1378 + $0x18] sm:$0xff]
    %v1383 = vpack.c.bf16 %v1360, %v1357
    %v1384 = vpack.c.bf16 %v1368, %v1365
    %v1385 = vpack.c.bf16 %v1373, %v1373
    %v1386 = vpack.c.bf16 %v1380, %v1379
    %v1387 = vpack.c.bf16 %v1382, %v1381
    %v1389 = vsel %vm323, %v1383, 0
    %v1392 = vsel %vm323, %v1384, 0
    %v1395 = vsel %vm323, %v1385, 0
    %1397 = vmatprep.subr.bf16.mxu0 0
    %1398 = vmatpush1.bf16.msra.mxu0 0
    %1399 = vmatprep.subr.bf16.mxu0 0
    %1400 = vmatpush1.bf16.msra.mxu0 0
    %1401 = vmatprep.subr.bf16.mxu0 0
    %1402 = vmatpush1.bf16.msra.mxu0 0
    %1403 = vmatprep.subr.bf16.mxu0 0
    %1404 = vmatpush1.bf16.msra.mxu0 0
    %1405 = vmatprep.subr.bf16.mxu0 0
    %1406 = vmatpush1.bf16.msra.mxu0 0
    %1407 = vmatprep.subr.bf16.mxu0 0
    %1408 = vmatpush1.bf16.msra.mxu0 0
    %1409 = vmatprep.subr.bf16.mxu0 0
    %1410 = vmatpush1.bf16.msra.mxu0 %v1387
    %1411 = vmatprep.subr.bf16.mxu0 0
    %1412 = vmatpush1.bf16.msra.mxu0 %v1386
    %1413 = vmatprep.subr.bf16.mxu0 0
    %1414 = vmatpush2.bf16.msra.mxu0 0
    %1415 = vmatprep.subr.bf16.mxu0 0
    %1416 = vmatpush2.bf16.msra.mxu0 0
    %1417 = vmatprep.subr.bf16.mxu0 0
    %1418 = vmatpush2.bf16.msra.mxu0 0
    %1419 = vmatprep.subr.bf16.mxu0 0
    %1420 = vmatpush2.bf16.msra.mxu0 0
    %1421 = vmatprep.subr.bf16.mxu0 0
    %1422 = vmatpush2.bf16.msra.mxu0 0
    %1423 = vmatprep.subr.bf16.mxu0 0
    %1424 = vmatpush2.bf16.msra.mxu0 0
    %1425 = vmatprep.subr.bf16.mxu0 0
    %1426 = vmatpush2.bf16.msra.mxu0 0
    %1427 = vmatprep.subr.bf16.mxu0 0
    %1428 = vmatpush2.bf16.msra.mxu0 0
    %1429 = vmatprep.mubr.bf16.mxu0 0
    %1430 = vmatmul.mubr.bf16.gmra.mxu0 %v1389
    %v1431 = vpop.f32.mrf.mxu0
    %v1432 = vadd.f32 0.0, %v1431
    %v1433 = vpop.f32.mrf.mxu0
    %v1434 = vpop.f32.mrf.mxu0
    %v1435 = vadd.f32 0.0, %v1434
    %v1436 = vpop.f32.mrf.mxu0
    %1437 = vmatprep.mubr.bf16.mxu0 0
    %1438 = vmatmul.mubr.bf16.gmra.mxu0 %v1392
    %v1439 = vpop.f32.mrf.mxu0
    %v1440 = vadd.f32 0.0, %v1439
    %v1441 = vpop.f32.mrf.mxu0
    %v1442 = vpop.f32.mrf.mxu0
    %v1443 = vadd.f32 0.0, %v1442
    %v1444 = vpop.f32.mrf.mxu0
    %1445 = vmatprep.mubr.bf16.mxu0 0
    %1446 = vmatmul.mubr.bf16.gmra.mxu0 %v1395
    %v1447 = vpop.f32.mrf.mxu0
    %v1448 = vadd.f32 0.0, %v1447
    %v1449 = vpop.f32.mrf.mxu0
    %v1450 = vpop.f32.mrf.mxu0
    %v1451 = vpop.f32.mrf.mxu0
    %1452 = vdwg.mxu0
    %v1453 = vadd.f32 %v899, %v1432
    %v1454 = vadd.f32 %v900, %v1435
    %v1455 = vadd.f32 %v901, %v1440
    %v1456 = vadd.f32 %v902, %v1443
    %v1457 = vadd.f32 %v903, %v1448
    %s1458 = scalar_lea.vmem %s29, 3
    %v1459 = vld [vmem:[%s1458] sm:$0x1]
    %v1461 = vlaneseq
    %v1462 = vshrl.u32 %v1461, 7
    %v1463 = vsub.s32 0, %v1462
    %v1464 = vrot.slane %v1459, %v1463
    %v1466 = vadd.f32 %v1453, %v1464
    %v1467 = vadd.f32 %v1454, %v1464
    %v1468 = vadd.f32 %v1455, %v1464
    %v1469 = vadd.f32 %v1456, %v1464
    %v1470 = vadd.f32 %v1457, %v1464
    %s1471 = scalar_lea.vmem %s27, 128
    %v1472 = vld [vmem:[%s1471] sm:$0xff]
    %v1473 = vld [vmem:[%s1471 + $0x8] sm:$0xff]
    %v1474 = vld [vmem:[%s1471 + $0x10] sm:$0xff]
    %v1475 = vld [vmem:[%s1471 + $0x18] sm:$0xff]
    %v1476 = vpack.c.bf16 %v1467, %v1466
    %v1477 = vpack.c.bf16 %v1469, %v1468
    %v1478 = vpack.c.bf16 %v1470, %v1470
    %v1479 = vpack.c.bf16 %v1473, %v1472
    %v1480 = vpack.c.bf16 %v1475, %v1474
    %s1481 = scalar_lea.vmem %s29, 4
    %v1482 = vld [vmem:[%s1481] sm:$0x1]
    %v1484 = vlaneseq
    %v1485 = vshrl.u32 %v1484, 7
    %v1486 = vsub.s32 0, %v1485
    %v1487 = vrot.slane %v1482, %v1486
    %v1490 = vsel %vm323, %v1476, 0
    %v1493 = vsel %vm323, %v1477, 0
    %v1496 = vsel %vm323, %v1478, 0
    %1498 = vmatprep.subr.bf16.mxu0 0
    %1499 = vmatpush1.bf16.msra.mxu0 0
    %1500 = vmatprep.subr.bf16.mxu0 0
    %1501 = vmatpush1.bf16.msra.mxu0 0
    %1502 = vmatprep.subr.bf16.mxu0 0
    %1503 = vmatpush1.bf16.msra.mxu0 0
    %1504 = vmatprep.subr.bf16.mxu0 0
    %1505 = vmatpush1.bf16.msra.mxu0 0
    %1506 = vmatprep.subr.bf16.mxu0 0
    %1507 = vmatpush1.bf16.msra.mxu0 0
    %1508 = vmatprep.subr.bf16.mxu0 0
    %1509 = vmatpush1.bf16.msra.mxu0 0
    %1510 = vmatprep.subr.bf16.mxu0 0
    %1511 = vmatpush1.bf16.msra.mxu0 %v1480
    %1512 = vmatprep.subr.bf16.mxu0 0
    %1513 = vmatpush1.bf16.msra.mxu0 %v1479
    %1514 = vmatprep.subr.bf16.mxu0 0
    %1515 = vmatpush2.bf16.msra.mxu0 0
    %1516 = vmatprep.subr.bf16.mxu0 0
    %1517 = vmatpush2.bf16.msra.mxu0 0
    %1518 = vmatprep.subr.bf16.mxu0 0
    %1519 = vmatpush2.bf16.msra.mxu0 0
    %1520 = vmatprep.subr.bf16.mxu0 0
    %1521 = vmatpush2.bf16.msra.mxu0 0
    %1522 = vmatprep.subr.bf16.mxu0 0
    %1523 = vmatpush2.bf16.msra.mxu0 0
    %1524 = vmatprep.subr.bf16.mxu0 0
    %1525 = vmatpush2.bf16.msra.mxu0 0
    %1526 = vmatprep.subr.bf16.mxu0 0
    %1527 = vmatpush2.bf16.msra.mxu0 0
    %1528 = vmatprep.subr.bf16.mxu0 0
    %1529 = vmatpush2.bf16.msra.mxu0 0
    %1530 = vmatprep.mubr.bf16.mxu0 0
    %1531 = vmatmul.mubr.bf16.gmra.mxu0 %v1490
    %v1532 = vpop.f32.mrf.mxu0
    %v1533 = vadd.f32 %v1487, %v1532
    %v1534 = vpop.f32.mrf.mxu0
    %v1535 = vpop.f32.mrf.mxu0
    %v1536 = vadd.f32 %v1487, %v1535
    %v1537 = vpop.f32.mrf.mxu0
    %1538 = vmatprep.mubr.bf16.mxu0 0
    %1539 = vmatmul.mubr.bf16.gmra.mxu0 %v1493
    %v1540 = vpop.f32.mrf.mxu0
    %v1541 = vadd.f32 %v1487, %v1540
    %v1542 = vpop.f32.mrf.mxu0
    %v1543 = vpop.f32.mrf.mxu0
    %v1544 = vadd.f32 %v1487, %v1543
    %v1545 = vpop.f32.mrf.mxu0
    %1546 = vmatprep.mubr.bf16.mxu0 0
    %1547 = vmatmul.mubr.bf16.gmra.mxu0 %v1496
    %v1548 = vpop.f32.mrf.mxu0
    %v1549 = vadd.f32 %v1487, %v1548
    %v1550 = vpop.f32.mrf.mxu0
    %v1551 = vpop.f32.mrf.mxu0
    %v1552 = vpop.f32.mrf.mxu0
    %1553 = vdwg.mxu0
    %s1554 = scalar_lea.vmem %s27, 160
    %v1555 = vld [vmem:[%s1554] sm:$0xff]
    %v1556 = vld [vmem:[%s1554 + $0x8] sm:$0xff]
    %v1557 = vld [vmem:[%s1554 + $0x10] sm:$0xff]
    %v1558 = vld [vmem:[%s1554 + $0x18] sm:$0xff]
    %v1559 = vpack.c.bf16 %v1556, %v1555
    %v1560 = vpack.c.bf16 %v1558, %v1557
    %s1561 = scalar_lea.vmem %s29, 5
    %v1562 = vld [vmem:[%s1561] sm:$0x1]
    %v1564 = vlaneseq
    %v1565 = vshrl.u32 %v1564, 7
    %v1566 = vsub.s32 0, %v1565
    %v1567 = vrot.slane %v1562, %v1566
    %1569 = vmatprep.subr.bf16.mxu0 0
    %1570 = vmatpush1.bf16.msra.mxu0 0
    %1571 = vmatprep.subr.bf16.mxu0 0
    %1572 = vmatpush1.bf16.msra.mxu0 0
    %1573 = vmatprep.subr.bf16.mxu0 0
    %1574 = vmatpush1.bf16.msra.mxu0 0
    %1575 = vmatprep.subr.bf16.mxu0 0
    %1576 = vmatpush1.bf16.msra.mxu0 0
    %1577 = vmatprep.subr.bf16.mxu0 0
    %1578 = vmatpush1.bf16.msra.mxu0 0
    %1579 = vmatprep.subr.bf16.mxu0 0
    %1580 = vmatpush1.bf16.msra.mxu0 0
    %1581 = vmatprep.subr.bf16.mxu0 0
    %1582 = vmatpush1.bf16.msra.mxu0 %v1560
    %1583 = vmatprep.subr.bf16.mxu0 0
    %1584 = vmatpush1.bf16.msra.mxu0 %v1559
    %1585 = vmatprep.subr.bf16.mxu0 0
    %1586 = vmatpush2.bf16.msra.mxu0 0
    %1587 = vmatprep.subr.bf16.mxu0 0
    %1588 = vmatpush2.bf16.msra.mxu0 0
    %1589 = vmatprep.subr.bf16.mxu0 0
    %1590 = vmatpush2.bf16.msra.mxu0 0
    %1591 = vmatprep.subr.bf16.mxu0 0
    %1592 = vmatpush2.bf16.msra.mxu0 0
    %1593 = vmatprep.subr.bf16.mxu0 0
    %1594 = vmatpush2.bf16.msra.mxu0 0
    %1595 = vmatprep.subr.bf16.mxu0 0
    %1596 = vmatpush2.bf16.msra.mxu0 0
    %1597 = vmatprep.subr.bf16.mxu0 0
    %1598 = vmatpush2.bf16.msra.mxu0 0
    %1599 = vmatprep.subr.bf16.mxu0 0
    %1600 = vmatpush2.bf16.msra.mxu0 0
    %1601 = vmatprep.mubr.bf16.mxu0 0
    %1602 = vmatmul.mubr.bf16.gmra.mxu0 %v1490
    %v1603 = vpop.f32.mrf.mxu0
    %v1604 = vadd.f32 %v1567, %v1603
    %v1605 = vpop.f32.mrf.mxu0
    %v1606 = vpop.f32.mrf.mxu0
    %v1607 = vadd.f32 %v1567, %v1606
    %v1608 = vpop.f32.mrf.mxu0
    %1609 = vmatprep.mubr.bf16.mxu0 0
    %1610 = vmatmul.mubr.bf16.gmra.mxu0 %v1493
    %v1611 = vpop.f32.mrf.mxu0
    %v1612 = vadd.f32 %v1567, %v1611
    %v1613 = vpop.f32.mrf.mxu0
    %v1614 = vpop.f32.mrf.mxu0
    %v1615 = vadd.f32 %v1567, %v1614
    %v1616 = vpop.f32.mrf.mxu0
    %1617 = vmatprep.mubr.bf16.mxu0 0
    %1618 = vmatmul.mubr.bf16.gmra.mxu0 %v1496
    %v1619 = vpop.f32.mrf.mxu0
    %v1620 = vadd.f32 %v1567, %v1619
    %v1621 = vpop.f32.mrf.mxu0
    %v1622 = vpop.f32.mrf.mxu0
    %v1623 = vpop.f32.mrf.mxu0
    %1624 = vdwg.mxu0
    %s1625 = scalar_lea.vmem %s27, 192
    %v1626 = vld [vmem:[%s1625] sm:$0xff]
    %v1627 = vld [vmem:[%s1625 + $0x8] sm:$0xff]
    %v1628 = vld [vmem:[%s1625 + $0x10] sm:$0xff]
    %v1629 = vld [vmem:[%s1625 + $0x18] sm:$0xff]
    %v1630 = vpack.c.bf16 %v1627, %v1626
    %v1631 = vpack.c.bf16 %v1629, %v1628
    %s1632 = scalar_lea.vmem %s29, 6
    %v1633 = vld [vmem:[%s1632] sm:$0x1]
    %v1635 = vlaneseq
    %v1636 = vshrl.u32 %v1635, 7
    %v1637 = vsub.s32 0, %v1636
    %v1638 = vrot.slane %v1633, %v1637
    %1640 = vmatprep.subr.bf16.mxu0 0
    %1641 = vmatpush1.bf16.msra.mxu0 0
    %1642 = vmatprep.subr.bf16.mxu0 0
    %1643 = vmatpush1.bf16.msra.mxu0 0
    %1644 = vmatprep.subr.bf16.mxu0 0
    %1645 = vmatpush1.bf16.msra.mxu0 0
    %1646 = vmatprep.subr.bf16.mxu0 0
    %1647 = vmatpush1.bf16.msra.mxu0 0
    %1648 = vmatprep.subr.bf16.mxu0 0
    %1649 = vmatpush1.bf16.msra.mxu0 0
    %1650 = vmatprep.subr.bf16.mxu0 0
    %1651 = vmatpush1.bf16.msra.mxu0 0
    %1652 = vmatprep.subr.bf16.mxu0 0
    %1653 = vmatpush1.bf16.msra.mxu0 %v1631
    %1654 = vmatprep.subr.bf16.mxu0 0
    %1655 = vmatpush1.bf16.msra.mxu0 %v1630
    %1656 = vmatprep.subr.bf16.mxu0 0
    %1657 = vmatpush2.bf16.msra.mxu0 0
    %1658 = vmatprep.subr.bf16.mxu0 0
    %1659 = vmatpush2.bf16.msra.mxu0 0
    %1660 = vmatprep.subr.bf16.mxu0 0
    %1661 = vmatpush2.bf16.msra.mxu0 0
    %1662 = vmatprep.subr.bf16.mxu0 0
    %1663 = vmatpush2.bf16.msra.mxu0 0
    %1664 = vmatprep.subr.bf16.mxu0 0
    %1665 = vmatpush2.bf16.msra.mxu0 0
    %1666 = vmatprep.subr.bf16.mxu0 0
    %1667 = vmatpush2.bf16.msra.mxu0 0
    %1668 = vmatprep.subr.bf16.mxu0 0
    %1669 = vmatpush2.bf16.msra.mxu0 0
    %1670 = vmatprep.subr.bf16.mxu0 0
    %1671 = vmatpush2.bf16.msra.mxu0 0
    %1672 = vmatprep.mubr.bf16.mxu0 0
    %1673 = vmatmul.mubr.bf16.gmra.mxu0 %v1490
    %v1674 = vpop.f32.mrf.mxu0
    %v1675 = vadd.f32 %v1638, %v1674
    %v1676 = vpop.f32.mrf.mxu0
    %v1677 = vpop.f32.mrf.mxu0
    %v1678 = vadd.f32 %v1638, %v1677
    %v1679 = vpop.f32.mrf.mxu0
    %1680 = vmatprep.mubr.bf16.mxu0 0
    %1681 = vmatmul.mubr.bf16.gmra.mxu0 %v1493
    %v1682 = vpop.f32.mrf.mxu0
    %v1683 = vadd.f32 %v1638, %v1682
    %v1684 = vpop.f32.mrf.mxu0
    %v1685 = vpop.f32.mrf.mxu0
    %v1686 = vadd.f32 %v1638, %v1685
    %v1687 = vpop.f32.mrf.mxu0
    %1688 = vmatprep.mubr.bf16.mxu0 0
    %1689 = vmatmul.mubr.bf16.gmra.mxu0 %v1496
    %v1690 = vpop.f32.mrf.mxu0
    %v1691 = vadd.f32 %v1638, %v1690
    %v1692 = vpop.f32.mrf.mxu0
    %v1693 = vpop.f32.mrf.mxu0
    %v1694 = vpop.f32.mrf.mxu0
    %1695 = vdwg.mxu0
    %1696 = vxpose.xlu0.b32.start [1/16] %v1604, 128
    %1697 = vxpose.xlu0.b32.cont [2/16] %v1607, 128
    %1698 = vxpose.xlu0.b32.cont [3/16] %v1612, 128
    %1699 = vxpose.xlu0.b32.cont [4/16] %v1615, 128
    %1700 = vxpose.xlu0.b32.cont [5/16] %v1620, 128
    %1701 = vxpose.xlu0.b32.cont [6/16] 0.0, 128
    %1702 = vxpose.xlu0.b32.cont [7/16] 0.0, 128
    %1703 = vxpose.xlu0.b32.cont [8/16] 0.0, 128
    %1704 = vxpose.xlu0.b32.cont [9/16] 0.0, 128
    %1705 = vxpose.xlu0.b32.cont [10/16] 0.0, 128
    %1706 = vxpose.xlu0.b32.cont [11/16] 0.0, 128
    %1707 = vxpose.xlu0.b32.cont [12/16] 0.0, 128
    %1708 = vxpose.xlu0.b32.cont [13/16] 0.0, 128
    %1709 = vxpose.xlu0.b32.cont [14/16] 0.0, 128
    %1710 = vxpose.xlu0.b32.cont [15/16] 0.0, 128
    %1711 = vxpose.xlu0.b32.end [16/16] 0.0, 128
    %v1712 = vpop.trf.xlu0
    %v1713 = vpop.trf.xlu0
    %v1714 = vpop.trf.xlu0
    %v1715 = vpop.trf.xlu0
    %v1716 = vpop.trf.xlu0
    %v1717 = vpop.trf.xlu0
    %v1718 = vpop.trf.xlu0
    %v1719 = vpop.trf.xlu0
    %v1720 = vpop.trf.xlu0
    %v1721 = vpop.trf.xlu0
    %v1722 = vpop.trf.xlu0
    %v1723 = vpop.trf.xlu0
    %v1724 = vpop.trf.xlu0
    %v1725 = vpop.trf.xlu0
    %v1726 = vpop.trf.xlu0
    %v1727 = vpop.trf.xlu0
    %v1728 = vpack.c.bf16 %v1536, %v1533
    %v1729 = vpack.c.bf16 %v1544, %v1541
    %v1730 = vpack.c.bf16 %v1549, %v1549
    %v1731 = vpack.c.bf16 %v1713, %v1712
    %v1732 = vpack.c.bf16 %v1715, %v1714
    %v1734 = vsel %vm323, %v1728, 0
    %v1737 = vsel %vm323, %v1729, 0
    %v1740 = vsel %vm323, %v1730, 0
    %1742 = vmatprep.subr.bf16.mxu0 0
    %1743 = vmatpush1.bf16.msra.mxu0 0
    %1744 = vmatprep.subr.bf16.mxu0 0
    %1745 = vmatpush1.bf16.msra.mxu0 0
    %1746 = vmatprep.subr.bf16.mxu0 0
    %1747 = vmatpush1.bf16.msra.mxu0 0
    %1748 = vmatprep.subr.bf16.mxu0 0
    %1749 = vmatpush1.bf16.msra.mxu0 0
    %1750 = vmatprep.subr.bf16.mxu0 0
    %1751 = vmatpush1.bf16.msra.mxu0 0
    %1752 = vmatprep.subr.bf16.mxu0 0
    %1753 = vmatpush1.bf16.msra.mxu0 0
    %1754 = vmatprep.subr.bf16.mxu0 0
    %1755 = vmatpush1.bf16.msra.mxu0 %v1732
    %1756 = vmatprep.subr.bf16.mxu0 0
    %1757 = vmatpush1.bf16.msra.mxu0 %v1731
    %1758 = vmatprep.subr.bf16.mxu0 0
    %1759 = vmatpush2.bf16.msra.mxu0 0
    %1760 = vmatprep.subr.bf16.mxu0 0
    %1761 = vmatpush2.bf16.msra.mxu0 0
    %1762 = vmatprep.subr.bf16.mxu0 0
    %1763 = vmatpush2.bf16.msra.mxu0 0
    %1764 = vmatprep.subr.bf16.mxu0 0
    %1765 = vmatpush2.bf16.msra.mxu0 0
    %1766 = vmatprep.subr.bf16.mxu0 0
    %1767 = vmatpush2.bf16.msra.mxu0 0
    %1768 = vmatprep.subr.bf16.mxu0 0
    %1769 = vmatpush2.bf16.msra.mxu0 0
    %1770 = vmatprep.subr.bf16.mxu0 0
    %1771 = vmatpush2.bf16.msra.mxu0 0
    %1772 = vmatprep.subr.bf16.mxu0 0
    %1773 = vmatpush2.bf16.msra.mxu0 0
    %1774 = vmatprep.mubr.bf16.mxu0 0
    %1775 = vmatmul.mubr.bf16.gmra.mxu0 %v1734
    %v1776 = vpop.f32.mrf.mxu0
    %v1777 = vadd.f32 0.0, %v1776
    %v1778 = vpop.f32.mrf.mxu0
    %v1779 = vpop.f32.mrf.mxu0
    %v1780 = vadd.f32 0.0, %v1779
    %v1781 = vpop.f32.mrf.mxu0
    %1782 = vmatprep.mubr.bf16.mxu0 0
    %1783 = vmatmul.mubr.bf16.gmra.mxu0 %v1737
    %v1784 = vpop.f32.mrf.mxu0
    %v1785 = vadd.f32 0.0, %v1784
    %v1786 = vpop.f32.mrf.mxu0
    %v1787 = vpop.f32.mrf.mxu0
    %v1788 = vadd.f32 0.0, %v1787
    %v1789 = vpop.f32.mrf.mxu0
    %1790 = vmatprep.mubr.bf16.mxu0 0
    %1791 = vmatmul.mubr.bf16.gmra.mxu0 %v1740
    %v1792 = vpop.f32.mrf.mxu0
    %v1793 = vadd.f32 0.0, %v1792
    %v1794 = vpop.f32.mrf.mxu0
    %v1795 = vpop.f32.mrf.mxu0
    %v1796 = vpop.f32.mrf.mxu0
    %1797 = vdwg.mxu0
    %v1798 = vmul.f32 %v1777, 0.17677669
    %v1799 = vmul.f32 %v1780, 0.17677669
    %v1800 = vmul.f32 %v1785, 0.17677669
    %v1801 = vmul.f32 %v1788, 0.17677669
    %v1802 = vmul.f32 %v1793, 0.17677669
    %v1803 = vadd.f32 %v1798, %v904
    %v1804 = vadd.f32 %v1799, %v905
    %v1805 = vadd.f32 %v1800, %v906
    %v1806 = vadd.f32 %v1801, %v907
    %v1807 = vadd.f32 %v1802, %v908
    %v1808 = vsel %vm238, %v1803, -inf
    %1809 = vmax.xlane.f32.xlu0 %v1808
    %v1810 = vpop.xlane.xlu0 %1809
    %v1811 = vsel %vm238, %v1804, -inf
    %1812 = vmax.xlane.f32.xlu0 %v1811
    %v1813 = vpop.xlane.xlu0 %1812
    %v1814 = vsel %vm238, %v1805, -inf
    %1815 = vmax.xlane.f32.xlu0 %v1814
    %v1816 = vpop.xlane.xlu0 %1815
    %v1817 = vsel %vm238, %v1806, -inf
    %1818 = vmax.xlane.f32.xlu0 %v1817
    %v1819 = vpop.xlane.xlu0 %1818
    %v1820 = vsel %vm238, %v1807, -inf
    %1821 = vmax.xlane.f32.xlu0 %v1820
    %v1822 = vpop.xlane.xlu0 %1821
    %v1823 = vsub.f32 %v1803, %v1810
    %v1824 = vsub.f32 %v1804, %v1813
    %v1825 = vsub.f32 %v1805, %v1816
    %v1826 = vsub.f32 %v1806, %v1819
    %v1827 = vsub.f32 %v1807, %v1822
    %v1828 = vmin.f32 %v1823, 0.0
    %v1829 = vmin.f32 %v1824, 0.0
    %v1830 = vmin.f32 %v1825, 0.0
    %v1831 = vmin.f32 %v1826, 0.0
    %v1832 = vmin.f32 %v1827, 0.0
    %v1833 = vmul.f32 %v1828, 1.442695
    %v1834 = vpow.pop %v1833
    %v1835 = vmul.f32 %v1829, 1.442695
    %v1836 = vpow.pop %v1835
    %v1837 = vmul.f32 %v1830, 1.442695
    %v1838 = vpow.pop %v1837
    %v1839 = vmul.f32 %v1831, 1.442695
    %v1840 = vpow.pop %v1839
    %v1841 = vmul.f32 %v1832, 1.442695
    %v1842 = vpow.pop %v1841
    %v1843 = vsel %vm238, %v1834, 0.0
    %1844 = vadd.xlane.f32.xlu0 %v1843
    %v1845 = vpop.xlane.xlu0 %1844
    %v1846 = vsel %vm238, %v1836, 0.0
    %1847 = vadd.xlane.f32.xlu0 %v1846
    %v1848 = vpop.xlane.xlu0 %1847
    %v1849 = vsel %vm238, %v1838, 0.0
    %1850 = vadd.xlane.f32.xlu0 %v1849
    %v1851 = vpop.xlane.xlu0 %1850
    %v1852 = vsel %vm238, %v1840, 0.0
    %1853 = vadd.xlane.f32.xlu0 %v1852
    %v1854 = vpop.xlane.xlu0 %1853
    %v1855 = vsel %vm238, %v1842, 0.0
    %1856 = vadd.xlane.f32.xlu0 %v1855
    %v1857 = vpop.xlane.xlu0 %1856
    %v1858 = vrcp.pop %v1845
    %v1859 = vmul.f32 %v1834, %v1858
    %v1860 = vrcp.pop %v1848
    %v1861 = vmul.f32 %v1836, %v1860
    %v1862 = vrcp.pop %v1851
    %v1863 = vmul.f32 %v1838, %v1862
    %v1864 = vrcp.pop %v1854
    %v1865 = vmul.f32 %v1840, %v1864
    %v1866 = vrcp.pop %v1857
    %v1867 = vmul.f32 %v1842, %v1866
    %v1868 = vpack.c.bf16 %v1861, %v1859
    %v1869 = vpack.c.bf16 %v1865, %v1863
    %v1870 = vpack.c.bf16 %v1867, %v1867
    %v1871 = vpack.c.bf16 %v1678, %v1675
    %v1872 = vpack.c.bf16 %v1686, %v1683
    %v1873 = vpack.c.bf16 %v1691, %v1691
    %v1875 = vsel %vm238, %v1868, 0
    %v1878 = vsel %vm238, %v1869, 0
    %v1881 = vsel %vm238, %v1870, 0
    %v1884 = vsel %vm167, %v1873, 0
    %1886 = vmatprep.subr.bf16.mxu0 0
    %1887 = vmatpush1.bf16.msra.mxu0 0
    %1888 = vmatprep.subr.bf16.mxu0 0
    %1889 = vmatpush1.bf16.msra.mxu0 0
    %1890 = vmatprep.subr.bf16.mxu0 0
    %1891 = vmatpush1.bf16.msra.mxu0 0
    %1892 = vmatprep.subr.bf16.mxu0 0
    %1893 = vmatpush1.bf16.msra.mxu0 0
    %1894 = vmatprep.subr.bf16.mxu0 0
    %1895 = vmatpush1.bf16.msra.mxu0 0
    %1896 = vmatprep.subr.bf16.mxu0 0
    %1897 = vmatpush1.bf16.msra.mxu0 %v1884
    %1898 = vmatprep.subr.bf16.mxu0 0
    %1899 = vmatpush1.bf16.msra.mxu0 %v1872
    %1900 = vmatprep.subr.bf16.mxu0 0
    %1901 = vmatpush1.bf16.msra.mxu0 %v1871
    %1902 = vmatprep.subr.bf16.mxu0 0
    %1903 = vmatpush2.bf16.msra.mxu0 0
    %1904 = vmatprep.subr.bf16.mxu0 0
    %1905 = vmatpush2.bf16.msra.mxu0 0
    %1906 = vmatprep.subr.bf16.mxu0 0
    %1907 = vmatpush2.bf16.msra.mxu0 0
    %1908 = vmatprep.subr.bf16.mxu0 0
    %1909 = vmatpush2.bf16.msra.mxu0 0
    %1910 = vmatprep.subr.bf16.mxu0 0
    %1911 = vmatpush2.bf16.msra.mxu0 0
    %1912 = vmatprep.subr.bf16.mxu0 0
    %1913 = vmatpush2.bf16.msra.mxu0 0
    %1914 = vmatprep.subr.bf16.mxu0 0
    %1915 = vmatpush2.bf16.msra.mxu0 0
    %1916 = vmatprep.subr.bf16.mxu0 0
    %1917 = vmatpush2.bf16.msra.mxu0 0
    %1918 = vmatprep.mubr.bf16.mxu0 0
    %1919 = vmatmul.mubr.bf16.gmra.mxu0 %v1875
    %v1920 = vpop.f32.mrf.mxu0
    %v1921 = vadd.f32 0.0, %v1920
    %v1922 = vpop.f32.mrf.mxu0
    %v1923 = vpop.f32.mrf.mxu0
    %v1924 = vadd.f32 0.0, %v1923
    %v1925 = vpop.f32.mrf.mxu0
    %1926 = vmatprep.mubr.bf16.mxu0 0
    %1927 = vmatmul.mubr.bf16.gmra.mxu0 %v1878
    %v1928 = vpop.f32.mrf.mxu0
    %v1929 = vadd.f32 0.0, %v1928
    %v1930 = vpop.f32.mrf.mxu0
    %v1931 = vpop.f32.mrf.mxu0
    %v1932 = vadd.f32 0.0, %v1931
    %v1933 = vpop.f32.mrf.mxu0
    %1934 = vmatprep.mubr.bf16.mxu0 0
    %1935 = vmatmul.mubr.bf16.gmra.mxu0 %v1881
    %v1936 = vpop.f32.mrf.mxu0
    %v1937 = vadd.f32 0.0, %v1936
    %v1938 = vpop.f32.mrf.mxu0
    %v1939 = vpop.f32.mrf.mxu0
    %v1940 = vpop.f32.mrf.mxu0
    %1941 = vdwg.mxu0
    %s1942 = scalar_lea.vmem %s27, 224
    %v1943 = vld [vmem:[%s1942] sm:$0xff]
    %v1944 = vld [vmem:[%s1942 + $0x8] sm:$0xff]
    %v1945 = vld [vmem:[%s1942 + $0x10] sm:$0xff]
    %v1946 = vld [vmem:[%s1942 + $0x18] sm:$0xff]
    %v1947 = vpack.c.bf16 %v1924, %v1921
    %v1948 = vpack.c.bf16 %v1932, %v1929
    %v1949 = vpack.c.bf16 %v1937, %v1937
    %v1950 = vpack.c.bf16 %v1944, %v1943
    %v1951 = vpack.c.bf16 %v1946, %v1945
    %v1953 = vsel %vm323, %v1947, 0
    %v1956 = vsel %vm323, %v1948, 0
    %v1959 = vsel %vm323, %v1949, 0
    %1961 = vmatprep.subr.bf16.mxu0 0
    %1962 = vmatpush1.bf16.msra.mxu0 0
    %1963 = vmatprep.subr.bf16.mxu0 0
    %1964 = vmatpush1.bf16.msra.mxu0 0
    %1965 = vmatprep.subr.bf16.mxu0 0
    %1966 = vmatpush1.bf16.msra.mxu0 0
    %1967 = vmatprep.subr.bf16.mxu0 0
    %1968 = vmatpush1.bf16.msra.mxu0 0
    %1969 = vmatprep.subr.bf16.mxu0 0
    %1970 = vmatpush1.bf16.msra.mxu0 0
    %1971 = vmatprep.subr.bf16.mxu0 0
    %1972 = vmatpush1.bf16.msra.mxu0 0
    %1973 = vmatprep.subr.bf16.mxu0 0
    %1974 = vmatpush1.bf16.msra.mxu0 %v1951
    %1975 = vmatprep.subr.bf16.mxu0 0
    %1976 = vmatpush1.bf16.msra.mxu0 %v1950
    %1977 = vmatprep.subr.bf16.mxu0 0
    %1978 = vmatpush2.bf16.msra.mxu0 0
    %1979 = vmatprep.subr.bf16.mxu0 0
    %1980 = vmatpush2.bf16.msra.mxu0 0
    %1981 = vmatprep.subr.bf16.mxu0 0
    %1982 = vmatpush2.bf16.msra.mxu0 0
    %1983 = vmatprep.subr.bf16.mxu0 0
    %1984 = vmatpush2.bf16.msra.mxu0 0
    %1985 = vmatprep.subr.bf16.mxu0 0
    %1986 = vmatpush2.bf16.msra.mxu0 0
    %1987 = vmatprep.subr.bf16.mxu0 0
    %1988 = vmatpush2.bf16.msra.mxu0 0
    %1989 = vmatprep.subr.bf16.mxu0 0
    %1990 = vmatpush2.bf16.msra.mxu0 0
    %1991 = vmatprep.subr.bf16.mxu0 0
    %1992 = vmatpush2.bf16.msra.mxu0 0
    %1993 = vmatprep.mubr.bf16.mxu0 0
    %1994 = vmatmul.mubr.bf16.gmra.mxu0 %v1953
    %v1995 = vpop.f32.mrf.mxu0
    %v1996 = vadd.f32 0.0, %v1995
    %v1997 = vpop.f32.mrf.mxu0
    %v1998 = vpop.f32.mrf.mxu0
    %v1999 = vadd.f32 0.0, %v1998
    %v2000 = vpop.f32.mrf.mxu0
    %2001 = vmatprep.mubr.bf16.mxu0 0
    %2002 = vmatmul.mubr.bf16.gmra.mxu0 %v1956
    %v2003 = vpop.f32.mrf.mxu0
    %v2004 = vadd.f32 0.0, %v2003
    %v2005 = vpop.f32.mrf.mxu0
    %v2006 = vpop.f32.mrf.mxu0
    %v2007 = vadd.f32 0.0, %v2006
    %v2008 = vpop.f32.mrf.mxu0
    %2009 = vmatprep.mubr.bf16.mxu0 0
    %2010 = vmatmul.mubr.bf16.gmra.mxu0 %v1959
    %v2011 = vpop.f32.mrf.mxu0
    %v2012 = vadd.f32 0.0, %v2011
    %v2013 = vpop.f32.mrf.mxu0
    %v2014 = vpop.f32.mrf.mxu0
    %v2015 = vpop.f32.mrf.mxu0
    %2016 = vdwg.mxu0
    %v2017 = vadd.f32 %v1466, %v1996
    %v2018 = vadd.f32 %v1467, %v1999
    %v2019 = vadd.f32 %v1468, %v2004
    %v2020 = vadd.f32 %v1469, %v2007
    %v2021 = vadd.f32 %v1470, %v2012
    %s2022 = scalar_lea.vmem %s29, 7
    %v2023 = vld [vmem:[%s2022] sm:$0x1]
    %v2025 = vlaneseq
    %v2026 = vshrl.u32 %v2025, 7
    %v2027 = vsub.s32 0, %v2026
    %v2028 = vrot.slane %v2023, %v2027
    %v2030 = vadd.f32 %v2017, %v2028
    %v2031 = vadd.f32 %v2018, %v2028
    %v2032 = vadd.f32 %v2019, %v2028
    %v2033 = vadd.f32 %v2020, %v2028
    %v2034 = vadd.f32 %v2021, %v2028
    %s2035 = scalar_lea.vmem %s27, 256
    %v2036 = vld [vmem:[%s2035] sm:$0xff]
    %v2037 = vld [vmem:[%s2035 + $0x8] sm:$0xff]
    %v2038 = vld [vmem:[%s2035 + $0x10] sm:$0xff]
    %v2039 = vld [vmem:[%s2035 + $0x18] sm:$0xff]
    %v2040 = vpack.c.bf16 %v2031, %v2030
    %v2041 = vpack.c.bf16 %v2033, %v2032
    %v2042 = vpack.c.bf16 %v2034, %v2034
    %v2043 = vpack.c.bf16 %v2037, %v2036
    %v2044 = vpack.c.bf16 %v2039, %v2038
    %s2045 = scalar_lea.vmem %s29, 8
    %v2046 = vld [vmem:[%s2045] sm:$0x1]
    %v2048 = vlaneseq
    %v2049 = vshrl.u32 %v2048, 7
    %v2050 = vsub.s32 0, %v2049
    %v2051 = vrot.slane %v2046, %v2050
    %v2054 = vsel %vm323, %v2040, 0
    %v2057 = vsel %vm323, %v2041, 0
    %v2060 = vsel %vm323, %v2042, 0
    %2062 = vmatprep.subr.bf16.mxu0 0
    %2063 = vmatpush1.bf16.msra.mxu0 0
    %2064 = vmatprep.subr.bf16.mxu0 0
    %2065 = vmatpush1.bf16.msra.mxu0 0
    %2066 = vmatprep.subr.bf16.mxu0 0
    %2067 = vmatpush1.bf16.msra.mxu0 0
    %2068 = vmatprep.subr.bf16.mxu0 0
    %2069 = vmatpush1.bf16.msra.mxu0 0
    %2070 = vmatprep.subr.bf16.mxu0 0
    %2071 = vmatpush1.bf16.msra.mxu0 0
    %2072 = vmatprep.subr.bf16.mxu0 0
    %2073 = vmatpush1.bf16.msra.mxu0 0
    %2074 = vmatprep.subr.bf16.mxu0 0
    %2075 = vmatpush1.bf16.msra.mxu0 %v2044
    %2076 = vmatprep.subr.bf16.mxu0 0
    %2077 = vmatpush1.bf16.msra.mxu0 %v2043
    %2078 = vmatprep.subr.bf16.mxu0 0
    %2079 = vmatpush2.bf16.msra.mxu0 0
    %2080 = vmatprep.subr.bf16.mxu0 0
    %2081 = vmatpush2.bf16.msra.mxu0 0
    %2082 = vmatprep.subr.bf16.mxu0 0
    %2083 = vmatpush2.bf16.msra.mxu0 0
    %2084 = vmatprep.subr.bf16.mxu0 0
    %2085 = vmatpush2.bf16.msra.mxu0 0
    %2086 = vmatprep.subr.bf16.mxu0 0
    %2087 = vmatpush2.bf16.msra.mxu0 0
    %2088 = vmatprep.subr.bf16.mxu0 0
    %2089 = vmatpush2.bf16.msra.mxu0 0
    %2090 = vmatprep.subr.bf16.mxu0 0
    %2091 = vmatpush2.bf16.msra.mxu0 0
    %2092 = vmatprep.subr.bf16.mxu0 0
    %2093 = vmatpush2.bf16.msra.mxu0 0
    %2094 = vmatprep.mubr.bf16.mxu0 0
    %2095 = vmatmul.mubr.bf16.gmra.mxu0 %v2054
    %v2096 = vpop.f32.mrf.mxu0
    %v2097 = vadd.f32 %v2051, %v2096
    %v2098 = vpop.f32.mrf.mxu0
    %v2099 = vpop.f32.mrf.mxu0
    %v2100 = vadd.f32 %v2051, %v2099
    %v2101 = vpop.f32.mrf.mxu0
    %2102 = vmatprep.mubr.bf16.mxu0 0
    %2103 = vmatmul.mubr.bf16.gmra.mxu0 %v2057
    %v2104 = vpop.f32.mrf.mxu0
    %v2105 = vadd.f32 %v2051, %v2104
    %v2106 = vpop.f32.mrf.mxu0
    %v2107 = vpop.f32.mrf.mxu0
    %v2108 = vadd.f32 %v2051, %v2107
    %v2109 = vpop.f32.mrf.mxu0
    %2110 = vmatprep.mubr.bf16.mxu0 0
    %2111 = vmatmul.mubr.bf16.gmra.mxu0 %v2060
    %v2112 = vpop.f32.mrf.mxu0
    %v2113 = vadd.f32 %v2051, %v2112
    %v2114 = vpop.f32.mrf.mxu0
    %v2115 = vpop.f32.mrf.mxu0
    %v2116 = vpop.f32.mrf.mxu0
    %2117 = vdwg.mxu0
    %s2118 = scalar_lea.vmem %s27, 288
    %v2119 = vld [vmem:[%s2118] sm:$0xff]
    %v2120 = vld [vmem:[%s2118 + $0x8] sm:$0xff]
    %v2121 = vld [vmem:[%s2118 + $0x10] sm:$0xff]
    %v2122 = vld [vmem:[%s2118 + $0x18] sm:$0xff]
    %v2123 = vpack.c.bf16 %v2120, %v2119
    %v2124 = vpack.c.bf16 %v2122, %v2121
    %s2125 = scalar_lea.vmem %s29, 9
    %v2126 = vld [vmem:[%s2125] sm:$0x1]
    %v2128 = vlaneseq
    %v2129 = vshrl.u32 %v2128, 7
    %v2130 = vsub.s32 0, %v2129
    %v2131 = vrot.slane %v2126, %v2130
    %2133 = vmatprep.subr.bf16.mxu0 0
    %2134 = vmatpush1.bf16.msra.mxu0 0
    %2135 = vmatprep.subr.bf16.mxu0 0
    %2136 = vmatpush1.bf16.msra.mxu0 0
    %2137 = vmatprep.subr.bf16.mxu0 0
    %2138 = vmatpush1.bf16.msra.mxu0 0
    %2139 = vmatprep.subr.bf16.mxu0 0
    %2140 = vmatpush1.bf16.msra.mxu0 0
    %2141 = vmatprep.subr.bf16.mxu0 0
    %2142 = vmatpush1.bf16.msra.mxu0 0
    %2143 = vmatprep.subr.bf16.mxu0 0
    %2144 = vmatpush1.bf16.msra.mxu0 0
    %2145 = vmatprep.subr.bf16.mxu0 0
    %2146 = vmatpush1.bf16.msra.mxu0 %v2124
    %2147 = vmatprep.subr.bf16.mxu0 0
    %2148 = vmatpush1.bf16.msra.mxu0 %v2123
    %2149 = vmatprep.subr.bf16.mxu0 0
    %2150 = vmatpush2.bf16.msra.mxu0 0
    %2151 = vmatprep.subr.bf16.mxu0 0
    %2152 = vmatpush2.bf16.msra.mxu0 0
    %2153 = vmatprep.subr.bf16.mxu0 0
    %2154 = vmatpush2.bf16.msra.mxu0 0
    %2155 = vmatprep.subr.bf16.mxu0 0
    %2156 = vmatpush2.bf16.msra.mxu0 0
    %2157 = vmatprep.subr.bf16.mxu0 0
    %2158 = vmatpush2.bf16.msra.mxu0 0
    %2159 = vmatprep.subr.bf16.mxu0 0
    %2160 = vmatpush2.bf16.msra.mxu0 0
    %2161 = vmatprep.subr.bf16.mxu0 0
    %2162 = vmatpush2.bf16.msra.mxu0 0
    %2163 = vmatprep.subr.bf16.mxu0 0
    %2164 = vmatpush2.bf16.msra.mxu0 0
    %2165 = vmatprep.mubr.bf16.mxu0 0
    %2166 = vmatmul.mubr.bf16.gmra.mxu0 %v2054
    %v2167 = vpop.f32.mrf.mxu0
    %v2168 = vadd.f32 %v2131, %v2167
    %v2169 = vpop.f32.mrf.mxu0
    %v2170 = vpop.f32.mrf.mxu0
    %v2171 = vadd.f32 %v2131, %v2170
    %v2172 = vpop.f32.mrf.mxu0
    %2173 = vmatprep.mubr.bf16.mxu0 0
    %2174 = vmatmul.mubr.bf16.gmra.mxu0 %v2057
    %v2175 = vpop.f32.mrf.mxu0
    %v2176 = vadd.f32 %v2131, %v2175
    %v2177 = vpop.f32.mrf.mxu0
    %v2178 = vpop.f32.mrf.mxu0
    %v2179 = vadd.f32 %v2131, %v2178
    %v2180 = vpop.f32.mrf.mxu0
    %2181 = vmatprep.mubr.bf16.mxu0 0
    %2182 = vmatmul.mubr.bf16.gmra.mxu0 %v2060
    %v2183 = vpop.f32.mrf.mxu0
    %v2184 = vadd.f32 %v2131, %v2183
    %v2185 = vpop.f32.mrf.mxu0
    %v2186 = vpop.f32.mrf.mxu0
    %v2187 = vpop.f32.mrf.mxu0
    %2188 = vdwg.mxu0
    %s2189 = scalar_lea.vmem %s27, 320
    %v2190 = vld [vmem:[%s2189] sm:$0xff]
    %v2191 = vld [vmem:[%s2189 + $0x8] sm:$0xff]
    %v2192 = vld [vmem:[%s2189 + $0x10] sm:$0xff]
    %v2193 = vld [vmem:[%s2189 + $0x18] sm:$0xff]
    %v2194 = vpack.c.bf16 %v2191, %v2190
    %v2195 = vpack.c.bf16 %v2193, %v2192
    %s2196 = scalar_lea.vmem %s29, 10
    %v2197 = vld [vmem:[%s2196] sm:$0x1]
    %v2199 = vlaneseq
    %v2200 = vshrl.u32 %v2199, 7
    %v2201 = vsub.s32 0, %v2200
    %v2202 = vrot.slane %v2197, %v2201
    %2204 = vmatprep.subr.bf16.mxu0 0
    %2205 = vmatpush1.bf16.msra.mxu0 0
    %2206 = vmatprep.subr.bf16.mxu0 0
    %2207 = vmatpush1.bf16.msra.mxu0 0
    %2208 = vmatprep.subr.bf16.mxu0 0
    %2209 = vmatpush1.bf16.msra.mxu0 0
    %2210 = vmatprep.subr.bf16.mxu0 0
    %2211 = vmatpush1.bf16.msra.mxu0 0
    %2212 = vmatprep.subr.bf16.mxu0 0
    %2213 = vmatpush1.bf16.msra.mxu0 0
    %2214 = vmatprep.subr.bf16.mxu0 0
    %2215 = vmatpush1.bf16.msra.mxu0 0
    %2216 = vmatprep.subr.bf16.mxu0 0
    %2217 = vmatpush1.bf16.msra.mxu0 %v2195
    %2218 = vmatprep.subr.bf16.mxu0 0
    %2219 = vmatpush1.bf16.msra.mxu0 %v2194
    %2220 = vmatprep.subr.bf16.mxu0 0
    %2221 = vmatpush2.bf16.msra.mxu0 0
    %2222 = vmatprep.subr.bf16.mxu0 0
    %2223 = vmatpush2.bf16.msra.mxu0 0
    %2224 = vmatprep.subr.bf16.mxu0 0
    %2225 = vmatpush2.bf16.msra.mxu0 0
    %2226 = vmatprep.subr.bf16.mxu0 0
    %2227 = vmatpush2.bf16.msra.mxu0 0
    %2228 = vmatprep.subr.bf16.mxu0 0
    %2229 = vmatpush2.bf16.msra.mxu0 0
    %2230 = vmatprep.subr.bf16.mxu0 0
    %2231 = vmatpush2.bf16.msra.mxu0 0
    %2232 = vmatprep.subr.bf16.mxu0 0
    %2233 = vmatpush2.bf16.msra.mxu0 0
    %2234 = vmatprep.subr.bf16.mxu0 0
    %2235 = vmatpush2.bf16.msra.mxu0 0
    %2236 = vmatprep.mubr.bf16.mxu0 0
    %2237 = vmatmul.mubr.bf16.gmra.mxu0 %v2054
    %v2238 = vpop.f32.mrf.mxu0
    %v2239 = vadd.f32 %v2202, %v2238
    %v2240 = vpop.f32.mrf.mxu0
    %v2241 = vpop.f32.mrf.mxu0
    %v2242 = vadd.f32 %v2202, %v2241
    %v2243 = vpop.f32.mrf.mxu0
    %2244 = vmatprep.mubr.bf16.mxu0 0
    %2245 = vmatmul.mubr.bf16.gmra.mxu0 %v2057
    %v2246 = vpop.f32.mrf.mxu0
    %v2247 = vadd.f32 %v2202, %v2246
    %v2248 = vpop.f32.mrf.mxu0
    %v2249 = vpop.f32.mrf.mxu0
    %v2250 = vadd.f32 %v2202, %v2249
    %v2251 = vpop.f32.mrf.mxu0
    %2252 = vmatprep.mubr.bf16.mxu0 0
    %2253 = vmatmul.mubr.bf16.gmra.mxu0 %v2060
    %v2254 = vpop.f32.mrf.mxu0
    %v2255 = vadd.f32 %v2202, %v2254
    %v2256 = vpop.f32.mrf.mxu0
    %v2257 = vpop.f32.mrf.mxu0
    %v2258 = vpop.f32.mrf.mxu0
    %2259 = vdwg.mxu0
    %2260 = vxpose.xlu0.b32.start [1/16] %v2168, 128
    %2261 = vxpose.xlu0.b32.cont [2/16] %v2171, 128
    %2262 = vxpose.xlu0.b32.cont [3/16] %v2176, 128
    %2263 = vxpose.xlu0.b32.cont [4/16] %v2179, 128
    %2264 = vxpose.xlu0.b32.cont [5/16] %v2184, 128
    %2265 = vxpose.xlu0.b32.cont [6/16] 0.0, 128
    %2266 = vxpose.xlu0.b32.cont [7/16] 0.0, 128
    %2267 = vxpose.xlu0.b32.cont [8/16] 0.0, 128
    %2268 = vxpose.xlu0.b32.cont [9/16] 0.0, 128
    %2269 = vxpose.xlu0.b32.cont [10/16] 0.0, 128
    %2270 = vxpose.xlu0.b32.cont [11/16] 0.0, 128
    %2271 = vxpose.xlu0.b32.cont [12/16] 0.0, 128
    %2272 = vxpose.xlu0.b32.cont [13/16] 0.0, 128
    %2273 = vxpose.xlu0.b32.cont [14/16] 0.0, 128
    %2274 = vxpose.xlu0.b32.cont [15/16] 0.0, 128
    %2275 = vxpose.xlu0.b32.end [16/16] 0.0, 128
    %v2276 = vpop.trf.xlu0
    %v2277 = vpop.trf.xlu0
    %v2278 = vpop.trf.xlu0
    %v2279 = vpop.trf.xlu0
    %v2280 = vpop.trf.xlu0
    %v2281 = vpop.trf.xlu0
    %v2282 = vpop.trf.xlu0
    %v2283 = vpop.trf.xlu0
    %v2284 = vpop.trf.xlu0
    %v2285 = vpop.trf.xlu0
    %v2286 = vpop.trf.xlu0
    %v2287 = vpop.trf.xlu0
    %v2288 = vpop.trf.xlu0
    %v2289 = vpop.trf.xlu0
    %v2290 = vpop.trf.xlu0
    %v2291 = vpop.trf.xlu0
    %v2292 = vpack.c.bf16 %v2100, %v2097
    %v2293 = vpack.c.bf16 %v2108, %v2105
    %v2294 = vpack.c.bf16 %v2113, %v2113
    %v2295 = vpack.c.bf16 %v2277, %v2276
    %v2296 = vpack.c.bf16 %v2279, %v2278
    %v2298 = vsel %vm323, %v2292, 0
    %v2301 = vsel %vm323, %v2293, 0
    %v2304 = vsel %vm323, %v2294, 0
    %2306 = vmatprep.subr.bf16.mxu0 0
    %2307 = vmatpush1.bf16.msra.mxu0 0
    %2308 = vmatprep.subr.bf16.mxu0 0
    %2309 = vmatpush1.bf16.msra.mxu0 0
    %2310 = vmatprep.subr.bf16.mxu0 0
    %2311 = vmatpush1.bf16.msra.mxu0 0
    %2312 = vmatprep.subr.bf16.mxu0 0
    %2313 = vmatpush1.bf16.msra.mxu0 0
    %2314 = vmatprep.subr.bf16.mxu0 0
    %2315 = vmatpush1.bf16.msra.mxu0 0
    %2316 = vmatprep.subr.bf16.mxu0 0
    %2317 = vmatpush1.bf16.msra.mxu0 0
    %2318 = vmatprep.subr.bf16.mxu0 0
    %2319 = vmatpush1.bf16.msra.mxu0 %v2296
    %2320 = vmatprep.subr.bf16.mxu0 0
    %2321 = vmatpush1.bf16.msra.mxu0 %v2295
    %2322 = vmatprep.subr.bf16.mxu0 0
    %2323 = vmatpush2.bf16.msra.mxu0 0
    %2324 = vmatprep.subr.bf16.mxu0 0
    %2325 = vmatpush2.bf16.msra.mxu0 0
    %2326 = vmatprep.subr.bf16.mxu0 0
    %2327 = vmatpush2.bf16.msra.mxu0 0
    %2328 = vmatprep.subr.bf16.mxu0 0
    %2329 = vmatpush2.bf16.msra.mxu0 0
    %2330 = vmatprep.subr.bf16.mxu0 0
    %2331 = vmatpush2.bf16.msra.mxu0 0
    %2332 = vmatprep.subr.bf16.mxu0 0
    %2333 = vmatpush2.bf16.msra.mxu0 0
    %2334 = vmatprep.subr.bf16.mxu0 0
    %2335 = vmatpush2.bf16.msra.mxu0 0
    %2336 = vmatprep.subr.bf16.mxu0 0
    %2337 = vmatpush2.bf16.msra.mxu0 0
    %2338 = vmatprep.mubr.bf16.mxu0 0
    %2339 = vmatmul.mubr.bf16.gmra.mxu0 %v2298
    %v2340 = vpop.f32.mrf.mxu0
    %v2341 = vadd.f32 0.0, %v2340
    %v2342 = vpop.f32.mrf.mxu0
    %v2343 = vpop.f32.mrf.mxu0
    %v2344 = vadd.f32 0.0, %v2343
    %v2345 = vpop.f32.mrf.mxu0
    %2346 = vmatprep.mubr.bf16.mxu0 0
    %2347 = vmatmul.mubr.bf16.gmra.mxu0 %v2301
    %v2348 = vpop.f32.mrf.mxu0
    %v2349 = vadd.f32 0.0, %v2348
    %v2350 = vpop.f32.mrf.mxu0
    %v2351 = vpop.f32.mrf.mxu0
    %v2352 = vadd.f32 0.0, %v2351
    %v2353 = vpop.f32.mrf.mxu0
    %2354 = vmatprep.mubr.bf16.mxu0 0
    %2355 = vmatmul.mubr.bf16.gmra.mxu0 %v2304
    %v2356 = vpop.f32.mrf.mxu0
    %v2357 = vadd.f32 0.0, %v2356
    %v2358 = vpop.f32.mrf.mxu0
    %v2359 = vpop.f32.mrf.mxu0
    %v2360 = vpop.f32.mrf.mxu0
    %2361 = vdwg.mxu0
    %v2362 = vmul.f32 %v2341, 0.17677669
    %v2363 = vmul.f32 %v2344, 0.17677669
    %v2364 = vmul.f32 %v2349, 0.17677669
    %v2365 = vmul.f32 %v2352, 0.17677669
    %v2366 = vmul.f32 %v2357, 0.17677669
    %v2367 = vadd.f32 %v2362, %v904
    %v2368 = vadd.f32 %v2363, %v905
    %v2369 = vadd.f32 %v2364, %v906
    %v2370 = vadd.f32 %v2365, %v907
    %v2371 = vadd.f32 %v2366, %v908
    %v2372 = vsel %vm238, %v2367, -inf
    %2373 = vmax.xlane.f32.xlu0 %v2372
    %v2374 = vpop.xlane.xlu0 %2373
    %v2375 = vsel %vm238, %v2368, -inf
    %2376 = vmax.xlane.f32.xlu0 %v2375
    %v2377 = vpop.xlane.xlu0 %2376
    %v2378 = vsel %vm238, %v2369, -inf
    %2379 = vmax.xlane.f32.xlu0 %v2378
    %v2380 = vpop.xlane.xlu0 %2379
    %v2381 = vsel %vm238, %v2370, -inf
    %2382 = vmax.xlane.f32.xlu0 %v2381
    %v2383 = vpop.xlane.xlu0 %2382
    %v2384 = vsel %vm238, %v2371, -inf
    %2385 = vmax.xlane.f32.xlu0 %v2384
    %v2386 = vpop.xlane.xlu0 %2385
    %v2387 = vsub.f32 %v2367, %v2374
    %v2388 = vsub.f32 %v2368, %v2377
    %v2389 = vsub.f32 %v2369, %v2380
    %v2390 = vsub.f32 %v2370, %v2383
    %v2391 = vsub.f32 %v2371, %v2386
    %v2392 = vmin.f32 %v2387, 0.0
    %v2393 = vmin.f32 %v2388, 0.0
    %v2394 = vmin.f32 %v2389, 0.0
    %v2395 = vmin.f32 %v2390, 0.0
    %v2396 = vmin.f32 %v2391, 0.0
    %v2397 = vmul.f32 %v2392, 1.442695
    %v2398 = vpow.pop %v2397
    %v2399 = vmul.f32 %v2393, 1.442695
    %v2400 = vpow.pop %v2399
    %v2401 = vmul.f32 %v2394, 1.442695
    %v2402 = vpow.pop %v2401
    %v2403 = vmul.f32 %v2395, 1.442695
    %v2404 = vpow.pop %v2403
    %v2405 = vmul.f32 %v2396, 1.442695
    %v2406 = vpow.pop %v2405
    %v2407 = vsel %vm238, %v2398, 0.0
    %2408 = vadd.xlane.f32.xlu0 %v2407
    %v2409 = vpop.xlane.xlu0 %2408
    %v2410 = vsel %vm238, %v2400, 0.0
    %2411 = vadd.xlane.f32.xlu0 %v2410
    %v2412 = vpop.xlane.xlu0 %2411
    %v2413 = vsel %vm238, %v2402, 0.0
    %2414 = vadd.xlane.f32.xlu0 %v2413
    %v2415 = vpop.xlane.xlu0 %2414
    %v2416 = vsel %vm238, %v2404, 0.0
    %2417 = vadd.xlane.f32.xlu0 %v2416
    %v2418 = vpop.xlane.xlu0 %2417
    %v2419 = vsel %vm238, %v2406, 0.0
    %2420 = vadd.xlane.f32.xlu0 %v2419
    %v2421 = vpop.xlane.xlu0 %2420
    %v2422 = vrcp.pop %v2409
    %v2423 = vmul.f32 %v2398, %v2422
    %v2424 = vrcp.pop %v2412
    %v2425 = vmul.f32 %v2400, %v2424
    %v2426 = vrcp.pop %v2415
    %v2427 = vmul.f32 %v2402, %v2426
    %v2428 = vrcp.pop %v2418
    %v2429 = vmul.f32 %v2404, %v2428
    %v2430 = vrcp.pop %v2421
    %v2431 = vmul.f32 %v2406, %v2430
    %v2432 = vpack.c.bf16 %v2425, %v2423
    %v2433 = vpack.c.bf16 %v2429, %v2427
    %v2434 = vpack.c.bf16 %v2431, %v2431
    %v2435 = vpack.c.bf16 %v2242, %v2239
    %v2436 = vpack.c.bf16 %v2250, %v2247
    %v2437 = vpack.c.bf16 %v2255, %v2255
    %v2439 = vsel %vm238, %v2432, 0
    %v2442 = vsel %vm238, %v2433, 0
    %v2445 = vsel %vm238, %v2434, 0
    %v2448 = vsel %vm167, %v2437, 0
    %2450 = vmatprep.subr.bf16.mxu0 0
    %2451 = vmatpush1.bf16.msra.mxu0 0
    %2452 = vmatprep.subr.bf16.mxu0 0
    %2453 = vmatpush1.bf16.msra.mxu0 0
    %2454 = vmatprep.subr.bf16.mxu0 0
    %2455 = vmatpush1.bf16.msra.mxu0 0
    %2456 = vmatprep.subr.bf16.mxu0 0
    %2457 = vmatpush1.bf16.msra.mxu0 0
    %2458 = vmatprep.subr.bf16.mxu0 0
    %2459 = vmatpush1.bf16.msra.mxu0 0
    %2460 = vmatprep.subr.bf16.mxu0 0
    %2461 = vmatpush1.bf16.msra.mxu0 %v2448
    %2462 = vmatprep.subr.bf16.mxu0 0
    %2463 = vmatpush1.bf16.msra.mxu0 %v2436
    %2464 = vmatprep.subr.bf16.mxu0 0
    %2465 = vmatpush1.bf16.msra.mxu0 %v2435
    %2466 = vmatprep.subr.bf16.mxu0 0
    %2467 = vmatpush2.bf16.msra.mxu0 0
    %2468 = vmatprep.subr.bf16.mxu0 0
    %2469 = vmatpush2.bf16.msra.mxu0 0
    %2470 = vmatprep.subr.bf16.mxu0 0
    %2471 = vmatpush2.bf16.msra.mxu0 0
    %2472 = vmatprep.subr.bf16.mxu0 0
    %2473 = vmatpush2.bf16.msra.mxu0 0
    %2474 = vmatprep.subr.bf16.mxu0 0
    %2475 = vmatpush2.bf16.msra.mxu0 0
    %2476 = vmatprep.subr.bf16.mxu0 0
    %2477 = vmatpush2.bf16.msra.mxu0 0
    %2478 = vmatprep.subr.bf16.mxu0 0
    %2479 = vmatpush2.bf16.msra.mxu0 0
    %2480 = vmatprep.subr.bf16.mxu0 0
    %2481 = vmatpush2.bf16.msra.mxu0 0
    %2482 = vmatprep.mubr.bf16.mxu0 0
    %2483 = vmatmul.mubr.bf16.gmra.mxu0 %v2439
    %v2484 = vpop.f32.mrf.mxu0
    %v2485 = vadd.f32 0.0, %v2484
    %v2486 = vpop.f32.mrf.mxu0
    %v2487 = vpop.f32.mrf.mxu0
    %v2488 = vadd.f32 0.0, %v2487
    %v2489 = vpop.f32.mrf.mxu0
    %2490 = vmatprep.mubr.bf16.mxu0 0
    %2491 = vmatmul.mubr.bf16.gmra.mxu0 %v2442
    %v2492 = vpop.f32.mrf.mxu0
    %v2493 = vadd.f32 0.0, %v2492
    %v2494 = vpop.f32.mrf.mxu0
    %v2495 = vpop.f32.mrf.mxu0
    %v2496 = vadd.f32 0.0, %v2495
    %v2497 = vpop.f32.mrf.mxu0
    %2498 = vmatprep.mubr.bf16.mxu0 0
    %2499 = vmatmul.mubr.bf16.gmra.mxu0 %v2445
    %v2500 = vpop.f32.mrf.mxu0
    %v2501 = vadd.f32 0.0, %v2500
    %v2502 = vpop.f32.mrf.mxu0
    %v2503 = vpop.f32.mrf.mxu0
    %v2504 = vpop.f32.mrf.mxu0
    %2505 = vdwg.mxu0
    %s2506 = scalar_lea.vmem %s27, 352
    %v2507 = vld [vmem:[%s2506] sm:$0xff]
    %v2508 = vld [vmem:[%s2506 + $0x8] sm:$0xff]
    %v2509 = vld [vmem:[%s2506 + $0x10] sm:$0xff]
    %v2510 = vld [vmem:[%s2506 + $0x18] sm:$0xff]
    %v2511 = vpack.c.bf16 %v2488, %v2485
    %v2512 = vpack.c.bf16 %v2496, %v2493
    %v2513 = vpack.c.bf16 %v2501, %v2501
    %v2514 = vpack.c.bf16 %v2508, %v2507
    %v2515 = vpack.c.bf16 %v2510, %v2509
    %v2517 = vsel %vm323, %v2511, 0
    %v2520 = vsel %vm323, %v2512, 0
    %v2523 = vsel %vm323, %v2513, 0
    %2525 = vmatprep.subr.bf16.mxu0 0
    %2526 = vmatpush1.bf16.msra.mxu0 0
    %2527 = vmatprep.subr.bf16.mxu0 0
    %2528 = vmatpush1.bf16.msra.mxu0 0
    %2529 = vmatprep.subr.bf16.mxu0 0
    %2530 = vmatpush1.bf16.msra.mxu0 0
    %2531 = vmatprep.subr.bf16.mxu0 0
    %2532 = vmatpush1.bf16.msra.mxu0 0
    %2533 = vmatprep.subr.bf16.mxu0 0
    %2534 = vmatpush1.bf16.msra.mxu0 0
    %2535 = vmatprep.subr.bf16.mxu0 0
    %2536 = vmatpush1.bf16.msra.mxu0 0
    %2537 = vmatprep.subr.bf16.mxu0 0
    %2538 = vmatpush1.bf16.msra.mxu0 %v2515
    %2539 = vmatprep.subr.bf16.mxu0 0
    %2540 = vmatpush1.bf16.msra.mxu0 %v2514
    %2541 = vmatprep.subr.bf16.mxu0 0
    %2542 = vmatpush2.bf16.msra.mxu0 0
    %2543 = vmatprep.subr.bf16.mxu0 0
    %2544 = vmatpush2.bf16.msra.mxu0 0
    %2545 = vmatprep.subr.bf16.mxu0 0
    %2546 = vmatpush2.bf16.msra.mxu0 0
    %2547 = vmatprep.subr.bf16.mxu0 0
    %2548 = vmatpush2.bf16.msra.mxu0 0
    %2549 = vmatprep.subr.bf16.mxu0 0
    %2550 = vmatpush2.bf16.msra.mxu0 0
    %2551 = vmatprep.subr.bf16.mxu0 0
    %2552 = vmatpush2.bf16.msra.mxu0 0
    %2553 = vmatprep.subr.bf16.mxu0 0
    %2554 = vmatpush2.bf16.msra.mxu0 0
    %2555 = vmatprep.subr.bf16.mxu0 0
    %2556 = vmatpush2.bf16.msra.mxu0 0
    %2557 = vmatprep.mubr.bf16.mxu0 0
    %2558 = vmatmul.mubr.bf16.gmra.mxu0 %v2517
    %v2559 = vpop.f32.mrf.mxu0
    %v2560 = vadd.f32 0.0, %v2559
    %v2561 = vpop.f32.mrf.mxu0
    %v2562 = vpop.f32.mrf.mxu0
    %v2563 = vadd.f32 0.0, %v2562
    %v2564 = vpop.f32.mrf.mxu0
    %2565 = vmatprep.mubr.bf16.mxu0 0
    %2566 = vmatmul.mubr.bf16.gmra.mxu0 %v2520
    %v2567 = vpop.f32.mrf.mxu0
    %v2568 = vadd.f32 0.0, %v2567
    %v2569 = vpop.f32.mrf.mxu0
    %v2570 = vpop.f32.mrf.mxu0
    %v2571 = vadd.f32 0.0, %v2570
    %v2572 = vpop.f32.mrf.mxu0
    %2573 = vmatprep.mubr.bf16.mxu0 0
    %2574 = vmatmul.mubr.bf16.gmra.mxu0 %v2523
    %v2575 = vpop.f32.mrf.mxu0
    %v2576 = vadd.f32 0.0, %v2575
    %v2577 = vpop.f32.mrf.mxu0
    %v2578 = vpop.f32.mrf.mxu0
    %v2579 = vpop.f32.mrf.mxu0
    %2580 = vdwg.mxu0
    %v2581 = vadd.f32 %v2030, %v2560
    %v2582 = vadd.f32 %v2031, %v2563
    %v2583 = vadd.f32 %v2032, %v2568
    %v2584 = vadd.f32 %v2033, %v2571
    %v2585 = vadd.f32 %v2034, %v2576
    %s2586 = scalar_lea.vmem %s29, 11
    %v2587 = vld [vmem:[%s2586] sm:$0x1]
    %v2589 = vlaneseq
    %v2590 = vshrl.u32 %v2589, 7
    %v2591 = vsub.s32 0, %v2590
    %v2592 = vrot.slane %v2587, %v2591
    %v2594 = vadd.f32 %v2581, %v2592
    %v2595 = vadd.f32 %v2582, %v2592
    %v2596 = vadd.f32 %v2583, %v2592
    %v2597 = vadd.f32 %v2584, %v2592
    %v2598 = vadd.f32 %v2585, %v2592
    %s2599 = scalar_lea.vmem %s27, 384
    %v2600 = vld [vmem:[%s2599] sm:$0xff]
    %v2601 = vld [vmem:[%s2599 + $0x8] sm:$0xff]
    %v2602 = vld [vmem:[%s2599 + $0x10] sm:$0xff]
    %v2603 = vld [vmem:[%s2599 + $0x18] sm:$0xff]
    %v2604 = vpack.c.bf16 %v2595, %v2594
    %v2605 = vpack.c.bf16 %v2597, %v2596
    %v2606 = vpack.c.bf16 %v2598, %v2598
    %v2607 = vpack.c.bf16 %v2601, %v2600
    %v2608 = vpack.c.bf16 %v2603, %v2602
    %s2609 = scalar_lea.vmem %s29, 12
    %v2610 = vld [vmem:[%s2609] sm:$0x1]
    %v2612 = vlaneseq
    %v2613 = vshrl.u32 %v2612, 7
    %v2614 = vsub.s32 0, %v2613
    %v2615 = vrot.slane %v2610, %v2614
    %v2618 = vsel %vm323, %v2604, 0
    %v2621 = vsel %vm323, %v2605, 0
    %v2624 = vsel %vm323, %v2606, 0
    %2626 = vmatprep.subr.bf16.mxu0 0
    %2627 = vmatpush1.bf16.msra.mxu0 0
    %2628 = vmatprep.subr.bf16.mxu0 0
    %2629 = vmatpush1.bf16.msra.mxu0 0
    %2630 = vmatprep.subr.bf16.mxu0 0
    %2631 = vmatpush1.bf16.msra.mxu0 0
    %2632 = vmatprep.subr.bf16.mxu0 0
    %2633 = vmatpush1.bf16.msra.mxu0 0
    %2634 = vmatprep.subr.bf16.mxu0 0
    %2635 = vmatpush1.bf16.msra.mxu0 0
    %2636 = vmatprep.subr.bf16.mxu0 0
    %2637 = vmatpush1.bf16.msra.mxu0 0
    %2638 = vmatprep.subr.bf16.mxu0 0
    %2639 = vmatpush1.bf16.msra.mxu0 %v2608
    %2640 = vmatprep.subr.bf16.mxu0 0
    %2641 = vmatpush1.bf16.msra.mxu0 %v2607
    %2642 = vmatprep.subr.bf16.mxu0 0
    %2643 = vmatpush2.bf16.msra.mxu0 0
    %2644 = vmatprep.subr.bf16.mxu0 0
    %2645 = vmatpush2.bf16.msra.mxu0 0
    %2646 = vmatprep.subr.bf16.mxu0 0
    %2647 = vmatpush2.bf16.msra.mxu0 0
    %2648 = vmatprep.subr.bf16.mxu0 0
    %2649 = vmatpush2.bf16.msra.mxu0 0
    %2650 = vmatprep.subr.bf16.mxu0 0
    %2651 = vmatpush2.bf16.msra.mxu0 0
    %2652 = vmatprep.subr.bf16.mxu0 0
    %2653 = vmatpush2.bf16.msra.mxu0 0
    %2654 = vmatprep.subr.bf16.mxu0 0
    %2655 = vmatpush2.bf16.msra.mxu0 0
    %2656 = vmatprep.subr.bf16.mxu0 0
    %2657 = vmatpush2.bf16.msra.mxu0 0
    %2658 = vmatprep.mubr.bf16.mxu0 0
    %2659 = vmatmul.mubr.bf16.gmra.mxu0 %v2618
    %v2660 = vpop.f32.mrf.mxu0
    %v2661 = vadd.f32 %v2615, %v2660
    %v2662 = vpop.f32.mrf.mxu0
    %v2663 = vpop.f32.mrf.mxu0
    %v2664 = vadd.f32 %v2615, %v2663
    %v2665 = vpop.f32.mrf.mxu0
    %2666 = vmatprep.mubr.bf16.mxu0 0
    %2667 = vmatmul.mubr.bf16.gmra.mxu0 %v2621
    %v2668 = vpop.f32.mrf.mxu0
    %v2669 = vadd.f32 %v2615, %v2668
    %v2670 = vpop.f32.mrf.mxu0
    %v2671 = vpop.f32.mrf.mxu0
    %v2672 = vadd.f32 %v2615, %v2671
    %v2673 = vpop.f32.mrf.mxu0
    %2674 = vmatprep.mubr.bf16.mxu0 0
    %2675 = vmatmul.mubr.bf16.gmra.mxu0 %v2624
    %v2676 = vpop.f32.mrf.mxu0
    %v2677 = vadd.f32 %v2615, %v2676
    %v2678 = vpop.f32.mrf.mxu0
    %v2679 = vpop.f32.mrf.mxu0
    %v2680 = vpop.f32.mrf.mxu0
    %2681 = vdwg.mxu0
    %s2682 = scalar_lea.vmem %s27, 416
    %v2683 = vld [vmem:[%s2682] sm:$0xff]
    %v2684 = vld [vmem:[%s2682 + $0x8] sm:$0xff]
    %v2685 = vld [vmem:[%s2682 + $0x10] sm:$0xff]
    %v2686 = vld [vmem:[%s2682 + $0x18] sm:$0xff]
    %v2687 = vpack.c.bf16 %v2684, %v2683
    %v2688 = vpack.c.bf16 %v2686, %v2685
    %s2689 = scalar_lea.vmem %s29, 13
    %v2690 = vld [vmem:[%s2689] sm:$0x1]
    %v2692 = vlaneseq
    %v2693 = vshrl.u32 %v2692, 7
    %v2694 = vsub.s32 0, %v2693
    %v2695 = vrot.slane %v2690, %v2694
    %2697 = vmatprep.subr.bf16.mxu0 0
    %2698 = vmatpush1.bf16.msra.mxu0 0
    %2699 = vmatprep.subr.bf16.mxu0 0
    %2700 = vmatpush1.bf16.msra.mxu0 0
    %2701 = vmatprep.subr.bf16.mxu0 0
    %2702 = vmatpush1.bf16.msra.mxu0 0
    %2703 = vmatprep.subr.bf16.mxu0 0
    %2704 = vmatpush1.bf16.msra.mxu0 0
    %2705 = vmatprep.subr.bf16.mxu0 0
    %2706 = vmatpush1.bf16.msra.mxu0 0
    %2707 = vmatprep.subr.bf16.mxu0 0
    %2708 = vmatpush1.bf16.msra.mxu0 0
    %2709 = vmatprep.subr.bf16.mxu0 0
    %2710 = vmatpush1.bf16.msra.mxu0 %v2688
    %2711 = vmatprep.subr.bf16.mxu0 0
    %2712 = vmatpush1.bf16.msra.mxu0 %v2687
    %2713 = vmatprep.subr.bf16.mxu0 0
    %2714 = vmatpush2.bf16.msra.mxu0 0
    %2715 = vmatprep.subr.bf16.mxu0 0
    %2716 = vmatpush2.bf16.msra.mxu0 0
    %2717 = vmatprep.subr.bf16.mxu0 0
    %2718 = vmatpush2.bf16.msra.mxu0 0
    %2719 = vmatprep.subr.bf16.mxu0 0
    %2720 = vmatpush2.bf16.msra.mxu0 0
    %2721 = vmatprep.subr.bf16.mxu0 0
    %2722 = vmatpush2.bf16.msra.mxu0 0
    %2723 = vmatprep.subr.bf16.mxu0 0
    %2724 = vmatpush2.bf16.msra.mxu0 0
    %2725 = vmatprep.subr.bf16.mxu0 0
    %2726 = vmatpush2.bf16.msra.mxu0 0
    %2727 = vmatprep.subr.bf16.mxu0 0
    %2728 = vmatpush2.bf16.msra.mxu0 0
    %2729 = vmatprep.mubr.bf16.mxu0 0
    %2730 = vmatmul.mubr.bf16.gmra.mxu0 %v2618
    %v2731 = vpop.f32.mrf.mxu0
    %v2732 = vadd.f32 %v2695, %v2731
    %v2733 = vpop.f32.mrf.mxu0
    %v2734 = vpop.f32.mrf.mxu0
    %v2735 = vadd.f32 %v2695, %v2734
    %v2736 = vpop.f32.mrf.mxu0
    %2737 = vmatprep.mubr.bf16.mxu0 0
    %2738 = vmatmul.mubr.bf16.gmra.mxu0 %v2621
    %v2739 = vpop.f32.mrf.mxu0
    %v2740 = vadd.f32 %v2695, %v2739
    %v2741 = vpop.f32.mrf.mxu0
    %v2742 = vpop.f32.mrf.mxu0
    %v2743 = vadd.f32 %v2695, %v2742
    %v2744 = vpop.f32.mrf.mxu0
    %2745 = vmatprep.mubr.bf16.mxu0 0
    %2746 = vmatmul.mubr.bf16.gmra.mxu0 %v2624
    %v2747 = vpop.f32.mrf.mxu0
    %v2748 = vadd.f32 %v2695, %v2747
    %v2749 = vpop.f32.mrf.mxu0
    %v2750 = vpop.f32.mrf.mxu0
    %v2751 = vpop.f32.mrf.mxu0
    %2752 = vdwg.mxu0
    %s2753 = scalar_lea.vmem %s27, 448
    %v2754 = vld [vmem:[%s2753] sm:$0xff]
    %v2755 = vld [vmem:[%s2753 + $0x8] sm:$0xff]
    %v2756 = vld [vmem:[%s2753 + $0x10] sm:$0xff]
    %v2757 = vld [vmem:[%s2753 + $0x18] sm:$0xff]
    %v2758 = vpack.c.bf16 %v2755, %v2754
    %v2759 = vpack.c.bf16 %v2757, %v2756
    %s2760 = scalar_lea.vmem %s29, 14
    %v2761 = vld [vmem:[%s2760] sm:$0x1]
    %v2763 = vlaneseq
    %v2764 = vshrl.u32 %v2763, 7
    %v2765 = vsub.s32 0, %v2764
    %v2766 = vrot.slane %v2761, %v2765
    %2768 = vmatprep.subr.bf16.mxu0 0
    %2769 = vmatpush1.bf16.msra.mxu0 0
    %2770 = vmatprep.subr.bf16.mxu0 0
    %2771 = vmatpush1.bf16.msra.mxu0 0
    %2772 = vmatprep.subr.bf16.mxu0 0
    %2773 = vmatpush1.bf16.msra.mxu0 0
    %2774 = vmatprep.subr.bf16.mxu0 0
    %2775 = vmatpush1.bf16.msra.mxu0 0
    %2776 = vmatprep.subr.bf16.mxu0 0
    %2777 = vmatpush1.bf16.msra.mxu0 0
    %2778 = vmatprep.subr.bf16.mxu0 0
    %2779 = vmatpush1.bf16.msra.mxu0 0
    %2780 = vmatprep.subr.bf16.mxu0 0
    %2781 = vmatpush1.bf16.msra.mxu0 %v2759
    %2782 = vmatprep.subr.bf16.mxu0 0
    %2783 = vmatpush1.bf16.msra.mxu0 %v2758
    %2784 = vmatprep.subr.bf16.mxu0 0
    %2785 = vmatpush2.bf16.msra.mxu0 0
    %2786 = vmatprep.subr.bf16.mxu0 0
    %2787 = vmatpush2.bf16.msra.mxu0 0
    %2788 = vmatprep.subr.bf16.mxu0 0
    %2789 = vmatpush2.bf16.msra.mxu0 0
    %2790 = vmatprep.subr.bf16.mxu0 0
    %2791 = vmatpush2.bf16.msra.mxu0 0
    %2792 = vmatprep.subr.bf16.mxu0 0
    %2793 = vmatpush2.bf16.msra.mxu0 0
    %2794 = vmatprep.subr.bf16.mxu0 0
    %2795 = vmatpush2.bf16.msra.mxu0 0
    %2796 = vmatprep.subr.bf16.mxu0 0
    %2797 = vmatpush2.bf16.msra.mxu0 0
    %2798 = vmatprep.subr.bf16.mxu0 0
    %2799 = vmatpush2.bf16.msra.mxu0 0
    %2800 = vmatprep.mubr.bf16.mxu0 0
    %2801 = vmatmul.mubr.bf16.gmra.mxu0 %v2618
    %v2802 = vpop.f32.mrf.mxu0
    %v2803 = vadd.f32 %v2766, %v2802
    %v2804 = vpop.f32.mrf.mxu0
    %v2805 = vpop.f32.mrf.mxu0
    %v2806 = vadd.f32 %v2766, %v2805
    %v2807 = vpop.f32.mrf.mxu0
    %2808 = vmatprep.mubr.bf16.mxu0 0
    %2809 = vmatmul.mubr.bf16.gmra.mxu0 %v2621
    %v2810 = vpop.f32.mrf.mxu0
    %v2811 = vadd.f32 %v2766, %v2810
    %v2812 = vpop.f32.mrf.mxu0
    %v2813 = vpop.f32.mrf.mxu0
    %v2814 = vadd.f32 %v2766, %v2813
    %v2815 = vpop.f32.mrf.mxu0
    %2816 = vmatprep.mubr.bf16.mxu0 0
    %2817 = vmatmul.mubr.bf16.gmra.mxu0 %v2624
    %v2818 = vpop.f32.mrf.mxu0
    %v2819 = vadd.f32 %v2766, %v2818
    %v2820 = vpop.f32.mrf.mxu0
    %v2821 = vpop.f32.mrf.mxu0
    %v2822 = vpop.f32.mrf.mxu0
    %2823 = vdwg.mxu0
    %2824 = vxpose.xlu0.b32.start [1/16] %v2732, 128
    %2825 = vxpose.xlu0.b32.cont [2/16] %v2735, 128
    %2826 = vxpose.xlu0.b32.cont [3/16] %v2740, 128
    %2827 = vxpose.xlu0.b32.cont [4/16] %v2743, 128
    %2828 = vxpose.xlu0.b32.cont [5/16] %v2748, 128
    %2829 = vxpose.xlu0.b32.cont [6/16] 0.0, 128
    %2830 = vxpose.xlu0.b32.cont [7/16] 0.0, 128
    %2831 = vxpose.xlu0.b32.cont [8/16] 0.0, 128
    %2832 = vxpose.xlu0.b32.cont [9/16] 0.0, 128
    %2833 = vxpose.xlu0.b32.cont [10/16] 0.0, 128
    %2834 = vxpose.xlu0.b32.cont [11/16] 0.0, 128
    %2835 = vxpose.xlu0.b32.cont [12/16] 0.0, 128
    %2836 = vxpose.xlu0.b32.cont [13/16] 0.0, 128
    %2837 = vxpose.xlu0.b32.cont [14/16] 0.0, 128
    %2838 = vxpose.xlu0.b32.cont [15/16] 0.0, 128
    %2839 = vxpose.xlu0.b32.end [16/16] 0.0, 128
    %v2840 = vpop.trf.xlu0
    %v2841 = vpop.trf.xlu0
    %v2842 = vpop.trf.xlu0
    %v2843 = vpop.trf.xlu0
    %v2844 = vpop.trf.xlu0
    %v2845 = vpop.trf.xlu0
    %v2846 = vpop.trf.xlu0
    %v2847 = vpop.trf.xlu0
    %v2848 = vpop.trf.xlu0
    %v2849 = vpop.trf.xlu0
    %v2850 = vpop.trf.xlu0
    %v2851 = vpop.trf.xlu0
    %v2852 = vpop.trf.xlu0
    %v2853 = vpop.trf.xlu0
    %v2854 = vpop.trf.xlu0
    %v2855 = vpop.trf.xlu0
    %v2856 = vpack.c.bf16 %v2664, %v2661
    %v2857 = vpack.c.bf16 %v2672, %v2669
    %v2858 = vpack.c.bf16 %v2677, %v2677
    %v2859 = vpack.c.bf16 %v2841, %v2840
    %v2860 = vpack.c.bf16 %v2843, %v2842
    %v2862 = vsel %vm323, %v2856, 0
    %v2865 = vsel %vm323, %v2857, 0
    %v2868 = vsel %vm323, %v2858, 0
    %2870 = vmatprep.subr.bf16.mxu0 0
    %2871 = vmatpush1.bf16.msra.mxu0 0
    %2872 = vmatprep.subr.bf16.mxu0 0
    %2873 = vmatpush1.bf16.msra.mxu0 0
    %2874 = vmatprep.subr.bf16.mxu0 0
    %2875 = vmatpush1.bf16.msra.mxu0 0
    %2876 = vmatprep.subr.bf16.mxu0 0
    %2877 = vmatpush1.bf16.msra.mxu0 0
    %2878 = vmatprep.subr.bf16.mxu0 0
    %2879 = vmatpush1.bf16.msra.mxu0 0
    %2880 = vmatprep.subr.bf16.mxu0 0
    %2881 = vmatpush1.bf16.msra.mxu0 0
    %2882 = vmatprep.subr.bf16.mxu0 0
    %2883 = vmatpush1.bf16.msra.mxu0 %v2860
    %2884 = vmatprep.subr.bf16.mxu0 0
    %2885 = vmatpush1.bf16.msra.mxu0 %v2859
    %2886 = vmatprep.subr.bf16.mxu0 0
    %2887 = vmatpush2.bf16.msra.mxu0 0
    %2888 = vmatprep.subr.bf16.mxu0 0
    %2889 = vmatpush2.bf16.msra.mxu0 0
    %2890 = vmatprep.subr.bf16.mxu0 0
    %2891 = vmatpush2.bf16.msra.mxu0 0
    %2892 = vmatprep.subr.bf16.mxu0 0
    %2893 = vmatpush2.bf16.msra.mxu0 0
    %2894 = vmatprep.subr.bf16.mxu0 0
    %2895 = vmatpush2.bf16.msra.mxu0 0
    %2896 = vmatprep.subr.bf16.mxu0 0
    %2897 = vmatpush2.bf16.msra.mxu0 0
    %2898 = vmatprep.subr.bf16.mxu0 0
    %2899 = vmatpush2.bf16.msra.mxu0 0
    %2900 = vmatprep.subr.bf16.mxu0 0
    %2901 = vmatpush2.bf16.msra.mxu0 0
    %2902 = vmatprep.mubr.bf16.mxu0 0
    %2903 = vmatmul.mubr.bf16.gmra.mxu0 %v2862
    %v2904 = vpop.f32.mrf.mxu0
    %v2905 = vadd.f32 0.0, %v2904
    %v2906 = vpop.f32.mrf.mxu0
    %v2907 = vpop.f32.mrf.mxu0
    %v2908 = vadd.f32 0.0, %v2907
    %v2909 = vpop.f32.mrf.mxu0
    %2910 = vmatprep.mubr.bf16.mxu0 0
    %2911 = vmatmul.mubr.bf16.gmra.mxu0 %v2865
    %v2912 = vpop.f32.mrf.mxu0
    %v2913 = vadd.f32 0.0, %v2912
    %v2914 = vpop.f32.mrf.mxu0
    %v2915 = vpop.f32.mrf.mxu0
    %v2916 = vadd.f32 0.0, %v2915
    %v2917 = vpop.f32.mrf.mxu0
    %2918 = vmatprep.mubr.bf16.mxu0 0
    %2919 = vmatmul.mubr.bf16.gmra.mxu0 %v2868
    %v2920 = vpop.f32.mrf.mxu0
    %v2921 = vadd.f32 0.0, %v2920
    %v2922 = vpop.f32.mrf.mxu0
    %v2923 = vpop.f32.mrf.mxu0
    %v2924 = vpop.f32.mrf.mxu0
    %2925 = vdwg.mxu0
    %v2926 = vmul.f32 %v2905, 0.17677669
    %v2927 = vmul.f32 %v2908, 0.17677669
    %v2928 = vmul.f32 %v2913, 0.17677669
    %v2929 = vmul.f32 %v2916, 0.17677669
    %v2930 = vmul.f32 %v2921, 0.17677669
    %v2931 = vadd.f32 %v2926, %v904
    %v2932 = vadd.f32 %v2927, %v905
    %v2933 = vadd.f32 %v2928, %v906
    %v2934 = vadd.f32 %v2929, %v907
    %v2935 = vadd.f32 %v2930, %v908
    %v2936 = vsel %vm238, %v2931, -inf
    %2937 = vmax.xlane.f32.xlu0 %v2936
    %v2938 = vpop.xlane.xlu0 %2937
    %v2939 = vsel %vm238, %v2932, -inf
    %2940 = vmax.xlane.f32.xlu0 %v2939
    %v2941 = vpop.xlane.xlu0 %2940
    %v2942 = vsel %vm238, %v2933, -inf
    %2943 = vmax.xlane.f32.xlu0 %v2942
    %v2944 = vpop.xlane.xlu0 %2943
    %v2945 = vsel %vm238, %v2934, -inf
    %2946 = vmax.xlane.f32.xlu0 %v2945
    %v2947 = vpop.xlane.xlu0 %2946
    %v2948 = vsel %vm238, %v2935, -inf
    %2949 = vmax.xlane.f32.xlu0 %v2948
    %v2950 = vpop.xlane.xlu0 %2949
    %v2951 = vsub.f32 %v2931, %v2938
    %v2952 = vsub.f32 %v2932, %v2941
    %v2953 = vsub.f32 %v2933, %v2944
    %v2954 = vsub.f32 %v2934, %v2947
    %v2955 = vsub.f32 %v2935, %v2950
    %v2956 = vmin.f32 %v2951, 0.0
    %v2957 = vmin.f32 %v2952, 0.0
    %v2958 = vmin.f32 %v2953, 0.0
    %v2959 = vmin.f32 %v2954, 0.0
    %v2960 = vmin.f32 %v2955, 0.0
    %v2961 = vmul.f32 %v2956, 1.442695
    %v2962 = vpow.pop %v2961
    %v2963 = vmul.f32 %v2957, 1.442695
    %v2964 = vpow.pop %v2963
    %v2965 = vmul.f32 %v2958, 1.442695
    %v2966 = vpow.pop %v2965
    %v2967 = vmul.f32 %v2959, 1.442695
    %v2968 = vpow.pop %v2967
    %v2969 = vmul.f32 %v2960, 1.442695
    %v2970 = vpow.pop %v2969
    %v2971 = vsel %vm238, %v2962, 0.0
    %2972 = vadd.xlane.f32.xlu0 %v2971
    %v2973 = vpop.xlane.xlu0 %2972
    %v2974 = vsel %vm238, %v2964, 0.0
    %2975 = vadd.xlane.f32.xlu0 %v2974
    %v2976 = vpop.xlane.xlu0 %2975
    %v2977 = vsel %vm238, %v2966, 0.0
    %2978 = vadd.xlane.f32.xlu0 %v2977
    %v2979 = vpop.xlane.xlu0 %2978
    %v2980 = vsel %vm238, %v2968, 0.0
    %2981 = vadd.xlane.f32.xlu0 %v2980
    %v2982 = vpop.xlane.xlu0 %2981
    %v2983 = vsel %vm238, %v2970, 0.0
    %2984 = vadd.xlane.f32.xlu0 %v2983
    %v2985 = vpop.xlane.xlu0 %2984
    %v2986 = vrcp.pop %v2973
    %v2987 = vmul.f32 %v2962, %v2986
    %v2988 = vrcp.pop %v2976
    %v2989 = vmul.f32 %v2964, %v2988
    %v2990 = vrcp.pop %v2979
    %v2991 = vmul.f32 %v2966, %v2990
    %v2992 = vrcp.pop %v2982
    %v2993 = vmul.f32 %v2968, %v2992
    %v2994 = vrcp.pop %v2985
    %v2995 = vmul.f32 %v2970, %v2994
    %v2996 = vpack.c.bf16 %v2989, %v2987
    %v2997 = vpack.c.bf16 %v2993, %v2991
    %v2998 = vpack.c.bf16 %v2995, %v2995
    %v2999 = vpack.c.bf16 %v2806, %v2803
    %v3000 = vpack.c.bf16 %v2814, %v2811
    %v3001 = vpack.c.bf16 %v2819, %v2819
    %v3003 = vsel %vm238, %v2996, 0
    %v3006 = vsel %vm238, %v2997, 0
    %v3009 = vsel %vm238, %v2998, 0
    %v3012 = vsel %vm167, %v3001, 0
    %3014 = vmatprep.subr.bf16.mxu0 0
    %3015 = vmatpush1.bf16.msra.mxu0 0
    %3016 = vmatprep.subr.bf16.mxu0 0
    %3017 = vmatpush1.bf16.msra.mxu0 0
    %3018 = vmatprep.subr.bf16.mxu0 0
    %3019 = vmatpush1.bf16.msra.mxu0 0
    %3020 = vmatprep.subr.bf16.mxu0 0
    %3021 = vmatpush1.bf16.msra.mxu0 0
    %3022 = vmatprep.subr.bf16.mxu0 0
    %3023 = vmatpush1.bf16.msra.mxu0 0
    %3024 = vmatprep.subr.bf16.mxu0 0
    %3025 = vmatpush1.bf16.msra.mxu0 %v3012
    %3026 = vmatprep.subr.bf16.mxu0 0
    %3027 = vmatpush1.bf16.msra.mxu0 %v3000
    %3028 = vmatprep.subr.bf16.mxu0 0
    %3029 = vmatpush1.bf16.msra.mxu0 %v2999
    %3030 = vmatprep.subr.bf16.mxu0 0
    %3031 = vmatpush2.bf16.msra.mxu0 0
    %3032 = vmatprep.subr.bf16.mxu0 0
    %3033 = vmatpush2.bf16.msra.mxu0 0
    %3034 = vmatprep.subr.bf16.mxu0 0
    %3035 = vmatpush2.bf16.msra.mxu0 0
    %3036 = vmatprep.subr.bf16.mxu0 0
    %3037 = vmatpush2.bf16.msra.mxu0 0
    %3038 = vmatprep.subr.bf16.mxu0 0
    %3039 = vmatpush2.bf16.msra.mxu0 0
    %3040 = vmatprep.subr.bf16.mxu0 0
    %3041 = vmatpush2.bf16.msra.mxu0 0
    %3042 = vmatprep.subr.bf16.mxu0 0
    %3043 = vmatpush2.bf16.msra.mxu0 0
    %3044 = vmatprep.subr.bf16.mxu0 0
    %3045 = vmatpush2.bf16.msra.mxu0 0
    %3046 = vmatprep.mubr.bf16.mxu0 0
    %3047 = vmatmul.mubr.bf16.gmra.mxu0 %v3003
    %v3048 = vpop.f32.mrf.mxu0
    %v3049 = vadd.f32 0.0, %v3048
    %v3050 = vpop.f32.mrf.mxu0
    %v3051 = vpop.f32.mrf.mxu0
    %v3052 = vadd.f32 0.0, %v3051
    %v3053 = vpop.f32.mrf.mxu0
    %3054 = vmatprep.mubr.bf16.mxu0 0
    %3055 = vmatmul.mubr.bf16.gmra.mxu0 %v3006
    %v3056 = vpop.f32.mrf.mxu0
    %v3057 = vadd.f32 0.0, %v3056
    %v3058 = vpop.f32.mrf.mxu0
    %v3059 = vpop.f32.mrf.mxu0
    %v3060 = vadd.f32 0.0, %v3059
    %v3061 = vpop.f32.mrf.mxu0
    %3062 = vmatprep.mubr.bf16.mxu0 0
    %3063 = vmatmul.mubr.bf16.gmra.mxu0 %v3009
    %v3064 = vpop.f32.mrf.mxu0
    %v3065 = vadd.f32 0.0, %v3064
    %v3066 = vpop.f32.mrf.mxu0
    %v3067 = vpop.f32.mrf.mxu0
    %v3068 = vpop.f32.mrf.mxu0
    %3069 = vdwg.mxu0
    %s3070 = scalar_lea.vmem %s27, 480
    %v3071 = vld [vmem:[%s3070] sm:$0xff]
    %v3072 = vld [vmem:[%s3070 + $0x8] sm:$0xff]
    %v3073 = vld [vmem:[%s3070 + $0x10] sm:$0xff]
    %v3074 = vld [vmem:[%s3070 + $0x18] sm:$0xff]
    %v3075 = vpack.c.bf16 %v3052, %v3049
    %v3076 = vpack.c.bf16 %v3060, %v3057
    %v3077 = vpack.c.bf16 %v3065, %v3065
    %v3078 = vpack.c.bf16 %v3072, %v3071
    %v3079 = vpack.c.bf16 %v3074, %v3073
    %v3081 = vsel %vm323, %v3075, 0
    %v3084 = vsel %vm323, %v3076, 0
    %v3087 = vsel %vm323, %v3077, 0
    %3089 = vmatprep.subr.bf16.mxu0 0
    %3090 = vmatpush1.bf16.msra.mxu0 0
    %3091 = vmatprep.subr.bf16.mxu0 0
    %3092 = vmatpush1.bf16.msra.mxu0 0
    %3093 = vmatprep.subr.bf16.mxu0 0
    %3094 = vmatpush1.bf16.msra.mxu0 0
    %3095 = vmatprep.subr.bf16.mxu0 0
    %3096 = vmatpush1.bf16.msra.mxu0 0
    %3097 = vmatprep.subr.bf16.mxu0 0
    %3098 = vmatpush1.bf16.msra.mxu0 0
    %3099 = vmatprep.subr.bf16.mxu0 0
    %3100 = vmatpush1.bf16.msra.mxu0 0
    %3101 = vmatprep.subr.bf16.mxu0 0
    %3102 = vmatpush1.bf16.msra.mxu0 %v3079
    %3103 = vmatprep.subr.bf16.mxu0 0
    %3104 = vmatpush1.bf16.msra.mxu0 %v3078
    %3105 = vmatprep.subr.bf16.mxu0 0
    %3106 = vmatpush2.bf16.msra.mxu0 0
    %3107 = vmatprep.subr.bf16.mxu0 0
    %3108 = vmatpush2.bf16.msra.mxu0 0
    %3109 = vmatprep.subr.bf16.mxu0 0
    %3110 = vmatpush2.bf16.msra.mxu0 0
    %3111 = vmatprep.subr.bf16.mxu0 0
    %3112 = vmatpush2.bf16.msra.mxu0 0
    %3113 = vmatprep.subr.bf16.mxu0 0
    %3114 = vmatpush2.bf16.msra.mxu0 0
    %3115 = vmatprep.subr.bf16.mxu0 0
    %3116 = vmatpush2.bf16.msra.mxu0 0
    %3117 = vmatprep.subr.bf16.mxu0 0
    %3118 = vmatpush2.bf16.msra.mxu0 0
    %3119 = vmatprep.subr.bf16.mxu0 0
    %3120 = vmatpush2.bf16.msra.mxu0 0
    %3121 = vmatprep.mubr.bf16.mxu0 0
    %3122 = vmatmul.mubr.bf16.gmra.mxu0 %v3081
    %v3123 = vpop.f32.mrf.mxu0
    %v3124 = vadd.f32 0.0, %v3123
    %v3125 = vpop.f32.mrf.mxu0
    %v3126 = vpop.f32.mrf.mxu0
    %v3127 = vadd.f32 0.0, %v3126
    %v3128 = vpop.f32.mrf.mxu0
    %3129 = vmatprep.mubr.bf16.mxu0 0
    %3130 = vmatmul.mubr.bf16.gmra.mxu0 %v3084
    %v3131 = vpop.f32.mrf.mxu0
    %v3132 = vadd.f32 0.0, %v3131
    %v3133 = vpop.f32.mrf.mxu0
    %v3134 = vpop.f32.mrf.mxu0
    %v3135 = vadd.f32 0.0, %v3134
    %v3136 = vpop.f32.mrf.mxu0
    %3137 = vmatprep.mubr.bf16.mxu0 0
    %3138 = vmatmul.mubr.bf16.gmra.mxu0 %v3087
    %v3139 = vpop.f32.mrf.mxu0
    %v3140 = vadd.f32 0.0, %v3139
    %v3141 = vpop.f32.mrf.mxu0
    %v3142 = vpop.f32.mrf.mxu0
    %v3143 = vpop.f32.mrf.mxu0
    %3144 = vdwg.mxu0
    %v3145 = vadd.f32 %v2594, %v3124
    %v3146 = vadd.f32 %v2595, %v3127
    %v3147 = vadd.f32 %v2596, %v3132
    %v3148 = vadd.f32 %v2597, %v3135
    %v3149 = vadd.f32 %v2598, %v3140
    %s3150 = scalar_lea.vmem %s29, 15
    %v3151 = vld [vmem:[%s3150] sm:$0x1]
    %v3153 = vlaneseq
    %v3154 = vshrl.u32 %v3153, 7
    %v3155 = vsub.s32 0, %v3154
    %v3156 = vrot.slane %v3151, %v3155
    %v3158 = vadd.f32 %v3145, %v3156
    %v3159 = vadd.f32 %v3146, %v3156
    %v3160 = vadd.f32 %v3147, %v3156
    %v3161 = vadd.f32 %v3148, %v3156
    %v3162 = vadd.f32 %v3149, %v3156
    %v3163 = vld [vmem:[%s17] sm:$0xff]
    %v3164 = vld [vmem:[%s17 + $0x8] sm:$0xff]
    %v3165 = vld [vmem:[%s17 + $0x10] sm:$0xff]
    %v3166 = vld [vmem:[%s17 + $0x18] sm:$0xff]
    %v3167 = vld [vmem:[%s17 + $0x20] sm:$0xff]
    %v3168 = vld [vmem:[%s47] sm:$0xff]
    %v3169 = vld [vmem:[%s47 + $0x8] sm:$0xff]
    %v3170 = vld [vmem:[%s47 + $0x10] sm:$0xff]
    %v3171 = vld [vmem:[%s47 + $0x18] sm:$0xff]
    %v3172 = vld [vmem:[%s49] sm:$0x1]
    %v3173 = vld [vmem:[%s51] sm:$0xff]
    %v3174 = vld [vmem:[%s51 + $0x8] sm:$0xff]
    %v3175 = vld [vmem:[%s51 + $0x10] sm:$0xff]
    %v3176 = vld [vmem:[%s51 + $0x18] sm:$0xff]
    %v3177 = vld [vmem:[%s53] sm:$0x1]
    %v3178 = vpack.c.bf16 %v3164, %v3163
    %v3179 = vpack.c.bf16 %v3166, %v3165
    %v3180 = vpack.c.bf16 %v3167, %v3167
    %v3181 = vpack.c.bf16 %v3159, %v3158
    %v3182 = vpack.c.bf16 %v3161, %v3160
    %v3183 = vpack.c.bf16 %v3162, %v3162
    %v3185 = vsel %vm238, %v3178, 0
    %v3188 = vsel %vm238, %v3179, 0
    %v3191 = vsel %vm238, %v3180, 0
    %v3194 = vsel %vm167, %v3183, 0
    %3196 = vmatprep.subr.bf16.mxu0 0
    %3197 = vmatpush1.bf16.msra.mxu0 0
    %3198 = vmatprep.subr.bf16.mxu0 0
    %3199 = vmatpush1.bf16.msra.mxu0 0
    %3200 = vmatprep.subr.bf16.mxu0 0
    %3201 = vmatpush1.bf16.msra.mxu0 0
    %3202 = vmatprep.subr.bf16.mxu0 0
    %3203 = vmatpush1.bf16.msra.mxu0 0
    %3204 = vmatprep.subr.bf16.mxu0 0
    %3205 = vmatpush1.bf16.msra.mxu0 0
    %3206 = vmatprep.subr.bf16.mxu0 0
    %3207 = vmatpush1.bf16.msra.mxu0 %v3194
    %3208 = vmatprep.subr.bf16.mxu0 0
    %3209 = vmatpush1.bf16.msra.mxu0 %v3182
    %3210 = vmatprep.subr.bf16.mxu0 0
    %3211 = vmatpush1.bf16.msra.mxu0 %v3181
    %3212 = vmatprep.subr.bf16.mxu0 0
    %3213 = vmatpush2.bf16.msra.mxu0 0
    %3214 = vmatprep.subr.bf16.mxu0 0
    %3215 = vmatpush2.bf16.msra.mxu0 0
    %3216 = vmatprep.subr.bf16.mxu0 0
    %3217 = vmatpush2.bf16.msra.mxu0 0
    %3218 = vmatprep.subr.bf16.mxu0 0
    %3219 = vmatpush2.bf16.msra.mxu0 0
    %3220 = vmatprep.subr.bf16.mxu0 0
    %3221 = vmatpush2.bf16.msra.mxu0 0
    %3222 = vmatprep.subr.bf16.mxu0 0
    %3223 = vmatpush2.bf16.msra.mxu0 0
    %3224 = vmatprep.subr.bf16.mxu0 0
    %3225 = vmatpush2.bf16.msra.mxu0 0
    %3226 = vmatprep.subr.bf16.mxu0 0
    %3227 = vmatpush2.bf16.msra.mxu0 0
    %3228 = vmatprep.mubr.bf16.mxu0 0
    %3229 = vmatmul.mubr.bf16.gmra.mxu0 %v3185
    %v3230 = vpop.f32.mrf.mxu0
    %v3231 = vadd.f32 0.0, %v3230
    %v3232 = vpop.f32.mrf.mxu0
    %v3233 = vpop.f32.mrf.mxu0
    %v3234 = vadd.f32 0.0, %v3233
    %v3235 = vpop.f32.mrf.mxu0
    %3236 = vmatprep.mubr.bf16.mxu0 0
    %3237 = vmatmul.mubr.bf16.gmra.mxu0 %v3188
    %v3238 = vpop.f32.mrf.mxu0
    %v3239 = vadd.f32 0.0, %v3238
    %v3240 = vpop.f32.mrf.mxu0
    %v3241 = vpop.f32.mrf.mxu0
    %v3242 = vadd.f32 0.0, %v3241
    %v3243 = vpop.f32.mrf.mxu0
    %3244 = vmatprep.mubr.bf16.mxu0 0
    %3245 = vmatmul.mubr.bf16.gmra.mxu0 %v3191
    %v3246 = vpop.f32.mrf.mxu0
    %v3247 = vadd.f32 0.0, %v3246
    %v3248 = vpop.f32.mrf.mxu0
    %v3249 = vpop.f32.mrf.mxu0
    %v3250 = vpop.f32.mrf.mxu0
    %3251 = vdwg.mxu0
    %v3252 = vpack.c.bf16 %v3234, %v3231
    %v3253 = vpack.c.bf16 %v3242, %v3239
    %v3254 = vpack.c.bf16 %v3247, %v3247
    %v3255 = vpack.c.bf16 %v3169, %v3168
    %v3256 = vpack.c.bf16 %v3171, %v3170
    %v3258 = vlaneseq
    %v3259 = vshrl.u32 %v3258, 7
    %v3260 = vsub.s32 0, %v3259
    %v3261 = vrot.slane %v3172, %v3260
    %v3264 = vsel %vm323, %v3252, 0
    %v3267 = vsel %vm323, %v3253, 0
    %v3270 = vsel %vm323, %v3254, 0
    %3272 = vmatprep.subr.bf16.mxu0 0
    %3273 = vmatpush1.bf16.msra.mxu0 0
    %3274 = vmatprep.subr.bf16.mxu0 0
    %3275 = vmatpush1.bf16.msra.mxu0 0
    %3276 = vmatprep.subr.bf16.mxu0 0
    %3277 = vmatpush1.bf16.msra.mxu0 0
    %3278 = vmatprep.subr.bf16.mxu0 0
    %3279 = vmatpush1.bf16.msra.mxu0 0
    %3280 = vmatprep.subr.bf16.mxu0 0
    %3281 = vmatpush1.bf16.msra.mxu0 0
    %3282 = vmatprep.subr.bf16.mxu0 0
    %3283 = vmatpush1.bf16.msra.mxu0 0
    %3284 = vmatprep.subr.bf16.mxu0 0
    %3285 = vmatpush1.bf16.msra.mxu0 %v3256
    %3286 = vmatprep.subr.bf16.mxu0 0
    %3287 = vmatpush1.bf16.msra.mxu0 %v3255
    %3288 = vmatprep.subr.bf16.mxu0 0
    %3289 = vmatpush2.bf16.msra.mxu0 0
    %3290 = vmatprep.subr.bf16.mxu0 0
    %3291 = vmatpush2.bf16.msra.mxu0 0
    %3292 = vmatprep.subr.bf16.mxu0 0
    %3293 = vmatpush2.bf16.msra.mxu0 0
    %3294 = vmatprep.subr.bf16.mxu0 0
    %3295 = vmatpush2.bf16.msra.mxu0 0
    %3296 = vmatprep.subr.bf16.mxu0 0
    %3297 = vmatpush2.bf16.msra.mxu0 0
    %3298 = vmatprep.subr.bf16.mxu0 0
    %3299 = vmatpush2.bf16.msra.mxu0 0
    %3300 = vmatprep.subr.bf16.mxu0 0
    %3301 = vmatpush2.bf16.msra.mxu0 0
    %3302 = vmatprep.subr.bf16.mxu0 0
    %3303 = vmatpush2.bf16.msra.mxu0 0
    %3304 = vmatprep.mubr.bf16.mxu0 0
    %3305 = vmatmul.mubr.bf16.gmra.mxu0 %v3264
    %v3306 = vpop.f32.mrf.mxu0
    %v3307 = vadd.f32 %v3261, %v3306
    %v3308 = vpop.f32.mrf.mxu0
    %v3309 = vpop.f32.mrf.mxu0
    %v3310 = vadd.f32 %v3261, %v3309
    %v3311 = vpop.f32.mrf.mxu0
    %3312 = vmatprep.mubr.bf16.mxu0 0
    %3313 = vmatmul.mubr.bf16.gmra.mxu0 %v3267
    %v3314 = vpop.f32.mrf.mxu0
    %v3315 = vadd.f32 %v3261, %v3314
    %v3316 = vpop.f32.mrf.mxu0
    %v3317 = vpop.f32.mrf.mxu0
    %v3318 = vadd.f32 %v3261, %v3317
    %v3319 = vpop.f32.mrf.mxu0
    %3320 = vmatprep.mubr.bf16.mxu0 0
    %3321 = vmatmul.mubr.bf16.gmra.mxu0 %v3270
    %v3322 = vpop.f32.mrf.mxu0
    %v3323 = vadd.f32 %v3261, %v3322
    %v3324 = vpop.f32.mrf.mxu0
    %v3325 = vpop.f32.mrf.mxu0
    %v3326 = vpop.f32.mrf.mxu0
    %3327 = vdwg.mxu0
    %vm3328 = vcmask 195584
    %v3329 = vsel %vm3328, %v3307, -inf
    %3330 = vmax.xlane.f32.xlu0 %v3329
    %v3331 = vpop.xlane.xlu0 %3330
    %v3332 = vsel %vm3328, %v3310, -inf
    %3333 = vmax.xlane.f32.xlu0 %v3332
    %v3334 = vpop.xlane.xlu0 %3333
    %v3335 = vsel %vm3328, %v3315, -inf
    %3336 = vmax.xlane.f32.xlu0 %v3335
    %v3337 = vpop.xlane.xlu0 %3336
    %v3338 = vsel %vm3328, %v3318, -inf
    %3339 = vmax.xlane.f32.xlu0 %v3338
    %v3340 = vpop.xlane.xlu0 %3339
    %v3341 = vsel %vm3328, %v3323, -inf
    %3342 = vmax.xlane.f32.xlu0 %v3341
    %v3343 = vpop.xlane.xlu0 %3342
    %v3344 = vsub.f32 %v3307, %v3331
    %v3345 = vsub.f32 %v3310, %v3334
    %v3346 = vsub.f32 %v3315, %v3337
    %v3347 = vsub.f32 %v3318, %v3340
    %v3348 = vsub.f32 %v3323, %v3343
    %v3349 = vmin.f32 %v3344, 0.0
    %v3350 = vmin.f32 %v3345, 0.0
    %v3351 = vmin.f32 %v3346, 0.0
    %v3352 = vmin.f32 %v3347, 0.0
    %v3353 = vmin.f32 %v3348, 0.0
    %v3354 = vmul.f32 %v3349, 1.442695
    %v3355 = vpow.pop %v3354
    %v3356 = vmul.f32 %v3350, 1.442695
    %v3357 = vpow.pop %v3356
    %v3358 = vmul.f32 %v3351, 1.442695
    %v3359 = vpow.pop %v3358
    %v3360 = vmul.f32 %v3352, 1.442695
    %v3361 = vpow.pop %v3360
    %v3362 = vmul.f32 %v3353, 1.442695
    %v3363 = vpow.pop %v3362
    %v3364 = vsel %vm3328, %v3355, 0.0
    %3365 = vadd.xlane.f32.xlu0 %v3364
    %v3366 = vpop.xlane.xlu0 %3365
    %v3367 = vsel %vm3328, %v3357, 0.0
    %3368 = vadd.xlane.f32.xlu0 %v3367
    %v3369 = vpop.xlane.xlu0 %3368
    %v3370 = vsel %vm3328, %v3359, 0.0
    %3371 = vadd.xlane.f32.xlu0 %v3370
    %v3372 = vpop.xlane.xlu0 %3371
    %v3373 = vsel %vm3328, %v3361, 0.0
    %3374 = vadd.xlane.f32.xlu0 %v3373
    %v3375 = vpop.xlane.xlu0 %3374
    %v3376 = vsel %vm3328, %v3363, 0.0
    %3377 = vadd.xlane.f32.xlu0 %v3376
    %v3378 = vpop.xlane.xlu0 %3377
    %v3379 = vrcp.pop %v3366
    %v3380 = vmul.f32 %v3355, %v3379
    %v3381 = vrcp.pop %v3369
    %v3382 = vmul.f32 %v3357, %v3381
    %v3383 = vrcp.pop %v3372
    %v3384 = vmul.f32 %v3359, %v3383
    %v3385 = vrcp.pop %v3375
    %v3386 = vmul.f32 %v3361, %v3385
    %v3387 = vrcp.pop %v3378
    %v3388 = vmul.f32 %v3363, %v3387
    %v3389 = vpack.c.bf16 %v3174, %v3173
    %v3390 = vpack.c.bf16 %v3176, %v3175
    %v3392 = vlaneseq
    %v3393 = vshrl.u32 %v3392, 7
    %v3394 = vsub.s32 0, %v3393
    %v3395 = vrot.slane %v3177, %v3394
    %3397 = vmatprep.subr.bf16.mxu0 0
    %3398 = vmatpush1.bf16.msra.mxu0 0
    %3399 = vmatprep.subr.bf16.mxu0 0
    %3400 = vmatpush1.bf16.msra.mxu0 0
    %3401 = vmatprep.subr.bf16.mxu0 0
    %3402 = vmatpush1.bf16.msra.mxu0 0
    %3403 = vmatprep.subr.bf16.mxu0 0
    %3404 = vmatpush1.bf16.msra.mxu0 0
    %3405 = vmatprep.subr.bf16.mxu0 0
    %3406 = vmatpush1.bf16.msra.mxu0 0
    %3407 = vmatprep.subr.bf16.mxu0 0
    %3408 = vmatpush1.bf16.msra.mxu0 0
    %3409 = vmatprep.subr.bf16.mxu0 0
    %3410 = vmatpush1.bf16.msra.mxu0 %v3390
    %3411 = vmatprep.subr.bf16.mxu0 0
    %3412 = vmatpush1.bf16.msra.mxu0 %v3389
    %3413 = vmatprep.subr.bf16.mxu0 0
    %3414 = vmatpush2.bf16.msra.mxu0 0
    %3415 = vmatprep.subr.bf16.mxu0 0
    %3416 = vmatpush2.bf16.msra.mxu0 0
    %3417 = vmatprep.subr.bf16.mxu0 0
    %3418 = vmatpush2.bf16.msra.mxu0 0
    %3419 = vmatprep.subr.bf16.mxu0 0
    %3420 = vmatpush2.bf16.msra.mxu0 0
    %3421 = vmatprep.subr.bf16.mxu0 0
    %3422 = vmatpush2.bf16.msra.mxu0 0
    %3423 = vmatprep.subr.bf16.mxu0 0
    %3424 = vmatpush2.bf16.msra.mxu0 0
    %3425 = vmatprep.subr.bf16.mxu0 0
    %3426 = vmatpush2.bf16.msra.mxu0 0
    %3427 = vmatprep.subr.bf16.mxu0 0
    %3428 = vmatpush2.bf16.msra.mxu0 0
    %3429 = vmatprep.mubr.bf16.mxu0 0
    %3430 = vmatmul.mubr.bf16.gmra.mxu0 %v3264
    %v3431 = vpop.f32.mrf.mxu0
    %v3432 = vadd.f32 %v3395, %v3431
    %v3433 = vpop.f32.mrf.mxu0
    %v3434 = vpop.f32.mrf.mxu0
    %v3435 = vadd.f32 %v3395, %v3434
    %v3436 = vpop.f32.mrf.mxu0
    %3437 = vmatprep.mubr.bf16.mxu0 0
    %3438 = vmatmul.mubr.bf16.gmra.mxu0 %v3267
    %v3439 = vpop.f32.mrf.mxu0
    %v3440 = vadd.f32 %v3395, %v3439
    %v3441 = vpop.f32.mrf.mxu0
    %v3442 = vpop.f32.mrf.mxu0
    %v3443 = vadd.f32 %v3395, %v3442
    %v3444 = vpop.f32.mrf.mxu0
    %3445 = vmatprep.mubr.bf16.mxu0 0
    %3446 = vmatmul.mubr.bf16.gmra.mxu0 %v3270
    %v3447 = vpop.f32.mrf.mxu0
    %v3448 = vadd.f32 %v3395, %v3447
    %v3449 = vpop.f32.mrf.mxu0
    %v3450 = vpop.f32.mrf.mxu0
    %v3451 = vpop.f32.mrf.mxu0
    %3452 = vdwg.mxu0
    %vm3453 = vcmp.gt.f32.partialorder %v3432, 0.0
    %vm3454 = vcmp.gt.f32.partialorder %v3435, 0.0
    %vm3455 = vcmp.gt.f32.partialorder %v3440, 0.0
    %vm3456 = vcmp.gt.f32.partialorder %v3443, 0.0
    %vm3457 = vcmp.gt.f32.partialorder %v3448, 0.0
    %v3458 = vmul.f32 %v3432, 0.01
    %v3459 = vmul.f32 %v3435, 0.01
    %v3460 = vmul.f32 %v3440, 0.01
    %v3461 = vmul.f32 %v3443, 0.01
    %v3462 = vmul.f32 %v3448, 0.01
    %v3463 = vsel %vm3453, %v3432, %v3458
    %v3464 = vsel %vm3454, %v3435, %v3459
    %v3465 = vsel %vm3455, %v3440, %v3460
    %v3466 = vsel %vm3456, %v3443, %v3461
    %v3467 = vsel %vm3457, %v3448, %v3462
    %3468 = vxpose.xlu0.b32.start [1/16] %v3380, 128
    %3469 = vxpose.xlu0.b32.cont [2/16] %v3382, 128
    %3470 = vxpose.xlu0.b32.cont [3/16] %v3384, 128
    %3471 = vxpose.xlu0.b32.cont [4/16] %v3386, 128
    %3472 = vxpose.xlu0.b32.cont [5/16] %v3388, 128
    %3473 = vxpose.xlu0.b32.cont [6/16] 0.0, 128
    %3474 = vxpose.xlu0.b32.cont [7/16] 0.0, 128
    %3475 = vxpose.xlu0.b32.cont [8/16] 0.0, 128
    %3476 = vxpose.xlu0.b32.cont [9/16] 0.0, 128
    %3477 = vxpose.xlu0.b32.cont [10/16] 0.0, 128
    %3478 = vxpose.xlu0.b32.cont [11/16] 0.0, 128
    %3479 = vxpose.xlu0.b32.cont [12/16] 0.0, 128
    %3480 = vxpose.xlu0.b32.cont [13/16] 0.0, 128
    %3481 = vxpose.xlu0.b32.cont [14/16] 0.0, 128
    %3482 = vxpose.xlu0.b32.cont [15/16] 0.0, 128
    %3483 = vxpose.xlu0.b32.end [16/16] 0.0, 128
    %v3484 = vpop.trf.xlu0
    %v3485 = vpop.trf.xlu0
    %v3486 = vpop.trf.xlu0
    %v3487 = vpop.trf.xlu0
    %v3488 = vpop.trf.xlu0
    %v3489 = vpop.trf.xlu0
    %v3490 = vpop.trf.xlu0
    %v3491 = vpop.trf.xlu0
    %v3492 = vpop.trf.xlu0
    %v3493 = vpop.trf.xlu0
    %v3494 = vpop.trf.xlu0
    %v3495 = vpop.trf.xlu0
    %v3496 = vpop.trf.xlu0
    %v3497 = vpop.trf.xlu0
    %v3498 = vpop.trf.xlu0
    %v3499 = vpop.trf.xlu0
    %v3500 = vpack.c.bf16 %v3485, %v3484
    %v3501 = vpack.c.bf16 %v3486, %v3486
    %v3502 = vpack.c.bf16 %v3464, %v3463
    %v3503 = vpack.c.bf16 %v3466, %v3465
    %v3504 = vpack.c.bf16 %v3467, %v3467
    %v3506 = vsel %vm238, %v3500, 0
    %v3509 = vsel %vm238, %v3501, 0
    %v3512 = vsel %vm167, %v3504, 0
    %3514 = vmatprep.subr.bf16.mxu0 0
    %3515 = vmatpush1.bf16.msra.mxu0 0
    %3516 = vmatprep.subr.bf16.mxu0 0
    %3517 = vmatpush1.bf16.msra.mxu0 0
    %3518 = vmatprep.subr.bf16.mxu0 0
    %3519 = vmatpush1.bf16.msra.mxu0 0
    %3520 = vmatprep.subr.bf16.mxu0 0
    %3521 = vmatpush1.bf16.msra.mxu0 0
    %3522 = vmatprep.subr.bf16.mxu0 0
    %3523 = vmatpush1.bf16.msra.mxu0 0
    %3524 = vmatprep.subr.bf16.mxu0 0
    %3525 = vmatpush1.bf16.msra.mxu0 %v3512
    %3526 = vmatprep.subr.bf16.mxu0 0
    %3527 = vmatpush1.bf16.msra.mxu0 %v3503
    %3528 = vmatprep.subr.bf16.mxu0 0
    %3529 = vmatpush1.bf16.msra.mxu0 %v3502
    %3530 = vmatprep.subr.bf16.mxu0 0
    %3531 = vmatpush2.bf16.msra.mxu0 0
    %3532 = vmatprep.subr.bf16.mxu0 0
    %3533 = vmatpush2.bf16.msra.mxu0 0
    %3534 = vmatprep.subr.bf16.mxu0 0
    %3535 = vmatpush2.bf16.msra.mxu0 0
    %3536 = vmatprep.subr.bf16.mxu0 0
    %3537 = vmatpush2.bf16.msra.mxu0 0
    %3538 = vmatprep.subr.bf16.mxu0 0
    %3539 = vmatpush2.bf16.msra.mxu0 0
    %3540 = vmatprep.subr.bf16.mxu0 0
    %3541 = vmatpush2.bf16.msra.mxu0 0
    %3542 = vmatprep.subr.bf16.mxu0 0
    %3543 = vmatpush2.bf16.msra.mxu0 0
    %3544 = vmatprep.subr.bf16.mxu0 0
    %3545 = vmatpush2.bf16.msra.mxu0 0
    %3546 = vmatprep.mubr.bf16.mxu0 0
    %3547 = vmatmul.mubr.bf16.gmra.mxu0 %v3506
    %v3548 = vpop.f32.mrf.mxu0
    %v3549 = vadd.f32 0.0, %v3548
    %v3550 = vpop.f32.mrf.mxu0
    %v3551 = vpop.f32.mrf.mxu0
    %v3552 = vadd.f32 0.0, %v3551
    %v3553 = vpop.f32.mrf.mxu0
    %3554 = vmatprep.mubr.bf16.mxu0 0
    %3555 = vmatmul.mubr.bf16.gmra.mxu0 %v3509
    %v3556 = vpop.f32.mrf.mxu0
    %v3557 = vadd.f32 0.0, %v3556
    %v3558 = vpop.f32.mrf.mxu0
    %v3559 = vpop.f32.mrf.mxu0
    %v3560 = vpop.f32.mrf.mxu0
    %3561 = vdwg.mxu0
    %v3562 = vpack.c.bf16 %v3382, %v3380
    %v3563 = vpack.c.bf16 %v3386, %v3384
    %v3564 = vpack.c.bf16 %v3388, %v3388
    %v3566 = vsel %vm167, %v3564, 0
    %3568 = vmatprep.subr.bf16.mxu0 0
    %3569 = vmatpush1.bf16.msra.mxu0 0
    %3570 = vmatprep.subr.bf16.mxu0 0
    %3571 = vmatpush1.bf16.msra.mxu0 0
    %3572 = vmatprep.subr.bf16.mxu0 0
    %3573 = vmatpush1.bf16.msra.mxu0 0
    %3574 = vmatprep.subr.bf16.mxu0 0
    %3575 = vmatpush1.bf16.msra.mxu0 0
    %3576 = vmatprep.subr.bf16.mxu0 0
    %3577 = vmatpush1.bf16.msra.mxu0 0
    %3578 = vmatprep.subr.bf16.mxu0 0
    %3579 = vmatpush1.bf16.msra.mxu0 %v3566
    %3580 = vmatprep.subr.bf16.mxu0 0
    %3581 = vmatpush1.bf16.msra.mxu0 %v3563
    %3582 = vmatprep.subr.bf16.mxu0 0
    %3583 = vmatpush1.bf16.msra.mxu0 %v3562
    %3584 = vmatprep.subr.bf16.mxu0 0
    %3585 = vmatpush2.bf16.msra.mxu0 0
    %3586 = vmatprep.subr.bf16.mxu0 0
    %3587 = vmatpush2.bf16.msra.mxu0 0
    %3588 = vmatprep.subr.bf16.mxu0 0
    %3589 = vmatpush2.bf16.msra.mxu0 0
    %3590 = vmatprep.subr.bf16.mxu0 0
    %3591 = vmatpush2.bf16.msra.mxu0 0
    %3592 = vmatprep.subr.bf16.mxu0 0
    %3593 = vmatpush2.bf16.msra.mxu0 0
    %3594 = vmatprep.subr.bf16.mxu0 0
    %3595 = vmatpush2.bf16.msra.mxu0 0
    %3596 = vmatprep.subr.bf16.mxu0 0
    %3597 = vmatpush2.bf16.msra.mxu0 0
    %3598 = vmatprep.subr.bf16.mxu0 0
    %3599 = vmatpush2.bf16.msra.mxu0 0
    %3600 = vmatprep.mubr.bf16.mxu0 0
    %3601 = vmatmul.mubr.bf16.gmra.mxu0 %v3185
    %v3602 = vpop.f32.mrf.mxu0
    %v3603 = vadd.f32 0.0, %v3602
    %v3604 = vpop.f32.mrf.mxu0
    %v3605 = vpop.f32.mrf.mxu0
    %v3606 = vadd.f32 0.0, %v3605
    %v3607 = vpop.f32.mrf.mxu0
    %3608 = vmatprep.mubr.bf16.mxu0 0
    %3609 = vmatmul.mubr.bf16.gmra.mxu0 %v3188
    %v3610 = vpop.f32.mrf.mxu0
    %v3611 = vadd.f32 0.0, %v3610
    %v3612 = vpop.f32.mrf.mxu0
    %v3613 = vpop.f32.mrf.mxu0
    %v3614 = vadd.f32 0.0, %v3613
    %v3615 = vpop.f32.mrf.mxu0
    %3616 = vmatprep.mubr.bf16.mxu0 0
    %3617 = vmatmul.mubr.bf16.gmra.mxu0 %v3191
    %v3618 = vpop.f32.mrf.mxu0
    %v3619 = vadd.f32 0.0, %v3618
    %v3620 = vpop.f32.mrf.mxu0
    %v3621 = vpop.f32.mrf.mxu0
    %v3622 = vpop.f32.mrf.mxu0
    %3623 = vdwg.mxu0
    %v3624 = vpack.c.bf16 %v3606, %v3603
    %v3625 = vpack.c.bf16 %v3614, %v3611
    %v3626 = vpack.c.bf16 %v3619, %v3619
    %v3628 = vsel %vm167, %v3626, 0
    %3630 = vmatprep.subr.bf16.mxu0 0
    %3631 = vmatpush1.bf16.msra.mxu0 0
    %3632 = vmatprep.subr.bf16.mxu0 0
    %3633 = vmatpush1.bf16.msra.mxu0 0
    %3634 = vmatprep.subr.bf16.mxu0 0
    %3635 = vmatpush1.bf16.msra.mxu0 0
    %3636 = vmatprep.subr.bf16.mxu0 0
    %3637 = vmatpush1.bf16.msra.mxu0 0
    %3638 = vmatprep.subr.bf16.mxu0 0
    %3639 = vmatpush1.bf16.msra.mxu0 0
    %3640 = vmatprep.subr.bf16.mxu0 0
    %3641 = vmatpush1.bf16.msra.mxu0 %v3628
    %3642 = vmatprep.subr.bf16.mxu0 0
    %3643 = vmatpush1.bf16.msra.mxu0 %v3625
    %3644 = vmatprep.subr.bf16.mxu0 0
    %3645 = vmatpush1.bf16.msra.mxu0 %v3624
    %3646 = vmatprep.subr.bf16.mxu0 0
    %3647 = vmatpush2.bf16.msra.mxu0 0
    %3648 = vmatprep.subr.bf16.mxu0 0
    %3649 = vmatpush2.bf16.msra.mxu0 0
    %3650 = vmatprep.subr.bf16.mxu0 0
    %3651 = vmatpush2.bf16.msra.mxu0 0
    %3652 = vmatprep.subr.bf16.mxu0 0
    %3653 = vmatpush2.bf16.msra.mxu0 0
    %3654 = vmatprep.subr.bf16.mxu0 0
    %3655 = vmatpush2.bf16.msra.mxu0 0
    %3656 = vmatprep.subr.bf16.mxu0 0
    %3657 = vmatpush2.bf16.msra.mxu0 0
    %3658 = vmatprep.subr.bf16.mxu0 0
    %3659 = vmatpush2.bf16.msra.mxu0 0
    %3660 = vmatprep.subr.bf16.mxu0 0
    %3661 = vmatpush2.bf16.msra.mxu0 0
    %3662 = vmatprep.mubr.bf16.mxu0 0
    %3663 = vmatmul.mubr.bf16.gmra.mxu0 %v3506
    %v3664 = vpop.f32.mrf.mxu0
    %v3665 = vadd.f32 0.0, %v3664
    %v3666 = vpop.f32.mrf.mxu0
    %v3667 = vpop.f32.mrf.mxu0
    %v3668 = vadd.f32 0.0, %v3667
    %v3669 = vpop.f32.mrf.mxu0
    %3670 = vmatprep.mubr.bf16.mxu0 0
    %3671 = vmatmul.mubr.bf16.gmra.mxu0 %v3509
    %v3672 = vpop.f32.mrf.mxu0
    %v3673 = vadd.f32 0.0, %v3672
    %v3674 = vpop.f32.mrf.mxu0
    %v3675 = vpop.f32.mrf.mxu0
    %v3676 = vpop.f32.mrf.mxu0
    %3677 = vdwg.mxu0
    %v3678 = vld [vmem:[%s7] sm:$0xff]
    %v3679 = vld [vmem:[%s7 + $0x8] sm:$0xff]
    %v3680 = vld [vmem:[%s7 + $0x10] sm:$0xff]
    %v3681 = vpack.c.bf16 %v3679, %v3678
    %v3682 = vpack.c.bf16 %v3680, %v3680
    %v3683 = vpack.c.bf16 %v3552, %v3549
    %v3684 = vpack.c.bf16 %v3557, %v3557
    %v3686 = vsel %vm3328, %v3681, 0
    %v3689 = vsel %vm3328, %v3682, 0
    %v3692 = vsel %vm167, %v3684, 0
    %3694 = vmatprep.subr.bf16.mxu0 0
    %3695 = vmatpush1.bf16.msra.mxu0 0
    %3696 = vmatprep.subr.bf16.mxu0 0
    %3697 = vmatpush1.bf16.msra.mxu0 0
    %3698 = vmatprep.subr.bf16.mxu0 0
    %3699 = vmatpush1.bf16.msra.mxu0 0
    %3700 = vmatprep.subr.bf16.mxu0 0
    %3701 = vmatpush1.bf16.msra.mxu0 0
    %3702 = vmatprep.subr.bf16.mxu0 0
    %3703 = vmatpush1.bf16.msra.mxu0 0
    %3704 = vmatprep.subr.bf16.mxu0 0
    %3705 = vmatpush1.bf16.msra.mxu0 0
    %3706 = vmatprep.subr.bf16.mxu0 0
    %3707 = vmatpush1.bf16.msra.mxu0 %v3692
    %3708 = vmatprep.subr.bf16.mxu0 0
    %3709 = vmatpush1.bf16.msra.mxu0 %v3683
    %3710 = vmatprep.subr.bf16.mxu0 0
    %3711 = vmatpush2.bf16.msra.mxu0 0
    %3712 = vmatprep.subr.bf16.mxu0 0
    %3713 = vmatpush2.bf16.msra.mxu0 0
    %3714 = vmatprep.subr.bf16.mxu0 0
    %3715 = vmatpush2.bf16.msra.mxu0 0
    %3716 = vmatprep.subr.bf16.mxu0 0
    %3717 = vmatpush2.bf16.msra.mxu0 0
    %3718 = vmatprep.subr.bf16.mxu0 0
    %3719 = vmatpush2.bf16.msra.mxu0 0
    %3720 = vmatprep.subr.bf16.mxu0 0
    %3721 = vmatpush2.bf16.msra.mxu0 0
    %3722 = vmatprep.subr.bf16.mxu0 0
    %3723 = vmatpush2.bf16.msra.mxu0 0
    %3724 = vmatprep.subr.bf16.mxu0 0
    %3725 = vmatpush2.bf16.msra.mxu0 0
    %3726 = vmatprep.mubr.bf16.mxu0 0
    %3727 = vmatmul.mubr.bf16.gmra.mxu0 %v3686
    %v3728 = vpop.f32.mrf.mxu0
    %v3729 = vadd.f32 0.0, %v3728
    %v3730 = vpop.f32.mrf.mxu0
    %v3731 = vpop.f32.mrf.mxu0
    %v3732 = vadd.f32 0.0, %v3731
    %v3733 = vpop.f32.mrf.mxu0
    %3734 = vmatprep.mubr.bf16.mxu0 0
    %3735 = vmatmul.mubr.bf16.gmra.mxu0 %v3689
    %v3736 = vpop.f32.mrf.mxu0
    %v3737 = vadd.f32 0.0, %v3736
    %v3738 = vpop.f32.mrf.mxu0
    %v3739 = vpop.f32.mrf.mxu0
    %v3740 = vpop.f32.mrf.mxu0
    %3741 = vdwg.mxu0
    %v3742 = vld [vmem:[%s31] sm:$0xff]
    %v3743 = vld [vmem:[%s31 + $0x8] sm:$0xff]
    %v3744 = vld [vmem:[%s31 + $0x10] sm:$0xff]
    %v3745 = vld [vmem:[%s31 + $0x18] sm:$0xff]
    %v3746 = vpack.c.bf16 %v3732, %v3729
    %v3747 = vpack.c.bf16 %v3737, %v3737
    %v3748 = vpack.c.bf16 %v3743, %v3742
    %v3749 = vpack.c.bf16 %v3745, %v3744
    %v3750 = vld [vmem:[%s33] sm:$0x1]
    %v3752 = vlaneseq
    %v3753 = vshrl.u32 %v3752, 7
    %v3754 = vsub.s32 0, %v3753
    %v3755 = vrot.slane %v3750, %v3754
    %v3758 = vsel %vm323, %v3746, 0
    %v3761 = vsel %vm323, %v3747, 0
    %3763 = vmatprep.subr.bf16.mxu0 0
    %3764 = vmatpush1.bf16.msra.mxu0 0
    %3765 = vmatprep.subr.bf16.mxu0 0
    %3766 = vmatpush1.bf16.msra.mxu0 0
    %3767 = vmatprep.subr.bf16.mxu0 0
    %3768 = vmatpush1.bf16.msra.mxu0 0
    %3769 = vmatprep.subr.bf16.mxu0 0
    %3770 = vmatpush1.bf16.msra.mxu0 0
    %3771 = vmatprep.subr.bf16.mxu0 0
    %3772 = vmatpush1.bf16.msra.mxu0 0
    %3773 = vmatprep.subr.bf16.mxu0 0
    %3774 = vmatpush1.bf16.msra.mxu0 0
    %3775 = vmatprep.subr.bf16.mxu0 0
    %3776 = vmatpush1.bf16.msra.mxu0 %v3749
    %3777 = vmatprep.subr.bf16.mxu0 0
    %3778 = vmatpush1.bf16.msra.mxu0 %v3748
    %3779 = vmatprep.subr.bf16.mxu0 0
    %3780 = vmatpush2.bf16.msra.mxu0 0
    %3781 = vmatprep.subr.bf16.mxu0 0
    %3782 = vmatpush2.bf16.msra.mxu0 0
    %3783 = vmatprep.subr.bf16.mxu0 0
    %3784 = vmatpush2.bf16.msra.mxu0 0
    %3785 = vmatprep.subr.bf16.mxu0 0
    %3786 = vmatpush2.bf16.msra.mxu0 0
    %3787 = vmatprep.subr.bf16.mxu0 0
    %3788 = vmatpush2.bf16.msra.mxu0 0
    %3789 = vmatprep.subr.bf16.mxu0 0
    %3790 = vmatpush2.bf16.msra.mxu0 0
    %3791 = vmatprep.subr.bf16.mxu0 0
    %3792 = vmatpush2.bf16.msra.mxu0 0
    %3793 = vmatprep.subr.bf16.mxu0 0
    %3794 = vmatpush2.bf16.msra.mxu0 0
    %3795 = vmatprep.mubr.bf16.mxu0 0
    %3796 = vmatmul.mubr.bf16.gmra.mxu0 %v3758
    %v3797 = vpop.f32.mrf.mxu0
    %v3798 = vadd.f32 %v3755, %v3797
    %v3799 = vpop.f32.mrf.mxu0
    %v3800 = vpop.f32.mrf.mxu0
    %v3801 = vadd.f32 %v3755, %v3800
    %v3802 = vpop.f32.mrf.mxu0
    %3803 = vmatprep.mubr.bf16.mxu0 0
    %3804 = vmatmul.mubr.bf16.gmra.mxu0 %v3761
    %v3805 = vpop.f32.mrf.mxu0
    %v3806 = vadd.f32 %v3755, %v3805
    %v3807 = vpop.f32.mrf.mxu0
    %v3808 = vpop.f32.mrf.mxu0
    %v3809 = vpop.f32.mrf.mxu0
    %3810 = vdwg.mxu0
    %vm3811 = vcmp.gt.f32.partialorder %v3798, 0.0
    %vm3812 = vcmp.gt.f32.partialorder %v3801, 0.0
    %vm3813 = vcmp.gt.f32.partialorder %v3806, 0.0
    %v3814 = vmul.f32 %v3798, 0.01
    %v3815 = vmul.f32 %v3801, 0.01
    %v3816 = vmul.f32 %v3806, 0.01
    %v3817 = vsel %vm3811, %v3798, %v3814
    %v3818 = vsel %vm3812, %v3801, %v3815
    %v3819 = vsel %vm3813, %v3806, %v3816
    %v3820 = vadd.f32 %v3549, %v3817
    %v3821 = vadd.f32 %v3552, %v3818
    %v3822 = vadd.f32 %v3557, %v3819
    %v3823 = vpack.c.bf16 %v3821, %v3820
    %v3824 = vpack.c.bf16 %v3822, %v3822
    %v3826 = vsel %vm167, %v3824, 0
    %3828 = vmatprep.subr.bf16.mxu0 0
    %3829 = vmatpush1.bf16.msra.mxu0 0
    %3830 = vmatprep.subr.bf16.mxu0 0
    %3831 = vmatpush1.bf16.msra.mxu0 0
    %3832 = vmatprep.subr.bf16.mxu0 0
    %3833 = vmatpush1.bf16.msra.mxu0 0
    %3834 = vmatprep.subr.bf16.mxu0 0
    %3835 = vmatpush1.bf16.msra.mxu0 0
    %3836 = vmatprep.subr.bf16.mxu0 0
    %3837 = vmatpush1.bf16.msra.mxu0 0
    %3838 = vmatprep.subr.bf16.mxu0 0
    %3839 = vmatpush1.bf16.msra.mxu0 0
    %3840 = vmatprep.subr.bf16.mxu0 0
    %3841 = vmatpush1.bf16.msra.mxu0 %v3826
    %3842 = vmatprep.subr.bf16.mxu0 0
    %3843 = vmatpush1.bf16.msra.mxu0 %v3823
    %3844 = vmatprep.subr.bf16.mxu0 0
    %3845 = vmatpush2.bf16.msra.mxu0 0
    %3846 = vmatprep.subr.bf16.mxu0 0
    %3847 = vmatpush2.bf16.msra.mxu0 0
    %3848 = vmatprep.subr.bf16.mxu0 0
    %3849 = vmatpush2.bf16.msra.mxu0 0
    %3850 = vmatprep.subr.bf16.mxu0 0
    %3851 = vmatpush2.bf16.msra.mxu0 0
    %3852 = vmatprep.subr.bf16.mxu0 0
    %3853 = vmatpush2.bf16.msra.mxu0 0
    %3854 = vmatprep.subr.bf16.mxu0 0
    %3855 = vmatpush2.bf16.msra.mxu0 0
    %3856 = vmatprep.subr.bf16.mxu0 0
    %3857 = vmatpush2.bf16.msra.mxu0 0
    %3858 = vmatprep.subr.bf16.mxu0 0
    %3859 = vmatpush2.bf16.msra.mxu0 0
    %3860 = vmatprep.mubr.bf16.mxu0 0
    %3861 = vmatmul.mubr.bf16.gmra.mxu0 %v3686
    %v3862 = vpop.f32.mrf.mxu0
    %v3863 = vadd.f32 0.0, %v3862
    %v3864 = vpop.f32.mrf.mxu0
    %v3865 = vpop.f32.mrf.mxu0
    %v3866 = vadd.f32 0.0, %v3865
    %v3867 = vpop.f32.mrf.mxu0
    %3868 = vmatprep.mubr.bf16.mxu0 0
    %3869 = vmatmul.mubr.bf16.gmra.mxu0 %v3689
    %v3870 = vpop.f32.mrf.mxu0
    %v3871 = vadd.f32 0.0, %v3870
    %v3872 = vpop.f32.mrf.mxu0
    %v3873 = vpop.f32.mrf.mxu0
    %v3874 = vpop.f32.mrf.mxu0
    %3875 = vdwg.mxu0
    %s3876 = scalar_lea.vmem %s31, 32
    %v3877 = vld [vmem:[%s3876] sm:$0xff]
    %v3878 = vld [vmem:[%s3876 + $0x8] sm:$0xff]
    %v3879 = vld [vmem:[%s3876 + $0x10] sm:$0xff]
    %v3880 = vld [vmem:[%s3876 + $0x18] sm:$0xff]
    %v3881 = vpack.c.bf16 %v3866, %v3863
    %v3882 = vpack.c.bf16 %v3871, %v3871
    %v3883 = vpack.c.bf16 %v3878, %v3877
    %v3884 = vpack.c.bf16 %v3880, %v3879
    %s3885 = scalar_lea.vmem %s33, 1
    %v3886 = vld [vmem:[%s3885] sm:$0x1]
    %v3888 = vlaneseq
    %v3889 = vshrl.u32 %v3888, 7
    %v3890 = vsub.s32 0, %v3889
    %v3891 = vrot.slane %v3886, %v3890
    %v3894 = vsel %vm323, %v3881, 0
    %v3897 = vsel %vm323, %v3882, 0
    %3899 = vmatprep.subr.bf16.mxu0 0
    %3900 = vmatpush1.bf16.msra.mxu0 0
    %3901 = vmatprep.subr.bf16.mxu0 0
    %3902 = vmatpush1.bf16.msra.mxu0 0
    %3903 = vmatprep.subr.bf16.mxu0 0
    %3904 = vmatpush1.bf16.msra.mxu0 0
    %3905 = vmatprep.subr.bf16.mxu0 0
    %3906 = vmatpush1.bf16.msra.mxu0 0
    %3907 = vmatprep.subr.bf16.mxu0 0
    %3908 = vmatpush1.bf16.msra.mxu0 0
    %3909 = vmatprep.subr.bf16.mxu0 0
    %3910 = vmatpush1.bf16.msra.mxu0 0
    %3911 = vmatprep.subr.bf16.mxu0 0
    %3912 = vmatpush1.bf16.msra.mxu0 %v3884
    %3913 = vmatprep.subr.bf16.mxu0 0
    %3914 = vmatpush1.bf16.msra.mxu0 %v3883
    %3915 = vmatprep.subr.bf16.mxu0 0
    %3916 = vmatpush2.bf16.msra.mxu0 0
    %3917 = vmatprep.subr.bf16.mxu0 0
    %3918 = vmatpush2.bf16.msra.mxu0 0
    %3919 = vmatprep.subr.bf16.mxu0 0
    %3920 = vmatpush2.bf16.msra.mxu0 0
    %3921 = vmatprep.subr.bf16.mxu0 0
    %3922 = vmatpush2.bf16.msra.mxu0 0
    %3923 = vmatprep.subr.bf16.mxu0 0
    %3924 = vmatpush2.bf16.msra.mxu0 0
    %3925 = vmatprep.subr.bf16.mxu0 0
    %3926 = vmatpush2.bf16.msra.mxu0 0
    %3927 = vmatprep.subr.bf16.mxu0 0
    %3928 = vmatpush2.bf16.msra.mxu0 0
    %3929 = vmatprep.subr.bf16.mxu0 0
    %3930 = vmatpush2.bf16.msra.mxu0 0
    %3931 = vmatprep.mubr.bf16.mxu0 0
    %3932 = vmatmul.mubr.bf16.gmra.mxu0 %v3894
    %v3933 = vpop.f32.mrf.mxu0
    %v3934 = vadd.f32 %v3891, %v3933
    %v3935 = vpop.f32.mrf.mxu0
    %v3936 = vpop.f32.mrf.mxu0
    %v3937 = vadd.f32 %v3891, %v3936
    %v3938 = vpop.f32.mrf.mxu0
    %3939 = vmatprep.mubr.bf16.mxu0 0
    %3940 = vmatmul.mubr.bf16.gmra.mxu0 %v3897
    %v3941 = vpop.f32.mrf.mxu0
    %v3942 = vadd.f32 %v3891, %v3941
    %v3943 = vpop.f32.mrf.mxu0
    %v3944 = vpop.f32.mrf.mxu0
    %v3945 = vpop.f32.mrf.mxu0
    %3946 = vdwg.mxu0
    %vm3947 = vcmp.gt.f32.partialorder %v3934, 0.0
    %vm3948 = vcmp.gt.f32.partialorder %v3937, 0.0
    %vm3949 = vcmp.gt.f32.partialorder %v3942, 0.0
    %v3950 = vmul.f32 %v3934, 0.01
    %v3951 = vmul.f32 %v3937, 0.01
    %v3952 = vmul.f32 %v3942, 0.01
    %v3953 = vsel %vm3947, %v3934, %v3950
    %v3954 = vsel %vm3948, %v3937, %v3951
    %v3955 = vsel %vm3949, %v3942, %v3952
    %v3956 = vadd.f32 %v3820, %v3953
    %v3957 = vadd.f32 %v3821, %v3954
    %v3958 = vadd.f32 %v3822, %v3955
    %v3959 = vpack.c.bf16 %v3957, %v3956
    %v3960 = vpack.c.bf16 %v3958, %v3958
    %v3962 = vsel %vm167, %v3960, 0
    %3964 = vmatprep.subr.bf16.mxu0 0
    %3965 = vmatpush1.bf16.msra.mxu0 0
    %3966 = vmatprep.subr.bf16.mxu0 0
    %3967 = vmatpush1.bf16.msra.mxu0 0
    %3968 = vmatprep.subr.bf16.mxu0 0
    %3969 = vmatpush1.bf16.msra.mxu0 0
    %3970 = vmatprep.subr.bf16.mxu0 0
    %3971 = vmatpush1.bf16.msra.mxu0 0
    %3972 = vmatprep.subr.bf16.mxu0 0
    %3973 = vmatpush1.bf16.msra.mxu0 0
    %3974 = vmatprep.subr.bf16.mxu0 0
    %3975 = vmatpush1.bf16.msra.mxu0 0
    %3976 = vmatprep.subr.bf16.mxu0 0
    %3977 = vmatpush1.bf16.msra.mxu0 %v3962
    %3978 = vmatprep.subr.bf16.mxu0 0
    %3979 = vmatpush1.bf16.msra.mxu0 %v3959
    %3980 = vmatprep.subr.bf16.mxu0 0
    %3981 = vmatpush2.bf16.msra.mxu0 0
    %3982 = vmatprep.subr.bf16.mxu0 0
    %3983 = vmatpush2.bf16.msra.mxu0 0
    %3984 = vmatprep.subr.bf16.mxu0 0
    %3985 = vmatpush2.bf16.msra.mxu0 0
    %3986 = vmatprep.subr.bf16.mxu0 0
    %3987 = vmatpush2.bf16.msra.mxu0 0
    %3988 = vmatprep.subr.bf16.mxu0 0
    %3989 = vmatpush2.bf16.msra.mxu0 0
    %3990 = vmatprep.subr.bf16.mxu0 0
    %3991 = vmatpush2.bf16.msra.mxu0 0
    %3992 = vmatprep.subr.bf16.mxu0 0
    %3993 = vmatpush2.bf16.msra.mxu0 0
    %3994 = vmatprep.subr.bf16.mxu0 0
    %3995 = vmatpush2.bf16.msra.mxu0 0
    %3996 = vmatprep.mubr.bf16.mxu0 0
    %3997 = vmatmul.mubr.bf16.gmra.mxu0 %v3686
    %v3998 = vpop.f32.mrf.mxu0
    %v3999 = vadd.f32 0.0, %v3998
    %v4000 = vpop.f32.mrf.mxu0
    %v4001 = vpop.f32.mrf.mxu0
    %v4002 = vadd.f32 0.0, %v4001
    %v4003 = vpop.f32.mrf.mxu0
    %4004 = vmatprep.mubr.bf16.mxu0 0
    %4005 = vmatmul.mubr.bf16.gmra.mxu0 %v3689
    %v4006 = vpop.f32.mrf.mxu0
    %v4007 = vadd.f32 0.0, %v4006
    %v4008 = vpop.f32.mrf.mxu0
    %v4009 = vpop.f32.mrf.mxu0
    %v4010 = vpop.f32.mrf.mxu0
    %4011 = vdwg.mxu0
    %s4012 = scalar_lea.vmem %s31, 64
    %v4013 = vld [vmem:[%s4012] sm:$0xff]
    %v4014 = vld [vmem:[%s4012 + $0x8] sm:$0xff]
    %v4015 = vld [vmem:[%s4012 + $0x10] sm:$0xff]
    %v4016 = vld [vmem:[%s4012 + $0x18] sm:$0xff]
    %v4017 = vpack.c.bf16 %v4002, %v3999
    %v4018 = vpack.c.bf16 %v4007, %v4007
    %v4019 = vpack.c.bf16 %v4014, %v4013
    %v4020 = vpack.c.bf16 %v4016, %v4015
    %s4021 = scalar_lea.vmem %s33, 2
    %v4022 = vld [vmem:[%s4021] sm:$0x1]
    %v4024 = vlaneseq
    %v4025 = vshrl.u32 %v4024, 7
    %v4026 = vsub.s32 0, %v4025
    %v4027 = vrot.slane %v4022, %v4026
    %v4030 = vsel %vm323, %v4017, 0
    %v4033 = vsel %vm323, %v4018, 0
    %4035 = vmatprep.subr.bf16.mxu0 0
    %4036 = vmatpush1.bf16.msra.mxu0 0
    %4037 = vmatprep.subr.bf16.mxu0 0
    %4038 = vmatpush1.bf16.msra.mxu0 0
    %4039 = vmatprep.subr.bf16.mxu0 0
    %4040 = vmatpush1.bf16.msra.mxu0 0
    %4041 = vmatprep.subr.bf16.mxu0 0
    %4042 = vmatpush1.bf16.msra.mxu0 0
    %4043 = vmatprep.subr.bf16.mxu0 0
    %4044 = vmatpush1.bf16.msra.mxu0 0
    %4045 = vmatprep.subr.bf16.mxu0 0
    %4046 = vmatpush1.bf16.msra.mxu0 0
    %4047 = vmatprep.subr.bf16.mxu0 0
    %4048 = vmatpush1.bf16.msra.mxu0 %v4020
    %4049 = vmatprep.subr.bf16.mxu0 0
    %4050 = vmatpush1.bf16.msra.mxu0 %v4019
    %4051 = vmatprep.subr.bf16.mxu0 0
    %4052 = vmatpush2.bf16.msra.mxu0 0
    %4053 = vmatprep.subr.bf16.mxu0 0
    %4054 = vmatpush2.bf16.msra.mxu0 0
    %4055 = vmatprep.subr.bf16.mxu0 0
    %4056 = vmatpush2.bf16.msra.mxu0 0
    %4057 = vmatprep.subr.bf16.mxu0 0
    %4058 = vmatpush2.bf16.msra.mxu0 0
    %4059 = vmatprep.subr.bf16.mxu0 0
    %4060 = vmatpush2.bf16.msra.mxu0 0
    %4061 = vmatprep.subr.bf16.mxu0 0
    %4062 = vmatpush2.bf16.msra.mxu0 0
    %4063 = vmatprep.subr.bf16.mxu0 0
    %4064 = vmatpush2.bf16.msra.mxu0 0
    %4065 = vmatprep.subr.bf16.mxu0 0
    %4066 = vmatpush2.bf16.msra.mxu0 0
    %4067 = vmatprep.mubr.bf16.mxu0 0
    %4068 = vmatmul.mubr.bf16.gmra.mxu0 %v4030
    %v4069 = vpop.f32.mrf.mxu0
    %v4070 = vadd.f32 %v4027, %v4069
    %v4071 = vpop.f32.mrf.mxu0
    %v4072 = vpop.f32.mrf.mxu0
    %v4073 = vadd.f32 %v4027, %v4072
    %v4074 = vpop.f32.mrf.mxu0
    %4075 = vmatprep.mubr.bf16.mxu0 0
    %4076 = vmatmul.mubr.bf16.gmra.mxu0 %v4033
    %v4077 = vpop.f32.mrf.mxu0
    %v4078 = vadd.f32 %v4027, %v4077
    %v4079 = vpop.f32.mrf.mxu0
    %v4080 = vpop.f32.mrf.mxu0
    %v4081 = vpop.f32.mrf.mxu0
    %4082 = vdwg.mxu0
    %vm4083 = vcmp.gt.f32.partialorder %v4070, 0.0
    %vm4084 = vcmp.gt.f32.partialorder %v4073, 0.0
    %vm4085 = vcmp.gt.f32.partialorder %v4078, 0.0
    %v4086 = vmul.f32 %v4070, 0.01
    %v4087 = vmul.f32 %v4073, 0.01
    %v4088 = vmul.f32 %v4078, 0.01
    %v4089 = vsel %vm4083, %v4070, %v4086
    %v4090 = vsel %vm4084, %v4073, %v4087
    %v4091 = vsel %vm4085, %v4078, %v4088
    %v4092 = vadd.f32 %v3956, %v4089
    %v4093 = vadd.f32 %v3957, %v4090
    %v4094 = vadd.f32 %v3958, %v4091
    %v4095 = vpack.c.bf16 %v4093, %v4092
    %v4096 = vpack.c.bf16 %v4094, %v4094
    %v4098 = vsel %vm167, %v4096, 0
    %4100 = vmatprep.subr.bf16.mxu0 0
    %4101 = vmatpush1.bf16.msra.mxu0 0
    %4102 = vmatprep.subr.bf16.mxu0 0
    %4103 = vmatpush1.bf16.msra.mxu0 0
    %4104 = vmatprep.subr.bf16.mxu0 0
    %4105 = vmatpush1.bf16.msra.mxu0 0
    %4106 = vmatprep.subr.bf16.mxu0 0
    %4107 = vmatpush1.bf16.msra.mxu0 0
    %4108 = vmatprep.subr.bf16.mxu0 0
    %4109 = vmatpush1.bf16.msra.mxu0 0
    %4110 = vmatprep.subr.bf16.mxu0 0
    %4111 = vmatpush1.bf16.msra.mxu0 0
    %4112 = vmatprep.subr.bf16.mxu0 0
    %4113 = vmatpush1.bf16.msra.mxu0 %v4098
    %4114 = vmatprep.subr.bf16.mxu0 0
    %4115 = vmatpush1.bf16.msra.mxu0 %v4095
    %4116 = vmatprep.subr.bf16.mxu0 0
    %4117 = vmatpush2.bf16.msra.mxu0 0
    %4118 = vmatprep.subr.bf16.mxu0 0
    %4119 = vmatpush2.bf16.msra.mxu0 0
    %4120 = vmatprep.subr.bf16.mxu0 0
    %4121 = vmatpush2.bf16.msra.mxu0 0
    %4122 = vmatprep.subr.bf16.mxu0 0
    %4123 = vmatpush2.bf16.msra.mxu0 0
    %4124 = vmatprep.subr.bf16.mxu0 0
    %4125 = vmatpush2.bf16.msra.mxu0 0
    %4126 = vmatprep.subr.bf16.mxu0 0
    %4127 = vmatpush2.bf16.msra.mxu0 0
    %4128 = vmatprep.subr.bf16.mxu0 0
    %4129 = vmatpush2.bf16.msra.mxu0 0
    %4130 = vmatprep.subr.bf16.mxu0 0
    %4131 = vmatpush2.bf16.msra.mxu0 0
    %4132 = vmatprep.mubr.bf16.mxu0 0
    %4133 = vmatmul.mubr.bf16.gmra.mxu0 %v3686
    %v4134 = vpop.f32.mrf.mxu0
    %v4135 = vadd.f32 0.0, %v4134
    %v4136 = vpop.f32.mrf.mxu0
    %v4137 = vpop.f32.mrf.mxu0
    %v4138 = vadd.f32 0.0, %v4137
    %v4139 = vpop.f32.mrf.mxu0
    %4140 = vmatprep.mubr.bf16.mxu0 0
    %4141 = vmatmul.mubr.bf16.gmra.mxu0 %v3689
    %v4142 = vpop.f32.mrf.mxu0
    %v4143 = vadd.f32 0.0, %v4142
    %v4144 = vpop.f32.mrf.mxu0
    %v4145 = vpop.f32.mrf.mxu0
    %v4146 = vpop.f32.mrf.mxu0
    %4147 = vdwg.mxu0
    %s4148 = scalar_lea.vmem %s31, 96
    %v4149 = vld [vmem:[%s4148] sm:$0xff]
    %v4150 = vld [vmem:[%s4148 + $0x8] sm:$0xff]
    %v4151 = vld [vmem:[%s4148 + $0x10] sm:$0xff]
    %v4152 = vld [vmem:[%s4148 + $0x18] sm:$0xff]
    %v4153 = vpack.c.bf16 %v4138, %v4135
    %v4154 = vpack.c.bf16 %v4143, %v4143
    %v4155 = vpack.c.bf16 %v4150, %v4149
    %v4156 = vpack.c.bf16 %v4152, %v4151
    %s4157 = scalar_lea.vmem %s33, 3
    %v4158 = vld [vmem:[%s4157] sm:$0x1]
    %v4160 = vlaneseq
    %v4161 = vshrl.u32 %v4160, 7
    %v4162 = vsub.s32 0, %v4161
    %v4163 = vrot.slane %v4158, %v4162
    %v4166 = vsel %vm323, %v4153, 0
    %v4169 = vsel %vm323, %v4154, 0
    %4171 = vmatprep.subr.bf16.mxu0 0
    %4172 = vmatpush1.bf16.msra.mxu0 0
    %4173 = vmatprep.subr.bf16.mxu0 0
    %4174 = vmatpush1.bf16.msra.mxu0 0
    %4175 = vmatprep.subr.bf16.mxu0 0
    %4176 = vmatpush1.bf16.msra.mxu0 0
    %4177 = vmatprep.subr.bf16.mxu0 0
    %4178 = vmatpush1.bf16.msra.mxu0 0
    %4179 = vmatprep.subr.bf16.mxu0 0
    %4180 = vmatpush1.bf16.msra.mxu0 0
    %4181 = vmatprep.subr.bf16.mxu0 0
    %4182 = vmatpush1.bf16.msra.mxu0 0
    %4183 = vmatprep.subr.bf16.mxu0 0
    %4184 = vmatpush1.bf16.msra.mxu0 %v4156
    %4185 = vmatprep.subr.bf16.mxu0 0
    %4186 = vmatpush1.bf16.msra.mxu0 %v4155
    %4187 = vmatprep.subr.bf16.mxu0 0
    %4188 = vmatpush2.bf16.msra.mxu0 0
    %4189 = vmatprep.subr.bf16.mxu0 0
    %4190 = vmatpush2.bf16.msra.mxu0 0
    %4191 = vmatprep.subr.bf16.mxu0 0
    %4192 = vmatpush2.bf16.msra.mxu0 0
    %4193 = vmatprep.subr.bf16.mxu0 0
    %4194 = vmatpush2.bf16.msra.mxu0 0
    %4195 = vmatprep.subr.bf16.mxu0 0
    %4196 = vmatpush2.bf16.msra.mxu0 0
    %4197 = vmatprep.subr.bf16.mxu0 0
    %4198 = vmatpush2.bf16.msra.mxu0 0
    %4199 = vmatprep.subr.bf16.mxu0 0
    %4200 = vmatpush2.bf16.msra.mxu0 0
    %4201 = vmatprep.subr.bf16.mxu0 0
    %4202 = vmatpush2.bf16.msra.mxu0 0
    %4203 = vmatprep.mubr.bf16.mxu0 0
    %4204 = vmatmul.mubr.bf16.gmra.mxu0 %v4166
    %v4205 = vpop.f32.mrf.mxu0
    %v4206 = vadd.f32 %v4163, %v4205
    %v4207 = vpop.f32.mrf.mxu0
    %v4208 = vpop.f32.mrf.mxu0
    %v4209 = vadd.f32 %v4163, %v4208
    %v4210 = vpop.f32.mrf.mxu0
    %4211 = vmatprep.mubr.bf16.mxu0 0
    %4212 = vmatmul.mubr.bf16.gmra.mxu0 %v4169
    %v4213 = vpop.f32.mrf.mxu0
    %v4214 = vadd.f32 %v4163, %v4213
    %v4215 = vpop.f32.mrf.mxu0
    %v4216 = vpop.f32.mrf.mxu0
    %v4217 = vpop.f32.mrf.mxu0
    %4218 = vdwg.mxu0
    %vm4219 = vcmp.gt.f32.partialorder %v4206, 0.0
    %vm4220 = vcmp.gt.f32.partialorder %v4209, 0.0
    %vm4221 = vcmp.gt.f32.partialorder %v4214, 0.0
    %v4222 = vmul.f32 %v4206, 0.01
    %v4223 = vmul.f32 %v4209, 0.01
    %v4224 = vmul.f32 %v4214, 0.01
    %v4225 = vsel %vm4219, %v4206, %v4222
    %v4226 = vsel %vm4220, %v4209, %v4223
    %v4227 = vsel %vm4221, %v4214, %v4224
    %v4228 = vadd.f32 %v4092, %v4225
    %v4229 = vadd.f32 %v4093, %v4226
    %v4230 = vadd.f32 %v4094, %v4227
    %v4231 = vld [vmem:[%s13] sm:$0xff]
    %v4232 = vld [vmem:[%s13 + $0x8] sm:$0xff]
    %v4233 = vld [vmem:[%s13 + $0x10] sm:$0xff]
    %v4234 = vld [vmem:[%s35] sm:$0xff]
    %v4235 = vld [vmem:[%s35 + $0x8] sm:$0xff]
    %v4236 = vld [vmem:[%s35 + $0x10] sm:$0xff]
    %v4237 = vld [vmem:[%s35 + $0x18] sm:$0xff]
    %v4238 = vpack.c.bf16 %v4229, %v4228
    %v4239 = vpack.c.bf16 %v4230, %v4230
    %v4240 = vpack.c.bf16 %v4235, %v4234
    %v4241 = vpack.c.bf16 %v4237, %v4236
    %v4242 = vld [vmem:[%s37] sm:$0x1]
    %v4244 = vlaneseq
    %v4245 = vshrl.u32 %v4244, 7
    %v4246 = vsub.s32 0, %v4245
    %v4247 = vrot.slane %v4242, %v4246
    %v4250 = vsel %vm323, %v4238, 0
    %v4253 = vsel %vm323, %v4239, 0
    %4255 = vmatprep.subr.bf16.mxu0 0
    %4256 = vmatpush1.bf16.msra.mxu0 0
    %4257 = vmatprep.subr.bf16.mxu0 0
    %4258 = vmatpush1.bf16.msra.mxu0 0
    %4259 = vmatprep.subr.bf16.mxu0 0
    %4260 = vmatpush1.bf16.msra.mxu0 0
    %4261 = vmatprep.subr.bf16.mxu0 0
    %4262 = vmatpush1.bf16.msra.mxu0 0
    %4263 = vmatprep.subr.bf16.mxu0 0
    %4264 = vmatpush1.bf16.msra.mxu0 0
    %4265 = vmatprep.subr.bf16.mxu0 0
    %4266 = vmatpush1.bf16.msra.mxu0 0
    %4267 = vmatprep.subr.bf16.mxu0 0
    %4268 = vmatpush1.bf16.msra.mxu0 %v4241
    %4269 = vmatprep.subr.bf16.mxu0 0
    %4270 = vmatpush1.bf16.msra.mxu0 %v4240
    %4271 = vmatprep.subr.bf16.mxu0 0
    %4272 = vmatpush2.bf16.msra.mxu0 0
    %4273 = vmatprep.subr.bf16.mxu0 0
    %4274 = vmatpush2.bf16.msra.mxu0 0
    %4275 = vmatprep.subr.bf16.mxu0 0
    %4276 = vmatpush2.bf16.msra.mxu0 0
    %4277 = vmatprep.subr.bf16.mxu0 0
    %4278 = vmatpush2.bf16.msra.mxu0 0
    %4279 = vmatprep.subr.bf16.mxu0 0
    %4280 = vmatpush2.bf16.msra.mxu0 0
    %4281 = vmatprep.subr.bf16.mxu0 0
    %4282 = vmatpush2.bf16.msra.mxu0 0
    %4283 = vmatprep.subr.bf16.mxu0 0
    %4284 = vmatpush2.bf16.msra.mxu0 0
    %4285 = vmatprep.subr.bf16.mxu0 0
    %4286 = vmatpush2.bf16.msra.mxu0 0
    %4287 = vmatprep.mubr.bf16.mxu0 0
    %4288 = vmatmul.mubr.bf16.gmra.mxu0 %v4250
    %v4289 = vpop.f32.mrf.mxu0
    %v4290 = vadd.f32 %v4247, %v4289
    %v4291 = vpop.f32.mrf.mxu0
    %v4292 = vpop.f32.mrf.mxu0
    %v4293 = vadd.f32 %v4247, %v4292
    %v4294 = vpop.f32.mrf.mxu0
    %4295 = vmatprep.mubr.bf16.mxu0 0
    %4296 = vmatmul.mubr.bf16.gmra.mxu0 %v4253
    %v4297 = vpop.f32.mrf.mxu0
    %v4298 = vadd.f32 %v4247, %v4297
    %v4299 = vpop.f32.mrf.mxu0
    %v4300 = vpop.f32.mrf.mxu0
    %v4301 = vpop.f32.mrf.mxu0
    %4302 = vdwg.mxu0
    %s4303 = scalar_lea.vmem %s35, 32
    %v4304 = vld [vmem:[%s4303] sm:$0xff]
    %v4305 = vld [vmem:[%s4303 + $0x8] sm:$0xff]
    %v4306 = vld [vmem:[%s4303 + $0x10] sm:$0xff]
    %v4307 = vld [vmem:[%s4303 + $0x18] sm:$0xff]
    %v4308 = vpack.c.bf16 %v4305, %v4304
    %v4309 = vpack.c.bf16 %v4307, %v4306
    %s4310 = scalar_lea.vmem %s37, 1
    %v4311 = vld [vmem:[%s4310] sm:$0x1]
    %v4313 = vlaneseq
    %v4314 = vshrl.u32 %v4313, 7
    %v4315 = vsub.s32 0, %v4314
    %v4316 = vrot.slane %v4311, %v4315
    %4318 = vmatprep.subr.bf16.mxu0 0
    %4319 = vmatpush1.bf16.msra.mxu0 0
    %4320 = vmatprep.subr.bf16.mxu0 0
    %4321 = vmatpush1.bf16.msra.mxu0 0
    %4322 = vmatprep.subr.bf16.mxu0 0
    %4323 = vmatpush1.bf16.msra.mxu0 0
    %4324 = vmatprep.subr.bf16.mxu0 0
    %4325 = vmatpush1.bf16.msra.mxu0 0
    %4326 = vmatprep.subr.bf16.mxu0 0
    %4327 = vmatpush1.bf16.msra.mxu0 0
    %4328 = vmatprep.subr.bf16.mxu0 0
    %4329 = vmatpush1.bf16.msra.mxu0 0
    %4330 = vmatprep.subr.bf16.mxu0 0
    %4331 = vmatpush1.bf16.msra.mxu0 %v4309
    %4332 = vmatprep.subr.bf16.mxu0 0
    %4333 = vmatpush1.bf16.msra.mxu0 %v4308
    %4334 = vmatprep.subr.bf16.mxu0 0
    %4335 = vmatpush2.bf16.msra.mxu0 0
    %4336 = vmatprep.subr.bf16.mxu0 0
    %4337 = vmatpush2.bf16.msra.mxu0 0
    %4338 = vmatprep.subr.bf16.mxu0 0
    %4339 = vmatpush2.bf16.msra.mxu0 0
    %4340 = vmatprep.subr.bf16.mxu0 0
    %4341 = vmatpush2.bf16.msra.mxu0 0
    %4342 = vmatprep.subr.bf16.mxu0 0
    %4343 = vmatpush2.bf16.msra.mxu0 0
    %4344 = vmatprep.subr.bf16.mxu0 0
    %4345 = vmatpush2.bf16.msra.mxu0 0
    %4346 = vmatprep.subr.bf16.mxu0 0
    %4347 = vmatpush2.bf16.msra.mxu0 0
    %4348 = vmatprep.subr.bf16.mxu0 0
    %4349 = vmatpush2.bf16.msra.mxu0 0
    %4350 = vmatprep.mubr.bf16.mxu0 0
    %4351 = vmatmul.mubr.bf16.gmra.mxu0 %v4250
    %v4352 = vpop.f32.mrf.mxu0
    %v4353 = vadd.f32 %v4316, %v4352
    %v4354 = vpop.f32.mrf.mxu0
    %v4355 = vpop.f32.mrf.mxu0
    %v4356 = vadd.f32 %v4316, %v4355
    %v4357 = vpop.f32.mrf.mxu0
    %4358 = vmatprep.mubr.bf16.mxu0 0
    %4359 = vmatmul.mubr.bf16.gmra.mxu0 %v4253
    %v4360 = vpop.f32.mrf.mxu0
    %v4361 = vadd.f32 %v4316, %v4360
    %v4362 = vpop.f32.mrf.mxu0
    %v4363 = vpop.f32.mrf.mxu0
    %v4364 = vpop.f32.mrf.mxu0
    %4365 = vdwg.mxu0
    %s4366 = scalar_lea.vmem %s35, 64
    %v4367 = vld [vmem:[%s4366] sm:$0xff]
    %v4368 = vld [vmem:[%s4366 + $0x8] sm:$0xff]
    %v4369 = vld [vmem:[%s4366 + $0x10] sm:$0xff]
    %v4370 = vld [vmem:[%s4366 + $0x18] sm:$0xff]
    %v4371 = vpack.c.bf16 %v4368, %v4367
    %v4372 = vpack.c.bf16 %v4370, %v4369
    %s4373 = scalar_lea.vmem %s37, 2
    %v4374 = vld [vmem:[%s4373] sm:$0x1]
    %v4376 = vlaneseq
    %v4377 = vshrl.u32 %v4376, 7
    %v4378 = vsub.s32 0, %v4377
    %v4379 = vrot.slane %v4374, %v4378
    %4381 = vmatprep.subr.bf16.mxu0 0
    %4382 = vmatpush1.bf16.msra.mxu0 0
    %4383 = vmatprep.subr.bf16.mxu0 0
    %4384 = vmatpush1.bf16.msra.mxu0 0
    %4385 = vmatprep.subr.bf16.mxu0 0
    %4386 = vmatpush1.bf16.msra.mxu0 0
    %4387 = vmatprep.subr.bf16.mxu0 0
    %4388 = vmatpush1.bf16.msra.mxu0 0
    %4389 = vmatprep.subr.bf16.mxu0 0
    %4390 = vmatpush1.bf16.msra.mxu0 0
    %4391 = vmatprep.subr.bf16.mxu0 0
    %4392 = vmatpush1.bf16.msra.mxu0 0
    %4393 = vmatprep.subr.bf16.mxu0 0
    %4394 = vmatpush1.bf16.msra.mxu0 %v4372
    %4395 = vmatprep.subr.bf16.mxu0 0
    %4396 = vmatpush1.bf16.msra.mxu0 %v4371
    %4397 = vmatprep.subr.bf16.mxu0 0
    %4398 = vmatpush2.bf16.msra.mxu0 0
    %4399 = vmatprep.subr.bf16.mxu0 0
    %4400 = vmatpush2.bf16.msra.mxu0 0
    %4401 = vmatprep.subr.bf16.mxu0 0
    %4402 = vmatpush2.bf16.msra.mxu0 0
    %4403 = vmatprep.subr.bf16.mxu0 0
    %4404 = vmatpush2.bf16.msra.mxu0 0
    %4405 = vmatprep.subr.bf16.mxu0 0
    %4406 = vmatpush2.bf16.msra.mxu0 0
    %4407 = vmatprep.subr.bf16.mxu0 0
    %4408 = vmatpush2.bf16.msra.mxu0 0
    %4409 = vmatprep.subr.bf16.mxu0 0
    %4410 = vmatpush2.bf16.msra.mxu0 0
    %4411 = vmatprep.subr.bf16.mxu0 0
    %4412 = vmatpush2.bf16.msra.mxu0 0
    %4413 = vmatprep.mubr.bf16.mxu0 0
    %4414 = vmatmul.mubr.bf16.gmra.mxu0 %v4250
    %v4415 = vpop.f32.mrf.mxu0
    %v4416 = vadd.f32 %v4379, %v4415
    %v4417 = vpop.f32.mrf.mxu0
    %v4418 = vpop.f32.mrf.mxu0
    %v4419 = vadd.f32 %v4379, %v4418
    %v4420 = vpop.f32.mrf.mxu0
    %4421 = vmatprep.mubr.bf16.mxu0 0
    %4422 = vmatmul.mubr.bf16.gmra.mxu0 %v4253
    %v4423 = vpop.f32.mrf.mxu0
    %v4424 = vadd.f32 %v4379, %v4423
    %v4425 = vpop.f32.mrf.mxu0
    %v4426 = vpop.f32.mrf.mxu0
    %v4427 = vpop.f32.mrf.mxu0
    %4428 = vdwg.mxu0
    %4429 = vxpose.xlu0.b32.start [1/16] %v4353, 128
    %4430 = vxpose.xlu0.b32.cont [2/16] %v4356, 128
    %4431 = vxpose.xlu0.b32.cont [3/16] %v4361, 128
    %4432 = vxpose.xlu0.b32.cont [4/16] 0.0, 128
    %4433 = vxpose.xlu0.b32.cont [5/16] 0.0, 128
    %4434 = vxpose.xlu0.b32.cont [6/16] 0.0, 128
    %4435 = vxpose.xlu0.b32.cont [7/16] 0.0, 128
    %4436 = vxpose.xlu0.b32.cont [8/16] 0.0, 128
    %4437 = vxpose.xlu0.b32.cont [9/16] 0.0, 128
    %4438 = vxpose.xlu0.b32.cont [10/16] 0.0, 128
    %4439 = vxpose.xlu0.b32.cont [11/16] 0.0, 128
    %4440 = vxpose.xlu0.b32.cont [12/16] 0.0, 128
    %4441 = vxpose.xlu0.b32.cont [13/16] 0.0, 128
    %4442 = vxpose.xlu0.b32.cont [14/16] 0.0, 128
    %4443 = vxpose.xlu0.b32.cont [15/16] 0.0, 128
    %4444 = vxpose.xlu0.b32.end [16/16] 0.0, 128
    %v4445 = vpop.trf.xlu0
    %v4446 = vpop.trf.xlu0
    %v4447 = vpop.trf.xlu0
    %v4448 = vpop.trf.xlu0
    %v4449 = vpop.trf.xlu0
    %v4450 = vpop.trf.xlu0
    %v4451 = vpop.trf.xlu0
    %v4452 = vpop.trf.xlu0
    %v4453 = vpop.trf.xlu0
    %v4454 = vpop.trf.xlu0
    %v4455 = vpop.trf.xlu0
    %v4456 = vpop.trf.xlu0
    %v4457 = vpop.trf.xlu0
    %v4458 = vpop.trf.xlu0
    %v4459 = vpop.trf.xlu0
    %v4460 = vpop.trf.xlu0
    %v4461 = vpack.c.bf16 %v4293, %v4290
    %v4462 = vpack.c.bf16 %v4298, %v4298
    %v4463 = vpack.c.bf16 %v4446, %v4445
    %v4464 = vpack.c.bf16 %v4448, %v4447
    %v4466 = vsel %vm323, %v4461, 0
    %v4469 = vsel %vm323, %v4462, 0
    %4471 = vmatprep.subr.bf16.mxu0 0
    %4472 = vmatpush1.bf16.msra.mxu0 0
    %4473 = vmatprep.subr.bf16.mxu0 0
    %4474 = vmatpush1.bf16.msra.mxu0 0
    %4475 = vmatprep.subr.bf16.mxu0 0
    %4476 = vmatpush1.bf16.msra.mxu0 0
    %4477 = vmatprep.subr.bf16.mxu0 0
    %4478 = vmatpush1.bf16.msra.mxu0 0
    %4479 = vmatprep.subr.bf16.mxu0 0
    %4480 = vmatpush1.bf16.msra.mxu0 0
    %4481 = vmatprep.subr.bf16.mxu0 0
    %4482 = vmatpush1.bf16.msra.mxu0 0
    %4483 = vmatprep.subr.bf16.mxu0 0
    %4484 = vmatpush1.bf16.msra.mxu0 %v4464
    %4485 = vmatprep.subr.bf16.mxu0 0
    %4486 = vmatpush1.bf16.msra.mxu0 %v4463
    %4487 = vmatprep.subr.bf16.mxu0 0
    %4488 = vmatpush2.bf16.msra.mxu0 0
    %4489 = vmatprep.subr.bf16.mxu0 0
    %4490 = vmatpush2.bf16.msra.mxu0 0
    %4491 = vmatprep.subr.bf16.mxu0 0
    %4492 = vmatpush2.bf16.msra.mxu0 0
    %4493 = vmatprep.subr.bf16.mxu0 0
    %4494 = vmatpush2.bf16.msra.mxu0 0
    %4495 = vmatprep.subr.bf16.mxu0 0
    %4496 = vmatpush2.bf16.msra.mxu0 0
    %4497 = vmatprep.subr.bf16.mxu0 0
    %4498 = vmatpush2.bf16.msra.mxu0 0
    %4499 = vmatprep.subr.bf16.mxu0 0
    %4500 = vmatpush2.bf16.msra.mxu0 0
    %4501 = vmatprep.subr.bf16.mxu0 0
    %4502 = vmatpush2.bf16.msra.mxu0 0
    %4503 = vmatprep.mubr.bf16.mxu0 0
    %4504 = vmatmul.mubr.bf16.gmra.mxu0 %v4466
    %v4505 = vpop.f32.mrf.mxu0
    %v4506 = vadd.f32 0.0, %v4505
    %v4507 = vpop.f32.mrf.mxu0
    %v4508 = vpop.f32.mrf.mxu0
    %v4509 = vadd.f32 0.0, %v4508
    %v4510 = vpop.f32.mrf.mxu0
    %4511 = vmatprep.mubr.bf16.mxu0 0
    %4512 = vmatmul.mubr.bf16.gmra.mxu0 %v4469
    %v4513 = vpop.f32.mrf.mxu0
    %v4514 = vadd.f32 0.0, %v4513
    %v4515 = vpop.f32.mrf.mxu0
    %v4516 = vpop.f32.mrf.mxu0
    %v4517 = vpop.f32.mrf.mxu0
    %4518 = vdwg.mxu0
    %v4519 = vmul.f32 %v4506, 0.17677669
    %v4520 = vmul.f32 %v4509, 0.17677669
    %v4521 = vmul.f32 %v4514, 0.17677669
    %v4522 = vadd.f32 %v4519, %v4231
    %v4523 = vadd.f32 %v4520, %v4232
    %v4524 = vadd.f32 %v4521, %v4233
    %v4525 = vsel %vm3328, %v4522, -inf
    %4526 = vmax.xlane.f32.xlu0 %v4525
    %v4527 = vpop.xlane.xlu0 %4526
    %v4528 = vsel %vm3328, %v4523, -inf
    %4529 = vmax.xlane.f32.xlu0 %v4528
    %v4530 = vpop.xlane.xlu0 %4529
    %v4531 = vsel %vm3328, %v4524, -inf
    %4532 = vmax.xlane.f32.xlu0 %v4531
    %v4533 = vpop.xlane.xlu0 %4532
    %v4534 = vsub.f32 %v4522, %v4527
    %v4535 = vsub.f32 %v4523, %v4530
    %v4536 = vsub.f32 %v4524, %v4533
    %v4537 = vmin.f32 %v4534, 0.0
    %v4538 = vmin.f32 %v4535, 0.0
    %v4539 = vmin.f32 %v4536, 0.0
    %v4540 = vmul.f32 %v4537, 1.442695
    %v4541 = vpow.pop %v4540
    %v4542 = vmul.f32 %v4538, 1.442695
    %v4543 = vpow.pop %v4542
    %v4544 = vmul.f32 %v4539, 1.442695
    %v4545 = vpow.pop %v4544
    %v4546 = vsel %vm3328, %v4541, 0.0
    %4547 = vadd.xlane.f32.xlu0 %v4546
    %v4548 = vpop.xlane.xlu0 %4547
    %v4549 = vsel %vm3328, %v4543, 0.0
    %4550 = vadd.xlane.f32.xlu0 %v4549
    %v4551 = vpop.xlane.xlu0 %4550
    %v4552 = vsel %vm3328, %v4545, 0.0
    %4553 = vadd.xlane.f32.xlu0 %v4552
    %v4554 = vpop.xlane.xlu0 %4553
    %v4555 = vrcp.pop %v4548
    %v4556 = vmul.f32 %v4541, %v4555
    %v4557 = vrcp.pop %v4551
    %v4558 = vmul.f32 %v4543, %v4557
    %v4559 = vrcp.pop %v4554
    %v4560 = vmul.f32 %v4545, %v4559
    %v4561 = vpack.c.bf16 %v4558, %v4556
    %v4562 = vpack.c.bf16 %v4560, %v4560
    %v4563 = vpack.c.bf16 %v4419, %v4416
    %v4564 = vpack.c.bf16 %v4424, %v4424
    %v4566 = vsel %vm3328, %v4561, 0
    %v4569 = vsel %vm3328, %v4562, 0
    %v4572 = vsel %vm167, %v4564, 0
    %4574 = vmatprep.subr.bf16.mxu0 0
    %4575 = vmatpush1.bf16.msra.mxu0 0
    %4576 = vmatprep.subr.bf16.mxu0 0
    %4577 = vmatpush1.bf16.msra.mxu0 0
    %4578 = vmatprep.subr.bf16.mxu0 0
    %4579 = vmatpush1.bf16.msra.mxu0 0
    %4580 = vmatprep.subr.bf16.mxu0 0
    %4581 = vmatpush1.bf16.msra.mxu0 0
    %4582 = vmatprep.subr.bf16.mxu0 0
    %4583 = vmatpush1.bf16.msra.mxu0 0
    %4584 = vmatprep.subr.bf16.mxu0 0
    %4585 = vmatpush1.bf16.msra.mxu0 0
    %4586 = vmatprep.subr.bf16.mxu0 0
    %4587 = vmatpush1.bf16.msra.mxu0 %v4572
    %4588 = vmatprep.subr.bf16.mxu0 0
    %4589 = vmatpush1.bf16.msra.mxu0 %v4563
    %4590 = vmatprep.subr.bf16.mxu0 0
    %4591 = vmatpush2.bf16.msra.mxu0 0
    %4592 = vmatprep.subr.bf16.mxu0 0
    %4593 = vmatpush2.bf16.msra.mxu0 0
    %4594 = vmatprep.subr.bf16.mxu0 0
    %4595 = vmatpush2.bf16.msra.mxu0 0
    %4596 = vmatprep.subr.bf16.mxu0 0
    %4597 = vmatpush2.bf16.msra.mxu0 0
    %4598 = vmatprep.subr.bf16.mxu0 0
    %4599 = vmatpush2.bf16.msra.mxu0 0
    %4600 = vmatprep.subr.bf16.mxu0 0
    %4601 = vmatpush2.bf16.msra.mxu0 0
    %4602 = vmatprep.subr.bf16.mxu0 0
    %4603 = vmatpush2.bf16.msra.mxu0 0
    %4604 = vmatprep.subr.bf16.mxu0 0
    %4605 = vmatpush2.bf16.msra.mxu0 0
    %4606 = vmatprep.mubr.bf16.mxu0 0
    %4607 = vmatmul.mubr.bf16.gmra.mxu0 %v4566
    %v4608 = vpop.f32.mrf.mxu0
    %v4609 = vadd.f32 0.0, %v4608
    %v4610 = vpop.f32.mrf.mxu0
    %v4611 = vpop.f32.mrf.mxu0
    %v4612 = vadd.f32 0.0, %v4611
    %v4613 = vpop.f32.mrf.mxu0
    %4614 = vmatprep.mubr.bf16.mxu0 0
    %4615 = vmatmul.mubr.bf16.gmra.mxu0 %v4569
    %v4616 = vpop.f32.mrf.mxu0
    %v4617 = vadd.f32 0.0, %v4616
    %v4618 = vpop.f32.mrf.mxu0
    %v4619 = vpop.f32.mrf.mxu0
    %v4620 = vpop.f32.mrf.mxu0
    %4621 = vdwg.mxu0
    %s4622 = scalar_lea.vmem %s35, 96
    %v4623 = vld [vmem:[%s4622] sm:$0xff]
    %v4624 = vld [vmem:[%s4622 + $0x8] sm:$0xff]
    %v4625 = vld [vmem:[%s4622 + $0x10] sm:$0xff]
    %v4626 = vld [vmem:[%s4622 + $0x18] sm:$0xff]
    %v4627 = vpack.c.bf16 %v4612, %v4609
    %v4628 = vpack.c.bf16 %v4617, %v4617
    %v4629 = vpack.c.bf16 %v4624, %v4623
    %v4630 = vpack.c.bf16 %v4626, %v4625
    %v4632 = vsel %vm323, %v4627, 0
    %v4635 = vsel %vm323, %v4628, 0
    %4637 = vmatprep.subr.bf16.mxu0 0
    %4638 = vmatpush1.bf16.msra.mxu0 0
    %4639 = vmatprep.subr.bf16.mxu0 0
    %4640 = vmatpush1.bf16.msra.mxu0 0
    %4641 = vmatprep.subr.bf16.mxu0 0
    %4642 = vmatpush1.bf16.msra.mxu0 0
    %4643 = vmatprep.subr.bf16.mxu0 0
    %4644 = vmatpush1.bf16.msra.mxu0 0
    %4645 = vmatprep.subr.bf16.mxu0 0
    %4646 = vmatpush1.bf16.msra.mxu0 0
    %4647 = vmatprep.subr.bf16.mxu0 0
    %4648 = vmatpush1.bf16.msra.mxu0 0
    %4649 = vmatprep.subr.bf16.mxu0 0
    %4650 = vmatpush1.bf16.msra.mxu0 %v4630
    %4651 = vmatprep.subr.bf16.mxu0 0
    %4652 = vmatpush1.bf16.msra.mxu0 %v4629
    %4653 = vmatprep.subr.bf16.mxu0 0
    %4654 = vmatpush2.bf16.msra.mxu0 0
    %4655 = vmatprep.subr.bf16.mxu0 0
    %4656 = vmatpush2.bf16.msra.mxu0 0
    %4657 = vmatprep.subr.bf16.mxu0 0
    %4658 = vmatpush2.bf16.msra.mxu0 0
    %4659 = vmatprep.subr.bf16.mxu0 0
    %4660 = vmatpush2.bf16.msra.mxu0 0
    %4661 = vmatprep.subr.bf16.mxu0 0
    %4662 = vmatpush2.bf16.msra.mxu0 0
    %4663 = vmatprep.subr.bf16.mxu0 0
    %4664 = vmatpush2.bf16.msra.mxu0 0
    %4665 = vmatprep.subr.bf16.mxu0 0
    %4666 = vmatpush2.bf16.msra.mxu0 0
    %4667 = vmatprep.subr.bf16.mxu0 0
    %4668 = vmatpush2.bf16.msra.mxu0 0
    %4669 = vmatprep.mubr.bf16.mxu0 0
    %4670 = vmatmul.mubr.bf16.gmra.mxu0 %v4632
    %v4671 = vpop.f32.mrf.mxu0
    %v4672 = vadd.f32 0.0, %v4671
    %v4673 = vpop.f32.mrf.mxu0
    %v4674 = vpop.f32.mrf.mxu0
    %v4675 = vadd.f32 0.0, %v4674
    %v4676 = vpop.f32.mrf.mxu0
    %4677 = vmatprep.mubr.bf16.mxu0 0
    %4678 = vmatmul.mubr.bf16.gmra.mxu0 %v4635
    %v4679 = vpop.f32.mrf.mxu0
    %v4680 = vadd.f32 0.0, %v4679
    %v4681 = vpop.f32.mrf.mxu0
    %v4682 = vpop.f32.mrf.mxu0
    %v4683 = vpop.f32.mrf.mxu0
    %4684 = vdwg.mxu0
    %v4685 = vadd.f32 %v4228, %v4672
    %v4686 = vadd.f32 %v4229, %v4675
    %v4687 = vadd.f32 %v4230, %v4680
    %s4688 = scalar_lea.vmem %s37, 3
    %v4689 = vld [vmem:[%s4688] sm:$0x1]
    %v4691 = vlaneseq
    %v4692 = vshrl.u32 %v4691, 7
    %v4693 = vsub.s32 0, %v4692
    %v4694 = vrot.slane %v4689, %v4693
    %v4696 = vadd.f32 %v4685, %v4694
    %v4697 = vadd.f32 %v4686, %v4694
    %v4698 = vadd.f32 %v4687, %v4694
    %s4699 = scalar_lea.vmem %s35, 128
    %v4700 = vld [vmem:[%s4699] sm:$0xff]
    %v4701 = vld [vmem:[%s4699 + $0x8] sm:$0xff]
    %v4702 = vld [vmem:[%s4699 + $0x10] sm:$0xff]
    %v4703 = vld [vmem:[%s4699 + $0x18] sm:$0xff]
    %v4704 = vpack.c.bf16 %v4697, %v4696
    %v4705 = vpack.c.bf16 %v4698, %v4698
    %v4706 = vpack.c.bf16 %v4701, %v4700
    %v4707 = vpack.c.bf16 %v4703, %v4702
    %s4708 = scalar_lea.vmem %s37, 4
    %v4709 = vld [vmem:[%s4708] sm:$0x1]
    %v4711 = vlaneseq
    %v4712 = vshrl.u32 %v4711, 7
    %v4713 = vsub.s32 0, %v4712
    %v4714 = vrot.slane %v4709, %v4713
    %v4717 = vsel %vm323, %v4704, 0
    %v4720 = vsel %vm323, %v4705, 0
    %4722 = vmatprep.subr.bf16.mxu0 0
    %4723 = vmatpush1.bf16.msra.mxu0 0
    %4724 = vmatprep.subr.bf16.mxu0 0
    %4725 = vmatpush1.bf16.msra.mxu0 0
    %4726 = vmatprep.subr.bf16.mxu0 0
    %4727 = vmatpush1.bf16.msra.mxu0 0
    %4728 = vmatprep.subr.bf16.mxu0 0
    %4729 = vmatpush1.bf16.msra.mxu0 0
    %4730 = vmatprep.subr.bf16.mxu0 0
    %4731 = vmatpush1.bf16.msra.mxu0 0
    %4732 = vmatprep.subr.bf16.mxu0 0
    %4733 = vmatpush1.bf16.msra.mxu0 0
    %4734 = vmatprep.subr.bf16.mxu0 0
    %4735 = vmatpush1.bf16.msra.mxu0 %v4707
    %4736 = vmatprep.subr.bf16.mxu0 0
    %4737 = vmatpush1.bf16.msra.mxu0 %v4706
    %4738 = vmatprep.subr.bf16.mxu0 0
    %4739 = vmatpush2.bf16.msra.mxu0 0
    %4740 = vmatprep.subr.bf16.mxu0 0
    %4741 = vmatpush2.bf16.msra.mxu0 0
    %4742 = vmatprep.subr.bf16.mxu0 0
    %4743 = vmatpush2.bf16.msra.mxu0 0
    %4744 = vmatprep.subr.bf16.mxu0 0
    %4745 = vmatpush2.bf16.msra.mxu0 0
    %4746 = vmatprep.subr.bf16.mxu0 0
    %4747 = vmatpush2.bf16.msra.mxu0 0
    %4748 = vmatprep.subr.bf16.mxu0 0
    %4749 = vmatpush2.bf16.msra.mxu0 0
    %4750 = vmatprep.subr.bf16.mxu0 0
    %4751 = vmatpush2.bf16.msra.mxu0 0
    %4752 = vmatprep.subr.bf16.mxu0 0
    %4753 = vmatpush2.bf16.msra.mxu0 0
    %4754 = vmatprep.mubr.bf16.mxu0 0
    %4755 = vmatmul.mubr.bf16.gmra.mxu0 %v4717
    %v4756 = vpop.f32.mrf.mxu0
    %v4757 = vadd.f32 %v4714, %v4756
    %v4758 = vpop.f32.mrf.mxu0
    %v4759 = vpop.f32.mrf.mxu0
    %v4760 = vadd.f32 %v4714, %v4759
    %v4761 = vpop.f32.mrf.mxu0
    %4762 = vmatprep.mubr.bf16.mxu0 0
    %4763 = vmatmul.mubr.bf16.gmra.mxu0 %v4720
    %v4764 = vpop.f32.mrf.mxu0
    %v4765 = vadd.f32 %v4714, %v4764
    %v4766 = vpop.f32.mrf.mxu0
    %v4767 = vpop.f32.mrf.mxu0
    %v4768 = vpop.f32.mrf.mxu0
    %4769 = vdwg.mxu0
    %s4770 = scalar_lea.vmem %s35, 160
    %v4771 = vld [vmem:[%s4770] sm:$0xff]
    %v4772 = vld [vmem:[%s4770 + $0x8] sm:$0xff]
    %v4773 = vld [vmem:[%s4770 + $0x10] sm:$0xff]
    %v4774 = vld [vmem:[%s4770 + $0x18] sm:$0xff]
    %v4775 = vpack.c.bf16 %v4772, %v4771
    %v4776 = vpack.c.bf16 %v4774, %v4773
    %s4777 = scalar_lea.vmem %s37, 5
    %v4778 = vld [vmem:[%s4777] sm:$0x1]
    %v4780 = vlaneseq
    %v4781 = vshrl.u32 %v4780, 7
    %v4782 = vsub.s32 0, %v4781
    %v4783 = vrot.slane %v4778, %v4782
    %4785 = vmatprep.subr.bf16.mxu0 0
    %4786 = vmatpush1.bf16.msra.mxu0 0
    %4787 = vmatprep.subr.bf16.mxu0 0
    %4788 = vmatpush1.bf16.msra.mxu0 0
    %4789 = vmatprep.subr.bf16.mxu0 0
    %4790 = vmatpush1.bf16.msra.mxu0 0
    %4791 = vmatprep.subr.bf16.mxu0 0
    %4792 = vmatpush1.bf16.msra.mxu0 0
    %4793 = vmatprep.subr.bf16.mxu0 0
    %4794 = vmatpush1.bf16.msra.mxu0 0
    %4795 = vmatprep.subr.bf16.mxu0 0
    %4796 = vmatpush1.bf16.msra.mxu0 0
    %4797 = vmatprep.subr.bf16.mxu0 0
    %4798 = vmatpush1.bf16.msra.mxu0 %v4776
    %4799 = vmatprep.subr.bf16.mxu0 0
    %4800 = vmatpush1.bf16.msra.mxu0 %v4775
    %4801 = vmatprep.subr.bf16.mxu0 0
    %4802 = vmatpush2.bf16.msra.mxu0 0
    %4803 = vmatprep.subr.bf16.mxu0 0
    %4804 = vmatpush2.bf16.msra.mxu0 0
    %4805 = vmatprep.subr.bf16.mxu0 0
    %4806 = vmatpush2.bf16.msra.mxu0 0
    %4807 = vmatprep.subr.bf16.mxu0 0
    %4808 = vmatpush2.bf16.msra.mxu0 0
    %4809 = vmatprep.subr.bf16.mxu0 0
    %4810 = vmatpush2.bf16.msra.mxu0 0
    %4811 = vmatprep.subr.bf16.mxu0 0
    %4812 = vmatpush2.bf16.msra.mxu0 0
    %4813 = vmatprep.subr.bf16.mxu0 0
    %4814 = vmatpush2.bf16.msra.mxu0 0
    %4815 = vmatprep.subr.bf16.mxu0 0
    %4816 = vmatpush2.bf16.msra.mxu0 0
    %4817 = vmatprep.mubr.bf16.mxu0 0
    %4818 = vmatmul.mubr.bf16.gmra.mxu0 %v4717
    %v4819 = vpop.f32.mrf.mxu0
    %v4820 = vadd.f32 %v4783, %v4819
    %v4821 = vpop.f32.mrf.mxu0
    %v4822 = vpop.f32.mrf.mxu0
    %v4823 = vadd.f32 %v4783, %v4822
    %v4824 = vpop.f32.mrf.mxu0
    %4825 = vmatprep.mubr.bf16.mxu0 0
    %4826 = vmatmul.mubr.bf16.gmra.mxu0 %v4720
    %v4827 = vpop.f32.mrf.mxu0
    %v4828 = vadd.f32 %v4783, %v4827
    %v4829 = vpop.f32.mrf.mxu0
    %v4830 = vpop.f32.mrf.mxu0
    %v4831 = vpop.f32.mrf.mxu0
    %4832 = vdwg.mxu0
    %s4833 = scalar_lea.vmem %s35, 192
    %v4834 = vld [vmem:[%s4833] sm:$0xff]
    %v4835 = vld [vmem:[%s4833 + $0x8] sm:$0xff]
    %v4836 = vld [vmem:[%s4833 + $0x10] sm:$0xff]
    %v4837 = vld [vmem:[%s4833 + $0x18] sm:$0xff]
    %v4838 = vpack.c.bf16 %v4835, %v4834
    %v4839 = vpack.c.bf16 %v4837, %v4836
    %s4840 = scalar_lea.vmem %s37, 6
    %v4841 = vld [vmem:[%s4840] sm:$0x1]
    %v4843 = vlaneseq
    %v4844 = vshrl.u32 %v4843, 7
    %v4845 = vsub.s32 0, %v4844
    %v4846 = vrot.slane %v4841, %v4845
    %4848 = vmatprep.subr.bf16.mxu0 0
    %4849 = vmatpush1.bf16.msra.mxu0 0
    %4850 = vmatprep.subr.bf16.mxu0 0
    %4851 = vmatpush1.bf16.msra.mxu0 0
    %4852 = vmatprep.subr.bf16.mxu0 0
    %4853 = vmatpush1.bf16.msra.mxu0 0
    %4854 = vmatprep.subr.bf16.mxu0 0
    %4855 = vmatpush1.bf16.msra.mxu0 0
    %4856 = vmatprep.subr.bf16.mxu0 0
    %4857 = vmatpush1.bf16.msra.mxu0 0
    %4858 = vmatprep.subr.bf16.mxu0 0
    %4859 = vmatpush1.bf16.msra.mxu0 0
    %4860 = vmatprep.subr.bf16.mxu0 0
    %4861 = vmatpush1.bf16.msra.mxu0 %v4839
    %4862 = vmatprep.subr.bf16.mxu0 0
    %4863 = vmatpush1.bf16.msra.mxu0 %v4838
    %4864 = vmatprep.subr.bf16.mxu0 0
    %4865 = vmatpush2.bf16.msra.mxu0 0
    %4866 = vmatprep.subr.bf16.mxu0 0
    %4867 = vmatpush2.bf16.msra.mxu0 0
    %4868 = vmatprep.subr.bf16.mxu0 0
    %4869 = vmatpush2.bf16.msra.mxu0 0
    %4870 = vmatprep.subr.bf16.mxu0 0
    %4871 = vmatpush2.bf16.msra.mxu0 0
    %4872 = vmatprep.subr.bf16.mxu0 0
    %4873 = vmatpush2.bf16.msra.mxu0 0
    %4874 = vmatprep.subr.bf16.mxu0 0
    %4875 = vmatpush2.bf16.msra.mxu0 0
    %4876 = vmatprep.subr.bf16.mxu0 0
    %4877 = vmatpush2.bf16.msra.mxu0 0
    %4878 = vmatprep.subr.bf16.mxu0 0
    %4879 = vmatpush2.bf16.msra.mxu0 0
    %4880 = vmatprep.mubr.bf16.mxu0 0
    %4881 = vmatmul.mubr.bf16.gmra.mxu0 %v4717
    %v4882 = vpop.f32.mrf.mxu0
    %v4883 = vadd.f32 %v4846, %v4882
    %v4884 = vpop.f32.mrf.mxu0
    %v4885 = vpop.f32.mrf.mxu0
    %v4886 = vadd.f32 %v4846, %v4885
    %v4887 = vpop.f32.mrf.mxu0
    %4888 = vmatprep.mubr.bf16.mxu0 0
    %4889 = vmatmul.mubr.bf16.gmra.mxu0 %v4720
    %v4890 = vpop.f32.mrf.mxu0
    %v4891 = vadd.f32 %v4846, %v4890
    %v4892 = vpop.f32.mrf.mxu0
    %v4893 = vpop.f32.mrf.mxu0
    %v4894 = vpop.f32.mrf.mxu0
    %4895 = vdwg.mxu0
    %4896 = vxpose.xlu0.b32.start [1/16] %v4820, 128
    %4897 = vxpose.xlu0.b32.cont [2/16] %v4823, 128
    %4898 = vxpose.xlu0.b32.cont [3/16] %v4828, 128
    %4899 = vxpose.xlu0.b32.cont [4/16] 0.0, 128
    %4900 = vxpose.xlu0.b32.cont [5/16] 0.0, 128
    %4901 = vxpose.xlu0.b32.cont [6/16] 0.0, 128
    %4902 = vxpose.xlu0.b32.cont [7/16] 0.0, 128
    %4903 = vxpose.xlu0.b32.cont [8/16] 0.0, 128
    %4904 = vxpose.xlu0.b32.cont [9/16] 0.0, 128
    %4905 = vxpose.xlu0.b32.cont [10/16] 0.0, 128
    %4906 = vxpose.xlu0.b32.cont [11/16] 0.0, 128
    %4907 = vxpose.xlu0.b32.cont [12/16] 0.0, 128
    %4908 = vxpose.xlu0.b32.cont [13/16] 0.0, 128
    %4909 = vxpose.xlu0.b32.cont [14/16] 0.0, 128
    %4910 = vxpose.xlu0.b32.cont [15/16] 0.0, 128
    %4911 = vxpose.xlu0.b32.end [16/16] 0.0, 128
    %v4912 = vpop.trf.xlu0
    %v4913 = vpop.trf.xlu0
    %v4914 = vpop.trf.xlu0
    %v4915 = vpop.trf.xlu0
    %v4916 = vpop.trf.xlu0
    %v4917 = vpop.trf.xlu0
    %v4918 = vpop.trf.xlu0
    %v4919 = vpop.trf.xlu0
    %v4920 = vpop.trf.xlu0
    %v4921 = vpop.trf.xlu0
    %v4922 = vpop.trf.xlu0
    %v4923 = vpop.trf.xlu0
    %v4924 = vpop.trf.xlu0
    %v4925 = vpop.trf.xlu0
    %v4926 = vpop.trf.xlu0
    %v4927 = vpop.trf.xlu0
    %v4928 = vpack.c.bf16 %v4760, %v4757
    %v4929 = vpack.c.bf16 %v4765, %v4765
    %v4930 = vpack.c.bf16 %v4913, %v4912
    %v4931 = vpack.c.bf16 %v4915, %v4914
    %v4933 = vsel %vm323, %v4928, 0
    %v4936 = vsel %vm323, %v4929, 0
    %4938 = vmatprep.subr.bf16.mxu0 0
    %4939 = vmatpush1.bf16.msra.mxu0 0
    %4940 = vmatprep.subr.bf16.mxu0 0
    %4941 = vmatpush1.bf16.msra.mxu0 0
    %4942 = vmatprep.subr.bf16.mxu0 0
    %4943 = vmatpush1.bf16.msra.mxu0 0
    %4944 = vmatprep.subr.bf16.mxu0 0
    %4945 = vmatpush1.bf16.msra.mxu0 0
    %4946 = vmatprep.subr.bf16.mxu0 0
    %4947 = vmatpush1.bf16.msra.mxu0 0
    %4948 = vmatprep.subr.bf16.mxu0 0
    %4949 = vmatpush1.bf16.msra.mxu0 0
    %4950 = vmatprep.subr.bf16.mxu0 0
    %4951 = vmatpush1.bf16.msra.mxu0 %v4931
    %4952 = vmatprep.subr.bf16.mxu0 0
    %4953 = vmatpush1.bf16.msra.mxu0 %v4930
    %4954 = vmatprep.subr.bf16.mxu0 0
    %4955 = vmatpush2.bf16.msra.mxu0 0
    %4956 = vmatprep.subr.bf16.mxu0 0
    %4957 = vmatpush2.bf16.msra.mxu0 0
    %4958 = vmatprep.subr.bf16.mxu0 0
    %4959 = vmatpush2.bf16.msra.mxu0 0
    %4960 = vmatprep.subr.bf16.mxu0 0
    %4961 = vmatpush2.bf16.msra.mxu0 0
    %4962 = vmatprep.subr.bf16.mxu0 0
    %4963 = vmatpush2.bf16.msra.mxu0 0
    %4964 = vmatprep.subr.bf16.mxu0 0
    %4965 = vmatpush2.bf16.msra.mxu0 0
    %4966 = vmatprep.subr.bf16.mxu0 0
    %4967 = vmatpush2.bf16.msra.mxu0 0
    %4968 = vmatprep.subr.bf16.mxu0 0
    %4969 = vmatpush2.bf16.msra.mxu0 0
    %4970 = vmatprep.mubr.bf16.mxu0 0
    %4971 = vmatmul.mubr.bf16.gmra.mxu0 %v4933
    %v4972 = vpop.f32.mrf.mxu0
    %v4973 = vadd.f32 0.0, %v4972
    %v4974 = vpop.f32.mrf.mxu0
    %v4975 = vpop.f32.mrf.mxu0
    %v4976 = vadd.f32 0.0, %v4975
    %v4977 = vpop.f32.mrf.mxu0
    %4978 = vmatprep.mubr.bf16.mxu0 0
    %4979 = vmatmul.mubr.bf16.gmra.mxu0 %v4936
    %v4980 = vpop.f32.mrf.mxu0
    %v4981 = vadd.f32 0.0, %v4980
    %v4982 = vpop.f32.mrf.mxu0
    %v4983 = vpop.f32.mrf.mxu0
    %v4984 = vpop.f32.mrf.mxu0
    %4985 = vdwg.mxu0
    %v4986 = vmul.f32 %v4973, 0.17677669
    %v4987 = vmul.f32 %v4976, 0.17677669
    %v4988 = vmul.f32 %v4981, 0.17677669
    %v4989 = vadd.f32 %v4986, %v4231
    %v4990 = vadd.f32 %v4987, %v4232
    %v4991 = vadd.f32 %v4988, %v4233
    %v4992 = vsel %vm3328, %v4989, -inf
    %4993 = vmax.xlane.f32.xlu0 %v4992
    %v4994 = vpop.xlane.xlu0 %4993
    %v4995 = vsel %vm3328, %v4990, -inf
    %4996 = vmax.xlane.f32.xlu0 %v4995
    %v4997 = vpop.xlane.xlu0 %4996
    %v4998 = vsel %vm3328, %v4991, -inf
    %4999 = vmax.xlane.f32.xlu0 %v4998
    %v5000 = vpop.xlane.xlu0 %4999
    %v5001 = vsub.f32 %v4989, %v4994
    %v5002 = vsub.f32 %v4990, %v4997
    %v5003 = vsub.f32 %v4991, %v5000
    %v5004 = vmin.f32 %v5001, 0.0
    %v5005 = vmin.f32 %v5002, 0.0
    %v5006 = vmin.f32 %v5003, 0.0
    %v5007 = vmul.f32 %v5004, 1.442695
    %v5008 = vpow.pop %v5007
    %v5009 = vmul.f32 %v5005, 1.442695
    %v5010 = vpow.pop %v5009
    %v5011 = vmul.f32 %v5006, 1.442695
    %v5012 = vpow.pop %v5011
    %v5013 = vsel %vm3328, %v5008, 0.0
    %5014 = vadd.xlane.f32.xlu0 %v5013
    %v5015 = vpop.xlane.xlu0 %5014
    %v5016 = vsel %vm3328, %v5010, 0.0
    %5017 = vadd.xlane.f32.xlu0 %v5016
    %v5018 = vpop.xlane.xlu0 %5017
    %v5019 = vsel %vm3328, %v5012, 0.0
    %5020 = vadd.xlane.f32.xlu0 %v5019
    %v5021 = vpop.xlane.xlu0 %5020
    %v5022 = vrcp.pop %v5015
    %v5023 = vmul.f32 %v5008, %v5022
    %v5024 = vrcp.pop %v5018
    %v5025 = vmul.f32 %v5010, %v5024
    %v5026 = vrcp.pop %v5021
    %v5027 = vmul.f32 %v5012, %v5026
    %v5028 = vpack.c.bf16 %v5025, %v5023
    %v5029 = vpack.c.bf16 %v5027, %v5027
    %v5030 = vpack.c.bf16 %v4886, %v4883
    %v5031 = vpack.c.bf16 %v4891, %v4891
    %v5033 = vsel %vm3328, %v5028, 0
    %v5036 = vsel %vm3328, %v5029, 0
    %v5039 = vsel %vm167, %v5031, 0
    %5041 = vmatprep.subr.bf16.mxu0 0
    %5042 = vmatpush1.bf16.msra.mxu0 0
    %5043 = vmatprep.subr.bf16.mxu0 0
    %5044 = vmatpush1.bf16.msra.mxu0 0
    %5045 = vmatprep.subr.bf16.mxu0 0
    %5046 = vmatpush1.bf16.msra.mxu0 0
    %5047 = vmatprep.subr.bf16.mxu0 0
    %5048 = vmatpush1.bf16.msra.mxu0 0
    %5049 = vmatprep.subr.bf16.mxu0 0
    %5050 = vmatpush1.bf16.msra.mxu0 0
    %5051 = vmatprep.subr.bf16.mxu0 0
    %5052 = vmatpush1.bf16.msra.mxu0 0
    %5053 = vmatprep.subr.bf16.mxu0 0
    %5054 = vmatpush1.bf16.msra.mxu0 %v5039
    %5055 = vmatprep.subr.bf16.mxu0 0
    %5056 = vmatpush1.bf16.msra.mxu0 %v5030
    %5057 = vmatprep.subr.bf16.mxu0 0
    %5058 = vmatpush2.bf16.msra.mxu0 0
    %5059 = vmatprep.subr.bf16.mxu0 0
    %5060 = vmatpush2.bf16.msra.mxu0 0
    %5061 = vmatprep.subr.bf16.mxu0 0
    %5062 = vmatpush2.bf16.msra.mxu0 0
    %5063 = vmatprep.subr.bf16.mxu0 0
    %5064 = vmatpush2.bf16.msra.mxu0 0
    %5065 = vmatprep.subr.bf16.mxu0 0
    %5066 = vmatpush2.bf16.msra.mxu0 0
    %5067 = vmatprep.subr.bf16.mxu0 0
    %5068 = vmatpush2.bf16.msra.mxu0 0
    %5069 = vmatprep.subr.bf16.mxu0 0
    %5070 = vmatpush2.bf16.msra.mxu0 0
    %5071 = vmatprep.subr.bf16.mxu0 0
    %5072 = vmatpush2.bf16.msra.mxu0 0
    %5073 = vmatprep.mubr.bf16.mxu0 0
    %5074 = vmatmul.mubr.bf16.gmra.mxu0 %v5033
    %v5075 = vpop.f32.mrf.mxu0
    %v5076 = vadd.f32 0.0, %v5075
    %v5077 = vpop.f32.mrf.mxu0
    %v5078 = vpop.f32.mrf.mxu0
    %v5079 = vadd.f32 0.0, %v5078
    %v5080 = vpop.f32.mrf.mxu0
    %5081 = vmatprep.mubr.bf16.mxu0 0
    %5082 = vmatmul.mubr.bf16.gmra.mxu0 %v5036
    %v5083 = vpop.f32.mrf.mxu0
    %v5084 = vadd.f32 0.0, %v5083
    %v5085 = vpop.f32.mrf.mxu0
    %v5086 = vpop.f32.mrf.mxu0
    %v5087 = vpop.f32.mrf.mxu0
    %5088 = vdwg.mxu0
    %s5089 = scalar_lea.vmem %s35, 224
    %v5090 = vld [vmem:[%s5089] sm:$0xff]
    %v5091 = vld [vmem:[%s5089 + $0x8] sm:$0xff]
    %v5092 = vld [vmem:[%s5089 + $0x10] sm:$0xff]
    %v5093 = vld [vmem:[%s5089 + $0x18] sm:$0xff]
    %v5094 = vpack.c.bf16 %v5079, %v5076
    %v5095 = vpack.c.bf16 %v5084, %v5084
    %v5096 = vpack.c.bf16 %v5091, %v5090
    %v5097 = vpack.c.bf16 %v5093, %v5092
    %v5099 = vsel %vm323, %v5094, 0
    %v5102 = vsel %vm323, %v5095, 0
    %5104 = vmatprep.subr.bf16.mxu0 0
    %5105 = vmatpush1.bf16.msra.mxu0 0
    %5106 = vmatprep.subr.bf16.mxu0 0
    %5107 = vmatpush1.bf16.msra.mxu0 0
    %5108 = vmatprep.subr.bf16.mxu0 0
    %5109 = vmatpush1.bf16.msra.mxu0 0
    %5110 = vmatprep.subr.bf16.mxu0 0
    %5111 = vmatpush1.bf16.msra.mxu0 0
    %5112 = vmatprep.subr.bf16.mxu0 0
    %5113 = vmatpush1.bf16.msra.mxu0 0
    %5114 = vmatprep.subr.bf16.mxu0 0
    %5115 = vmatpush1.bf16.msra.mxu0 0
    %5116 = vmatprep.subr.bf16.mxu0 0
    %5117 = vmatpush1.bf16.msra.mxu0 %v5097
    %5118 = vmatprep.subr.bf16.mxu0 0
    %5119 = vmatpush1.bf16.msra.mxu0 %v5096
    %5120 = vmatprep.subr.bf16.mxu0 0
    %5121 = vmatpush2.bf16.msra.mxu0 0
    %5122 = vmatprep.subr.bf16.mxu0 0
    %5123 = vmatpush2.bf16.msra.mxu0 0
    %5124 = vmatprep.subr.bf16.mxu0 0
    %5125 = vmatpush2.bf16.msra.mxu0 0
    %5126 = vmatprep.subr.bf16.mxu0 0
    %5127 = vmatpush2.bf16.msra.mxu0 0
    %5128 = vmatprep.subr.bf16.mxu0 0
    %5129 = vmatpush2.bf16.msra.mxu0 0
    %5130 = vmatprep.subr.bf16.mxu0 0
    %5131 = vmatpush2.bf16.msra.mxu0 0
    %5132 = vmatprep.subr.bf16.mxu0 0
    %5133 = vmatpush2.bf16.msra.mxu0 0
    %5134 = vmatprep.subr.bf16.mxu0 0
    %5135 = vmatpush2.bf16.msra.mxu0 0
    %5136 = vmatprep.mubr.bf16.mxu0 0
    %5137 = vmatmul.mubr.bf16.gmra.mxu0 %v5099
    %v5138 = vpop.f32.mrf.mxu0
    %v5139 = vadd.f32 0.0, %v5138
    %v5140 = vpop.f32.mrf.mxu0
    %v5141 = vpop.f32.mrf.mxu0
    %v5142 = vadd.f32 0.0, %v5141
    %v5143 = vpop.f32.mrf.mxu0
    %5144 = vmatprep.mubr.bf16.mxu0 0
    %5145 = vmatmul.mubr.bf16.gmra.mxu0 %v5102
    %v5146 = vpop.f32.mrf.mxu0
    %v5147 = vadd.f32 0.0, %v5146
    %v5148 = vpop.f32.mrf.mxu0
    %v5149 = vpop.f32.mrf.mxu0
    %v5150 = vpop.f32.mrf.mxu0
    %5151 = vdwg.mxu0
    %v5152 = vadd.f32 %v4696, %v5139
    %v5153 = vadd.f32 %v4697, %v5142
    %v5154 = vadd.f32 %v4698, %v5147
    %s5155 = scalar_lea.vmem %s37, 7
    %v5156 = vld [vmem:[%s5155] sm:$0x1]
    %v5158 = vlaneseq
    %v5159 = vshrl.u32 %v5158, 7
    %v5160 = vsub.s32 0, %v5159
    %v5161 = vrot.slane %v5156, %v5160
    %v5163 = vadd.f32 %v5152, %v5161
    %v5164 = vadd.f32 %v5153, %v5161
    %v5165 = vadd.f32 %v5154, %v5161
    %s5166 = scalar_lea.vmem %s35, 256
    %v5167 = vld [vmem:[%s5166] sm:$0xff]
    %v5168 = vld [vmem:[%s5166 + $0x8] sm:$0xff]
    %v5169 = vld [vmem:[%s5166 + $0x10] sm:$0xff]
    %v5170 = vld [vmem:[%s5166 + $0x18] sm:$0xff]
    %v5171 = vpack.c.bf16 %v5164, %v5163
    %v5172 = vpack.c.bf16 %v5165, %v5165
    %v5173 = vpack.c.bf16 %v5168, %v5167
    %v5174 = vpack.c.bf16 %v5170, %v5169
    %s5175 = scalar_lea.vmem %s37, 8
    %v5176 = vld [vmem:[%s5175] sm:$0x1]
    %v5178 = vlaneseq
    %v5179 = vshrl.u32 %v5178, 7
    %v5180 = vsub.s32 0, %v5179
    %v5181 = vrot.slane %v5176, %v5180
    %v5184 = vsel %vm323, %v5171, 0
    %v5187 = vsel %vm323, %v5172, 0
    %5189 = vmatprep.subr.bf16.mxu0 0
    %5190 = vmatpush1.bf16.msra.mxu0 0
    %5191 = vmatprep.subr.bf16.mxu0 0
    %5192 = vmatpush1.bf16.msra.mxu0 0
    %5193 = vmatprep.subr.bf16.mxu0 0
    %5194 = vmatpush1.bf16.msra.mxu0 0
    %5195 = vmatprep.subr.bf16.mxu0 0
    %5196 = vmatpush1.bf16.msra.mxu0 0
    %5197 = vmatprep.subr.bf16.mxu0 0
    %5198 = vmatpush1.bf16.msra.mxu0 0
    %5199 = vmatprep.subr.bf16.mxu0 0
    %5200 = vmatpush1.bf16.msra.mxu0 0
    %5201 = vmatprep.subr.bf16.mxu0 0
    %5202 = vmatpush1.bf16.msra.mxu0 %v5174
    %5203 = vmatprep.subr.bf16.mxu0 0
    %5204 = vmatpush1.bf16.msra.mxu0 %v5173
    %5205 = vmatprep.subr.bf16.mxu0 0
    %5206 = vmatpush2.bf16.msra.mxu0 0
    %5207 = vmatprep.subr.bf16.mxu0 0
    %5208 = vmatpush2.bf16.msra.mxu0 0
    %5209 = vmatprep.subr.bf16.mxu0 0
    %5210 = vmatpush2.bf16.msra.mxu0 0
    %5211 = vmatprep.subr.bf16.mxu0 0
    %5212 = vmatpush2.bf16.msra.mxu0 0
    %5213 = vmatprep.subr.bf16.mxu0 0
    %5214 = vmatpush2.bf16.msra.mxu0 0
    %5215 = vmatprep.subr.bf16.mxu0 0
    %5216 = vmatpush2.bf16.msra.mxu0 0
    %5217 = vmatprep.subr.bf16.mxu0 0
    %5218 = vmatpush2.bf16.msra.mxu0 0
    %5219 = vmatprep.subr.bf16.mxu0 0
    %5220 = vmatpush2.bf16.msra.mxu0 0
    %5221 = vmatprep.mubr.bf16.mxu0 0
    %5222 = vmatmul.mubr.bf16.gmra.mxu0 %v5184
    %v5223 = vpop.f32.mrf.mxu0
    %v5224 = vadd.f32 %v5181, %v5223
    %v5225 = vpop.f32.mrf.mxu0
    %v5226 = vpop.f32.mrf.mxu0
    %v5227 = vadd.f32 %v5181, %v5226
    %v5228 = vpop.f32.mrf.mxu0
    %5229 = vmatprep.mubr.bf16.mxu0 0
    %5230 = vmatmul.mubr.bf16.gmra.mxu0 %v5187
    %v5231 = vpop.f32.mrf.mxu0
    %v5232 = vadd.f32 %v5181, %v5231
    %v5233 = vpop.f32.mrf.mxu0
    %v5234 = vpop.f32.mrf.mxu0
    %v5235 = vpop.f32.mrf.mxu0
    %5236 = vdwg.mxu0
    %s5237 = scalar_lea.vmem %s35, 288
    %v5238 = vld [vmem:[%s5237] sm:$0xff]
    %v5239 = vld [vmem:[%s5237 + $0x8] sm:$0xff]
    %v5240 = vld [vmem:[%s5237 + $0x10] sm:$0xff]
    %v5241 = vld [vmem:[%s5237 + $0x18] sm:$0xff]
    %v5242 = vpack.c.bf16 %v5239, %v5238
    %v5243 = vpack.c.bf16 %v5241, %v5240
    %s5244 = scalar_lea.vmem %s37, 9
    %v5245 = vld [vmem:[%s5244] sm:$0x1]
    %v5247 = vlaneseq
    %v5248 = vshrl.u32 %v5247, 7
    %v5249 = vsub.s32 0, %v5248
    %v5250 = vrot.slane %v5245, %v5249
    %5252 = vmatprep.subr.bf16.mxu0 0
    %5253 = vmatpush1.bf16.msra.mxu0 0
    %5254 = vmatprep.subr.bf16.mxu0 0
    %5255 = vmatpush1.bf16.msra.mxu0 0
    %5256 = vmatprep.subr.bf16.mxu0 0
    %5257 = vmatpush1.bf16.msra.mxu0 0
    %5258 = vmatprep.subr.bf16.mxu0 0
    %5259 = vmatpush1.bf16.msra.mxu0 0
    %5260 = vmatprep.subr.bf16.mxu0 0
    %5261 = vmatpush1.bf16.msra.mxu0 0
    %5262 = vmatprep.subr.bf16.mxu0 0
    %5263 = vmatpush1.bf16.msra.mxu0 0
    %5264 = vmatprep.subr.bf16.mxu0 0
    %5265 = vmatpush1.bf16.msra.mxu0 %v5243
    %5266 = vmatprep.subr.bf16.mxu0 0
    %5267 = vmatpush1.bf16.msra.mxu0 %v5242
    %5268 = vmatprep.subr.bf16.mxu0 0
    %5269 = vmatpush2.bf16.msra.mxu0 0
    %5270 = vmatprep.subr.bf16.mxu0 0
    %5271 = vmatpush2.bf16.msra.mxu0 0
    %5272 = vmatprep.subr.bf16.mxu0 0
    %5273 = vmatpush2.bf16.msra.mxu0 0
    %5274 = vmatprep.subr.bf16.mxu0 0
    %5275 = vmatpush2.bf16.msra.mxu0 0
    %5276 = vmatprep.subr.bf16.mxu0 0
    %5277 = vmatpush2.bf16.msra.mxu0 0
    %5278 = vmatprep.subr.bf16.mxu0 0
    %5279 = vmatpush2.bf16.msra.mxu0 0
    %5280 = vmatprep.subr.bf16.mxu0 0
    %5281 = vmatpush2.bf16.msra.mxu0 0
    %5282 = vmatprep.subr.bf16.mxu0 0
    %5283 = vmatpush2.bf16.msra.mxu0 0
    %5284 = vmatprep.mubr.bf16.mxu0 0
    %5285 = vmatmul.mubr.bf16.gmra.mxu0 %v5184
    %v5286 = vpop.f32.mrf.mxu0
    %v5287 = vadd.f32 %v5250, %v5286
    %v5288 = vpop.f32.mrf.mxu0
    %v5289 = vpop.f32.mrf.mxu0
    %v5290 = vadd.f32 %v5250, %v5289
    %v5291 = vpop.f32.mrf.mxu0
    %5292 = vmatprep.mubr.bf16.mxu0 0
    %5293 = vmatmul.mubr.bf16.gmra.mxu0 %v5187
    %v5294 = vpop.f32.mrf.mxu0
    %v5295 = vadd.f32 %v5250, %v5294
    %v5296 = vpop.f32.mrf.mxu0
    %v5297 = vpop.f32.mrf.mxu0
    %v5298 = vpop.f32.mrf.mxu0
    %5299 = vdwg.mxu0
    %s5300 = scalar_lea.vmem %s35, 320
    %v5301 = vld [vmem:[%s5300] sm:$0xff]
    %v5302 = vld [vmem:[%s5300 + $0x8] sm:$0xff]
    %v5303 = vld [vmem:[%s5300 + $0x10] sm:$0xff]
    %v5304 = vld [vmem:[%s5300 + $0x18] sm:$0xff]
    %v5305 = vpack.c.bf16 %v5302, %v5301
    %v5306 = vpack.c.bf16 %v5304, %v5303
    %s5307 = scalar_lea.vmem %s37, 10
    %v5308 = vld [vmem:[%s5307] sm:$0x1]
    %v5310 = vlaneseq
    %v5311 = vshrl.u32 %v5310, 7
    %v5312 = vsub.s32 0, %v5311
    %v5313 = vrot.slane %v5308, %v5312
    %5315 = vmatprep.subr.bf16.mxu0 0
    %5316 = vmatpush1.bf16.msra.mxu0 0
    %5317 = vmatprep.subr.bf16.mxu0 0
    %5318 = vmatpush1.bf16.msra.mxu0 0
    %5319 = vmatprep.subr.bf16.mxu0 0
    %5320 = vmatpush1.bf16.msra.mxu0 0
    %5321 = vmatprep.subr.bf16.mxu0 0
    %5322 = vmatpush1.bf16.msra.mxu0 0
    %5323 = vmatprep.subr.bf16.mxu0 0
    %5324 = vmatpush1.bf16.msra.mxu0 0
    %5325 = vmatprep.subr.bf16.mxu0 0
    %5326 = vmatpush1.bf16.msra.mxu0 0
    %5327 = vmatprep.subr.bf16.mxu0 0
    %5328 = vmatpush1.bf16.msra.mxu0 %v5306
    %5329 = vmatprep.subr.bf16.mxu0 0
    %5330 = vmatpush1.bf16.msra.mxu0 %v5305
    %5331 = vmatprep.subr.bf16.mxu0 0
    %5332 = vmatpush2.bf16.msra.mxu0 0
    %5333 = vmatprep.subr.bf16.mxu0 0
    %5334 = vmatpush2.bf16.msra.mxu0 0
    %5335 = vmatprep.subr.bf16.mxu0 0
    %5336 = vmatpush2.bf16.msra.mxu0 0
    %5337 = vmatprep.subr.bf16.mxu0 0
    %5338 = vmatpush2.bf16.msra.mxu0 0
    %5339 = vmatprep.subr.bf16.mxu0 0
    %5340 = vmatpush2.bf16.msra.mxu0 0
    %5341 = vmatprep.subr.bf16.mxu0 0
    %5342 = vmatpush2.bf16.msra.mxu0 0
    %5343 = vmatprep.subr.bf16.mxu0 0
    %5344 = vmatpush2.bf16.msra.mxu0 0
    %5345 = vmatprep.subr.bf16.mxu0 0
    %5346 = vmatpush2.bf16.msra.mxu0 0
    %5347 = vmatprep.mubr.bf16.mxu0 0
    %5348 = vmatmul.mubr.bf16.gmra.mxu0 %v5184
    %v5349 = vpop.f32.mrf.mxu0
    %v5350 = vadd.f32 %v5313, %v5349
    %v5351 = vpop.f32.mrf.mxu0
    %v5352 = vpop.f32.mrf.mxu0
    %v5353 = vadd.f32 %v5313, %v5352
    %v5354 = vpop.f32.mrf.mxu0
    %5355 = vmatprep.mubr.bf16.mxu0 0
    %5356 = vmatmul.mubr.bf16.gmra.mxu0 %v5187
    %v5357 = vpop.f32.mrf.mxu0
    %v5358 = vadd.f32 %v5313, %v5357
    %v5359 = vpop.f32.mrf.mxu0
    %v5360 = vpop.f32.mrf.mxu0
    %v5361 = vpop.f32.mrf.mxu0
    %5362 = vdwg.mxu0
    %5363 = vxpose.xlu0.b32.start [1/16] %v5287, 128
    %5364 = vxpose.xlu0.b32.cont [2/16] %v5290, 128
    %5365 = vxpose.xlu0.b32.cont [3/16] %v5295, 128
    %5366 = vxpose.xlu0.b32.cont [4/16] 0.0, 128
    %5367 = vxpose.xlu0.b32.cont [5/16] 0.0, 128
    %5368 = vxpose.xlu0.b32.cont [6/16] 0.0, 128
    %5369 = vxpose.xlu0.b32.cont [7/16] 0.0, 128
    %5370 = vxpose.xlu0.b32.cont [8/16] 0.0, 128
    %5371 = vxpose.xlu0.b32.cont [9/16] 0.0, 128
    %5372 = vxpose.xlu0.b32.cont [10/16] 0.0, 128
    %5373 = vxpose.xlu0.b32.cont [11/16] 0.0, 128
    %5374 = vxpose.xlu0.b32.cont [12/16] 0.0, 128
    %5375 = vxpose.xlu0.b32.cont [13/16] 0.0, 128
    %5376 = vxpose.xlu0.b32.cont [14/16] 0.0, 128
    %5377 = vxpose.xlu0.b32.cont [15/16] 0.0, 128
    %5378 = vxpose.xlu0.b32.end [16/16] 0.0, 128
    %v5379 = vpop.trf.xlu0
    %v5380 = vpop.trf.xlu0
    %v5381 = vpop.trf.xlu0
    %v5382 = vpop.trf.xlu0
    %v5383 = vpop.trf.xlu0
    %v5384 = vpop.trf.xlu0
    %v5385 = vpop.trf.xlu0
    %v5386 = vpop.trf.xlu0
    %v5387 = vpop.trf.xlu0
    %v5388 = vpop.trf.xlu0
    %v5389 = vpop.trf.xlu0
    %v5390 = vpop.trf.xlu0
    %v5391 = vpop.trf.xlu0
    %v5392 = vpop.trf.xlu0
    %v5393 = vpop.trf.xlu0
    %v5394 = vpop.trf.xlu0
    %v5395 = vpack.c.bf16 %v5227, %v5224
    %v5396 = vpack.c.bf16 %v5232, %v5232
    %v5397 = vpack.c.bf16 %v5380, %v5379
    %v5398 = vpack.c.bf16 %v5382, %v5381
    %v5400 = vsel %vm323, %v5395, 0
    %v5403 = vsel %vm323, %v5396, 0
    %5405 = vmatprep.subr.bf16.mxu0 0
    %5406 = vmatpush1.bf16.msra.mxu0 0
    %5407 = vmatprep.subr.bf16.mxu0 0
    %5408 = vmatpush1.bf16.msra.mxu0 0
    %5409 = vmatprep.subr.bf16.mxu0 0
    %5410 = vmatpush1.bf16.msra.mxu0 0
    %5411 = vmatprep.subr.bf16.mxu0 0
    %5412 = vmatpush1.bf16.msra.mxu0 0
    %5413 = vmatprep.subr.bf16.mxu0 0
    %5414 = vmatpush1.bf16.msra.mxu0 0
    %5415 = vmatprep.subr.bf16.mxu0 0
    %5416 = vmatpush1.bf16.msra.mxu0 0
    %5417 = vmatprep.subr.bf16.mxu0 0
    %5418 = vmatpush1.bf16.msra.mxu0 %v5398
    %5419 = vmatprep.subr.bf16.mxu0 0
    %5420 = vmatpush1.bf16.msra.mxu0 %v5397
    %5421 = vmatprep.subr.bf16.mxu0 0
    %5422 = vmatpush2.bf16.msra.mxu0 0
    %5423 = vmatprep.subr.bf16.mxu0 0
    %5424 = vmatpush2.bf16.msra.mxu0 0
    %5425 = vmatprep.subr.bf16.mxu0 0
    %5426 = vmatpush2.bf16.msra.mxu0 0
    %5427 = vmatprep.subr.bf16.mxu0 0
    %5428 = vmatpush2.bf16.msra.mxu0 0
    %5429 = vmatprep.subr.bf16.mxu0 0
    %5430 = vmatpush2.bf16.msra.mxu0 0
    %5431 = vmatprep.subr.bf16.mxu0 0
    %5432 = vmatpush2.bf16.msra.mxu0 0
    %5433 = vmatprep.subr.bf16.mxu0 0
    %5434 = vmatpush2.bf16.msra.mxu0 0
    %5435 = vmatprep.subr.bf16.mxu0 0
    %5436 = vmatpush2.bf16.msra.mxu0 0
    %5437 = vmatprep.mubr.bf16.mxu0 0
    %5438 = vmatmul.mubr.bf16.gmra.mxu0 %v5400
    %v5439 = vpop.f32.mrf.mxu0
    %v5440 = vadd.f32 0.0, %v5439
    %v5441 = vpop.f32.mrf.mxu0
    %v5442 = vpop.f32.mrf.mxu0
    %v5443 = vadd.f32 0.0, %v5442
    %v5444 = vpop.f32.mrf.mxu0
    %5445 = vmatprep.mubr.bf16.mxu0 0
    %5446 = vmatmul.mubr.bf16.gmra.mxu0 %v5403
    %v5447 = vpop.f32.mrf.mxu0
    %v5448 = vadd.f32 0.0, %v5447
    %v5449 = vpop.f32.mrf.mxu0
    %v5450 = vpop.f32.mrf.mxu0
    %v5451 = vpop.f32.mrf.mxu0
    %5452 = vdwg.mxu0
    %v5453 = vmul.f32 %v5440, 0.17677669
    %v5454 = vmul.f32 %v5443, 0.17677669
    %v5455 = vmul.f32 %v5448, 0.17677669
    %v5456 = vadd.f32 %v5453, %v4231
    %v5457 = vadd.f32 %v5454, %v4232
    %v5458 = vadd.f32 %v5455, %v4233
    %v5459 = vsel %vm3328, %v5456, -inf
    %5460 = vmax.xlane.f32.xlu0 %v5459
    %v5461 = vpop.xlane.xlu0 %5460
    %v5462 = vsel %vm3328, %v5457, -inf
    %5463 = vmax.xlane.f32.xlu0 %v5462
    %v5464 = vpop.xlane.xlu0 %5463
    %v5465 = vsel %vm3328, %v5458, -inf
    %5466 = vmax.xlane.f32.xlu0 %v5465
    %v5467 = vpop.xlane.xlu0 %5466
    %v5468 = vsub.f32 %v5456, %v5461
    %v5469 = vsub.f32 %v5457, %v5464
    %v5470 = vsub.f32 %v5458, %v5467
    %v5471 = vmin.f32 %v5468, 0.0
    %v5472 = vmin.f32 %v5469, 0.0
    %v5473 = vmin.f32 %v5470, 0.0
    %v5474 = vmul.f32 %v5471, 1.442695
    %v5475 = vpow.pop %v5474
    %v5476 = vmul.f32 %v5472, 1.442695
    %v5477 = vpow.pop %v5476
    %v5478 = vmul.f32 %v5473, 1.442695
    %v5479 = vpow.pop %v5478
    %v5480 = vsel %vm3328, %v5475, 0.0
    %5481 = vadd.xlane.f32.xlu0 %v5480
    %v5482 = vpop.xlane.xlu0 %5481
    %v5483 = vsel %vm3328, %v5477, 0.0
    %5484 = vadd.xlane.f32.xlu0 %v5483
    %v5485 = vpop.xlane.xlu0 %5484
    %v5486 = vsel %vm3328, %v5479, 0.0
    %5487 = vadd.xlane.f32.xlu0 %v5486
    %v5488 = vpop.xlane.xlu0 %5487
    %v5489 = vrcp.pop %v5482
    %v5490 = vmul.f32 %v5475, %v5489
    %v5491 = vrcp.pop %v5485
    %v5492 = vmul.f32 %v5477, %v5491
    %v5493 = vrcp.pop %v5488
    %v5494 = vmul.f32 %v5479, %v5493
    %v5495 = vpack.c.bf16 %v5492, %v5490
    %v5496 = vpack.c.bf16 %v5494, %v5494
    %v5497 = vpack.c.bf16 %v5353, %v5350
    %v5498 = vpack.c.bf16 %v5358, %v5358
    %v5500 = vsel %vm3328, %v5495, 0
    %v5503 = vsel %vm3328, %v5496, 0
    %v5506 = vsel %vm167, %v5498, 0
    %5508 = vmatprep.subr.bf16.mxu0 0
    %5509 = vmatpush1.bf16.msra.mxu0 0
    %5510 = vmatprep.subr.bf16.mxu0 0
    %5511 = vmatpush1.bf16.msra.mxu0 0
    %5512 = vmatprep.subr.bf16.mxu0 0
    %5513 = vmatpush1.bf16.msra.mxu0 0
    %5514 = vmatprep.subr.bf16.mxu0 0
    %5515 = vmatpush1.bf16.msra.mxu0 0
    %5516 = vmatprep.subr.bf16.mxu0 0
    %5517 = vmatpush1.bf16.msra.mxu0 0
    %5518 = vmatprep.subr.bf16.mxu0 0
    %5519 = vmatpush1.bf16.msra.mxu0 0
    %5520 = vmatprep.subr.bf16.mxu0 0
    %5521 = vmatpush1.bf16.msra.mxu0 %v5506
    %5522 = vmatprep.subr.bf16.mxu0 0
    %5523 = vmatpush1.bf16.msra.mxu0 %v5497
    %5524 = vmatprep.subr.bf16.mxu0 0
    %5525 = vmatpush2.bf16.msra.mxu0 0
    %5526 = vmatprep.subr.bf16.mxu0 0
    %5527 = vmatpush2.bf16.msra.mxu0 0
    %5528 = vmatprep.subr.bf16.mxu0 0
    %5529 = vmatpush2.bf16.msra.mxu0 0
    %5530 = vmatprep.subr.bf16.mxu0 0
    %5531 = vmatpush2.bf16.msra.mxu0 0
    %5532 = vmatprep.subr.bf16.mxu0 0
    %5533 = vmatpush2.bf16.msra.mxu0 0
    %5534 = vmatprep.subr.bf16.mxu0 0
    %5535 = vmatpush2.bf16.msra.mxu0 0
    %5536 = vmatprep.subr.bf16.mxu0 0
    %5537 = vmatpush2.bf16.msra.mxu0 0
    %5538 = vmatprep.subr.bf16.mxu0 0
    %5539 = vmatpush2.bf16.msra.mxu0 0
    %5540 = vmatprep.mubr.bf16.mxu0 0
    %5541 = vmatmul.mubr.bf16.gmra.mxu0 %v5500
    %v5542 = vpop.f32.mrf.mxu0
    %v5543 = vadd.f32 0.0, %v5542
    %v5544 = vpop.f32.mrf.mxu0
    %v5545 = vpop.f32.mrf.mxu0
    %v5546 = vadd.f32 0.0, %v5545
    %v5547 = vpop.f32.mrf.mxu0
    %5548 = vmatprep.mubr.bf16.mxu0 0
    %5549 = vmatmul.mubr.bf16.gmra.mxu0 %v5503
    %v5550 = vpop.f32.mrf.mxu0
    %v5551 = vadd.f32 0.0, %v5550
    %v5552 = vpop.f32.mrf.mxu0
    %v5553 = vpop.f32.mrf.mxu0
    %v5554 = vpop.f32.mrf.mxu0
    %5555 = vdwg.mxu0
    %s5556 = scalar_lea.vmem %s35, 352
    %v5557 = vld [vmem:[%s5556] sm:$0xff]
    %v5558 = vld [vmem:[%s5556 + $0x8] sm:$0xff]
    %v5559 = vld [vmem:[%s5556 + $0x10] sm:$0xff]
    %v5560 = vld [vmem:[%s5556 + $0x18] sm:$0xff]
    %v5561 = vpack.c.bf16 %v5546, %v5543
    %v5562 = vpack.c.bf16 %v5551, %v5551
    %v5563 = vpack.c.bf16 %v5558, %v5557
    %v5564 = vpack.c.bf16 %v5560, %v5559
    %v5566 = vsel %vm323, %v5561, 0
    %v5569 = vsel %vm323, %v5562, 0
    %5571 = vmatprep.subr.bf16.mxu0 0
    %5572 = vmatpush1.bf16.msra.mxu0 0
    %5573 = vmatprep.subr.bf16.mxu0 0
    %5574 = vmatpush1.bf16.msra.mxu0 0
    %5575 = vmatprep.subr.bf16.mxu0 0
    %5576 = vmatpush1.bf16.msra.mxu0 0
    %5577 = vmatprep.subr.bf16.mxu0 0
    %5578 = vmatpush1.bf16.msra.mxu0 0
    %5579 = vmatprep.subr.bf16.mxu0 0
    %5580 = vmatpush1.bf16.msra.mxu0 0
    %5581 = vmatprep.subr.bf16.mxu0 0
    %5582 = vmatpush1.bf16.msra.mxu0 0
    %5583 = vmatprep.subr.bf16.mxu0 0
    %5584 = vmatpush1.bf16.msra.mxu0 %v5564
    %5585 = vmatprep.subr.bf16.mxu0 0
    %5586 = vmatpush1.bf16.msra.mxu0 %v5563
    %5587 = vmatprep.subr.bf16.mxu0 0
    %5588 = vmatpush2.bf16.msra.mxu0 0
    %5589 = vmatprep.subr.bf16.mxu0 0
    %5590 = vmatpush2.bf16.msra.mxu0 0
    %5591 = vmatprep.subr.bf16.mxu0 0
    %5592 = vmatpush2.bf16.msra.mxu0 0
    %5593 = vmatprep.subr.bf16.mxu0 0
    %5594 = vmatpush2.bf16.msra.mxu0 0
    %5595 = vmatprep.subr.bf16.mxu0 0
    %5596 = vmatpush2.bf16.msra.mxu0 0
    %5597 = vmatprep.subr.bf16.mxu0 0
    %5598 = vmatpush2.bf16.msra.mxu0 0
    %5599 = vmatprep.subr.bf16.mxu0 0
    %5600 = vmatpush2.bf16.msra.mxu0 0
    %5601 = vmatprep.subr.bf16.mxu0 0
    %5602 = vmatpush2.bf16.msra.mxu0 0
    %5603 = vmatprep.mubr.bf16.mxu0 0
    %5604 = vmatmul.mubr.bf16.gmra.mxu0 %v5566
    %v5605 = vpop.f32.mrf.mxu0
    %v5606 = vadd.f32 0.0, %v5605
    %v5607 = vpop.f32.mrf.mxu0
    %v5608 = vpop.f32.mrf.mxu0
    %v5609 = vadd.f32 0.0, %v5608
    %v5610 = vpop.f32.mrf.mxu0
    %5611 = vmatprep.mubr.bf16.mxu0 0
    %5612 = vmatmul.mubr.bf16.gmra.mxu0 %v5569
    %v5613 = vpop.f32.mrf.mxu0
    %v5614 = vadd.f32 0.0, %v5613
    %v5615 = vpop.f32.mrf.mxu0
    %v5616 = vpop.f32.mrf.mxu0
    %v5617 = vpop.f32.mrf.mxu0
    %5618 = vdwg.mxu0
    %v5619 = vadd.f32 %v5163, %v5606
    %v5620 = vadd.f32 %v5164, %v5609
    %v5621 = vadd.f32 %v5165, %v5614
    %s5622 = scalar_lea.vmem %s37, 11
    %v5623 = vld [vmem:[%s5622] sm:$0x1]
    %v5625 = vlaneseq
    %v5626 = vshrl.u32 %v5625, 7
    %v5627 = vsub.s32 0, %v5626
    %v5628 = vrot.slane %v5623, %v5627
    %v5630 = vadd.f32 %v5619, %v5628
    %v5631 = vadd.f32 %v5620, %v5628
    %v5632 = vadd.f32 %v5621, %v5628
    %s5633 = scalar_lea.vmem %s35, 384
    %v5634 = vld [vmem:[%s5633] sm:$0xff]
    %v5635 = vld [vmem:[%s5633 + $0x8] sm:$0xff]
    %v5636 = vld [vmem:[%s5633 + $0x10] sm:$0xff]
    %v5637 = vld [vmem:[%s5633 + $0x18] sm:$0xff]
    %v5638 = vpack.c.bf16 %v5631, %v5630
    %v5639 = vpack.c.bf16 %v5632, %v5632
    %v5640 = vpack.c.bf16 %v5635, %v5634
    %v5641 = vpack.c.bf16 %v5637, %v5636
    %s5642 = scalar_lea.vmem %s37, 12
    %v5643 = vld [vmem:[%s5642] sm:$0x1]
    %v5645 = vlaneseq
    %v5646 = vshrl.u32 %v5645, 7
    %v5647 = vsub.s32 0, %v5646
    %v5648 = vrot.slane %v5643, %v5647
    %v5651 = vsel %vm323, %v5638, 0
    %v5654 = vsel %vm323, %v5639, 0
    %5656 = vmatprep.subr.bf16.mxu0 0
    %5657 = vmatpush1.bf16.msra.mxu0 0
    %5658 = vmatprep.subr.bf16.mxu0 0
    %5659 = vmatpush1.bf16.msra.mxu0 0
    %5660 = vmatprep.subr.bf16.mxu0 0
    %5661 = vmatpush1.bf16.msra.mxu0 0
    %5662 = vmatprep.subr.bf16.mxu0 0
    %5663 = vmatpush1.bf16.msra.mxu0 0
    %5664 = vmatprep.subr.bf16.mxu0 0
    %5665 = vmatpush1.bf16.msra.mxu0 0
    %5666 = vmatprep.subr.bf16.mxu0 0
    %5667 = vmatpush1.bf16.msra.mxu0 0
    %5668 = vmatprep.subr.bf16.mxu0 0
    %5669 = vmatpush1.bf16.msra.mxu0 %v5641
    %5670 = vmatprep.subr.bf16.mxu0 0
    %5671 = vmatpush1.bf16.msra.mxu0 %v5640
    %5672 = vmatprep.subr.bf16.mxu0 0
    %5673 = vmatpush2.bf16.msra.mxu0 0
    %5674 = vmatprep.subr.bf16.mxu0 0
    %5675 = vmatpush2.bf16.msra.mxu0 0
    %5676 = vmatprep.subr.bf16.mxu0 0
    %5677 = vmatpush2.bf16.msra.mxu0 0
    %5678 = vmatprep.subr.bf16.mxu0 0
    %5679 = vmatpush2.bf16.msra.mxu0 0
    %5680 = vmatprep.subr.bf16.mxu0 0
    %5681 = vmatpush2.bf16.msra.mxu0 0
    %5682 = vmatprep.subr.bf16.mxu0 0
    %5683 = vmatpush2.bf16.msra.mxu0 0
    %5684 = vmatprep.subr.bf16.mxu0 0
    %5685 = vmatpush2.bf16.msra.mxu0 0
    %5686 = vmatprep.subr.bf16.mxu0 0
    %5687 = vmatpush2.bf16.msra.mxu0 0
    %5688 = vmatprep.mubr.bf16.mxu0 0
    %5689 = vmatmul.mubr.bf16.gmra.mxu0 %v5651
    %v5690 = vpop.f32.mrf.mxu0
    %v5691 = vadd.f32 %v5648, %v5690
    %v5692 = vpop.f32.mrf.mxu0
    %v5693 = vpop.f32.mrf.mxu0
    %v5694 = vadd.f32 %v5648, %v5693
    %v5695 = vpop.f32.mrf.mxu0
    %5696 = vmatprep.mubr.bf16.mxu0 0
    %5697 = vmatmul.mubr.bf16.gmra.mxu0 %v5654
    %v5698 = vpop.f32.mrf.mxu0
    %v5699 = vadd.f32 %v5648, %v5698
    %v5700 = vpop.f32.mrf.mxu0
    %v5701 = vpop.f32.mrf.mxu0
    %v5702 = vpop.f32.mrf.mxu0
    %5703 = vdwg.mxu0
    %s5704 = scalar_lea.vmem %s35, 416
    %v5705 = vld [vmem:[%s5704] sm:$0xff]
    %v5706 = vld [vmem:[%s5704 + $0x8] sm:$0xff]
    %v5707 = vld [vmem:[%s5704 + $0x10] sm:$0xff]
    %v5708 = vld [vmem:[%s5704 + $0x18] sm:$0xff]
    %v5709 = vpack.c.bf16 %v5706, %v5705
    %v5710 = vpack.c.bf16 %v5708, %v5707
    %s5711 = scalar_lea.vmem %s37, 13
    %v5712 = vld [vmem:[%s5711] sm:$0x1]
    %v5714 = vlaneseq
    %v5715 = vshrl.u32 %v5714, 7
    %v5716 = vsub.s32 0, %v5715
    %v5717 = vrot.slane %v5712, %v5716
    %5719 = vmatprep.subr.bf16.mxu0 0
    %5720 = vmatpush1.bf16.msra.mxu0 0
    %5721 = vmatprep.subr.bf16.mxu0 0
    %5722 = vmatpush1.bf16.msra.mxu0 0
    %5723 = vmatprep.subr.bf16.mxu0 0
    %5724 = vmatpush1.bf16.msra.mxu0 0
    %5725 = vmatprep.subr.bf16.mxu0 0
    %5726 = vmatpush1.bf16.msra.mxu0 0
    %5727 = vmatprep.subr.bf16.mxu0 0
    %5728 = vmatpush1.bf16.msra.mxu0 0
    %5729 = vmatprep.subr.bf16.mxu0 0
    %5730 = vmatpush1.bf16.msra.mxu0 0
    %5731 = vmatprep.subr.bf16.mxu0 0
    %5732 = vmatpush1.bf16.msra.mxu0 %v5710
    %5733 = vmatprep.subr.bf16.mxu0 0
    %5734 = vmatpush1.bf16.msra.mxu0 %v5709
    %5735 = vmatprep.subr.bf16.mxu0 0
    %5736 = vmatpush2.bf16.msra.mxu0 0
    %5737 = vmatprep.subr.bf16.mxu0 0
    %5738 = vmatpush2.bf16.msra.mxu0 0
    %5739 = vmatprep.subr.bf16.mxu0 0
    %5740 = vmatpush2.bf16.msra.mxu0 0
    %5741 = vmatprep.subr.bf16.mxu0 0
    %5742 = vmatpush2.bf16.msra.mxu0 0
    %5743 = vmatprep.subr.bf16.mxu0 0
    %5744 = vmatpush2.bf16.msra.mxu0 0
    %5745 = vmatprep.subr.bf16.mxu0 0
    %5746 = vmatpush2.bf16.msra.mxu0 0
    %5747 = vmatprep.subr.bf16.mxu0 0
    %5748 = vmatpush2.bf16.msra.mxu0 0
    %5749 = vmatprep.subr.bf16.mxu0 0
    %5750 = vmatpush2.bf16.msra.mxu0 0
    %5751 = vmatprep.mubr.bf16.mxu0 0
    %5752 = vmatmul.mubr.bf16.gmra.mxu0 %v5651
    %v5753 = vpop.f32.mrf.mxu0
    %v5754 = vadd.f32 %v5717, %v5753
    %v5755 = vpop.f32.mrf.mxu0
    %v5756 = vpop.f32.mrf.mxu0
    %v5757 = vadd.f32 %v5717, %v5756
    %v5758 = vpop.f32.mrf.mxu0
    %5759 = vmatprep.mubr.bf16.mxu0 0
    %5760 = vmatmul.mubr.bf16.gmra.mxu0 %v5654
    %v5761 = vpop.f32.mrf.mxu0
    %v5762 = vadd.f32 %v5717, %v5761
    %v5763 = vpop.f32.mrf.mxu0
    %v5764 = vpop.f32.mrf.mxu0
    %v5765 = vpop.f32.mrf.mxu0
    %5766 = vdwg.mxu0
    %s5767 = scalar_lea.vmem %s35, 448
    %v5768 = vld [vmem:[%s5767] sm:$0xff]
    %v5769 = vld [vmem:[%s5767 + $0x8] sm:$0xff]
    %v5770 = vld [vmem:[%s5767 + $0x10] sm:$0xff]
    %v5771 = vld [vmem:[%s5767 + $0x18] sm:$0xff]
    %v5772 = vpack.c.bf16 %v5769, %v5768
    %v5773 = vpack.c.bf16 %v5771, %v5770
    %s5774 = scalar_lea.vmem %s37, 14
    %v5775 = vld [vmem:[%s5774] sm:$0x1]
    %v5777 = vlaneseq
    %v5778 = vshrl.u32 %v5777, 7
    %v5779 = vsub.s32 0, %v5778
    %v5780 = vrot.slane %v5775, %v5779
    %5782 = vmatprep.subr.bf16.mxu0 0
    %5783 = vmatpush1.bf16.msra.mxu0 0
    %5784 = vmatprep.subr.bf16.mxu0 0
    %5785 = vmatpush1.bf16.msra.mxu0 0
    %5786 = vmatprep.subr.bf16.mxu0 0
    %5787 = vmatpush1.bf16.msra.mxu0 0
    %5788 = vmatprep.subr.bf16.mxu0 0
    %5789 = vmatpush1.bf16.msra.mxu0 0
    %5790 = vmatprep.subr.bf16.mxu0 0
    %5791 = vmatpush1.bf16.msra.mxu0 0
    %5792 = vmatprep.subr.bf16.mxu0 0
    %5793 = vmatpush1.bf16.msra.mxu0 0
    %5794 = vmatprep.subr.bf16.mxu0 0
    %5795 = vmatpush1.bf16.msra.mxu0 %v5773
    %5796 = vmatprep.subr.bf16.mxu0 0
    %5797 = vmatpush1.bf16.msra.mxu0 %v5772
    %5798 = vmatprep.subr.bf16.mxu0 0
    %5799 = vmatpush2.bf16.msra.mxu0 0
    %5800 = vmatprep.subr.bf16.mxu0 0
    %5801 = vmatpush2.bf16.msra.mxu0 0
    %5802 = vmatprep.subr.bf16.mxu0 0
    %5803 = vmatpush2.bf16.msra.mxu0 0
    %5804 = vmatprep.subr.bf16.mxu0 0
    %5805 = vmatpush2.bf16.msra.mxu0 0
    %5806 = vmatprep.subr.bf16.mxu0 0
    %5807 = vmatpush2.bf16.msra.mxu0 0
    %5808 = vmatprep.subr.bf16.mxu0 0
    %5809 = vmatpush2.bf16.msra.mxu0 0
    %5810 = vmatprep.subr.bf16.mxu0 0
    %5811 = vmatpush2.bf16.msra.mxu0 0
    %5812 = vmatprep.subr.bf16.mxu0 0
    %5813 = vmatpush2.bf16.msra.mxu0 0
    %5814 = vmatprep.mubr.bf16.mxu0 0
    %5815 = vmatmul.mubr.bf16.gmra.mxu0 %v5651
    %v5816 = vpop.f32.mrf.mxu0
    %v5817 = vadd.f32 %v5780, %v5816
    %v5818 = vpop.f32.mrf.mxu0
    %v5819 = vpop.f32.mrf.mxu0
    %v5820 = vadd.f32 %v5780, %v5819
    %v5821 = vpop.f32.mrf.mxu0
    %5822 = vmatprep.mubr.bf16.mxu0 0
    %5823 = vmatmul.mubr.bf16.gmra.mxu0 %v5654
    %v5824 = vpop.f32.mrf.mxu0
    %v5825 = vadd.f32 %v5780, %v5824
    %v5826 = vpop.f32.mrf.mxu0
    %v5827 = vpop.f32.mrf.mxu0
    %v5828 = vpop.f32.mrf.mxu0
    %5829 = vdwg.mxu0
    %5830 = vxpose.xlu0.b32.start [1/16] %v5754, 128
    %5831 = vxpose.xlu0.b32.cont [2/16] %v5757, 128
    %5832 = vxpose.xlu0.b32.cont [3/16] %v5762, 128
    %5833 = vxpose.xlu0.b32.cont [4/16] 0.0, 128
    %5834 = vxpose.xlu0.b32.cont [5/16] 0.0, 128
    %5835 = vxpose.xlu0.b32.cont [6/16] 0.0, 128
    %5836 = vxpose.xlu0.b32.cont [7/16] 0.0, 128
    %5837 = vxpose.xlu0.b32.cont [8/16] 0.0, 128
    %5838 = vxpose.xlu0.b32.cont [9/16] 0.0, 128
    %5839 = vxpose.xlu0.b32.cont [10/16] 0.0, 128
    %5840 = vxpose.xlu0.b32.cont [11/16] 0.0, 128
    %5841 = vxpose.xlu0.b32.cont [12/16] 0.0, 128
    %5842 = vxpose.xlu0.b32.cont [13/16] 0.0, 128
    %5843 = vxpose.xlu0.b32.cont [14/16] 0.0, 128
    %5844 = vxpose.xlu0.b32.cont [15/16] 0.0, 128
    %5845 = vxpose.xlu0.b32.end [16/16] 0.0, 128
    %v5846 = vpop.trf.xlu0
    %v5847 = vpop.trf.xlu0
    %v5848 = vpop.trf.xlu0
    %v5849 = vpop.trf.xlu0
    %v5850 = vpop.trf.xlu0
    %v5851 = vpop.trf.xlu0
    %v5852 = vpop.trf.xlu0
    %v5853 = vpop.trf.xlu0
    %v5854 = vpop.trf.xlu0
    %v5855 = vpop.trf.xlu0
    %v5856 = vpop.trf.xlu0
    %v5857 = vpop.trf.xlu0
    %v5858 = vpop.trf.xlu0
    %v5859 = vpop.trf.xlu0
    %v5860 = vpop.trf.xlu0
    %v5861 = vpop.trf.xlu0
    %v5862 = vpack.c.bf16 %v5694, %v5691
    %v5863 = vpack.c.bf16 %v5699, %v5699
    %v5864 = vpack.c.bf16 %v5847, %v5846
    %v5865 = vpack.c.bf16 %v5849, %v5848
    %v5867 = vsel %vm323, %v5862, 0
    %v5870 = vsel %vm323, %v5863, 0
    %5872 = vmatprep.subr.bf16.mxu0 0
    %5873 = vmatpush1.bf16.msra.mxu0 0
    %5874 = vmatprep.subr.bf16.mxu0 0
    %5875 = vmatpush1.bf16.msra.mxu0 0
    %5876 = vmatprep.subr.bf16.mxu0 0
    %5877 = vmatpush1.bf16.msra.mxu0 0
    %5878 = vmatprep.subr.bf16.mxu0 0
    %5879 = vmatpush1.bf16.msra.mxu0 0
    %5880 = vmatprep.subr.bf16.mxu0 0
    %5881 = vmatpush1.bf16.msra.mxu0 0
    %5882 = vmatprep.subr.bf16.mxu0 0
    %5883 = vmatpush1.bf16.msra.mxu0 0
    %5884 = vmatprep.subr.bf16.mxu0 0
    %5885 = vmatpush1.bf16.msra.mxu0 %v5865
    %5886 = vmatprep.subr.bf16.mxu0 0
    %5887 = vmatpush1.bf16.msra.mxu0 %v5864
    %5888 = vmatprep.subr.bf16.mxu0 0
    %5889 = vmatpush2.bf16.msra.mxu0 0
    %5890 = vmatprep.subr.bf16.mxu0 0
    %5891 = vmatpush2.bf16.msra.mxu0 0
    %5892 = vmatprep.subr.bf16.mxu0 0
    %5893 = vmatpush2.bf16.msra.mxu0 0
    %5894 = vmatprep.subr.bf16.mxu0 0
    %5895 = vmatpush2.bf16.msra.mxu0 0
    %5896 = vmatprep.subr.bf16.mxu0 0
    %5897 = vmatpush2.bf16.msra.mxu0 0
    %5898 = vmatprep.subr.bf16.mxu0 0
    %5899 = vmatpush2.bf16.msra.mxu0 0
    %5900 = vmatprep.subr.bf16.mxu0 0
    %5901 = vmatpush2.bf16.msra.mxu0 0
    %5902 = vmatprep.subr.bf16.mxu0 0
    %5903 = vmatpush2.bf16.msra.mxu0 0
    %5904 = vmatprep.mubr.bf16.mxu0 0
    %5905 = vmatmul.mubr.bf16.gmra.mxu0 %v5867
    %v5906 = vpop.f32.mrf.mxu0
    %v5907 = vadd.f32 0.0, %v5906
    %v5908 = vpop.f32.mrf.mxu0
    %v5909 = vpop.f32.mrf.mxu0
    %v5910 = vadd.f32 0.0, %v5909
    %v5911 = vpop.f32.mrf.mxu0
    %5912 = vmatprep.mubr.bf16.mxu0 0
    %5913 = vmatmul.mubr.bf16.gmra.mxu0 %v5870
    %v5914 = vpop.f32.mrf.mxu0
    %v5915 = vadd.f32 0.0, %v5914
    %v5916 = vpop.f32.mrf.mxu0
    %v5917 = vpop.f32.mrf.mxu0
    %v5918 = vpop.f32.mrf.mxu0
    %5919 = vdwg.mxu0
    %v5920 = vmul.f32 %v5907, 0.17677669
    %v5921 = vmul.f32 %v5910, 0.17677669
    %v5922 = vmul.f32 %v5915, 0.17677669
    %v5923 = vadd.f32 %v5920, %v4231
    %v5924 = vadd.f32 %v5921, %v4232
    %v5925 = vadd.f32 %v5922, %v4233
    %v5926 = vsel %vm3328, %v5923, -inf
    %5927 = vmax.xlane.f32.xlu0 %v5926
    %v5928 = vpop.xlane.xlu0 %5927
    %v5929 = vsel %vm3328, %v5924, -inf
    %5930 = vmax.xlane.f32.xlu0 %v5929
    %v5931 = vpop.xlane.xlu0 %5930
    %v5932 = vsel %vm3328, %v5925, -inf
    %5933 = vmax.xlane.f32.xlu0 %v5932
    %v5934 = vpop.xlane.xlu0 %5933
    %v5935 = vsub.f32 %v5923, %v5928
    %v5936 = vsub.f32 %v5924, %v5931
    %v5937 = vsub.f32 %v5925, %v5934
    %v5938 = vmin.f32 %v5935, 0.0
    %v5939 = vmin.f32 %v5936, 0.0
    %v5940 = vmin.f32 %v5937, 0.0
    %v5941 = vmul.f32 %v5938, 1.442695
    %v5942 = vpow.pop %v5941
    %v5943 = vmul.f32 %v5939, 1.442695
    %v5944 = vpow.pop %v5943
    %v5945 = vmul.f32 %v5940, 1.442695
    %v5946 = vpow.pop %v5945
    %v5947 = vsel %vm3328, %v5942, 0.0
    %5948 = vadd.xlane.f32.xlu0 %v5947
    %v5949 = vpop.xlane.xlu0 %5948
    %v5950 = vsel %vm3328, %v5944, 0.0
    %5951 = vadd.xlane.f32.xlu0 %v5950
    %v5952 = vpop.xlane.xlu0 %5951
    %v5953 = vsel %vm3328, %v5946, 0.0
    %5954 = vadd.xlane.f32.xlu0 %v5953
    %v5955 = vpop.xlane.xlu0 %5954
    %v5956 = vrcp.pop %v5949
    %v5957 = vmul.f32 %v5942, %v5956
    %v5958 = vrcp.pop %v5952
    %v5959 = vmul.f32 %v5944, %v5958
    %v5960 = vrcp.pop %v5955
    %v5961 = vmul.f32 %v5946, %v5960
    %v5962 = vpack.c.bf16 %v5959, %v5957
    %v5963 = vpack.c.bf16 %v5961, %v5961
    %v5964 = vpack.c.bf16 %v5820, %v5817
    %v5965 = vpack.c.bf16 %v5825, %v5825
    %v5967 = vsel %vm3328, %v5962, 0
    %v5970 = vsel %vm3328, %v5963, 0
    %v5973 = vsel %vm167, %v5965, 0
    %5975 = vmatprep.subr.bf16.mxu0 0
    %5976 = vmatpush1.bf16.msra.mxu0 0
    %5977 = vmatprep.subr.bf16.mxu0 0
    %5978 = vmatpush1.bf16.msra.mxu0 0
    %5979 = vmatprep.subr.bf16.mxu0 0
    %5980 = vmatpush1.bf16.msra.mxu0 0
    %5981 = vmatprep.subr.bf16.mxu0 0
    %5982 = vmatpush1.bf16.msra.mxu0 0
    %5983 = vmatprep.subr.bf16.mxu0 0
    %5984 = vmatpush1.bf16.msra.mxu0 0
    %5985 = vmatprep.subr.bf16.mxu0 0
    %5986 = vmatpush1.bf16.msra.mxu0 0
    %5987 = vmatprep.subr.bf16.mxu0 0
    %5988 = vmatpush1.bf16.msra.mxu0 %v5973
    %5989 = vmatprep.subr.bf16.mxu0 0
    %5990 = vmatpush1.bf16.msra.mxu0 %v5964
    %5991 = vmatprep.subr.bf16.mxu0 0
    %5992 = vmatpush2.bf16.msra.mxu0 0
    %5993 = vmatprep.subr.bf16.mxu0 0
    %5994 = vmatpush2.bf16.msra.mxu0 0
    %5995 = vmatprep.subr.bf16.mxu0 0
    %5996 = vmatpush2.bf16.msra.mxu0 0
    %5997 = vmatprep.subr.bf16.mxu0 0
    %5998 = vmatpush2.bf16.msra.mxu0 0
    %5999 = vmatprep.subr.bf16.mxu0 0
    %6000 = vmatpush2.bf16.msra.mxu0 0
    %6001 = vmatprep.subr.bf16.mxu0 0
    %6002 = vmatpush2.bf16.msra.mxu0 0
    %6003 = vmatprep.subr.bf16.mxu0 0
    %6004 = vmatpush2.bf16.msra.mxu0 0
    %6005 = vmatprep.subr.bf16.mxu0 0
    %6006 = vmatpush2.bf16.msra.mxu0 0
    %6007 = vmatprep.mubr.bf16.mxu0 0
    %6008 = vmatmul.mubr.bf16.gmra.mxu0 %v5967
    %v6009 = vpop.f32.mrf.mxu0
    %v6010 = vadd.f32 0.0, %v6009
    %v6011 = vpop.f32.mrf.mxu0
    %v6012 = vpop.f32.mrf.mxu0
    %v6013 = vadd.f32 0.0, %v6012
    %v6014 = vpop.f32.mrf.mxu0
    %6015 = vmatprep.mubr.bf16.mxu0 0
    %6016 = vmatmul.mubr.bf16.gmra.mxu0 %v5970
    %v6017 = vpop.f32.mrf.mxu0
    %v6018 = vadd.f32 0.0, %v6017
    %v6019 = vpop.f32.mrf.mxu0
    %v6020 = vpop.f32.mrf.mxu0
    %v6021 = vpop.f32.mrf.mxu0
    %6022 = vdwg.mxu0
    %s6023 = scalar_lea.vmem %s35, 480
    %v6024 = vld [vmem:[%s6023] sm:$0xff]
    %v6025 = vld [vmem:[%s6023 + $0x8] sm:$0xff]
    %v6026 = vld [vmem:[%s6023 + $0x10] sm:$0xff]
    %v6027 = vld [vmem:[%s6023 + $0x18] sm:$0xff]
    %v6028 = vpack.c.bf16 %v6013, %v6010
    %v6029 = vpack.c.bf16 %v6018, %v6018
    %v6030 = vpack.c.bf16 %v6025, %v6024
    %v6031 = vpack.c.bf16 %v6027, %v6026
    %v6033 = vsel %vm323, %v6028, 0
    %v6036 = vsel %vm323, %v6029, 0
    %6038 = vmatprep.subr.bf16.mxu0 0
    %6039 = vmatpush1.bf16.msra.mxu0 0
    %6040 = vmatprep.subr.bf16.mxu0 0
    %6041 = vmatpush1.bf16.msra.mxu0 0
    %6042 = vmatprep.subr.bf16.mxu0 0
    %6043 = vmatpush1.bf16.msra.mxu0 0
    %6044 = vmatprep.subr.bf16.mxu0 0
    %6045 = vmatpush1.bf16.msra.mxu0 0
    %6046 = vmatprep.subr.bf16.mxu0 0
    %6047 = vmatpush1.bf16.msra.mxu0 0
    %6048 = vmatprep.subr.bf16.mxu0 0
    %6049 = vmatpush1.bf16.msra.mxu0 0
    %6050 = vmatprep.subr.bf16.mxu0 0
    %6051 = vmatpush1.bf16.msra.mxu0 %v6031
    %6052 = vmatprep.subr.bf16.mxu0 0
    %6053 = vmatpush1.bf16.msra.mxu0 %v6030
    %6054 = vmatprep.subr.bf16.mxu0 0
    %6055 = vmatpush2.bf16.msra.mxu0 0
    %6056 = vmatprep.subr.bf16.mxu0 0
    %6057 = vmatpush2.bf16.msra.mxu0 0
    %6058 = vmatprep.subr.bf16.mxu0 0
    %6059 = vmatpush2.bf16.msra.mxu0 0
    %6060 = vmatprep.subr.bf16.mxu0 0
    %6061 = vmatpush2.bf16.msra.mxu0 0
    %6062 = vmatprep.subr.bf16.mxu0 0
    %6063 = vmatpush2.bf16.msra.mxu0 0
    %6064 = vmatprep.subr.bf16.mxu0 0
    %6065 = vmatpush2.bf16.msra.mxu0 0
    %6066 = vmatprep.subr.bf16.mxu0 0
    %6067 = vmatpush2.bf16.msra.mxu0 0
    %6068 = vmatprep.subr.bf16.mxu0 0
    %6069 = vmatpush2.bf16.msra.mxu0 0
    %6070 = vmatprep.mubr.bf16.mxu0 0
    %6071 = vmatmul.mubr.bf16.gmra.mxu0 %v6033
    %v6072 = vpop.f32.mrf.mxu0
    %v6073 = vadd.f32 0.0, %v6072
    %v6074 = vpop.f32.mrf.mxu0
    %v6075 = vpop.f32.mrf.mxu0
    %v6076 = vadd.f32 0.0, %v6075
    %v6077 = vpop.f32.mrf.mxu0
    %6078 = vmatprep.mubr.bf16.mxu0 0
    %6079 = vmatmul.mubr.bf16.gmra.mxu0 %v6036
    %v6080 = vpop.f32.mrf.mxu0
    %v6081 = vadd.f32 0.0, %v6080
    %v6082 = vpop.f32.mrf.mxu0
    %v6083 = vpop.f32.mrf.mxu0
    %v6084 = vpop.f32.mrf.mxu0
    %6085 = vdwg.mxu0
    %v6086 = vadd.f32 %v5630, %v6073
    %v6087 = vadd.f32 %v5631, %v6076
    %v6088 = vadd.f32 %v5632, %v6081
    %s6089 = scalar_lea.vmem %s37, 15
    %v6090 = vld [vmem:[%s6089] sm:$0x1]
    %v6092 = vlaneseq
    %v6093 = vshrl.u32 %v6092, 7
    %v6094 = vsub.s32 0, %v6093
    %v6095 = vrot.slane %v6090, %v6094
    %v6097 = vadd.f32 %v6086, %v6095
    %v6098 = vadd.f32 %v6087, %v6095
    %v6099 = vadd.f32 %v6088, %v6095
    %v6100 = vld [vmem:[%s55] sm:$0xff]
    %v6101 = vld [vmem:[%s55 + $0x8] sm:$0xff]
    %v6102 = vld [vmem:[%s55 + $0x10] sm:$0xff]
    %v6103 = vld [vmem:[%s55 + $0x18] sm:$0xff]
    %v6104 = vld [vmem:[%s57] sm:$0x1]
    %v6105 = vld [vmem:[%s59] sm:$0xff]
    %v6106 = vld [vmem:[%s59 + $0x8] sm:$0xff]
    %v6107 = vld [vmem:[%s59 + $0x10] sm:$0xff]
    %v6108 = vld [vmem:[%s59 + $0x18] sm:$0xff]
    %v6109 = vld [vmem:[%s61] sm:$0x1]
    %v6110 = vpack.c.bf16 %v3668, %v3665
    %v6111 = vpack.c.bf16 %v3673, %v3673
    %v6112 = vpack.c.bf16 %v6098, %v6097
    %v6113 = vpack.c.bf16 %v6099, %v6099
    %v6115 = vsel %vm3328, %v6110, 0
    %v6118 = vsel %vm3328, %v6111, 0
    %v6121 = vsel %vm167, %v6113, 0
    %6123 = vmatprep.subr.bf16.mxu0 0
    %6124 = vmatpush1.bf16.msra.mxu0 0
    %6125 = vmatprep.subr.bf16.mxu0 0
    %6126 = vmatpush1.bf16.msra.mxu0 0
    %6127 = vmatprep.subr.bf16.mxu0 0
    %6128 = vmatpush1.bf16.msra.mxu0 0
    %6129 = vmatprep.subr.bf16.mxu0 0
    %6130 = vmatpush1.bf16.msra.mxu0 0
    %6131 = vmatprep.subr.bf16.mxu0 0
    %6132 = vmatpush1.bf16.msra.mxu0 0
    %6133 = vmatprep.subr.bf16.mxu0 0
    %6134 = vmatpush1.bf16.msra.mxu0 0
    %6135 = vmatprep.subr.bf16.mxu0 0
    %6136 = vmatpush1.bf16.msra.mxu0 %v6121
    %6137 = vmatprep.subr.bf16.mxu0 0
    %6138 = vmatpush1.bf16.msra.mxu0 %v6112
    %6139 = vmatprep.subr.bf16.mxu0 0
    %6140 = vmatpush2.bf16.msra.mxu0 0
    %6141 = vmatprep.subr.bf16.mxu0 0
    %6142 = vmatpush2.bf16.msra.mxu0 0
    %6143 = vmatprep.subr.bf16.mxu0 0
    %6144 = vmatpush2.bf16.msra.mxu0 0
    %6145 = vmatprep.subr.bf16.mxu0 0
    %6146 = vmatpush2.bf16.msra.mxu0 0
    %6147 = vmatprep.subr.bf16.mxu0 0
    %6148 = vmatpush2.bf16.msra.mxu0 0
    %6149 = vmatprep.subr.bf16.mxu0 0
    %6150 = vmatpush2.bf16.msra.mxu0 0
    %6151 = vmatprep.subr.bf16.mxu0 0
    %6152 = vmatpush2.bf16.msra.mxu0 0
    %6153 = vmatprep.subr.bf16.mxu0 0
    %6154 = vmatpush2.bf16.msra.mxu0 0
    %6155 = vmatprep.mubr.bf16.mxu0 0
    %6156 = vmatmul.mubr.bf16.gmra.mxu0 %v6115
    %v6157 = vpop.f32.mrf.mxu0
    %v6158 = vadd.f32 0.0, %v6157
    %v6159 = vpop.f32.mrf.mxu0
    %v6160 = vpop.f32.mrf.mxu0
    %v6161 = vadd.f32 0.0, %v6160
    %v6162 = vpop.f32.mrf.mxu0
    %6163 = vmatprep.mubr.bf16.mxu0 0
    %6164 = vmatmul.mubr.bf16.gmra.mxu0 %v6118
    %v6165 = vpop.f32.mrf.mxu0
    %v6166 = vadd.f32 0.0, %v6165
    %v6167 = vpop.f32.mrf.mxu0
    %v6168 = vpop.f32.mrf.mxu0
    %v6169 = vpop.f32.mrf.mxu0
    %6170 = vdwg.mxu0
    %v6171 = vpack.c.bf16 %v6161, %v6158
    %v6172 = vpack.c.bf16 %v6166, %v6166
    %v6173 = vpack.c.bf16 %v6101, %v6100
    %v6174 = vpack.c.bf16 %v6103, %v6102
    %v6176 = vlaneseq
    %v6177 = vshrl.u32 %v6176, 7
    %v6178 = vsub.s32 0, %v6177
    %v6179 = vrot.slane %v6104, %v6178
    %v6182 = vsel %vm323, %v6171, 0
    %v6185 = vsel %vm323, %v6172, 0
    %6187 = vmatprep.subr.bf16.mxu0 0
    %6188 = vmatpush1.bf16.msra.mxu0 0
    %6189 = vmatprep.subr.bf16.mxu0 0
    %6190 = vmatpush1.bf16.msra.mxu0 0
    %6191 = vmatprep.subr.bf16.mxu0 0
    %6192 = vmatpush1.bf16.msra.mxu0 0
    %6193 = vmatprep.subr.bf16.mxu0 0
    %6194 = vmatpush1.bf16.msra.mxu0 0
    %6195 = vmatprep.subr.bf16.mxu0 0
    %6196 = vmatpush1.bf16.msra.mxu0 0
    %6197 = vmatprep.subr.bf16.mxu0 0
    %6198 = vmatpush1.bf16.msra.mxu0 0
    %6199 = vmatprep.subr.bf16.mxu0 0
    %6200 = vmatpush1.bf16.msra.mxu0 %v6174
    %6201 = vmatprep.subr.bf16.mxu0 0
    %6202 = vmatpush1.bf16.msra.mxu0 %v6173
    %6203 = vmatprep.subr.bf16.mxu0 0
    %6204 = vmatpush2.bf16.msra.mxu0 0
    %6205 = vmatprep.subr.bf16.mxu0 0
    %6206 = vmatpush2.bf16.msra.mxu0 0
    %6207 = vmatprep.subr.bf16.mxu0 0
    %6208 = vmatpush2.bf16.msra.mxu0 0
    %6209 = vmatprep.subr.bf16.mxu0 0
    %6210 = vmatpush2.bf16.msra.mxu0 0
    %6211 = vmatprep.subr.bf16.mxu0 0
    %6212 = vmatpush2.bf16.msra.mxu0 0
    %6213 = vmatprep.subr.bf16.mxu0 0
    %6214 = vmatpush2.bf16.msra.mxu0 0
    %6215 = vmatprep.subr.bf16.mxu0 0
    %6216 = vmatpush2.bf16.msra.mxu0 0
    %6217 = vmatprep.subr.bf16.mxu0 0
    %6218 = vmatpush2.bf16.msra.mxu0 0
    %6219 = vmatprep.mubr.bf16.mxu0 0
    %6220 = vmatmul.mubr.bf16.gmra.mxu0 %v6182
    %v6221 = vpop.f32.mrf.mxu0
    %v6222 = vadd.f32 %v6179, %v6221
    %v6223 = vpop.f32.mrf.mxu0
    %v6224 = vpop.f32.mrf.mxu0
    %v6225 = vadd.f32 %v6179, %v6224
    %v6226 = vpop.f32.mrf.mxu0
    %6227 = vmatprep.mubr.bf16.mxu0 0
    %6228 = vmatmul.mubr.bf16.gmra.mxu0 %v6185
    %v6229 = vpop.f32.mrf.mxu0
    %v6230 = vadd.f32 %v6179, %v6229
    %v6231 = vpop.f32.mrf.mxu0
    %v6232 = vpop.f32.mrf.mxu0
    %v6233 = vpop.f32.mrf.mxu0
    %6234 = vdwg.mxu0
    %vm6235 = vcmask 130048
    %v6236 = vsel %vm6235, %v6222, -inf
    %6237 = vmax.xlane.f32.xlu0 %v6236
    %v6238 = vpop.xlane.xlu0 %6237
    %v6239 = vsel %vm6235, %v6225, -inf
    %6240 = vmax.xlane.f32.xlu0 %v6239
    %v6241 = vpop.xlane.xlu0 %6240
    %v6242 = vsel %vm6235, %v6230, -inf
    %6243 = vmax.xlane.f32.xlu0 %v6242
    %v6244 = vpop.xlane.xlu0 %6243
    %v6245 = vsub.f32 %v6222, %v6238
    %v6246 = vsub.f32 %v6225, %v6241
    %v6247 = vsub.f32 %v6230, %v6244
    %v6248 = vmin.f32 %v6245, 0.0
    %v6249 = vmin.f32 %v6246, 0.0
    %v6250 = vmin.f32 %v6247, 0.0
    %v6251 = vmul.f32 %v6248, 1.442695
    %v6252 = vpow.pop %v6251
    %v6253 = vmul.f32 %v6249, 1.442695
    %v6254 = vpow.pop %v6253
    %v6255 = vmul.f32 %v6250, 1.442695
    %v6256 = vpow.pop %v6255
    %v6257 = vsel %vm6235, %v6252, 0.0
    %6258 = vadd.xlane.f32.xlu0 %v6257
    %v6259 = vpop.xlane.xlu0 %6258
    %v6260 = vsel %vm6235, %v6254, 0.0
    %6261 = vadd.xlane.f32.xlu0 %v6260
    %v6262 = vpop.xlane.xlu0 %6261
    %v6263 = vsel %vm6235, %v6256, 0.0
    %6264 = vadd.xlane.f32.xlu0 %v6263
    %v6265 = vpop.xlane.xlu0 %6264
    %v6266 = vrcp.pop %v6259
    %v6267 = vmul.f32 %v6252, %v6266
    %v6268 = vrcp.pop %v6262
    %v6269 = vmul.f32 %v6254, %v6268
    %v6270 = vrcp.pop %v6265
    %v6271 = vmul.f32 %v6256, %v6270
    %v6272 = vpack.c.bf16 %v6106, %v6105
    %v6273 = vpack.c.bf16 %v6108, %v6107
    %v6275 = vlaneseq
    %v6276 = vshrl.u32 %v6275, 7
    %v6277 = vsub.s32 0, %v6276
    %v6278 = vrot.slane %v6109, %v6277
    %6280 = vmatprep.subr.bf16.mxu0 0
    %6281 = vmatpush1.bf16.msra.mxu0 0
    %6282 = vmatprep.subr.bf16.mxu0 0
    %6283 = vmatpush1.bf16.msra.mxu0 0
    %6284 = vmatprep.subr.bf16.mxu0 0
    %6285 = vmatpush1.bf16.msra.mxu0 0
    %6286 = vmatprep.subr.bf16.mxu0 0
    %6287 = vmatpush1.bf16.msra.mxu0 0
    %6288 = vmatprep.subr.bf16.mxu0 0
    %6289 = vmatpush1.bf16.msra.mxu0 0
    %6290 = vmatprep.subr.bf16.mxu0 0
    %6291 = vmatpush1.bf16.msra.mxu0 0
    %6292 = vmatprep.subr.bf16.mxu0 0
    %6293 = vmatpush1.bf16.msra.mxu0 %v6273
    %6294 = vmatprep.subr.bf16.mxu0 0
    %6295 = vmatpush1.bf16.msra.mxu0 %v6272
    %6296 = vmatprep.subr.bf16.mxu0 0
    %6297 = vmatpush2.bf16.msra.mxu0 0
    %6298 = vmatprep.subr.bf16.mxu0 0
    %6299 = vmatpush2.bf16.msra.mxu0 0
    %6300 = vmatprep.subr.bf16.mxu0 0
    %6301 = vmatpush2.bf16.msra.mxu0 0
    %6302 = vmatprep.subr.bf16.mxu0 0
    %6303 = vmatpush2.bf16.msra.mxu0 0
    %6304 = vmatprep.subr.bf16.mxu0 0
    %6305 = vmatpush2.bf16.msra.mxu0 0
    %6306 = vmatprep.subr.bf16.mxu0 0
    %6307 = vmatpush2.bf16.msra.mxu0 0
    %6308 = vmatprep.subr.bf16.mxu0 0
    %6309 = vmatpush2.bf16.msra.mxu0 0
    %6310 = vmatprep.subr.bf16.mxu0 0
    %6311 = vmatpush2.bf16.msra.mxu0 0
    %6312 = vmatprep.mubr.bf16.mxu0 0
    %6313 = vmatmul.mubr.bf16.gmra.mxu0 %v6182
    %v6314 = vpop.f32.mrf.mxu0
    %v6315 = vadd.f32 %v6278, %v6314
    %v6316 = vpop.f32.mrf.mxu0
    %v6317 = vpop.f32.mrf.mxu0
    %v6318 = vadd.f32 %v6278, %v6317
    %v6319 = vpop.f32.mrf.mxu0
    %6320 = vmatprep.mubr.bf16.mxu0 0
    %6321 = vmatmul.mubr.bf16.gmra.mxu0 %v6185
    %v6322 = vpop.f32.mrf.mxu0
    %v6323 = vadd.f32 %v6278, %v6322
    %v6324 = vpop.f32.mrf.mxu0
    %v6325 = vpop.f32.mrf.mxu0
    %v6326 = vpop.f32.mrf.mxu0
    %6327 = vdwg.mxu0
    %vm6328 = vcmp.gt.f32.partialorder %v6315, 0.0
    %vm6329 = vcmp.gt.f32.partialorder %v6318, 0.0
    %vm6330 = vcmp.gt.f32.partialorder %v6323, 0.0
    %v6331 = vmul.f32 %v6315, 0.01
    %v6332 = vmul.f32 %v6318, 0.01
    %v6333 = vmul.f32 %v6323, 0.01
    %v6334 = vsel %vm6328, %v6315, %v6331
    %v6335 = vsel %vm6329, %v6318, %v6332
    %v6336 = vsel %vm6330, %v6323, %v6333
    %6337 = vxpose.xlu0.b32.start [1/16] %v6267, 128
    %6338 = vxpose.xlu0.b32.cont [2/16] %v6269, 128
    %6339 = vxpose.xlu0.b32.cont [3/16] %v6271, 128
    %6340 = vxpose.xlu0.b32.cont [4/16] 0.0, 128
    %6341 = vxpose.xlu0.b32.cont [5/16] 0.0, 128
    %6342 = vxpose.xlu0.b32.cont [6/16] 0.0, 128
    %6343 = vxpose.xlu0.b32.cont [7/16] 0.0, 128
    %6344 = vxpose.xlu0.b32.cont [8/16] 0.0, 128
    %6345 = vxpose.xlu0.b32.cont [9/16] 0.0, 128
    %6346 = vxpose.xlu0.b32.cont [10/16] 0.0, 128
    %6347 = vxpose.xlu0.b32.cont [11/16] 0.0, 128
    %6348 = vxpose.xlu0.b32.cont [12/16] 0.0, 128
    %6349 = vxpose.xlu0.b32.cont [13/16] 0.0, 128
    %6350 = vxpose.xlu0.b32.cont [14/16] 0.0, 128
    %6351 = vxpose.xlu0.b32.cont [15/16] 0.0, 128
    %6352 = vxpose.xlu0.b32.end [16/16] 0.0, 128
    %v6353 = vpop.trf.xlu0
    %v6354 = vpop.trf.xlu0
    %v6355 = vpop.trf.xlu0
    %v6356 = vpop.trf.xlu0
    %v6357 = vpop.trf.xlu0
    %v6358 = vpop.trf.xlu0
    %v6359 = vpop.trf.xlu0
    %v6360 = vpop.trf.xlu0
    %v6361 = vpop.trf.xlu0
    %v6362 = vpop.trf.xlu0
    %v6363 = vpop.trf.xlu0
    %v6364 = vpop.trf.xlu0
    %v6365 = vpop.trf.xlu0
    %v6366 = vpop.trf.xlu0
    %v6367 = vpop.trf.xlu0
    %v6368 = vpop.trf.xlu0
    %v6369 = vpack.c.bf16 %v6354, %v6353
    %v6370 = vpack.c.bf16 %v6335, %v6334
    %v6371 = vpack.c.bf16 %v6336, %v6336
    %v6373 = vsel %vm3328, %v6369, 0
    %v6376 = vsel %vm167, %v6371, 0
    %6378 = vmatprep.subr.bf16.mxu0 0
    %6379 = vmatpush1.bf16.msra.mxu0 0
    %6380 = vmatprep.subr.bf16.mxu0 0
    %6381 = vmatpush1.bf16.msra.mxu0 0
    %6382 = vmatprep.subr.bf16.mxu0 0
    %6383 = vmatpush1.bf16.msra.mxu0 0
    %6384 = vmatprep.subr.bf16.mxu0 0
    %6385 = vmatpush1.bf16.msra.mxu0 0
    %6386 = vmatprep.subr.bf16.mxu0 0
    %6387 = vmatpush1.bf16.msra.mxu0 0
    %6388 = vmatprep.subr.bf16.mxu0 0
    %6389 = vmatpush1.bf16.msra.mxu0 0
    %6390 = vmatprep.subr.bf16.mxu0 0
    %6391 = vmatpush1.bf16.msra.mxu0 %v6376
    %6392 = vmatprep.subr.bf16.mxu0 0
    %6393 = vmatpush1.bf16.msra.mxu0 %v6370
    %6394 = vmatprep.subr.bf16.mxu0 0
    %6395 = vmatpush2.bf16.msra.mxu0 0
    %6396 = vmatprep.subr.bf16.mxu0 0
    %6397 = vmatpush2.bf16.msra.mxu0 0
    %6398 = vmatprep.subr.bf16.mxu0 0
    %6399 = vmatpush2.bf16.msra.mxu0 0
    %6400 = vmatprep.subr.bf16.mxu0 0
    %6401 = vmatpush2.bf16.msra.mxu0 0
    %6402 = vmatprep.subr.bf16.mxu0 0
    %6403 = vmatpush2.bf16.msra.mxu0 0
    %6404 = vmatprep.subr.bf16.mxu0 0
    %6405 = vmatpush2.bf16.msra.mxu0 0
    %6406 = vmatprep.subr.bf16.mxu0 0
    %6407 = vmatpush2.bf16.msra.mxu0 0
    %6408 = vmatprep.subr.bf16.mxu0 0
    %6409 = vmatpush2.bf16.msra.mxu0 0
    %6410 = vmatprep.mubr.bf16.mxu0 0
    %6411 = vmatmul.mubr.bf16.gmra.mxu0 %v6373
    %v6412 = vpop.f32.mrf.mxu0
    %v6413 = vadd.f32 0.0, %v6412
    %v6414 = vpop.f32.mrf.mxu0
    %v6415 = vpop.f32.mrf.mxu0
    %v6416 = vadd.f32 0.0, %v6415
    %v6417 = vpop.f32.mrf.mxu0
    %6418 = vdwg.mxu0
    %v6419 = vld [vmem:[%s9] sm:$0xff]
    %v6420 = vld [vmem:[%s9 + $0x8] sm:$0xff]
    %v6421 = vpack.c.bf16 %v6420, %v6419
    %v6422 = vpack.c.bf16 %v6416, %v6413
    %v6424 = vsel %vm6235, %v6421, 0
    %6426 = vmatprep.subr.bf16.mxu0 0
    %6427 = vmatpush1.bf16.msra.mxu0 0
    %6428 = vmatprep.subr.bf16.mxu0 0
    %6429 = vmatpush1.bf16.msra.mxu0 0
    %6430 = vmatprep.subr.bf16.mxu0 0
    %6431 = vmatpush1.bf16.msra.mxu0 0
    %6432 = vmatprep.subr.bf16.mxu0 0
    %6433 = vmatpush1.bf16.msra.mxu0 0
    %6434 = vmatprep.subr.bf16.mxu0 0
    %6435 = vmatpush1.bf16.msra.mxu0 0
    %6436 = vmatprep.subr.bf16.mxu0 0
    %6437 = vmatpush1.bf16.msra.mxu0 0
    %6438 = vmatprep.subr.bf16.mxu0 0
    %6439 = vmatpush1.bf16.msra.mxu0 0
    %6440 = vmatprep.subr.bf16.mxu0 0
    %6441 = vmatpush1.bf16.msra.mxu0 %v6422
    %6442 = vmatprep.subr.bf16.mxu0 0
    %6443 = vmatpush2.bf16.msra.mxu0 0
    %6444 = vmatprep.subr.bf16.mxu0 0
    %6445 = vmatpush2.bf16.msra.mxu0 0
    %6446 = vmatprep.subr.bf16.mxu0 0
    %6447 = vmatpush2.bf16.msra.mxu0 0
    %6448 = vmatprep.subr.bf16.mxu0 0
    %6449 = vmatpush2.bf16.msra.mxu0 0
    %6450 = vmatprep.subr.bf16.mxu0 0
    %6451 = vmatpush2.bf16.msra.mxu0 0
    %6452 = vmatprep.subr.bf16.mxu0 0
    %6453 = vmatpush2.bf16.msra.mxu0 0
    %6454 = vmatprep.subr.bf16.mxu0 0
    %6455 = vmatpush2.bf16.msra.mxu0 0
    %6456 = vmatprep.subr.bf16.mxu0 0
    %6457 = vmatpush2.bf16.msra.mxu0 0
    %6458 = vmatprep.mubr.bf16.mxu0 0
    %6459 = vmatmul.mubr.bf16.gmra.mxu0 %v6424
    %v6460 = vpop.f32.mrf.mxu0
    %v6461 = vadd.f32 0.0, %v6460
    %v6462 = vpop.f32.mrf.mxu0
    %v6463 = vpop.f32.mrf.mxu0
    %v6464 = vadd.f32 0.0, %v6463
    %v6465 = vpop.f32.mrf.mxu0
    %6466 = vdwg.mxu0
    %v6467 = vld [vmem:[%s39] sm:$0xff]
    %v6468 = vld [vmem:[%s39 + $0x8] sm:$0xff]
    %v6469 = vld [vmem:[%s39 + $0x10] sm:$0xff]
    %v6470 = vld [vmem:[%s39 + $0x18] sm:$0xff]
    %v6471 = vpack.c.bf16 %v6464, %v6461
    %v6472 = vpack.c.bf16 %v6468, %v6467
    %v6473 = vpack.c.bf16 %v6470, %v6469
    %v6474 = vld [vmem:[%s41] sm:$0x1]
    %v6476 = vlaneseq
    %v6477 = vshrl.u32 %v6476, 7
    %v6478 = vsub.s32 0, %v6477
    %v6479 = vrot.slane %v6474, %v6478
    %v6482 = vsel %vm323, %v6471, 0
    %6484 = vmatprep.subr.bf16.mxu0 0
    %6485 = vmatpush1.bf16.msra.mxu0 0
    %6486 = vmatprep.subr.bf16.mxu0 0
    %6487 = vmatpush1.bf16.msra.mxu0 0
    %6488 = vmatprep.subr.bf16.mxu0 0
    %6489 = vmatpush1.bf16.msra.mxu0 0
    %6490 = vmatprep.subr.bf16.mxu0 0
    %6491 = vmatpush1.bf16.msra.mxu0 0
    %6492 = vmatprep.subr.bf16.mxu0 0
    %6493 = vmatpush1.bf16.msra.mxu0 0
    %6494 = vmatprep.subr.bf16.mxu0 0
    %6495 = vmatpush1.bf16.msra.mxu0 0
    %6496 = vmatprep.subr.bf16.mxu0 0
    %6497 = vmatpush1.bf16.msra.mxu0 %v6473
    %6498 = vmatprep.subr.bf16.mxu0 0
    %6499 = vmatpush1.bf16.msra.mxu0 %v6472
    %6500 = vmatprep.subr.bf16.mxu0 0
    %6501 = vmatpush2.bf16.msra.mxu0 0
    %6502 = vmatprep.subr.bf16.mxu0 0
    %6503 = vmatpush2.bf16.msra.mxu0 0
    %6504 = vmatprep.subr.bf16.mxu0 0
    %6505 = vmatpush2.bf16.msra.mxu0 0
    %6506 = vmatprep.subr.bf16.mxu0 0
    %6507 = vmatpush2.bf16.msra.mxu0 0
    %6508 = vmatprep.subr.bf16.mxu0 0
    %6509 = vmatpush2.bf16.msra.mxu0 0
    %6510 = vmatprep.subr.bf16.mxu0 0
    %6511 = vmatpush2.bf16.msra.mxu0 0
    %6512 = vmatprep.subr.bf16.mxu0 0
    %6513 = vmatpush2.bf16.msra.mxu0 0
    %6514 = vmatprep.subr.bf16.mxu0 0
    %6515 = vmatpush2.bf16.msra.mxu0 0
    %6516 = vmatprep.mubr.bf16.mxu0 0
    %6517 = vmatmul.mubr.bf16.gmra.mxu0 %v6482
    %v6518 = vpop.f32.mrf.mxu0
    %v6519 = vadd.f32 %v6479, %v6518
    %v6520 = vpop.f32.mrf.mxu0
    %v6521 = vpop.f32.mrf.mxu0
    %v6522 = vadd.f32 %v6479, %v6521
    %v6523 = vpop.f32.mrf.mxu0
    %6524 = vdwg.mxu0
    %vm6525 = vcmp.gt.f32.partialorder %v6519, 0.0
    %vm6526 = vcmp.gt.f32.partialorder %v6522, 0.0
    %v6527 = vmul.f32 %v6519, 0.01
    %v6528 = vmul.f32 %v6522, 0.01
    %v6529 = vsel %vm6525, %v6519, %v6527
    %v6530 = vsel %vm6526, %v6522, %v6528
    %v6531 = vadd.f32 %v6413, %v6529
    %v6532 = vadd.f32 %v6416, %v6530
    %v6533 = vpack.c.bf16 %v6532, %v6531
    %6534 = vmatprep.subr.bf16.mxu0 0
    %6535 = vmatpush1.bf16.msra.mxu0 0
    %6536 = vmatprep.subr.bf16.mxu0 0
    %6537 = vmatpush1.bf16.msra.mxu0 0
    %6538 = vmatprep.subr.bf16.mxu0 0
    %6539 = vmatpush1.bf16.msra.mxu0 0
    %6540 = vmatprep.subr.bf16.mxu0 0
    %6541 = vmatpush1.bf16.msra.mxu0 0
    %6542 = vmatprep.subr.bf16.mxu0 0
    %6543 = vmatpush1.bf16.msra.mxu0 0
    %6544 = vmatprep.subr.bf16.mxu0 0
    %6545 = vmatpush1.bf16.msra.mxu0 0
    %6546 = vmatprep.subr.bf16.mxu0 0
    %6547 = vmatpush1.bf16.msra.mxu0 0
    %6548 = vmatprep.subr.bf16.mxu0 0
    %6549 = vmatpush1.bf16.msra.mxu0 %v6533
    %6550 = vmatprep.subr.bf16.mxu0 0
    %6551 = vmatpush2.bf16.msra.mxu0 0
    %6552 = vmatprep.subr.bf16.mxu0 0
    %6553 = vmatpush2.bf16.msra.mxu0 0
    %6554 = vmatprep.subr.bf16.mxu0 0
    %6555 = vmatpush2.bf16.msra.mxu0 0
    %6556 = vmatprep.subr.bf16.mxu0 0
    %6557 = vmatpush2.bf16.msra.mxu0 0
    %6558 = vmatprep.subr.bf16.mxu0 0
    %6559 = vmatpush2.bf16.msra.mxu0 0
    %6560 = vmatprep.subr.bf16.mxu0 0
    %6561 = vmatpush2.bf16.msra.mxu0 0
    %6562 = vmatprep.subr.bf16.mxu0 0
    %6563 = vmatpush2.bf16.msra.mxu0 0
    %6564 = vmatprep.subr.bf16.mxu0 0
    %6565 = vmatpush2.bf16.msra.mxu0 0
    %6566 = vmatprep.mubr.bf16.mxu0 0
    %6567 = vmatmul.mubr.bf16.gmra.mxu0 %v6424
    %v6568 = vpop.f32.mrf.mxu0
    %v6569 = vadd.f32 0.0, %v6568
    %v6570 = vpop.f32.mrf.mxu0
    %v6571 = vpop.f32.mrf.mxu0
    %v6572 = vadd.f32 0.0, %v6571
    %v6573 = vpop.f32.mrf.mxu0
    %6574 = vdwg.mxu0
    %s6575 = scalar_lea.vmem %s39, 32
    %v6576 = vld [vmem:[%s6575] sm:$0xff]
    %v6577 = vld [vmem:[%s6575 + $0x8] sm:$0xff]
    %v6578 = vld [vmem:[%s6575 + $0x10] sm:$0xff]
    %v6579 = vld [vmem:[%s6575 + $0x18] sm:$0xff]
    %v6580 = vpack.c.bf16 %v6572, %v6569
    %v6581 = vpack.c.bf16 %v6577, %v6576
    %v6582 = vpack.c.bf16 %v6579, %v6578
    %s6583 = scalar_lea.vmem %s41, 1
    %v6584 = vld [vmem:[%s6583] sm:$0x1]
    %v6586 = vlaneseq
    %v6587 = vshrl.u32 %v6586, 7
    %v6588 = vsub.s32 0, %v6587
    %v6589 = vrot.slane %v6584, %v6588
    %v6592 = vsel %vm323, %v6580, 0
    %6594 = vmatprep.subr.bf16.mxu0 0
    %6595 = vmatpush1.bf16.msra.mxu0 0
    %6596 = vmatprep.subr.bf16.mxu0 0
    %6597 = vmatpush1.bf16.msra.mxu0 0
    %6598 = vmatprep.subr.bf16.mxu0 0
    %6599 = vmatpush1.bf16.msra.mxu0 0
    %6600 = vmatprep.subr.bf16.mxu0 0
    %6601 = vmatpush1.bf16.msra.mxu0 0
    %6602 = vmatprep.subr.bf16.mxu0 0
    %6603 = vmatpush1.bf16.msra.mxu0 0
    %6604 = vmatprep.subr.bf16.mxu0 0
    %6605 = vmatpush1.bf16.msra.mxu0 0
    %6606 = vmatprep.subr.bf16.mxu0 0
    %6607 = vmatpush1.bf16.msra.mxu0 %v6582
    %6608 = vmatprep.subr.bf16.mxu0 0
    %6609 = vmatpush1.bf16.msra.mxu0 %v6581
    %6610 = vmatprep.subr.bf16.mxu0 0
    %6611 = vmatpush2.bf16.msra.mxu0 0
    %6612 = vmatprep.subr.bf16.mxu0 0
    %6613 = vmatpush2.bf16.msra.mxu0 0
    %6614 = vmatprep.subr.bf16.mxu0 0
    %6615 = vmatpush2.bf16.msra.mxu0 0
    %6616 = vmatprep.subr.bf16.mxu0 0
    %6617 = vmatpush2.bf16.msra.mxu0 0
    %6618 = vmatprep.subr.bf16.mxu0 0
    %6619 = vmatpush2.bf16.msra.mxu0 0
    %6620 = vmatprep.subr.bf16.mxu0 0
    %6621 = vmatpush2.bf16.msra.mxu0 0
    %6622 = vmatprep.subr.bf16.mxu0 0
    %6623 = vmatpush2.bf16.msra.mxu0 0
    %6624 = vmatprep.subr.bf16.mxu0 0
    %6625 = vmatpush2.bf16.msra.mxu0 0
    %6626 = vmatprep.mubr.bf16.mxu0 0
    %6627 = vmatmul.mubr.bf16.gmra.mxu0 %v6592
    %v6628 = vpop.f32.mrf.mxu0
    %v6629 = vadd.f32 %v6589, %v6628
    %v6630 = vpop.f32.mrf.mxu0
    %v6631 = vpop.f32.mrf.mxu0
    %v6632 = vadd.f32 %v6589, %v6631
    %v6633 = vpop.f32.mrf.mxu0
    %6634 = vdwg.mxu0
    %vm6635 = vcmp.gt.f32.partialorder %v6629, 0.0
    %vm6636 = vcmp.gt.f32.partialorder %v6632, 0.0
    %v6637 = vmul.f32 %v6629, 0.01
    %v6638 = vmul.f32 %v6632, 0.01
    %v6639 = vsel %vm6635, %v6629, %v6637
    %v6640 = vsel %vm6636, %v6632, %v6638
    %v6641 = vadd.f32 %v6531, %v6639
    %v6642 = vadd.f32 %v6532, %v6640
    %v6643 = vpack.c.bf16 %v6642, %v6641
    %6644 = vmatprep.subr.bf16.mxu0 0
    %6645 = vmatpush1.bf16.msra.mxu0 0
    %6646 = vmatprep.subr.bf16.mxu0 0
    %6647 = vmatpush1.bf16.msra.mxu0 0
    %6648 = vmatprep.subr.bf16.mxu0 0
    %6649 = vmatpush1.bf16.msra.mxu0 0
    %6650 = vmatprep.subr.bf16.mxu0 0
    %6651 = vmatpush1.bf16.msra.mxu0 0
    %6652 = vmatprep.subr.bf16.mxu0 0
    %6653 = vmatpush1.bf16.msra.mxu0 0
    %6654 = vmatprep.subr.bf16.mxu0 0
    %6655 = vmatpush1.bf16.msra.mxu0 0
    %6656 = vmatprep.subr.bf16.mxu0 0
    %6657 = vmatpush1.bf16.msra.mxu0 0
    %6658 = vmatprep.subr.bf16.mxu0 0
    %6659 = vmatpush1.bf16.msra.mxu0 %v6643
    %6660 = vmatprep.subr.bf16.mxu0 0
    %6661 = vmatpush2.bf16.msra.mxu0 0
    %6662 = vmatprep.subr.bf16.mxu0 0
    %6663 = vmatpush2.bf16.msra.mxu0 0
    %6664 = vmatprep.subr.bf16.mxu0 0
    %6665 = vmatpush2.bf16.msra.mxu0 0
    %6666 = vmatprep.subr.bf16.mxu0 0
    %6667 = vmatpush2.bf16.msra.mxu0 0
    %6668 = vmatprep.subr.bf16.mxu0 0
    %6669 = vmatpush2.bf16.msra.mxu0 0
    %6670 = vmatprep.subr.bf16.mxu0 0
    %6671 = vmatpush2.bf16.msra.mxu0 0
    %6672 = vmatprep.subr.bf16.mxu0 0
    %6673 = vmatpush2.bf16.msra.mxu0 0
    %6674 = vmatprep.subr.bf16.mxu0 0
    %6675 = vmatpush2.bf16.msra.mxu0 0
    %6676 = vmatprep.mubr.bf16.mxu0 0
    %6677 = vmatmul.mubr.bf16.gmra.mxu0 %v6424
    %v6678 = vpop.f32.mrf.mxu0
    %v6679 = vadd.f32 0.0, %v6678
    %v6680 = vpop.f32.mrf.mxu0
    %v6681 = vpop.f32.mrf.mxu0
    %v6682 = vadd.f32 0.0, %v6681
    %v6683 = vpop.f32.mrf.mxu0
    %6684 = vdwg.mxu0
    %s6685 = scalar_lea.vmem %s39, 64
    %v6686 = vld [vmem:[%s6685] sm:$0xff]
    %v6687 = vld [vmem:[%s6685 + $0x8] sm:$0xff]
    %v6688 = vld [vmem:[%s6685 + $0x10] sm:$0xff]
    %v6689 = vld [vmem:[%s6685 + $0x18] sm:$0xff]
    %v6690 = vpack.c.bf16 %v6682, %v6679
    %v6691 = vpack.c.bf16 %v6687, %v6686
    %v6692 = vpack.c.bf16 %v6689, %v6688
    %s6693 = scalar_lea.vmem %s41, 2
    %v6694 = vld [vmem:[%s6693] sm:$0x1]
    %v6696 = vlaneseq
    %v6697 = vshrl.u32 %v6696, 7
    %v6698 = vsub.s32 0, %v6697
    %v6699 = vrot.slane %v6694, %v6698
    %v6702 = vsel %vm323, %v6690, 0
    %6704 = vmatprep.subr.bf16.mxu0 0
    %6705 = vmatpush1.bf16.msra.mxu0 0
    %6706 = vmatprep.subr.bf16.mxu0 0
    %6707 = vmatpush1.bf16.msra.mxu0 0
    %6708 = vmatprep.subr.bf16.mxu0 0
    %6709 = vmatpush1.bf16.msra.mxu0 0
    %6710 = vmatprep.subr.bf16.mxu0 0
    %6711 = vmatpush1.bf16.msra.mxu0 0
    %6712 = vmatprep.subr.bf16.mxu0 0
    %6713 = vmatpush1.bf16.msra.mxu0 0
    %6714 = vmatprep.subr.bf16.mxu0 0
    %6715 = vmatpush1.bf16.msra.mxu0 0
    %6716 = vmatprep.subr.bf16.mxu0 0
    %6717 = vmatpush1.bf16.msra.mxu0 %v6692
    %6718 = vmatprep.subr.bf16.mxu0 0
    %6719 = vmatpush1.bf16.msra.mxu0 %v6691
    %6720 = vmatprep.subr.bf16.mxu0 0
    %6721 = vmatpush2.bf16.msra.mxu0 0
    %6722 = vmatprep.subr.bf16.mxu0 0
    %6723 = vmatpush2.bf16.msra.mxu0 0
    %6724 = vmatprep.subr.bf16.mxu0 0
    %6725 = vmatpush2.bf16.msra.mxu0 0
    %6726 = vmatprep.subr.bf16.mxu0 0
    %6727 = vmatpush2.bf16.msra.mxu0 0
    %6728 = vmatprep.subr.bf16.mxu0 0
    %6729 = vmatpush2.bf16.msra.mxu0 0
    %6730 = vmatprep.subr.bf16.mxu0 0
    %6731 = vmatpush2.bf16.msra.mxu0 0
    %6732 = vmatprep.subr.bf16.mxu0 0
    %6733 = vmatpush2.bf16.msra.mxu0 0
    %6734 = vmatprep.subr.bf16.mxu0 0
    %6735 = vmatpush2.bf16.msra.mxu0 0
    %6736 = vmatprep.mubr.bf16.mxu0 0
    %6737 = vmatmul.mubr.bf16.gmra.mxu0 %v6702
    %v6738 = vpop.f32.mrf.mxu0
    %v6739 = vadd.f32 %v6699, %v6738
    %v6740 = vpop.f32.mrf.mxu0
    %v6741 = vpop.f32.mrf.mxu0
    %v6742 = vadd.f32 %v6699, %v6741
    %v6743 = vpop.f32.mrf.mxu0
    %6744 = vdwg.mxu0
    %vm6745 = vcmp.gt.f32.partialorder %v6739, 0.0
    %vm6746 = vcmp.gt.f32.partialorder %v6742, 0.0
    %v6747 = vmul.f32 %v6739, 0.01
    %v6748 = vmul.f32 %v6742, 0.01
    %v6749 = vsel %vm6745, %v6739, %v6747
    %v6750 = vsel %vm6746, %v6742, %v6748
    %v6751 = vadd.f32 %v6641, %v6749
    %v6752 = vadd.f32 %v6642, %v6750
    %v6753 = vpack.c.bf16 %v6752, %v6751
    %6754 = vmatprep.subr.bf16.mxu0 0
    %6755 = vmatpush1.bf16.msra.mxu0 0
    %6756 = vmatprep.subr.bf16.mxu0 0
    %6757 = vmatpush1.bf16.msra.mxu0 0
    %6758 = vmatprep.subr.bf16.mxu0 0
    %6759 = vmatpush1.bf16.msra.mxu0 0
    %6760 = vmatprep.subr.bf16.mxu0 0
    %6761 = vmatpush1.bf16.msra.mxu0 0
    %6762 = vmatprep.subr.bf16.mxu0 0
    %6763 = vmatpush1.bf16.msra.mxu0 0
    %6764 = vmatprep.subr.bf16.mxu0 0
    %6765 = vmatpush1.bf16.msra.mxu0 0
    %6766 = vmatprep.subr.bf16.mxu0 0
    %6767 = vmatpush1.bf16.msra.mxu0 0
    %6768 = vmatprep.subr.bf16.mxu0 0
    %6769 = vmatpush1.bf16.msra.mxu0 %v6753
    %6770 = vmatprep.subr.bf16.mxu0 0
    %6771 = vmatpush2.bf16.msra.mxu0 0
    %6772 = vmatprep.subr.bf16.mxu0 0
    %6773 = vmatpush2.bf16.msra.mxu0 0
    %6774 = vmatprep.subr.bf16.mxu0 0
    %6775 = vmatpush2.bf16.msra.mxu0 0
    %6776 = vmatprep.subr.bf16.mxu0 0
    %6777 = vmatpush2.bf16.msra.mxu0 0
    %6778 = vmatprep.subr.bf16.mxu0 0
    %6779 = vmatpush2.bf16.msra.mxu0 0
    %6780 = vmatprep.subr.bf16.mxu0 0
    %6781 = vmatpush2.bf16.msra.mxu0 0
    %6782 = vmatprep.subr.bf16.mxu0 0
    %6783 = vmatpush2.bf16.msra.mxu0 0
    %6784 = vmatprep.subr.bf16.mxu0 0
    %6785 = vmatpush2.bf16.msra.mxu0 0
    %6786 = vmatprep.mubr.bf16.mxu0 0
    %6787 = vmatmul.mubr.bf16.gmra.mxu0 %v6424
    %v6788 = vpop.f32.mrf.mxu0
    %v6789 = vadd.f32 0.0, %v6788
    %v6790 = vpop.f32.mrf.mxu0
    %v6791 = vpop.f32.mrf.mxu0
    %v6792 = vadd.f32 0.0, %v6791
    %v6793 = vpop.f32.mrf.mxu0
    %6794 = vdwg.mxu0
    %s6795 = scalar_lea.vmem %s39, 96
    %v6796 = vld [vmem:[%s6795] sm:$0xff]
    %v6797 = vld [vmem:[%s6795 + $0x8] sm:$0xff]
    %v6798 = vld [vmem:[%s6795 + $0x10] sm:$0xff]
    %v6799 = vld [vmem:[%s6795 + $0x18] sm:$0xff]
    %v6800 = vpack.c.bf16 %v6792, %v6789
    %v6801 = vpack.c.bf16 %v6797, %v6796
    %v6802 = vpack.c.bf16 %v6799, %v6798
    %s6803 = scalar_lea.vmem %s41, 3
    %v6804 = vld [vmem:[%s6803] sm:$0x1]
    %v6806 = vlaneseq
    %v6807 = vshrl.u32 %v6806, 7
    %v6808 = vsub.s32 0, %v6807
    %v6809 = vrot.slane %v6804, %v6808
    %v6812 = vsel %vm323, %v6800, 0
    %6814 = vmatprep.subr.bf16.mxu0 0
    %6815 = vmatpush1.bf16.msra.mxu0 0
    %6816 = vmatprep.subr.bf16.mxu0 0
    %6817 = vmatpush1.bf16.msra.mxu0 0
    %6818 = vmatprep.subr.bf16.mxu0 0
    %6819 = vmatpush1.bf16.msra.mxu0 0
    %6820 = vmatprep.subr.bf16.mxu0 0
    %6821 = vmatpush1.bf16.msra.mxu0 0
    %6822 = vmatprep.subr.bf16.mxu0 0
    %6823 = vmatpush1.bf16.msra.mxu0 0
    %6824 = vmatprep.subr.bf16.mxu0 0
    %6825 = vmatpush1.bf16.msra.mxu0 0
    %6826 = vmatprep.subr.bf16.mxu0 0
    %6827 = vmatpush1.bf16.msra.mxu0 %v6802
    %6828 = vmatprep.subr.bf16.mxu0 0
    %6829 = vmatpush1.bf16.msra.mxu0 %v6801
    %6830 = vmatprep.subr.bf16.mxu0 0
    %6831 = vmatpush2.bf16.msra.mxu0 0
    %6832 = vmatprep.subr.bf16.mxu0 0
    %6833 = vmatpush2.bf16.msra.mxu0 0
    %6834 = vmatprep.subr.bf16.mxu0 0
    %6835 = vmatpush2.bf16.msra.mxu0 0
    %6836 = vmatprep.subr.bf16.mxu0 0
    %6837 = vmatpush2.bf16.msra.mxu0 0
    %6838 = vmatprep.subr.bf16.mxu0 0
    %6839 = vmatpush2.bf16.msra.mxu0 0
    %6840 = vmatprep.subr.bf16.mxu0 0
    %6841 = vmatpush2.bf16.msra.mxu0 0
    %6842 = vmatprep.subr.bf16.mxu0 0
    %6843 = vmatpush2.bf16.msra.mxu0 0
    %6844 = vmatprep.subr.bf16.mxu0 0
    %6845 = vmatpush2.bf16.msra.mxu0 0
    %6846 = vmatprep.mubr.bf16.mxu0 0
    %6847 = vmatmul.mubr.bf16.gmra.mxu0 %v6812
    %v6848 = vpop.f32.mrf.mxu0
    %v6849 = vadd.f32 %v6809, %v6848
    %v6850 = vpop.f32.mrf.mxu0
    %v6851 = vpop.f32.mrf.mxu0
    %v6852 = vadd.f32 %v6809, %v6851
    %v6853 = vpop.f32.mrf.mxu0
    %6854 = vdwg.mxu0
    %vm6855 = vcmp.gt.f32.partialorder %v6849, 0.0
    %vm6856 = vcmp.gt.f32.partialorder %v6852, 0.0
    %v6857 = vmul.f32 %v6849, 0.01
    %v6858 = vmul.f32 %v6852, 0.01
    %v6859 = vsel %vm6855, %v6849, %v6857
    %v6860 = vsel %vm6856, %v6852, %v6858
    %v6861 = vadd.f32 %v6751, %v6859
    %v6862 = vadd.f32 %v6752, %v6860
    %v6863 = vld [vmem:[%s15] sm:$0xff]
    %v6864 = vld [vmem:[%s15 + $0x8] sm:$0xff]
    %v6865 = vld [vmem:[%s43] sm:$0xff]
    %v6866 = vld [vmem:[%s43 + $0x8] sm:$0xff]
    %v6867 = vld [vmem:[%s43 + $0x10] sm:$0xff]
    %v6868 = vld [vmem:[%s43 + $0x18] sm:$0xff]
    %v6869 = vpack.c.bf16 %v6862, %v6861
    %v6870 = vpack.c.bf16 %v6866, %v6865
    %v6871 = vpack.c.bf16 %v6868, %v6867
    %v6872 = vld [vmem:[%s45] sm:$0x1]
    %v6874 = vlaneseq
    %v6875 = vshrl.u32 %v6874, 7
    %v6876 = vsub.s32 0, %v6875
    %v6877 = vrot.slane %v6872, %v6876
    %v6880 = vsel %vm323, %v6869, 0
    %6882 = vmatprep.subr.bf16.mxu0 0
    %6883 = vmatpush1.bf16.msra.mxu0 0
    %6884 = vmatprep.subr.bf16.mxu0 0
    %6885 = vmatpush1.bf16.msra.mxu0 0
    %6886 = vmatprep.subr.bf16.mxu0 0
    %6887 = vmatpush1.bf16.msra.mxu0 0
    %6888 = vmatprep.subr.bf16.mxu0 0
    %6889 = vmatpush1.bf16.msra.mxu0 0
    %6890 = vmatprep.subr.bf16.mxu0 0
    %6891 = vmatpush1.bf16.msra.mxu0 0
    %6892 = vmatprep.subr.bf16.mxu0 0
    %6893 = vmatpush1.bf16.msra.mxu0 0
    %6894 = vmatprep.subr.bf16.mxu0 0
    %6895 = vmatpush1.bf16.msra.mxu0 %v6871
    %6896 = vmatprep.subr.bf16.mxu0 0
    %6897 = vmatpush1.bf16.msra.mxu0 %v6870
    %6898 = vmatprep.subr.bf16.mxu0 0
    %6899 = vmatpush2.bf16.msra.mxu0 0
    %6900 = vmatprep.subr.bf16.mxu0 0
    %6901 = vmatpush2.bf16.msra.mxu0 0
    %6902 = vmatprep.subr.bf16.mxu0 0
    %6903 = vmatpush2.bf16.msra.mxu0 0
    %6904 = vmatprep.subr.bf16.mxu0 0
    %6905 = vmatpush2.bf16.msra.mxu0 0
    %6906 = vmatprep.subr.bf16.mxu0 0
    %6907 = vmatpush2.bf16.msra.mxu0 0
    %6908 = vmatprep.subr.bf16.mxu0 0
    %6909 = vmatpush2.bf16.msra.mxu0 0
    %6910 = vmatprep.subr.bf16.mxu0 0
    %6911 = vmatpush2.bf16.msra.mxu0 0
    %6912 = vmatprep.subr.bf16.mxu0 0
    %6913 = vmatpush2.bf16.msra.mxu0 0
    %6914 = vmatprep.mubr.bf16.mxu0 0
    %6915 = vmatmul.mubr.bf16.gmra.mxu0 %v6880
    %v6916 = vpop.f32.mrf.mxu0
    %v6917 = vadd.f32 %v6877, %v6916
    %v6918 = vpop.f32.mrf.mxu0
    %v6919 = vpop.f32.mrf.mxu0
    %v6920 = vadd.f32 %v6877, %v6919
    %v6921 = vpop.f32.mrf.mxu0
    %6922 = vdwg.mxu0
    %s6923 = scalar_lea.vmem %s43, 32
    %v6924 = vld [vmem:[%s6923] sm:$0xff]
    %v6925 = vld [vmem:[%s6923 + $0x8] sm:$0xff]
    %v6926 = vld [vmem:[%s6923 + $0x10] sm:$0xff]
    %v6927 = vld [vmem:[%s6923 + $0x18] sm:$0xff]
    %v6928 = vpack.c.bf16 %v6925, %v6924
    %v6929 = vpack.c.bf16 %v6927, %v6926
    %s6930 = scalar_lea.vmem %s45, 1
    %v6931 = vld [vmem:[%s6930] sm:$0x1]
    %v6933 = vlaneseq
    %v6934 = vshrl.u32 %v6933, 7
    %v6935 = vsub.s32 0, %v6934
    %v6936 = vrot.slane %v6931, %v6935
    %6938 = vmatprep.subr.bf16.mxu0 0
    %6939 = vmatpush1.bf16.msra.mxu0 0
    %6940 = vmatprep.subr.bf16.mxu0 0
    %6941 = vmatpush1.bf16.msra.mxu0 0
    %6942 = vmatprep.subr.bf16.mxu0 0
    %6943 = vmatpush1.bf16.msra.mxu0 0
    %6944 = vmatprep.subr.bf16.mxu0 0
    %6945 = vmatpush1.bf16.msra.mxu0 0
    %6946 = vmatprep.subr.bf16.mxu0 0
    %6947 = vmatpush1.bf16.msra.mxu0 0
    %6948 = vmatprep.subr.bf16.mxu0 0
    %6949 = vmatpush1.bf16.msra.mxu0 0
    %6950 = vmatprep.subr.bf16.mxu0 0
    %6951 = vmatpush1.bf16.msra.mxu0 %v6929
    %6952 = vmatprep.subr.bf16.mxu0 0
    %6953 = vmatpush1.bf16.msra.mxu0 %v6928
    %6954 = vmatprep.subr.bf16.mxu0 0
    %6955 = vmatpush2.bf16.msra.mxu0 0
    %6956 = vmatprep.subr.bf16.mxu0 0
    %6957 = vmatpush2.bf16.msra.mxu0 0
    %6958 = vmatprep.subr.bf16.mxu0 0
    %6959 = vmatpush2.bf16.msra.mxu0 0
    %6960 = vmatprep.subr.bf16.mxu0 0
    %6961 = vmatpush2.bf16.msra.mxu0 0
    %6962 = vmatprep.subr.bf16.mxu0 0
    %6963 = vmatpush2.bf16.msra.mxu0 0
    %6964 = vmatprep.subr.bf16.mxu0 0
    %6965 = vmatpush2.bf16.msra.mxu0 0
    %6966 = vmatprep.subr.bf16.mxu0 0
    %6967 = vmatpush2.bf16.msra.mxu0 0
    %6968 = vmatprep.subr.bf16.mxu0 0
    %6969 = vmatpush2.bf16.msra.mxu0 0
    %6970 = vmatprep.mubr.bf16.mxu0 0
    %6971 = vmatmul.mubr.bf16.gmra.mxu0 %v6880
    %v6972 = vpop.f32.mrf.mxu0
    %v6973 = vadd.f32 %v6936, %v6972
    %v6974 = vpop.f32.mrf.mxu0
    %v6975 = vpop.f32.mrf.mxu0
    %v6976 = vadd.f32 %v6936, %v6975
    %v6977 = vpop.f32.mrf.mxu0
    %6978 = vdwg.mxu0
    %s6979 = scalar_lea.vmem %s43, 64
    %v6980 = vld [vmem:[%s6979] sm:$0xff]
    %v6981 = vld [vmem:[%s6979 + $0x8] sm:$0xff]
    %v6982 = vld [vmem:[%s6979 + $0x10] sm:$0xff]
    %v6983 = vld [vmem:[%s6979 + $0x18] sm:$0xff]
    %v6984 = vpack.c.bf16 %v6981, %v6980
    %v6985 = vpack.c.bf16 %v6983, %v6982
    %s6986 = scalar_lea.vmem %s45, 2
    %v6987 = vld [vmem:[%s6986] sm:$0x1]
    %v6989 = vlaneseq
    %v6990 = vshrl.u32 %v6989, 7
    %v6991 = vsub.s32 0, %v6990
    %v6992 = vrot.slane %v6987, %v6991
    %6994 = vmatprep.subr.bf16.mxu0 0
    %6995 = vmatpush1.bf16.msra.mxu0 0
    %6996 = vmatprep.subr.bf16.mxu0 0
    %6997 = vmatpush1.bf16.msra.mxu0 0
    %6998 = vmatprep.subr.bf16.mxu0 0
    %6999 = vmatpush1.bf16.msra.mxu0 0
    %7000 = vmatprep.subr.bf16.mxu0 0
    %7001 = vmatpush1.bf16.msra.mxu0 0
    %7002 = vmatprep.subr.bf16.mxu0 0
    %7003 = vmatpush1.bf16.msra.mxu0 0
    %7004 = vmatprep.subr.bf16.mxu0 0
    %7005 = vmatpush1.bf16.msra.mxu0 0
    %7006 = vmatprep.subr.bf16.mxu0 0
    %7007 = vmatpush1.bf16.msra.mxu0 %v6985
    %7008 = vmatprep.subr.bf16.mxu0 0
    %7009 = vmatpush1.bf16.msra.mxu0 %v6984
    %7010 = vmatprep.subr.bf16.mxu0 0
    %7011 = vmatpush2.bf16.msra.mxu0 0
    %7012 = vmatprep.subr.bf16.mxu0 0
    %7013 = vmatpush2.bf16.msra.mxu0 0
    %7014 = vmatprep.subr.bf16.mxu0 0
    %7015 = vmatpush2.bf16.msra.mxu0 0
    %7016 = vmatprep.subr.bf16.mxu0 0
    %7017 = vmatpush2.bf16.msra.mxu0 0
    %7018 = vmatprep.subr.bf16.mxu0 0
    %7019 = vmatpush2.bf16.msra.mxu0 0
    %7020 = vmatprep.subr.bf16.mxu0 0
    %7021 = vmatpush2.bf16.msra.mxu0 0
    %7022 = vmatprep.subr.bf16.mxu0 0
    %7023 = vmatpush2.bf16.msra.mxu0 0
    %7024 = vmatprep.subr.bf16.mxu0 0
    %7025 = vmatpush2.bf16.msra.mxu0 0
    %7026 = vmatprep.mubr.bf16.mxu0 0
    %7027 = vmatmul.mubr.bf16.gmra.mxu0 %v6880
    %v7028 = vpop.f32.mrf.mxu0
    %v7029 = vadd.f32 %v6992, %v7028
    %v7030 = vpop.f32.mrf.mxu0
    %v7031 = vpop.f32.mrf.mxu0
    %v7032 = vadd.f32 %v6992, %v7031
    %v7033 = vpop.f32.mrf.mxu0
    %7034 = vdwg.mxu0
    %7035 = vxpose.xlu0.b32.start [1/16] %v6973, 128
    %7036 = vxpose.xlu0.b32.cont [2/16] %v6976, 128
    %7037 = vxpose.xlu0.b32.cont [3/16] 0.0, 128
    %7038 = vxpose.xlu0.b32.cont [4/16] 0.0, 128
    %7039 = vxpose.xlu0.b32.cont [5/16] 0.0, 128
    %7040 = vxpose.xlu0.b32.cont [6/16] 0.0, 128
    %7041 = vxpose.xlu0.b32.cont [7/16] 0.0, 128
    %7042 = vxpose.xlu0.b32.cont [8/16] 0.0, 128
    %7043 = vxpose.xlu0.b32.cont [9/16] 0.0, 128
    %7044 = vxpose.xlu0.b32.cont [10/16] 0.0, 128
    %7045 = vxpose.xlu0.b32.cont [11/16] 0.0, 128
    %7046 = vxpose.xlu0.b32.cont [12/16] 0.0, 128
    %7047 = vxpose.xlu0.b32.cont [13/16] 0.0, 128
    %7048 = vxpose.xlu0.b32.cont [14/16] 0.0, 128
    %7049 = vxpose.xlu0.b32.cont [15/16] 0.0, 128
    %7050 = vxpose.xlu0.b32.end [16/16] 0.0, 128
    %v7051 = vpop.trf.xlu0
    %v7052 = vpop.trf.xlu0
    %v7053 = vpop.trf.xlu0
    %v7054 = vpop.trf.xlu0
    %v7055 = vpop.trf.xlu0
    %v7056 = vpop.trf.xlu0
    %v7057 = vpop.trf.xlu0
    %v7058 = vpop.trf.xlu0
    %v7059 = vpop.trf.xlu0
    %v7060 = vpop.trf.xlu0
    %v7061 = vpop.trf.xlu0
    %v7062 = vpop.trf.xlu0
    %v7063 = vpop.trf.xlu0
    %v7064 = vpop.trf.xlu0
    %v7065 = vpop.trf.xlu0
    %v7066 = vpop.trf.xlu0
    %v7067 = vpack.c.bf16 %v6920, %v6917
    %v7068 = vpack.c.bf16 %v7052, %v7051
    %v7069 = vpack.c.bf16 %v7054, %v7053
    %v7071 = vsel %vm323, %v7067, 0
    %7073 = vmatprep.subr.bf16.mxu0 0
    %7074 = vmatpush1.bf16.msra.mxu0 0
    %7075 = vmatprep.subr.bf16.mxu0 0
    %7076 = vmatpush1.bf16.msra.mxu0 0
    %7077 = vmatprep.subr.bf16.mxu0 0
    %7078 = vmatpush1.bf16.msra.mxu0 0
    %7079 = vmatprep.subr.bf16.mxu0 0
    %7080 = vmatpush1.bf16.msra.mxu0 0
    %7081 = vmatprep.subr.bf16.mxu0 0
    %7082 = vmatpush1.bf16.msra.mxu0 0
    %7083 = vmatprep.subr.bf16.mxu0 0
    %7084 = vmatpush1.bf16.msra.mxu0 0
    %7085 = vmatprep.subr.bf16.mxu0 0
    %7086 = vmatpush1.bf16.msra.mxu0 %v7069
    %7087 = vmatprep.subr.bf16.mxu0 0
    %7088 = vmatpush1.bf16.msra.mxu0 %v7068
    %7089 = vmatprep.subr.bf16.mxu0 0
    %7090 = vmatpush2.bf16.msra.mxu0 0
    %7091 = vmatprep.subr.bf16.mxu0 0
    %7092 = vmatpush2.bf16.msra.mxu0 0
    %7093 = vmatprep.subr.bf16.mxu0 0
    %7094 = vmatpush2.bf16.msra.mxu0 0
    %7095 = vmatprep.subr.bf16.mxu0 0
    %7096 = vmatpush2.bf16.msra.mxu0 0
    %7097 = vmatprep.subr.bf16.mxu0 0
    %7098 = vmatpush2.bf16.msra.mxu0 0
    %7099 = vmatprep.subr.bf16.mxu0 0
    %7100 = vmatpush2.bf16.msra.mxu0 0
    %7101 = vmatprep.subr.bf16.mxu0 0
    %7102 = vmatpush2.bf16.msra.mxu0 0
    %7103 = vmatprep.subr.bf16.mxu0 0
    %7104 = vmatpush2.bf16.msra.mxu0 0
    %7105 = vmatprep.mubr.bf16.mxu0 0
    %7106 = vmatmul.mubr.bf16.gmra.mxu0 %v7071
    %v7107 = vpop.f32.mrf.mxu0
    %v7108 = vadd.f32 0.0, %v7107
    %v7109 = vpop.f32.mrf.mxu0
    %v7110 = vpop.f32.mrf.mxu0
    %v7111 = vadd.f32 0.0, %v7110
    %v7112 = vpop.f32.mrf.mxu0
    %7113 = vdwg.mxu0
    %v7114 = vmul.f32 %v7108, 0.17677669
    %v7115 = vmul.f32 %v7111, 0.17677669
    %v7116 = vadd.f32 %v7114, %v6863
    %v7117 = vadd.f32 %v7115, %v6864
    %v7118 = vsel %vm6235, %v7116, -inf
    %7119 = vmax.xlane.f32.xlu0 %v7118
    %v7120 = vpop.xlane.xlu0 %7119
    %v7121 = vsel %vm6235, %v7117, -inf
    %7122 = vmax.xlane.f32.xlu0 %v7121
    %v7123 = vpop.xlane.xlu0 %7122
    %v7124 = vsub.f32 %v7116, %v7120
    %v7125 = vsub.f32 %v7117, %v7123
    %v7126 = vmin.f32 %v7124, 0.0
    %v7127 = vmin.f32 %v7125, 0.0
    %v7128 = vmul.f32 %v7126, 1.442695
    %v7129 = vpow.pop %v7128
    %v7130 = vmul.f32 %v7127, 1.442695
    %v7131 = vpow.pop %v7130
    %v7132 = vsel %vm6235, %v7129, 0.0
    %7133 = vadd.xlane.f32.xlu0 %v7132
    %v7134 = vpop.xlane.xlu0 %7133
    %v7135 = vsel %vm6235, %v7131, 0.0
    %7136 = vadd.xlane.f32.xlu0 %v7135
    %v7137 = vpop.xlane.xlu0 %7136
    %v7138 = vrcp.pop %v7134
    %v7139 = vmul.f32 %v7129, %v7138
    %v7140 = vrcp.pop %v7137
    %v7141 = vmul.f32 %v7131, %v7140
    %v7142 = vpack.c.bf16 %v7141, %v7139
    %v7143 = vpack.c.bf16 %v7032, %v7029
    %v7145 = vsel %vm6235, %v7142, 0
    %7147 = vmatprep.subr.bf16.mxu0 0
    %7148 = vmatpush1.bf16.msra.mxu0 0
    %7149 = vmatprep.subr.bf16.mxu0 0
    %7150 = vmatpush1.bf16.msra.mxu0 0
    %7151 = vmatprep.subr.bf16.mxu0 0
    %7152 = vmatpush1.bf16.msra.mxu0 0
    %7153 = vmatprep.subr.bf16.mxu0 0
    %7154 = vmatpush1.bf16.msra.mxu0 0
    %7155 = vmatprep.subr.bf16.mxu0 0
    %7156 = vmatpush1.bf16.msra.mxu0 0
    %7157 = vmatprep.subr.bf16.mxu0 0
    %7158 = vmatpush1.bf16.msra.mxu0 0
    %7159 = vmatprep.subr.bf16.mxu0 0
    %7160 = vmatpush1.bf16.msra.mxu0 0
    %7161 = vmatprep.subr.bf16.mxu0 0
    %7162 = vmatpush1.bf16.msra.mxu0 %v7143
    %7163 = vmatprep.subr.bf16.mxu0 0
    %7164 = vmatpush2.bf16.msra.mxu0 0
    %7165 = vmatprep.subr.bf16.mxu0 0
    %7166 = vmatpush2.bf16.msra.mxu0 0
    %7167 = vmatprep.subr.bf16.mxu0 0
    %7168 = vmatpush2.bf16.msra.mxu0 0
    %7169 = vmatprep.subr.bf16.mxu0 0
    %7170 = vmatpush2.bf16.msra.mxu0 0
    %7171 = vmatprep.subr.bf16.mxu0 0
    %7172 = vmatpush2.bf16.msra.mxu0 0
    %7173 = vmatprep.subr.bf16.mxu0 0
    %7174 = vmatpush2.bf16.msra.mxu0 0
    %7175 = vmatprep.subr.bf16.mxu0 0
    %7176 = vmatpush2.bf16.msra.mxu0 0
    %7177 = vmatprep.subr.bf16.mxu0 0
    %7178 = vmatpush2.bf16.msra.mxu0 0
    %7179 = vmatprep.mubr.bf16.mxu0 0
    %7180 = vmatmul.mubr.bf16.gmra.mxu0 %v7145
    %v7181 = vpop.f32.mrf.mxu0
    %v7182 = vadd.f32 0.0, %v7181
    %v7183 = vpop.f32.mrf.mxu0
    %v7184 = vpop.f32.mrf.mxu0
    %v7185 = vadd.f32 0.0, %v7184
    %v7186 = vpop.f32.mrf.mxu0
    %7187 = vdwg.mxu0
    %s7188 = scalar_lea.vmem %s43, 96
    %v7189 = vld [vmem:[%s7188] sm:$0xff]
    %v7190 = vld [vmem:[%s7188 + $0x8] sm:$0xff]
    %v7191 = vld [vmem:[%s7188 + $0x10] sm:$0xff]
    %v7192 = vld [vmem:[%s7188 + $0x18] sm:$0xff]
    %v7193 = vpack.c.bf16 %v7185, %v7182
    %v7194 = vpack.c.bf16 %v7190, %v7189
    %v7195 = vpack.c.bf16 %v7192, %v7191
    %v7197 = vsel %vm323, %v7193, 0
    %7199 = vmatprep.subr.bf16.mxu0 0
    %7200 = vmatpush1.bf16.msra.mxu0 0
    %7201 = vmatprep.subr.bf16.mxu0 0
    %7202 = vmatpush1.bf16.msra.mxu0 0
    %7203 = vmatprep.subr.bf16.mxu0 0
    %7204 = vmatpush1.bf16.msra.mxu0 0
    %7205 = vmatprep.subr.bf16.mxu0 0
    %7206 = vmatpush1.bf16.msra.mxu0 0
    %7207 = vmatprep.subr.bf16.mxu0 0
    %7208 = vmatpush1.bf16.msra.mxu0 0
    %7209 = vmatprep.subr.bf16.mxu0 0
    %7210 = vmatpush1.bf16.msra.mxu0 0
    %7211 = vmatprep.subr.bf16.mxu0 0
    %7212 = vmatpush1.bf16.msra.mxu0 %v7195
    %7213 = vmatprep.subr.bf16.mxu0 0
    %7214 = vmatpush1.bf16.msra.mxu0 %v7194
    %7215 = vmatprep.subr.bf16.mxu0 0
    %7216 = vmatpush2.bf16.msra.mxu0 0
    %7217 = vmatprep.subr.bf16.mxu0 0
    %7218 = vmatpush2.bf16.msra.mxu0 0
    %7219 = vmatprep.subr.bf16.mxu0 0
    %7220 = vmatpush2.bf16.msra.mxu0 0
    %7221 = vmatprep.subr.bf16.mxu0 0
    %7222 = vmatpush2.bf16.msra.mxu0 0
    %7223 = vmatprep.subr.bf16.mxu0 0
    %7224 = vmatpush2.bf16.msra.mxu0 0
    %7225 = vmatprep.subr.bf16.mxu0 0
    %7226 = vmatpush2.bf16.msra.mxu0 0
    %7227 = vmatprep.subr.bf16.mxu0 0
    %7228 = vmatpush2.bf16.msra.mxu0 0
    %7229 = vmatprep.subr.bf16.mxu0 0
    %7230 = vmatpush2.bf16.msra.mxu0 0
    %7231 = vmatprep.mubr.bf16.mxu0 0
    %7232 = vmatmul.mubr.bf16.gmra.mxu0 %v7197
    %v7233 = vpop.f32.mrf.mxu0
    %v7234 = vadd.f32 0.0, %v7233
    %v7235 = vpop.f32.mrf.mxu0
    %v7236 = vpop.f32.mrf.mxu0
    %v7237 = vadd.f32 0.0, %v7236
    %v7238 = vpop.f32.mrf.mxu0
    %7239 = vdwg.mxu0
    %v7240 = vadd.f32 %v6861, %v7234
    %v7241 = vadd.f32 %v6862, %v7237
    %s7242 = scalar_lea.vmem %s45, 3
    %v7243 = vld [vmem:[%s7242] sm:$0x1]
    %v7245 = vlaneseq
    %v7246 = vshrl.u32 %v7245, 7
    %v7247 = vsub.s32 0, %v7246
    %v7248 = vrot.slane %v7243, %v7247
    %v7250 = vadd.f32 %v7240, %v7248
    %v7251 = vadd.f32 %v7241, %v7248
    %s7252 = scalar_lea.vmem %s43, 128
    %v7253 = vld [vmem:[%s7252] sm:$0xff]
    %v7254 = vld [vmem:[%s7252 + $0x8] sm:$0xff]
    %v7255 = vld [vmem:[%s7252 + $0x10] sm:$0xff]
    %v7256 = vld [vmem:[%s7252 + $0x18] sm:$0xff]
    %v7257 = vpack.c.bf16 %v7251, %v7250
    %v7258 = vpack.c.bf16 %v7254, %v7253
    %v7259 = vpack.c.bf16 %v7256, %v7255
    %s7260 = scalar_lea.vmem %s45, 4
    %v7261 = vld [vmem:[%s7260] sm:$0x1]
    %v7263 = vlaneseq
    %v7264 = vshrl.u32 %v7263, 7
    %v7265 = vsub.s32 0, %v7264
    %v7266 = vrot.slane %v7261, %v7265
    %v7269 = vsel %vm323, %v7257, 0
    %7271 = vmatprep.subr.bf16.mxu0 0
    %7272 = vmatpush1.bf16.msra.mxu0 0
    %7273 = vmatprep.subr.bf16.mxu0 0
    %7274 = vmatpush1.bf16.msra.mxu0 0
    %7275 = vmatprep.subr.bf16.mxu0 0
    %7276 = vmatpush1.bf16.msra.mxu0 0
    %7277 = vmatprep.subr.bf16.mxu0 0
    %7278 = vmatpush1.bf16.msra.mxu0 0
    %7279 = vmatprep.subr.bf16.mxu0 0
    %7280 = vmatpush1.bf16.msra.mxu0 0
    %7281 = vmatprep.subr.bf16.mxu0 0
    %7282 = vmatpush1.bf16.msra.mxu0 0
    %7283 = vmatprep.subr.bf16.mxu0 0
    %7284 = vmatpush1.bf16.msra.mxu0 %v7259
    %7285 = vmatprep.subr.bf16.mxu0 0
    %7286 = vmatpush1.bf16.msra.mxu0 %v7258
    %7287 = vmatprep.subr.bf16.mxu0 0
    %7288 = vmatpush2.bf16.msra.mxu0 0
    %7289 = vmatprep.subr.bf16.mxu0 0
    %7290 = vmatpush2.bf16.msra.mxu0 0
    %7291 = vmatprep.subr.bf16.mxu0 0
    %7292 = vmatpush2.bf16.msra.mxu0 0
    %7293 = vmatprep.subr.bf16.mxu0 0
    %7294 = vmatpush2.bf16.msra.mxu0 0
    %7295 = vmatprep.subr.bf16.mxu0 0
    %7296 = vmatpush2.bf16.msra.mxu0 0
    %7297 = vmatprep.subr.bf16.mxu0 0
    %7298 = vmatpush2.bf16.msra.mxu0 0
    %7299 = vmatprep.subr.bf16.mxu0 0
    %7300 = vmatpush2.bf16.msra.mxu0 0
    %7301 = vmatprep.subr.bf16.mxu0 0
    %7302 = vmatpush2.bf16.msra.mxu0 0
    %7303 = vmatprep.mubr.bf16.mxu0 0
    %7304 = vmatmul.mubr.bf16.gmra.mxu0 %v7269
    %v7305 = vpop.f32.mrf.mxu0
    %v7306 = vadd.f32 %v7266, %v7305
    %v7307 = vpop.f32.mrf.mxu0
    %v7308 = vpop.f32.mrf.mxu0
    %v7309 = vadd.f32 %v7266, %v7308
    %v7310 = vpop.f32.mrf.mxu0
    %7311 = vdwg.mxu0
    %s7312 = scalar_lea.vmem %s43, 160
    %v7313 = vld [vmem:[%s7312] sm:$0xff]
    %v7314 = vld [vmem:[%s7312 + $0x8] sm:$0xff]
    %v7315 = vld [vmem:[%s7312 + $0x10] sm:$0xff]
    %v7316 = vld [vmem:[%s7312 + $0x18] sm:$0xff]
    %v7317 = vpack.c.bf16 %v7314, %v7313
    %v7318 = vpack.c.bf16 %v7316, %v7315
    %s7319 = scalar_lea.vmem %s45, 5
    %v7320 = vld [vmem:[%s7319] sm:$0x1]
    %v7322 = vlaneseq
    %v7323 = vshrl.u32 %v7322, 7
    %v7324 = vsub.s32 0, %v7323
    %v7325 = vrot.slane %v7320, %v7324
    %7327 = vmatprep.subr.bf16.mxu0 0
    %7328 = vmatpush1.bf16.msra.mxu0 0
    %7329 = vmatprep.subr.bf16.mxu0 0
    %7330 = vmatpush1.bf16.msra.mxu0 0
    %7331 = vmatprep.subr.bf16.mxu0 0
    %7332 = vmatpush1.bf16.msra.mxu0 0
    %7333 = vmatprep.subr.bf16.mxu0 0
    %7334 = vmatpush1.bf16.msra.mxu0 0
    %7335 = vmatprep.subr.bf16.mxu0 0
    %7336 = vmatpush1.bf16.msra.mxu0 0
    %7337 = vmatprep.subr.bf16.mxu0 0
    %7338 = vmatpush1.bf16.msra.mxu0 0
    %7339 = vmatprep.subr.bf16.mxu0 0
    %7340 = vmatpush1.bf16.msra.mxu0 %v7318
    %7341 = vmatprep.subr.bf16.mxu0 0
    %7342 = vmatpush1.bf16.msra.mxu0 %v7317
    %7343 = vmatprep.subr.bf16.mxu0 0
    %7344 = vmatpush2.bf16.msra.mxu0 0
    %7345 = vmatprep.subr.bf16.mxu0 0
    %7346 = vmatpush2.bf16.msra.mxu0 0
    %7347 = vmatprep.subr.bf16.mxu0 0
    %7348 = vmatpush2.bf16.msra.mxu0 0
    %7349 = vmatprep.subr.bf16.mxu0 0
    %7350 = vmatpush2.bf16.msra.mxu0 0
    %7351 = vmatprep.subr.bf16.mxu0 0
    %7352 = vmatpush2.bf16.msra.mxu0 0
    %7353 = vmatprep.subr.bf16.mxu0 0
    %7354 = vmatpush2.bf16.msra.mxu0 0
    %7355 = vmatprep.subr.bf16.mxu0 0
    %7356 = vmatpush2.bf16.msra.mxu0 0
    %7357 = vmatprep.subr.bf16.mxu0 0
    %7358 = vmatpush2.bf16.msra.mxu0 0
    %7359 = vmatprep.mubr.bf16.mxu0 0
    %7360 = vmatmul.mubr.bf16.gmra.mxu0 %v7269
    %v7361 = vpop.f32.mrf.mxu0
    %v7362 = vadd.f32 %v7325, %v7361
    %v7363 = vpop.f32.mrf.mxu0
    %v7364 = vpop.f32.mrf.mxu0
    %v7365 = vadd.f32 %v7325, %v7364
    %v7366 = vpop.f32.mrf.mxu0
    %7367 = vdwg.mxu0
    %s7368 = scalar_lea.vmem %s43, 192
    %v7369 = vld [vmem:[%s7368] sm:$0xff]
    %v7370 = vld [vmem:[%s7368 + $0x8] sm:$0xff]
    %v7371 = vld [vmem:[%s7368 + $0x10] sm:$0xff]
    %v7372 = vld [vmem:[%s7368 + $0x18] sm:$0xff]
    %v7373 = vpack.c.bf16 %v7370, %v7369
    %v7374 = vpack.c.bf16 %v7372, %v7371
    %s7375 = scalar_lea.vmem %s45, 6
    %v7376 = vld [vmem:[%s7375] sm:$0x1]
    %v7378 = vlaneseq
    %v7379 = vshrl.u32 %v7378, 7
    %v7380 = vsub.s32 0, %v7379
    %v7381 = vrot.slane %v7376, %v7380
    %7383 = vmatprep.subr.bf16.mxu0 0
    %7384 = vmatpush1.bf16.msra.mxu0 0
    %7385 = vmatprep.subr.bf16.mxu0 0
    %7386 = vmatpush1.bf16.msra.mxu0 0
    %7387 = vmatprep.subr.bf16.mxu0 0
    %7388 = vmatpush1.bf16.msra.mxu0 0
    %7389 = vmatprep.subr.bf16.mxu0 0
    %7390 = vmatpush1.bf16.msra.mxu0 0
    %7391 = vmatprep.subr.bf16.mxu0 0
    %7392 = vmatpush1.bf16.msra.mxu0 0
    %7393 = vmatprep.subr.bf16.mxu0 0
    %7394 = vmatpush1.bf16.msra.mxu0 0
    %7395 = vmatprep.subr.bf16.mxu0 0
    %7396 = vmatpush1.bf16.msra.mxu0 %v7374
    %7397 = vmatprep.subr.bf16.mxu0 0
    %7398 = vmatpush1.bf16.msra.mxu0 %v7373
    %7399 = vmatprep.subr.bf16.mxu0 0
    %7400 = vmatpush2.bf16.msra.mxu0 0
    %7401 = vmatprep.subr.bf16.mxu0 0
    %7402 = vmatpush2.bf16.msra.mxu0 0
    %7403 = vmatprep.subr.bf16.mxu0 0
    %7404 = vmatpush2.bf16.msra.mxu0 0
    %7405 = vmatprep.subr.bf16.mxu0 0
    %7406 = vmatpush2.bf16.msra.mxu0 0
    %7407 = vmatprep.subr.bf16.mxu0 0
    %7408 = vmatpush2.bf16.msra.mxu0 0
    %7409 = vmatprep.subr.bf16.mxu0 0
    %7410 = vmatpush2.bf16.msra.mxu0 0
    %7411 = vmatprep.subr.bf16.mxu0 0
    %7412 = vmatpush2.bf16.msra.mxu0 0
    %7413 = vmatprep.subr.bf16.mxu0 0
    %7414 = vmatpush2.bf16.msra.mxu0 0
    %7415 = vmatprep.mubr.bf16.mxu0 0
    %7416 = vmatmul.mubr.bf16.gmra.mxu0 %v7269
    %v7417 = vpop.f32.mrf.mxu0
    %v7418 = vadd.f32 %v7381, %v7417
    %v7419 = vpop.f32.mrf.mxu0
    %v7420 = vpop.f32.mrf.mxu0
    %v7421 = vadd.f32 %v7381, %v7420
    %v7422 = vpop.f32.mrf.mxu0
    %7423 = vdwg.mxu0
    %7424 = vxpose.xlu0.b32.start [1/16] %v7362, 128
    %7425 = vxpose.xlu0.b32.cont [2/16] %v7365, 128
    %7426 = vxpose.xlu0.b32.cont [3/16] 0.0, 128
    %7427 = vxpose.xlu0.b32.cont [4/16] 0.0, 128
    %7428 = vxpose.xlu0.b32.cont [5/16] 0.0, 128
    %7429 = vxpose.xlu0.b32.cont [6/16] 0.0, 128
    %7430 = vxpose.xlu0.b32.cont [7/16] 0.0, 128
    %7431 = vxpose.xlu0.b32.cont [8/16] 0.0, 128
    %7432 = vxpose.xlu0.b32.cont [9/16] 0.0, 128
    %7433 = vxpose.xlu0.b32.cont [10/16] 0.0, 128
    %7434 = vxpose.xlu0.b32.cont [11/16] 0.0, 128
    %7435 = vxpose.xlu0.b32.cont [12/16] 0.0, 128
    %7436 = vxpose.xlu0.b32.cont [13/16] 0.0, 128
    %7437 = vxpose.xlu0.b32.cont [14/16] 0.0, 128
    %7438 = vxpose.xlu0.b32.cont [15/16] 0.0, 128
    %7439 = vxpose.xlu0.b32.end [16/16] 0.0, 128
    %v7440 = vpop.trf.xlu0
    %v7441 = vpop.trf.xlu0
    %v7442 = vpop.trf.xlu0
    %v7443 = vpop.trf.xlu0
    %v7444 = vpop.trf.xlu0
    %v7445 = vpop.trf.xlu0
    %v7446 = vpop.trf.xlu0
    %v7447 = vpop.trf.xlu0
    %v7448 = vpop.trf.xlu0
    %v7449 = vpop.trf.xlu0
    %v7450 = vpop.trf.xlu0
    %v7451 = vpop.trf.xlu0
    %v7452 = vpop.trf.xlu0
    %v7453 = vpop.trf.xlu0
    %v7454 = vpop.trf.xlu0
    %v7455 = vpop.trf.xlu0
    %v7456 = vpack.c.bf16 %v7309, %v7306
    %v7457 = vpack.c.bf16 %v7441, %v7440
    %v7458 = vpack.c.bf16 %v7443, %v7442
    %v7460 = vsel %vm323, %v7456, 0
    %7462 = vmatprep.subr.bf16.mxu0 0
    %7463 = vmatpush1.bf16.msra.mxu0 0
    %7464 = vmatprep.subr.bf16.mxu0 0
    %7465 = vmatpush1.bf16.msra.mxu0 0
    %7466 = vmatprep.subr.bf16.mxu0 0
    %7467 = vmatpush1.bf16.msra.mxu0 0
    %7468 = vmatprep.subr.bf16.mxu0 0
    %7469 = vmatpush1.bf16.msra.mxu0 0
    %7470 = vmatprep.subr.bf16.mxu0 0
    %7471 = vmatpush1.bf16.msra.mxu0 0
    %7472 = vmatprep.subr.bf16.mxu0 0
    %7473 = vmatpush1.bf16.msra.mxu0 0
    %7474 = vmatprep.subr.bf16.mxu0 0
    %7475 = vmatpush1.bf16.msra.mxu0 %v7458
    %7476 = vmatprep.subr.bf16.mxu0 0
    %7477 = vmatpush1.bf16.msra.mxu0 %v7457
    %7478 = vmatprep.subr.bf16.mxu0 0
    %7479 = vmatpush2.bf16.msra.mxu0 0
    %7480 = vmatprep.subr.bf16.mxu0 0
    %7481 = vmatpush2.bf16.msra.mxu0 0
    %7482 = vmatprep.subr.bf16.mxu0 0
    %7483 = vmatpush2.bf16.msra.mxu0 0
    %7484 = vmatprep.subr.bf16.mxu0 0
    %7485 = vmatpush2.bf16.msra.mxu0 0
    %7486 = vmatprep.subr.bf16.mxu0 0
    %7487 = vmatpush2.bf16.msra.mxu0 0
    %7488 = vmatprep.subr.bf16.mxu0 0
    %7489 = vmatpush2.bf16.msra.mxu0 0
    %7490 = vmatprep.subr.bf16.mxu0 0
    %7491 = vmatpush2.bf16.msra.mxu0 0
    %7492 = vmatprep.subr.bf16.mxu0 0
    %7493 = vmatpush2.bf16.msra.mxu0 0
    %7494 = vmatprep.mubr.bf16.mxu0 0
    %7495 = vmatmul.mubr.bf16.gmra.mxu0 %v7460
    %v7496 = vpop.f32.mrf.mxu0
    %v7497 = vadd.f32 0.0, %v7496
    %v7498 = vpop.f32.mrf.mxu0
    %v7499 = vpop.f32.mrf.mxu0
    %v7500 = vadd.f32 0.0, %v7499
    %v7501 = vpop.f32.mrf.mxu0
    %7502 = vdwg.mxu0
    %v7503 = vmul.f32 %v7497, 0.17677669
    %v7504 = vmul.f32 %v7500, 0.17677669
    %v7505 = vadd.f32 %v7503, %v6863
    %v7506 = vadd.f32 %v7504, %v6864
    %v7507 = vsel %vm6235, %v7505, -inf
    %7508 = vmax.xlane.f32.xlu0 %v7507
    %v7509 = vpop.xlane.xlu0 %7508
    %v7510 = vsel %vm6235, %v7506, -inf
    %7511 = vmax.xlane.f32.xlu0 %v7510
    %v7512 = vpop.xlane.xlu0 %7511
    %v7513 = vsub.f32 %v7505, %v7509
    %v7514 = vsub.f32 %v7506, %v7512
    %v7515 = vmin.f32 %v7513, 0.0
    %v7516 = vmin.f32 %v7514, 0.0
    %v7517 = vmul.f32 %v7515, 1.442695
    %v7518 = vpow.pop %v7517
    %v7519 = vmul.f32 %v7516, 1.442695
    %v7520 = vpow.pop %v7519
    %v7521 = vsel %vm6235, %v7518, 0.0
    %7522 = vadd.xlane.f32.xlu0 %v7521
    %v7523 = vpop.xlane.xlu0 %7522
    %v7524 = vsel %vm6235, %v7520, 0.0
    %7525 = vadd.xlane.f32.xlu0 %v7524
    %v7526 = vpop.xlane.xlu0 %7525
    %v7527 = vrcp.pop %v7523
    %v7528 = vmul.f32 %v7518, %v7527
    %v7529 = vrcp.pop %v7526
    %v7530 = vmul.f32 %v7520, %v7529
    %v7531 = vpack.c.bf16 %v7530, %v7528
    %v7532 = vpack.c.bf16 %v7421, %v7418
    %v7534 = vsel %vm6235, %v7531, 0
    %7536 = vmatprep.subr.bf16.mxu0 0
    %7537 = vmatpush1.bf16.msra.mxu0 0
    %7538 = vmatprep.subr.bf16.mxu0 0
    %7539 = vmatpush1.bf16.msra.mxu0 0
    %7540 = vmatprep.subr.bf16.mxu0 0
    %7541 = vmatpush1.bf16.msra.mxu0 0
    %7542 = vmatprep.subr.bf16.mxu0 0
    %7543 = vmatpush1.bf16.msra.mxu0 0
    %7544 = vmatprep.subr.bf16.mxu0 0
    %7545 = vmatpush1.bf16.msra.mxu0 0
    %7546 = vmatprep.subr.bf16.mxu0 0
    %7547 = vmatpush1.bf16.msra.mxu0 0
    %7548 = vmatprep.subr.bf16.mxu0 0
    %7549 = vmatpush1.bf16.msra.mxu0 0
    %7550 = vmatprep.subr.bf16.mxu0 0
    %7551 = vmatpush1.bf16.msra.mxu0 %v7532
    %7552 = vmatprep.subr.bf16.mxu0 0
    %7553 = vmatpush2.bf16.msra.mxu0 0
    %7554 = vmatprep.subr.bf16.mxu0 0
    %7555 = vmatpush2.bf16.msra.mxu0 0
    %7556 = vmatprep.subr.bf16.mxu0 0
    %7557 = vmatpush2.bf16.msra.mxu0 0
    %7558 = vmatprep.subr.bf16.mxu0 0
    %7559 = vmatpush2.bf16.msra.mxu0 0
    %7560 = vmatprep.subr.bf16.mxu0 0
    %7561 = vmatpush2.bf16.msra.mxu0 0
    %7562 = vmatprep.subr.bf16.mxu0 0
    %7563 = vmatpush2.bf16.msra.mxu0 0
    %7564 = vmatprep.subr.bf16.mxu0 0
    %7565 = vmatpush2.bf16.msra.mxu0 0
    %7566 = vmatprep.subr.bf16.mxu0 0
    %7567 = vmatpush2.bf16.msra.mxu0 0
    %7568 = vmatprep.mubr.bf16.mxu0 0
    %7569 = vmatmul.mubr.bf16.gmra.mxu0 %v7534
    %v7570 = vpop.f32.mrf.mxu0
    %v7571 = vadd.f32 0.0, %v7570
    %v7572 = vpop.f32.mrf.mxu0
    %v7573 = vpop.f32.mrf.mxu0
    %v7574 = vadd.f32 0.0, %v7573
    %v7575 = vpop.f32.mrf.mxu0
    %7576 = vdwg.mxu0
    %s7577 = scalar_lea.vmem %s43, 224
    %v7578 = vld [vmem:[%s7577] sm:$0xff]
    %v7579 = vld [vmem:[%s7577 + $0x8] sm:$0xff]
    %v7580 = vld [vmem:[%s7577 + $0x10] sm:$0xff]
    %v7581 = vld [vmem:[%s7577 + $0x18] sm:$0xff]
    %v7582 = vpack.c.bf16 %v7574, %v7571
    %v7583 = vpack.c.bf16 %v7579, %v7578
    %v7584 = vpack.c.bf16 %v7581, %v7580
    %v7586 = vsel %vm323, %v7582, 0
    %7588 = vmatprep.subr.bf16.mxu0 0
    %7589 = vmatpush1.bf16.msra.mxu0 0
    %7590 = vmatprep.subr.bf16.mxu0 0
    %7591 = vmatpush1.bf16.msra.mxu0 0
    %7592 = vmatprep.subr.bf16.mxu0 0
    %7593 = vmatpush1.bf16.msra.mxu0 0
    %7594 = vmatprep.subr.bf16.mxu0 0
    %7595 = vmatpush1.bf16.msra.mxu0 0
    %7596 = vmatprep.subr.bf16.mxu0 0
    %7597 = vmatpush1.bf16.msra.mxu0 0
    %7598 = vmatprep.subr.bf16.mxu0 0
    %7599 = vmatpush1.bf16.msra.mxu0 0
    %7600 = vmatprep.subr.bf16.mxu0 0
    %7601 = vmatpush1.bf16.msra.mxu0 %v7584
    %7602 = vmatprep.subr.bf16.mxu0 0
    %7603 = vmatpush1.bf16.msra.mxu0 %v7583
    %7604 = vmatprep.subr.bf16.mxu0 0
    %7605 = vmatpush2.bf16.msra.mxu0 0
    %7606 = vmatprep.subr.bf16.mxu0 0
    %7607 = vmatpush2.bf16.msra.mxu0 0
    %7608 = vmatprep.subr.bf16.mxu0 0
    %7609 = vmatpush2.bf16.msra.mxu0 0
    %7610 = vmatprep.subr.bf16.mxu0 0
    %7611 = vmatpush2.bf16.msra.mxu0 0
    %7612 = vmatprep.subr.bf16.mxu0 0
    %7613 = vmatpush2.bf16.msra.mxu0 0
    %7614 = vmatprep.subr.bf16.mxu0 0
    %7615 = vmatpush2.bf16.msra.mxu0 0
    %7616 = vmatprep.subr.bf16.mxu0 0
    %7617 = vmatpush2.bf16.msra.mxu0 0
    %7618 = vmatprep.subr.bf16.mxu0 0
    %7619 = vmatpush2.bf16.msra.mxu0 0
    %7620 = vmatprep.mubr.bf16.mxu0 0
    %7621 = vmatmul.mubr.bf16.gmra.mxu0 %v7586
    %v7622 = vpop.f32.mrf.mxu0
    %v7623 = vadd.f32 0.0, %v7622
    %v7624 = vpop.f32.mrf.mxu0
    %v7625 = vpop.f32.mrf.mxu0
    %v7626 = vadd.f32 0.0, %v7625
    %v7627 = vpop.f32.mrf.mxu0
    %7628 = vdwg.mxu0
    %v7629 = vadd.f32 %v7250, %v7623
    %v7630 = vadd.f32 %v7251, %v7626
    %s7631 = scalar_lea.vmem %s45, 7
    %v7632 = vld [vmem:[%s7631] sm:$0x1]
    %v7634 = vlaneseq
    %v7635 = vshrl.u32 %v7634, 7
    %v7636 = vsub.s32 0, %v7635
    %v7637 = vrot.slane %v7632, %v7636
    %v7639 = vadd.f32 %v7629, %v7637
    %v7640 = vadd.f32 %v7630, %v7637
    %s7641 = scalar_lea.vmem %s43, 256
    %v7642 = vld [vmem:[%s7641] sm:$0xff]
    %v7643 = vld [vmem:[%s7641 + $0x8] sm:$0xff]
    %v7644 = vld [vmem:[%s7641 + $0x10] sm:$0xff]
    %v7645 = vld [vmem:[%s7641 + $0x18] sm:$0xff]
    %v7646 = vpack.c.bf16 %v7640, %v7639
    %v7647 = vpack.c.bf16 %v7643, %v7642
    %v7648 = vpack.c.bf16 %v7645, %v7644
    %s7649 = scalar_lea.vmem %s45, 8
    %v7650 = vld [vmem:[%s7649] sm:$0x1]
    %v7652 = vlaneseq
    %v7653 = vshrl.u32 %v7652, 7
    %v7654 = vsub.s32 0, %v7653
    %v7655 = vrot.slane %v7650, %v7654
    %v7658 = vsel %vm323, %v7646, 0
    %7660 = vmatprep.subr.bf16.mxu0 0
    %7661 = vmatpush1.bf16.msra.mxu0 0
    %7662 = vmatprep.subr.bf16.mxu0 0
    %7663 = vmatpush1.bf16.msra.mxu0 0
    %7664 = vmatprep.subr.bf16.mxu0 0
    %7665 = vmatpush1.bf16.msra.mxu0 0
    %7666 = vmatprep.subr.bf16.mxu0 0
    %7667 = vmatpush1.bf16.msra.mxu0 0
    %7668 = vmatprep.subr.bf16.mxu0 0
    %7669 = vmatpush1.bf16.msra.mxu0 0
    %7670 = vmatprep.subr.bf16.mxu0 0
    %7671 = vmatpush1.bf16.msra.mxu0 0
    %7672 = vmatprep.subr.bf16.mxu0 0
    %7673 = vmatpush1.bf16.msra.mxu0 %v7648
    %7674 = vmatprep.subr.bf16.mxu0 0
    %7675 = vmatpush1.bf16.msra.mxu0 %v7647
    %7676 = vmatprep.subr.bf16.mxu0 0
    %7677 = vmatpush2.bf16.msra.mxu0 0
    %7678 = vmatprep.subr.bf16.mxu0 0
    %7679 = vmatpush2.bf16.msra.mxu0 0
    %7680 = vmatprep.subr.bf16.mxu0 0
    %7681 = vmatpush2.bf16.msra.mxu0 0
    %7682 = vmatprep.subr.bf16.mxu0 0
    %7683 = vmatpush2.bf16.msra.mxu0 0
    %7684 = vmatprep.subr.bf16.mxu0 0
    %7685 = vmatpush2.bf16.msra.mxu0 0
    %7686 = vmatprep.subr.bf16.mxu0 0
    %7687 = vmatpush2.bf16.msra.mxu0 0
    %7688 = vmatprep.subr.bf16.mxu0 0
    %7689 = vmatpush2.bf16.msra.mxu0 0
    %7690 = vmatprep.subr.bf16.mxu0 0
    %7691 = vmatpush2.bf16.msra.mxu0 0
    %7692 = vmatprep.mubr.bf16.mxu0 0
    %7693 = vmatmul.mubr.bf16.gmra.mxu0 %v7658
    %v7694 = vpop.f32.mrf.mxu0
    %v7695 = vadd.f32 %v7655, %v7694
    %v7696 = vpop.f32.mrf.mxu0
    %v7697 = vpop.f32.mrf.mxu0
    %v7698 = vadd.f32 %v7655, %v7697
    %v7699 = vpop.f32.mrf.mxu0
    %7700 = vdwg.mxu0
    %s7701 = scalar_lea.vmem %s43, 288
    %v7702 = vld [vmem:[%s7701] sm:$0xff]
    %v7703 = vld [vmem:[%s7701 + $0x8] sm:$0xff]
    %v7704 = vld [vmem:[%s7701 + $0x10] sm:$0xff]
    %v7705 = vld [vmem:[%s7701 + $0x18] sm:$0xff]
    %v7706 = vpack.c.bf16 %v7703, %v7702
    %v7707 = vpack.c.bf16 %v7705, %v7704
    %s7708 = scalar_lea.vmem %s45, 9
    %v7709 = vld [vmem:[%s7708] sm:$0x1]
    %v7711 = vlaneseq
    %v7712 = vshrl.u32 %v7711, 7
    %v7713 = vsub.s32 0, %v7712
    %v7714 = vrot.slane %v7709, %v7713
    %7716 = vmatprep.subr.bf16.mxu0 0
    %7717 = vmatpush1.bf16.msra.mxu0 0
    %7718 = vmatprep.subr.bf16.mxu0 0
    %7719 = vmatpush1.bf16.msra.mxu0 0
    %7720 = vmatprep.subr.bf16.mxu0 0
    %7721 = vmatpush1.bf16.msra.mxu0 0
    %7722 = vmatprep.subr.bf16.mxu0 0
    %7723 = vmatpush1.bf16.msra.mxu0 0
    %7724 = vmatprep.subr.bf16.mxu0 0
    %7725 = vmatpush1.bf16.msra.mxu0 0
    %7726 = vmatprep.subr.bf16.mxu0 0
    %7727 = vmatpush1.bf16.msra.mxu0 0
    %7728 = vmatprep.subr.bf16.mxu0 0
    %7729 = vmatpush1.bf16.msra.mxu0 %v7707
    %7730 = vmatprep.subr.bf16.mxu0 0
    %7731 = vmatpush1.bf16.msra.mxu0 %v7706
    %7732 = vmatprep.subr.bf16.mxu0 0
    %7733 = vmatpush2.bf16.msra.mxu0 0
    %7734 = vmatprep.subr.bf16.mxu0 0
    %7735 = vmatpush2.bf16.msra.mxu0 0
    %7736 = vmatprep.subr.bf16.mxu0 0
    %7737 = vmatpush2.bf16.msra.mxu0 0
    %7738 = vmatprep.subr.bf16.mxu0 0
    %7739 = vmatpush2.bf16.msra.mxu0 0
    %7740 = vmatprep.subr.bf16.mxu0 0
    %7741 = vmatpush2.bf16.msra.mxu0 0
    %7742 = vmatprep.subr.bf16.mxu0 0
    %7743 = vmatpush2.bf16.msra.mxu0 0
    %7744 = vmatprep.subr.bf16.mxu0 0
    %7745 = vmatpush2.bf16.msra.mxu0 0
    %7746 = vmatprep.subr.bf16.mxu0 0
    %7747 = vmatpush2.bf16.msra.mxu0 0
    %7748 = vmatprep.mubr.bf16.mxu0 0
    %7749 = vmatmul.mubr.bf16.gmra.mxu0 %v7658
    %v7750 = vpop.f32.mrf.mxu0
    %v7751 = vadd.f32 %v7714, %v7750
    %v7752 = vpop.f32.mrf.mxu0
    %v7753 = vpop.f32.mrf.mxu0
    %v7754 = vadd.f32 %v7714, %v7753
    %v7755 = vpop.f32.mrf.mxu0
    %7756 = vdwg.mxu0
    %s7757 = scalar_lea.vmem %s43, 320
    %v7758 = vld [vmem:[%s7757] sm:$0xff]
    %v7759 = vld [vmem:[%s7757 + $0x8] sm:$0xff]
    %v7760 = vld [vmem:[%s7757 + $0x10] sm:$0xff]
    %v7761 = vld [vmem:[%s7757 + $0x18] sm:$0xff]
    %v7762 = vpack.c.bf16 %v7759, %v7758
    %v7763 = vpack.c.bf16 %v7761, %v7760
    %s7764 = scalar_lea.vmem %s45, 10
    %v7765 = vld [vmem:[%s7764] sm:$0x1]
    %v7767 = vlaneseq
    %v7768 = vshrl.u32 %v7767, 7
    %v7769 = vsub.s32 0, %v7768
    %v7770 = vrot.slane %v7765, %v7769
    %7772 = vmatprep.subr.bf16.mxu0 0
    %7773 = vmatpush1.bf16.msra.mxu0 0
    %7774 = vmatprep.subr.bf16.mxu0 0
    %7775 = vmatpush1.bf16.msra.mxu0 0
    %7776 = vmatprep.subr.bf16.mxu0 0
    %7777 = vmatpush1.bf16.msra.mxu0 0
    %7778 = vmatprep.subr.bf16.mxu0 0
    %7779 = vmatpush1.bf16.msra.mxu0 0
    %7780 = vmatprep.subr.bf16.mxu0 0
    %7781 = vmatpush1.bf16.msra.mxu0 0
    %7782 = vmatprep.subr.bf16.mxu0 0
    %7783 = vmatpush1.bf16.msra.mxu0 0
    %7784 = vmatprep.subr.bf16.mxu0 0
    %7785 = vmatpush1.bf16.msra.mxu0 %v7763
    %7786 = vmatprep.subr.bf16.mxu0 0
    %7787 = vmatpush1.bf16.msra.mxu0 %v7762
    %7788 = vmatprep.subr.bf16.mxu0 0
    %7789 = vmatpush2.bf16.msra.mxu0 0
    %7790 = vmatprep.subr.bf16.mxu0 0
    %7791 = vmatpush2.bf16.msra.mxu0 0
    %7792 = vmatprep.subr.bf16.mxu0 0
    %7793 = vmatpush2.bf16.msra.mxu0 0
    %7794 = vmatprep.subr.bf16.mxu0 0
    %7795 = vmatpush2.bf16.msra.mxu0 0
    %7796 = vmatprep.subr.bf16.mxu0 0
    %7797 = vmatpush2.bf16.msra.mxu0 0
    %7798 = vmatprep.subr.bf16.mxu0 0
    %7799 = vmatpush2.bf16.msra.mxu0 0
    %7800 = vmatprep.subr.bf16.mxu0 0
    %7801 = vmatpush2.bf16.msra.mxu0 0
    %7802 = vmatprep.subr.bf16.mxu0 0
    %7803 = vmatpush2.bf16.msra.mxu0 0
    %7804 = vmatprep.mubr.bf16.mxu0 0
    %7805 = vmatmul.mubr.bf16.gmra.mxu0 %v7658
    %v7806 = vpop.f32.mrf.mxu0
    %v7807 = vadd.f32 %v7770, %v7806
    %v7808 = vpop.f32.mrf.mxu0
    %v7809 = vpop.f32.mrf.mxu0
    %v7810 = vadd.f32 %v7770, %v7809
    %v7811 = vpop.f32.mrf.mxu0
    %7812 = vdwg.mxu0
    %7813 = vxpose.xlu0.b32.start [1/16] %v7751, 128
    %7814 = vxpose.xlu0.b32.cont [2/16] %v7754, 128
    %7815 = vxpose.xlu0.b32.cont [3/16] 0.0, 128
    %7816 = vxpose.xlu0.b32.cont [4/16] 0.0, 128
    %7817 = vxpose.xlu0.b32.cont [5/16] 0.0, 128
    %7818 = vxpose.xlu0.b32.cont [6/16] 0.0, 128
    %7819 = vxpose.xlu0.b32.cont [7/16] 0.0, 128
    %7820 = vxpose.xlu0.b32.cont [8/16] 0.0, 128
    %7821 = vxpose.xlu0.b32.cont [9/16] 0.0, 128
    %7822 = vxpose.xlu0.b32.cont [10/16] 0.0, 128
    %7823 = vxpose.xlu0.b32.cont [11/16] 0.0, 128
    %7824 = vxpose.xlu0.b32.cont [12/16] 0.0, 128
    %7825 = vxpose.xlu0.b32.cont [13/16] 0.0, 128
    %7826 = vxpose.xlu0.b32.cont [14/16] 0.0, 128
    %7827 = vxpose.xlu0.b32.cont [15/16] 0.0, 128
    %7828 = vxpose.xlu0.b32.end [16/16] 0.0, 128
    %v7829 = vpop.trf.xlu0
    %v7830 = vpop.trf.xlu0
    %v7831 = vpop.trf.xlu0
    %v7832 = vpop.trf.xlu0
    %v7833 = vpop.trf.xlu0
    %v7834 = vpop.trf.xlu0
    %v7835 = vpop.trf.xlu0
    %v7836 = vpop.trf.xlu0
    %v7837 = vpop.trf.xlu0
    %v7838 = vpop.trf.xlu0
    %v7839 = vpop.trf.xlu0
    %v7840 = vpop.trf.xlu0
    %v7841 = vpop.trf.xlu0
    %v7842 = vpop.trf.xlu0
    %v7843 = vpop.trf.xlu0
    %v7844 = vpop.trf.xlu0
    %v7845 = vpack.c.bf16 %v7698, %v7695
    %v7846 = vpack.c.bf16 %v7830, %v7829
    %v7847 = vpack.c.bf16 %v7832, %v7831
    %v7849 = vsel %vm323, %v7845, 0
    %7851 = vmatprep.subr.bf16.mxu0 0
    %7852 = vmatpush1.bf16.msra.mxu0 0
    %7853 = vmatprep.subr.bf16.mxu0 0
    %7854 = vmatpush1.bf16.msra.mxu0 0
    %7855 = vmatprep.subr.bf16.mxu0 0
    %7856 = vmatpush1.bf16.msra.mxu0 0
    %7857 = vmatprep.subr.bf16.mxu0 0
    %7858 = vmatpush1.bf16.msra.mxu0 0
    %7859 = vmatprep.subr.bf16.mxu0 0
    %7860 = vmatpush1.bf16.msra.mxu0 0
    %7861 = vmatprep.subr.bf16.mxu0 0
    %7862 = vmatpush1.bf16.msra.mxu0 0
    %7863 = vmatprep.subr.bf16.mxu0 0
    %7864 = vmatpush1.bf16.msra.mxu0 %v7847
    %7865 = vmatprep.subr.bf16.mxu0 0
    %7866 = vmatpush1.bf16.msra.mxu0 %v7846
    %7867 = vmatprep.subr.bf16.mxu0 0
    %7868 = vmatpush2.bf16.msra.mxu0 0
    %7869 = vmatprep.subr.bf16.mxu0 0
    %7870 = vmatpush2.bf16.msra.mxu0 0
    %7871 = vmatprep.subr.bf16.mxu0 0
    %7872 = vmatpush2.bf16.msra.mxu0 0
    %7873 = vmatprep.subr.bf16.mxu0 0
    %7874 = vmatpush2.bf16.msra.mxu0 0
    %7875 = vmatprep.subr.bf16.mxu0 0
    %7876 = vmatpush2.bf16.msra.mxu0 0
    %7877 = vmatprep.subr.bf16.mxu0 0
    %7878 = vmatpush2.bf16.msra.mxu0 0
    %7879 = vmatprep.subr.bf16.mxu0 0
    %7880 = vmatpush2.bf16.msra.mxu0 0
    %7881 = vmatprep.subr.bf16.mxu0 0
    %7882 = vmatpush2.bf16.msra.mxu0 0
    %7883 = vmatprep.mubr.bf16.mxu0 0
    %7884 = vmatmul.mubr.bf16.gmra.mxu0 %v7849
    %v7885 = vpop.f32.mrf.mxu0
    %v7886 = vadd.f32 0.0, %v7885
    %v7887 = vpop.f32.mrf.mxu0
    %v7888 = vpop.f32.mrf.mxu0
    %v7889 = vadd.f32 0.0, %v7888
    %v7890 = vpop.f32.mrf.mxu0
    %7891 = vdwg.mxu0
    %v7892 = vmul.f32 %v7886, 0.17677669
    %v7893 = vmul.f32 %v7889, 0.17677669
    %v7894 = vadd.f32 %v7892, %v6863
    %v7895 = vadd.f32 %v7893, %v6864
    %v7896 = vsel %vm6235, %v7894, -inf
    %7897 = vmax.xlane.f32.xlu0 %v7896
    %v7898 = vpop.xlane.xlu0 %7897
    %v7899 = vsel %vm6235, %v7895, -inf
    %7900 = vmax.xlane.f32.xlu0 %v7899
    %v7901 = vpop.xlane.xlu0 %7900
    %v7902 = vsub.f32 %v7894, %v7898
    %v7903 = vsub.f32 %v7895, %v7901
    %v7904 = vmin.f32 %v7902, 0.0
    %v7905 = vmin.f32 %v7903, 0.0
    %v7906 = vmul.f32 %v7904, 1.442695
    %v7907 = vpow.pop %v7906
    %v7908 = vmul.f32 %v7905, 1.442695
    %v7909 = vpow.pop %v7908
    %v7910 = vsel %vm6235, %v7907, 0.0
    %7911 = vadd.xlane.f32.xlu0 %v7910
    %v7912 = vpop.xlane.xlu0 %7911
    %v7913 = vsel %vm6235, %v7909, 0.0
    %7914 = vadd.xlane.f32.xlu0 %v7913
    %v7915 = vpop.xlane.xlu0 %7914
    %v7916 = vrcp.pop %v7912
    %v7917 = vmul.f32 %v7907, %v7916
    %v7918 = vrcp.pop %v7915
    %v7919 = vmul.f32 %v7909, %v7918
    %v7920 = vpack.c.bf16 %v7919, %v7917
    %v7921 = vpack.c.bf16 %v7810, %v7807
    %v7923 = vsel %vm6235, %v7920, 0
    %7925 = vmatprep.subr.bf16.mxu0 0
    %7926 = vmatpush1.bf16.msra.mxu0 0
    %7927 = vmatprep.subr.bf16.mxu0 0
    %7928 = vmatpush1.bf16.msra.mxu0 0
    %7929 = vmatprep.subr.bf16.mxu0 0
    %7930 = vmatpush1.bf16.msra.mxu0 0
    %7931 = vmatprep.subr.bf16.mxu0 0
    %7932 = vmatpush1.bf16.msra.mxu0 0
    %7933 = vmatprep.subr.bf16.mxu0 0
    %7934 = vmatpush1.bf16.msra.mxu0 0
    %7935 = vmatprep.subr.bf16.mxu0 0
    %7936 = vmatpush1.bf16.msra.mxu0 0
    %7937 = vmatprep.subr.bf16.mxu0 0
    %7938 = vmatpush1.bf16.msra.mxu0 0
    %7939 = vmatprep.subr.bf16.mxu0 0
    %7940 = vmatpush1.bf16.msra.mxu0 %v7921
    %7941 = vmatprep.subr.bf16.mxu0 0
    %7942 = vmatpush2.bf16.msra.mxu0 0
    %7943 = vmatprep.subr.bf16.mxu0 0
    %7944 = vmatpush2.bf16.msra.mxu0 0
    %7945 = vmatprep.subr.bf16.mxu0 0
    %7946 = vmatpush2.bf16.msra.mxu0 0
    %7947 = vmatprep.subr.bf16.mxu0 0
    %7948 = vmatpush2.bf16.msra.mxu0 0
    %7949 = vmatprep.subr.bf16.mxu0 0
    %7950 = vmatpush2.bf16.msra.mxu0 0
    %7951 = vmatprep.subr.bf16.mxu0 0
    %7952 = vmatpush2.bf16.msra.mxu0 0
    %7953 = vmatprep.subr.bf16.mxu0 0
    %7954 = vmatpush2.bf16.msra.mxu0 0
    %7955 = vmatprep.subr.bf16.mxu0 0
    %7956 = vmatpush2.bf16.msra.mxu0 0
    %7957 = vmatprep.mubr.bf16.mxu0 0
    %7958 = vmatmul.mubr.bf16.gmra.mxu0 %v7923
    %v7959 = vpop.f32.mrf.mxu0
    %v7960 = vadd.f32 0.0, %v7959
    %v7961 = vpop.f32.mrf.mxu0
    %v7962 = vpop.f32.mrf.mxu0
    %v7963 = vadd.f32 0.0, %v7962
    %v7964 = vpop.f32.mrf.mxu0
    %7965 = vdwg.mxu0
    %s7966 = scalar_lea.vmem %s43, 352
    %v7967 = vld [vmem:[%s7966] sm:$0xff]
    %v7968 = vld [vmem:[%s7966 + $0x8] sm:$0xff]
    %v7969 = vld [vmem:[%s7966 + $0x10] sm:$0xff]
    %v7970 = vld [vmem:[%s7966 + $0x18] sm:$0xff]
    %v7971 = vpack.c.bf16 %v7963, %v7960
    %v7972 = vpack.c.bf16 %v7968, %v7967
    %v7973 = vpack.c.bf16 %v7970, %v7969
    %v7975 = vsel %vm323, %v7971, 0
    %7977 = vmatprep.subr.bf16.mxu0 0
    %7978 = vmatpush1.bf16.msra.mxu0 0
    %7979 = vmatprep.subr.bf16.mxu0 0
    %7980 = vmatpush1.bf16.msra.mxu0 0
    %7981 = vmatprep.subr.bf16.mxu0 0
    %7982 = vmatpush1.bf16.msra.mxu0 0
    %7983 = vmatprep.subr.bf16.mxu0 0
    %7984 = vmatpush1.bf16.msra.mxu0 0
    %7985 = vmatprep.subr.bf16.mxu0 0
    %7986 = vmatpush1.bf16.msra.mxu0 0
    %7987 = vmatprep.subr.bf16.mxu0 0
    %7988 = vmatpush1.bf16.msra.mxu0 0
    %7989 = vmatprep.subr.bf16.mxu0 0
    %7990 = vmatpush1.bf16.msra.mxu0 %v7973
    %7991 = vmatprep.subr.bf16.mxu0 0
    %7992 = vmatpush1.bf16.msra.mxu0 %v7972
    %7993 = vmatprep.subr.bf16.mxu0 0
    %7994 = vmatpush2.bf16.msra.mxu0 0
    %7995 = vmatprep.subr.bf16.mxu0 0
    %7996 = vmatpush2.bf16.msra.mxu0 0
    %7997 = vmatprep.subr.bf16.mxu0 0
    %7998 = vmatpush2.bf16.msra.mxu0 0
    %7999 = vmatprep.subr.bf16.mxu0 0
    %8000 = vmatpush2.bf16.msra.mxu0 0
    %8001 = vmatprep.subr.bf16.mxu0 0
    %8002 = vmatpush2.bf16.msra.mxu0 0
    %8003 = vmatprep.subr.bf16.mxu0 0
    %8004 = vmatpush2.bf16.msra.mxu0 0
    %8005 = vmatprep.subr.bf16.mxu0 0
    %8006 = vmatpush2.bf16.msra.mxu0 0
    %8007 = vmatprep.subr.bf16.mxu0 0
    %8008 = vmatpush2.bf16.msra.mxu0 0
    %8009 = vmatprep.mubr.bf16.mxu0 0
    %8010 = vmatmul.mubr.bf16.gmra.mxu0 %v7975
    %v8011 = vpop.f32.mrf.mxu0
    %v8012 = vadd.f32 0.0, %v8011
    %v8013 = vpop.f32.mrf.mxu0
    %v8014 = vpop.f32.mrf.mxu0
    %v8015 = vadd.f32 0.0, %v8014
    %v8016 = vpop.f32.mrf.mxu0
    %8017 = vdwg.mxu0
    %v8018 = vadd.f32 %v7639, %v8012
    %v8019 = vadd.f32 %v7640, %v8015
    %s8020 = scalar_lea.vmem %s45, 11
    %v8021 = vld [vmem:[%s8020] sm:$0x1]
    %v8023 = vlaneseq
    %v8024 = vshrl.u32 %v8023, 7
    %v8025 = vsub.s32 0, %v8024
    %v8026 = vrot.slane %v8021, %v8025
    %v8028 = vadd.f32 %v8018, %v8026
    %v8029 = vadd.f32 %v8019, %v8026
    %s8030 = scalar_lea.vmem %s43, 384
    %v8031 = vld [vmem:[%s8030] sm:$0xff]
    %v8032 = vld [vmem:[%s8030 + $0x8] sm:$0xff]
    %v8033 = vld [vmem:[%s8030 + $0x10] sm:$0xff]
    %v8034 = vld [vmem:[%s8030 + $0x18] sm:$0xff]
    %v8035 = vpack.c.bf16 %v8029, %v8028
    %v8036 = vpack.c.bf16 %v8032, %v8031
    %v8037 = vpack.c.bf16 %v8034, %v8033
    %s8038 = scalar_lea.vmem %s45, 12
    %v8039 = vld [vmem:[%s8038] sm:$0x1]
    %v8041 = vlaneseq
    %v8042 = vshrl.u32 %v8041, 7
    %v8043 = vsub.s32 0, %v8042
    %v8044 = vrot.slane %v8039, %v8043
    %v8047 = vsel %vm323, %v8035, 0
    %8049 = vmatprep.subr.bf16.mxu0 0
    %8050 = vmatpush1.bf16.msra.mxu0 0
    %8051 = vmatprep.subr.bf16.mxu0 0
    %8052 = vmatpush1.bf16.msra.mxu0 0
    %8053 = vmatprep.subr.bf16.mxu0 0
    %8054 = vmatpush1.bf16.msra.mxu0 0
    %8055 = vmatprep.subr.bf16.mxu0 0
    %8056 = vmatpush1.bf16.msra.mxu0 0
    %8057 = vmatprep.subr.bf16.mxu0 0
    %8058 = vmatpush1.bf16.msra.mxu0 0
    %8059 = vmatprep.subr.bf16.mxu0 0
    %8060 = vmatpush1.bf16.msra.mxu0 0
    %8061 = vmatprep.subr.bf16.mxu0 0
    %8062 = vmatpush1.bf16.msra.mxu0 %v8037
    %8063 = vmatprep.subr.bf16.mxu0 0
    %8064 = vmatpush1.bf16.msra.mxu0 %v8036
    %8065 = vmatprep.subr.bf16.mxu0 0
    %8066 = vmatpush2.bf16.msra.mxu0 0
    %8067 = vmatprep.subr.bf16.mxu0 0
    %8068 = vmatpush2.bf16.msra.mxu0 0
    %8069 = vmatprep.subr.bf16.mxu0 0
    %8070 = vmatpush2.bf16.msra.mxu0 0
    %8071 = vmatprep.subr.bf16.mxu0 0
    %8072 = vmatpush2.bf16.msra.mxu0 0
    %8073 = vmatprep.subr.bf16.mxu0 0
    %8074 = vmatpush2.bf16.msra.mxu0 0
    %8075 = vmatprep.subr.bf16.mxu0 0
    %8076 = vmatpush2.bf16.msra.mxu0 0
    %8077 = vmatprep.subr.bf16.mxu0 0
    %8078 = vmatpush2.bf16.msra.mxu0 0
    %8079 = vmatprep.subr.bf16.mxu0 0
    %8080 = vmatpush2.bf16.msra.mxu0 0
    %8081 = vmatprep.mubr.bf16.mxu0 0
    %8082 = vmatmul.mubr.bf16.gmra.mxu0 %v8047
    %v8083 = vpop.f32.mrf.mxu0
    %v8084 = vadd.f32 %v8044, %v8083
    %v8085 = vpop.f32.mrf.mxu0
    %v8086 = vpop.f32.mrf.mxu0
    %v8087 = vadd.f32 %v8044, %v8086
    %v8088 = vpop.f32.mrf.mxu0
    %8089 = vdwg.mxu0
    %s8090 = scalar_lea.vmem %s43, 416
    %v8091 = vld [vmem:[%s8090] sm:$0xff]
    %v8092 = vld [vmem:[%s8090 + $0x8] sm:$0xff]
    %v8093 = vld [vmem:[%s8090 + $0x10] sm:$0xff]
    %v8094 = vld [vmem:[%s8090 + $0x18] sm:$0xff]
    %v8095 = vpack.c.bf16 %v8092, %v8091
    %v8096 = vpack.c.bf16 %v8094, %v8093
    %s8097 = scalar_lea.vmem %s45, 13
    %v8098 = vld [vmem:[%s8097] sm:$0x1]
    %v8100 = vlaneseq
    %v8101 = vshrl.u32 %v8100, 7
    %v8102 = vsub.s32 0, %v8101
    %v8103 = vrot.slane %v8098, %v8102
    %8105 = vmatprep.subr.bf16.mxu0 0
    %8106 = vmatpush1.bf16.msra.mxu0 0
    %8107 = vmatprep.subr.bf16.mxu0 0
    %8108 = vmatpush1.bf16.msra.mxu0 0
    %8109 = vmatprep.subr.bf16.mxu0 0
    %8110 = vmatpush1.bf16.msra.mxu0 0
    %8111 = vmatprep.subr.bf16.mxu0 0
    %8112 = vmatpush1.bf16.msra.mxu0 0
    %8113 = vmatprep.subr.bf16.mxu0 0
    %8114 = vmatpush1.bf16.msra.mxu0 0
    %8115 = vmatprep.subr.bf16.mxu0 0
    %8116 = vmatpush1.bf16.msra.mxu0 0
    %8117 = vmatprep.subr.bf16.mxu0 0
    %8118 = vmatpush1.bf16.msra.mxu0 %v8096
    %8119 = vmatprep.subr.bf16.mxu0 0
    %8120 = vmatpush1.bf16.msra.mxu0 %v8095
    %8121 = vmatprep.subr.bf16.mxu0 0
    %8122 = vmatpush2.bf16.msra.mxu0 0
    %8123 = vmatprep.subr.bf16.mxu0 0
    %8124 = vmatpush2.bf16.msra.mxu0 0
    %8125 = vmatprep.subr.bf16.mxu0 0
    %8126 = vmatpush2.bf16.msra.mxu0 0
    %8127 = vmatprep.subr.bf16.mxu0 0
    %8128 = vmatpush2.bf16.msra.mxu0 0
    %8129 = vmatprep.subr.bf16.mxu0 0
    %8130 = vmatpush2.bf16.msra.mxu0 0
    %8131 = vmatprep.subr.bf16.mxu0 0
    %8132 = vmatpush2.bf16.msra.mxu0 0
    %8133 = vmatprep.subr.bf16.mxu0 0
    %8134 = vmatpush2.bf16.msra.mxu0 0
    %8135 = vmatprep.subr.bf16.mxu0 0
    %8136 = vmatpush2.bf16.msra.mxu0 0
    %8137 = vmatprep.mubr.bf16.mxu0 0
    %8138 = vmatmul.mubr.bf16.gmra.mxu0 %v8047
    %v8139 = vpop.f32.mrf.mxu0
    %v8140 = vadd.f32 %v8103, %v8139
    %v8141 = vpop.f32.mrf.mxu0
    %v8142 = vpop.f32.mrf.mxu0
    %v8143 = vadd.f32 %v8103, %v8142
    %v8144 = vpop.f32.mrf.mxu0
    %8145 = vdwg.mxu0
    %s8146 = scalar_lea.vmem %s43, 448
    %v8147 = vld [vmem:[%s8146] sm:$0xff]
    %v8148 = vld [vmem:[%s8146 + $0x8] sm:$0xff]
    %v8149 = vld [vmem:[%s8146 + $0x10] sm:$0xff]
    %v8150 = vld [vmem:[%s8146 + $0x18] sm:$0xff]
    %v8151 = vpack.c.bf16 %v8148, %v8147
    %v8152 = vpack.c.bf16 %v8150, %v8149
    %s8153 = scalar_lea.vmem %s45, 14
    %v8154 = vld [vmem:[%s8153] sm:$0x1]
    %v8156 = vlaneseq
    %v8157 = vshrl.u32 %v8156, 7
    %v8158 = vsub.s32 0, %v8157
    %v8159 = vrot.slane %v8154, %v8158
    %8161 = vmatprep.subr.bf16.mxu0 0
    %8162 = vmatpush1.bf16.msra.mxu0 0
    %8163 = vmatprep.subr.bf16.mxu0 0
    %8164 = vmatpush1.bf16.msra.mxu0 0
    %8165 = vmatprep.subr.bf16.mxu0 0
    %8166 = vmatpush1.bf16.msra.mxu0 0
    %8167 = vmatprep.subr.bf16.mxu0 0
    %8168 = vmatpush1.bf16.msra.mxu0 0
    %8169 = vmatprep.subr.bf16.mxu0 0
    %8170 = vmatpush1.bf16.msra.mxu0 0
    %8171 = vmatprep.subr.bf16.mxu0 0
    %8172 = vmatpush1.bf16.msra.mxu0 0
    %8173 = vmatprep.subr.bf16.mxu0 0
    %8174 = vmatpush1.bf16.msra.mxu0 %v8152
    %8175 = vmatprep.subr.bf16.mxu0 0
    %8176 = vmatpush1.bf16.msra.mxu0 %v8151
    %8177 = vmatprep.subr.bf16.mxu0 0
    %8178 = vmatpush2.bf16.msra.mxu0 0
    %8179 = vmatprep.subr.bf16.mxu0 0
    %8180 = vmatpush2.bf16.msra.mxu0 0
    %8181 = vmatprep.subr.bf16.mxu0 0
    %8182 = vmatpush2.bf16.msra.mxu0 0
    %8183 = vmatprep.subr.bf16.mxu0 0
    %8184 = vmatpush2.bf16.msra.mxu0 0
    %8185 = vmatprep.subr.bf16.mxu0 0
    %8186 = vmatpush2.bf16.msra.mxu0 0
    %8187 = vmatprep.subr.bf16.mxu0 0
    %8188 = vmatpush2.bf16.msra.mxu0 0
    %8189 = vmatprep.subr.bf16.mxu0 0
    %8190 = vmatpush2.bf16.msra.mxu0 0
    %8191 = vmatprep.subr.bf16.mxu0 0
    %8192 = vmatpush2.bf16.msra.mxu0 0
    %8193 = vmatprep.mubr.bf16.mxu0 0
    %8194 = vmatmul.mubr.bf16.gmra.mxu0 %v8047
    %v8195 = vpop.f32.mrf.mxu0
    %v8196 = vadd.f32 %v8159, %v8195
    %v8197 = vpop.f32.mrf.mxu0
    %v8198 = vpop.f32.mrf.mxu0
    %v8199 = vadd.f32 %v8159, %v8198
    %v8200 = vpop.f32.mrf.mxu0
    %8201 = vdwg.mxu0
    %8202 = vxpose.xlu0.b32.start [1/16] %v8140, 128
    %8203 = vxpose.xlu0.b32.cont [2/16] %v8143, 128
    %8204 = vxpose.xlu0.b32.cont [3/16] 0.0, 128
    %8205 = vxpose.xlu0.b32.cont [4/16] 0.0, 128
    %8206 = vxpose.xlu0.b32.cont [5/16] 0.0, 128
    %8207 = vxpose.xlu0.b32.cont [6/16] 0.0, 128
    %8208 = vxpose.xlu0.b32.cont [7/16] 0.0, 128
    %8209 = vxpose.xlu0.b32.cont [8/16] 0.0, 128
    %8210 = vxpose.xlu0.b32.cont [9/16] 0.0, 128
    %8211 = vxpose.xlu0.b32.cont [10/16] 0.0, 128
    %8212 = vxpose.xlu0.b32.cont [11/16] 0.0, 128
    %8213 = vxpose.xlu0.b32.cont [12/16] 0.0, 128
    %8214 = vxpose.xlu0.b32.cont [13/16] 0.0, 128
    %8215 = vxpose.xlu0.b32.cont [14/16] 0.0, 128
    %8216 = vxpose.xlu0.b32.cont [15/16] 0.0, 128
    %8217 = vxpose.xlu0.b32.end [16/16] 0.0, 128
    %v8218 = vpop.trf.xlu0
    %v8219 = vpop.trf.xlu0
    %v8220 = vpop.trf.xlu0
    %v8221 = vpop.trf.xlu0
    %v8222 = vpop.trf.xlu0
    %v8223 = vpop.trf.xlu0
    %v8224 = vpop.trf.xlu0
    %v8225 = vpop.trf.xlu0
    %v8226 = vpop.trf.xlu0
    %v8227 = vpop.trf.xlu0
    %v8228 = vpop.trf.xlu0
    %v8229 = vpop.trf.xlu0
    %v8230 = vpop.trf.xlu0
    %v8231 = vpop.trf.xlu0
    %v8232 = vpop.trf.xlu0
    %v8233 = vpop.trf.xlu0
    %v8234 = vpack.c.bf16 %v8087, %v8084
    %v8235 = vpack.c.bf16 %v8219, %v8218
    %v8236 = vpack.c.bf16 %v8221, %v8220
    %v8238 = vsel %vm323, %v8234, 0
    %8240 = vmatprep.subr.bf16.mxu0 0
    %8241 = vmatpush1.bf16.msra.mxu0 0
    %8242 = vmatprep.subr.bf16.mxu0 0
    %8243 = vmatpush1.bf16.msra.mxu0 0
    %8244 = vmatprep.subr.bf16.mxu0 0
    %8245 = vmatpush1.bf16.msra.mxu0 0
    %8246 = vmatprep.subr.bf16.mxu0 0
    %8247 = vmatpush1.bf16.msra.mxu0 0
    %8248 = vmatprep.subr.bf16.mxu0 0
    %8249 = vmatpush1.bf16.msra.mxu0 0
    %8250 = vmatprep.subr.bf16.mxu0 0
    %8251 = vmatpush1.bf16.msra.mxu0 0
    %8252 = vmatprep.subr.bf16.mxu0 0
    %8253 = vmatpush1.bf16.msra.mxu0 %v8236
    %8254 = vmatprep.subr.bf16.mxu0 0
    %8255 = vmatpush1.bf16.msra.mxu0 %v8235
    %8256 = vmatprep.subr.bf16.mxu0 0
    %8257 = vmatpush2.bf16.msra.mxu0 0
    %8258 = vmatprep.subr.bf16.mxu0 0
    %8259 = vmatpush2.bf16.msra.mxu0 0
    %8260 = vmatprep.subr.bf16.mxu0 0
    %8261 = vmatpush2.bf16.msra.mxu0 0
    %8262 = vmatprep.subr.bf16.mxu0 0
    %8263 = vmatpush2.bf16.msra.mxu0 0
    %8264 = vmatprep.subr.bf16.mxu0 0
    %8265 = vmatpush2.bf16.msra.mxu0 0
    %8266 = vmatprep.subr.bf16.mxu0 0
    %8267 = vmatpush2.bf16.msra.mxu0 0
    %8268 = vmatprep.subr.bf16.mxu0 0
    %8269 = vmatpush2.bf16.msra.mxu0 0
    %8270 = vmatprep.subr.bf16.mxu0 0
    %8271 = vmatpush2.bf16.msra.mxu0 0
    %8272 = vmatprep.mubr.bf16.mxu0 0
    %8273 = vmatmul.mubr.bf16.gmra.mxu0 %v8238
    %v8274 = vpop.f32.mrf.mxu0
    %v8275 = vadd.f32 0.0, %v8274
    %v8276 = vpop.f32.mrf.mxu0
    %v8277 = vpop.f32.mrf.mxu0
    %v8278 = vadd.f32 0.0, %v8277
    %v8279 = vpop.f32.mrf.mxu0
    %8280 = vdwg.mxu0
    %v8281 = vmul.f32 %v8275, 0.17677669
    %v8282 = vmul.f32 %v8278, 0.17677669
    %v8283 = vadd.f32 %v8281, %v6863
    %v8284 = vadd.f32 %v8282, %v6864
    %v8285 = vsel %vm6235, %v8283, -inf
    %8286 = vmax.xlane.f32.xlu0 %v8285
    %v8287 = vpop.xlane.xlu0 %8286
    %v8288 = vsel %vm6235, %v8284, -inf
    %8289 = vmax.xlane.f32.xlu0 %v8288
    %v8290 = vpop.xlane.xlu0 %8289
    %v8291 = vsub.f32 %v8283, %v8287
    %v8292 = vsub.f32 %v8284, %v8290
    %v8293 = vmin.f32 %v8291, 0.0
    %v8294 = vmin.f32 %v8292, 0.0
    %v8295 = vmul.f32 %v8293, 1.442695
    %v8296 = vpow.pop %v8295
    %v8297 = vmul.f32 %v8294, 1.442695
    %v8298 = vpow.pop %v8297
    %v8299 = vsel %vm6235, %v8296, 0.0
    %8300 = vadd.xlane.f32.xlu0 %v8299
    %v8301 = vpop.xlane.xlu0 %8300
    %v8302 = vsel %vm6235, %v8298, 0.0
    %8303 = vadd.xlane.f32.xlu0 %v8302
    %v8304 = vpop.xlane.xlu0 %8303
    %v8305 = vrcp.pop %v8301
    %v8306 = vmul.f32 %v8296, %v8305
    %v8307 = vrcp.pop %v8304
    %v8308 = vmul.f32 %v8298, %v8307
    %v8309 = vpack.c.bf16 %v8308, %v8306
    %v8310 = vpack.c.bf16 %v8199, %v8196
    %v8312 = vsel %vm6235, %v8309, 0
    %8314 = vmatprep.subr.bf16.mxu0 0
    %8315 = vmatpush1.bf16.msra.mxu0 0
    %8316 = vmatprep.subr.bf16.mxu0 0
    %8317 = vmatpush1.bf16.msra.mxu0 0
    %8318 = vmatprep.subr.bf16.mxu0 0
    %8319 = vmatpush1.bf16.msra.mxu0 0
    %8320 = vmatprep.subr.bf16.mxu0 0
    %8321 = vmatpush1.bf16.msra.mxu0 0
    %8322 = vmatprep.subr.bf16.mxu0 0
    %8323 = vmatpush1.bf16.msra.mxu0 0
    %8324 = vmatprep.subr.bf16.mxu0 0
    %8325 = vmatpush1.bf16.msra.mxu0 0
    %8326 = vmatprep.subr.bf16.mxu0 0
    %8327 = vmatpush1.bf16.msra.mxu0 0
    %8328 = vmatprep.subr.bf16.mxu0 0
    %8329 = vmatpush1.bf16.msra.mxu0 %v8310
    %8330 = vmatprep.subr.bf16.mxu0 0
    %8331 = vmatpush2.bf16.msra.mxu0 0
    %8332 = vmatprep.subr.bf16.mxu0 0
    %8333 = vmatpush2.bf16.msra.mxu0 0
    %8334 = vmatprep.subr.bf16.mxu0 0
    %8335 = vmatpush2.bf16.msra.mxu0 0
    %8336 = vmatprep.subr.bf16.mxu0 0
    %8337 = vmatpush2.bf16.msra.mxu0 0
    %8338 = vmatprep.subr.bf16.mxu0 0
    %8339 = vmatpush2.bf16.msra.mxu0 0
    %8340 = vmatprep.subr.bf16.mxu0 0
    %8341 = vmatpush2.bf16.msra.mxu0 0
    %8342 = vmatprep.subr.bf16.mxu0 0
    %8343 = vmatpush2.bf16.msra.mxu0 0
    %8344 = vmatprep.subr.bf16.mxu0 0
    %8345 = vmatpush2.bf16.msra.mxu0 0
    %8346 = vmatprep.mubr.bf16.mxu0 0
    %8347 = vmatmul.mubr.bf16.gmra.mxu0 %v8312
    %v8348 = vpop.f32.mrf.mxu0
    %v8349 = vadd.f32 0.0, %v8348
    %v8350 = vpop.f32.mrf.mxu0
    %v8351 = vpop.f32.mrf.mxu0
    %v8352 = vadd.f32 0.0, %v8351
    %v8353 = vpop.f32.mrf.mxu0
    %8354 = vdwg.mxu0
    %s8355 = scalar_lea.vmem %s43, 480
    %v8356 = vld [vmem:[%s8355] sm:$0xff]
    %v8357 = vld [vmem:[%s8355 + $0x8] sm:$0xff]
    %v8358 = vld [vmem:[%s8355 + $0x10] sm:$0xff]
    %v8359 = vld [vmem:[%s8355 + $0x18] sm:$0xff]
    %v8360 = vpack.c.bf16 %v8352, %v8349
    %v8361 = vpack.c.bf16 %v8357, %v8356
    %v8362 = vpack.c.bf16 %v8359, %v8358
    %v8364 = vsel %vm323, %v8360, 0
    %8366 = vmatprep.subr.bf16.mxu0 0
    %8367 = vmatpush1.bf16.msra.mxu0 0
    %8368 = vmatprep.subr.bf16.mxu0 0
    %8369 = vmatpush1.bf16.msra.mxu0 0
    %8370 = vmatprep.subr.bf16.mxu0 0
    %8371 = vmatpush1.bf16.msra.mxu0 0
    %8372 = vmatprep.subr.bf16.mxu0 0
    %8373 = vmatpush1.bf16.msra.mxu0 0
    %8374 = vmatprep.subr.bf16.mxu0 0
    %8375 = vmatpush1.bf16.msra.mxu0 0
    %8376 = vmatprep.subr.bf16.mxu0 0
    %8377 = vmatpush1.bf16.msra.mxu0 0
    %8378 = vmatprep.subr.bf16.mxu0 0
    %8379 = vmatpush1.bf16.msra.mxu0 %v8362
    %8380 = vmatprep.subr.bf16.mxu0 0
    %8381 = vmatpush1.bf16.msra.mxu0 %v8361
    %8382 = vmatprep.subr.bf16.mxu0 0
    %8383 = vmatpush2.bf16.msra.mxu0 0
    %8384 = vmatprep.subr.bf16.mxu0 0
    %8385 = vmatpush2.bf16.msra.mxu0 0
    %8386 = vmatprep.subr.bf16.mxu0 0
    %8387 = vmatpush2.bf16.msra.mxu0 0
    %8388 = vmatprep.subr.bf16.mxu0 0
    %8389 = vmatpush2.bf16.msra.mxu0 0
    %8390 = vmatprep.subr.bf16.mxu0 0
    %8391 = vmatpush2.bf16.msra.mxu0 0
    %8392 = vmatprep.subr.bf16.mxu0 0
    %8393 = vmatpush2.bf16.msra.mxu0 0
    %8394 = vmatprep.subr.bf16.mxu0 0
    %8395 = vmatpush2.bf16.msra.mxu0 0
    %8396 = vmatprep.subr.bf16.mxu0 0
    %8397 = vmatpush2.bf16.msra.mxu0 0
    %8398 = vmatprep.mubr.bf16.mxu0 0
    %8399 = vmatmul.mubr.bf16.gmra.mxu0 %v8364
    %v8400 = vpop.f32.mrf.mxu0
    %v8401 = vadd.f32 0.0, %v8400
    %v8402 = vpop.f32.mrf.mxu0
    %v8403 = vpop.f32.mrf.mxu0
    %v8404 = vadd.f32 0.0, %v8403
    %v8405 = vpop.f32.mrf.mxu0
    %8406 = vdwg.mxu0
    %v8407 = vadd.f32 %v8028, %v8401
    %v8408 = vadd.f32 %v8029, %v8404
    %s8409 = scalar_lea.vmem %s45, 15
    %v8410 = vld [vmem:[%s8409] sm:$0x1]
    %v8412 = vlaneseq
    %v8413 = vshrl.u32 %v8412, 7
    %v8414 = vsub.s32 0, %v8413
    %v8415 = vrot.slane %v8410, %v8414
    %v8417 = vadd.f32 %v8407, %v8415
    %v8418 = vadd.f32 %v8408, %v8415
    %v8419 = vld [vmem:[%s63] sm:$0xff]
    %v8420 = vld [vmem:[%s63 + $0x8] sm:$0xff]
    %v8421 = vld [vmem:[%s63 + $0x10] sm:$0xff]
    %v8422 = vld [vmem:[%s63 + $0x18] sm:$0xff]
    %v8423 = vpack.c.bf16 %v8418, %v8417
    %v8424 = vpack.c.bf16 %v8420, %v8419
    %v8425 = vpack.c.bf16 %v8422, %v8421
    %v8426 = vld [vmem:[%s65] sm:$0x1]
    %v8428 = vlaneseq
    %v8429 = vshrl.u32 %v8428, 7
    %v8430 = vsub.s32 0, %v8429
    %v8431 = vrot.slane %v8426, %v8430
    %v8434 = vsel %vm323, %v8423, 0
    %8436 = vmatprep.subr.bf16.mxu0 0
    %8437 = vmatpush1.bf16.msra.mxu0 0
    %8438 = vmatprep.subr.bf16.mxu0 0
    %8439 = vmatpush1.bf16.msra.mxu0 0
    %8440 = vmatprep.subr.bf16.mxu0 0
    %8441 = vmatpush1.bf16.msra.mxu0 0
    %8442 = vmatprep.subr.bf16.mxu0 0
    %8443 = vmatpush1.bf16.msra.mxu0 0
    %8444 = vmatprep.subr.bf16.mxu0 0
    %8445 = vmatpush1.bf16.msra.mxu0 0
    %8446 = vmatprep.subr.bf16.mxu0 0
    %8447 = vmatpush1.bf16.msra.mxu0 0
    %8448 = vmatprep.subr.bf16.mxu0 0
    %8449 = vmatpush1.bf16.msra.mxu0 %v8425
    %8450 = vmatprep.subr.bf16.mxu0 0
    %8451 = vmatpush1.bf16.msra.mxu0 %v8424
    %8452 = vmatprep.subr.bf16.mxu0 0
    %8453 = vmatpush2.bf16.msra.mxu0 0
    %8454 = vmatprep.subr.bf16.mxu0 0
    %8455 = vmatpush2.bf16.msra.mxu0 0
    %8456 = vmatprep.subr.bf16.mxu0 0
    %8457 = vmatpush2.bf16.msra.mxu0 0
    %8458 = vmatprep.subr.bf16.mxu0 0
    %8459 = vmatpush2.bf16.msra.mxu0 0
    %8460 = vmatprep.subr.bf16.mxu0 0
    %8461 = vmatpush2.bf16.msra.mxu0 0
    %8462 = vmatprep.subr.bf16.mxu0 0
    %8463 = vmatpush2.bf16.msra.mxu0 0
    %8464 = vmatprep.subr.bf16.mxu0 0
    %8465 = vmatpush2.bf16.msra.mxu0 0
    %8466 = vmatprep.subr.bf16.mxu0 0
    %8467 = vmatpush2.bf16.msra.mxu0 0
    %8468 = vmatprep.mubr.bf16.mxu0 0
    %8469 = vmatmul.mubr.bf16.gmra.mxu0 %v8434
    %v8470 = vpop.f32.mrf.mxu0
    %v8471 = vadd.f32 %v8431, %v8470
    %v8472 = vpop.f32.mrf.mxu0
    %v8473 = vpop.f32.mrf.mxu0
    %v8474 = vadd.f32 %v8431, %v8473
    %v8475 = vpop.f32.mrf.mxu0
    %8476 = vdwg.mxu0
    %v8477 = vld [vmem:[%s3] sm:$0xff]
    %v8478 = vld [vmem:[%s3 + $0x8] sm:$0xff]
    %v8479 = vadd.f32 %v8471, %v8477
    %v8480 = vadd.f32 %v8474, %v8478
    %8481 = vst.msk [vmem:[#allocation2] sm:$0xff] %vm157, %v8479
    %8482 = vst.msk [vmem:[#allocation2 + $0x8] sm:$0xff] %vm157, %v8480
    // Predicated region
    $region134: #{forward.1} parent=1 // pred_check
      _
    $region135: #{forward.1} parent=1 // pred_check_branch
      %8484 = sbr.rel (0) target = $region137
    $region136: #{forward.1} parent=1 // pred_region
      %s8486 = ssub.s32 256, 256
      %8487 = vsyncadd [#allocation3], %s8486
      %s8488 = sshll.u32 [#allocation2], 4
      %s8489 = int_to_ptr.vmem [resolvable:$true] %s8488
      %8494 = dma.vmem_to_hbm [thread:$0]  %s8489, 256, %s67, [#allocation3], 128, 128, 8
    $region137: #{forward.1} parent=1 // pred_fallthru
      _
    // Predicated region
    $region138: #{forward.1} parent=1 // pred_check
      _
    $region139: #{forward.1} parent=1 // pred_check_branch
      %8496 = sbr.rel (0) target = $region141
    $region140: #{forward.1} parent=1 // pred_region
      %8497 = dma.done [#allocation3], 256
    $region141: #{forward.1} parent=1 // pred_fallthru
      _
    %8498 = vsyncpa [#allocation3], 1

</llo_original>
